<compile_context>
chip_gen: v7x
topology: tpu7x:2x2x1
jax: 0.10.0
libtpu: 0.0.40
codegen_flags: <defaults>
</compile_context>

<pallas_src>
import jax
import jax.numpy as jnp
from jax import lax
from jax.experimental import pallas as pl
from jax.experimental.pallas import tpu as pltpu

LANE = 128     # channel lane width; all channel dims are zero-padded to this
_EPS = 1e-5


def _round_up(x, m):
    return (x + m - 1) // m * m


def _vmem_limit_bytes():
    try:
        cap = int(pltpu.get_tpu_info().vmem_capacity_bytes)
    except Exception:
        cap = 64 * 1024 * 1024
    # half of physical VMEM: 64 MiB on v5e/v6e (128 MiB), 32 MiB on v7x (64 MiB)
    return int(min(cap // 2, 64 * 1024 * 1024))


_VMEM_LIMIT = _vmem_limit_bytes()


# ---------------------------------------------------------------------------
# Shared conv body: im2col into VMEM scratch -> one MXU matmul -> bf16 y,
# f32 per-channel sum / sum-of-squares (this grid step's batch image only).
# ---------------------------------------------------------------------------
def _conv_from_padded(read_tap, w_ref, y_ref, sum_ref, ssq_ref, patches_ref, H, W, C):
    for di in range(3):
        for dj in range(3):
            t = di * 3 + dj
            patches_ref[:, t * C:(t + 1) * C] = read_tap(di, dj)
    acc = jnp.dot(patches_ref[...], w_ref[...], preferred_element_type=jnp.float32)
    y_ref[0] = acc.astype(y_ref.dtype)
    sum_ref[0] = jnp.sum(acc, axis=0, keepdims=True)
    ssq_ref[0] = jnp.sum(acc * acc, axis=0, keepdims=True)


# Kernel 1: conv3x3 (padding=1, no bias) + per-batch BN partial stats.
def _conv1_kernel(xp_ref, w_ref, y_ref, sum_ref, ssq_ref, patches_ref):
    H = xp_ref.shape[1] - 2
    W = xp_ref.shape[2] - 2
    C = xp_ref.shape[3]

    def read_tap(di, dj):
        return xp_ref[0, di:di + H, dj:dj + W, :].reshape(H * W, C)

    _conv_from_padded(read_tap, w_ref, y_ref, sum_ref, ssq_ref, patches_ref, H, W, C)


# Kernel 2: fused [BN1 apply + ReLU -> zero-halo pad in VMEM -> conv3x3] +
# per-batch BN2 partial stats.
def _bn_relu_conv_kernel(y1_ref, scale_ref, shift_ref, w_ref,
                         y2_ref, sum_ref, ssq_ref, xpad_ref, patches_ref):
    Hp2, Wp2, C = xpad_ref.shape
    H, W = Hp2 - 2, Wp2 - 2
    # The conv halo must stay exactly 0 (an affine would map 0 -> max(shift,0)),
    # so zero the padded scratch and only write the interior with affine+ReLU.
    xpad_ref[...] = jnp.zeros_like(xpad_ref)
    a = jnp.maximum(
        y1_ref[0].astype(jnp.float32) * scale_ref[...] + shift_ref[...], 0.0)
    xpad_ref[1:H + 1, 1:W + 1, :] = a.astype(xpad_ref.dtype).reshape(H, W, C)

    def read_tap(di, dj):
        return xpad_ref[di:di + H, dj:dj + W, :].reshape(H * W, C)

    _conv_from_padded(read_tap, w_ref, y2_ref, sum_ref, ssq_ref, patches_ref, H, W, C)


# Kernel 3: final BN apply (precomputed scale/shift) + ReLU on (tm, 128) tiles.
def _bn_relu_kernel(y_ref, scale_ref, shift_ref, o_ref):
    o_ref[...] = jnp.maximum(
        y_ref[...].astype(jnp.float32) * scale_ref[...] + shift_ref[...], 0.0
    ).astype(o_ref.dtype)


# ---------------------------------------------------------------------------
# Host-side helpers.
# ---------------------------------------------------------------------------
def _im2col_weight(weight, C):
    cout, cin, kh, kw = weight.shape
    w = jnp.transpose(weight, (2, 3, 1, 0))                      # (3,3,Cin,Cout)
    w = jnp.pad(w, ((0, 0), (0, 0), (0, C - cin), (0, C - cout)))
    return w.reshape(kh * kw * C, C).astype(jnp.bfloat16)


def _pad_channels(v, C, fill):
    n = v.shape[0]
    return jnp.concatenate(
        [v.astype(jnp.float32), jnp.full((C - n,), fill, jnp.float32)])


def _bn_scale_shift(psum, pssq, gamma_p, beta_p, count):
    s = jnp.sum(psum, axis=(0, 1))
    q = jnp.sum(pssq, axis=(0, 1))
    mean = s / count
    var = jnp.maximum(q / count - mean * mean, 0.0)  # guard one-pass cancellation
    scale = gamma_p * lax.rsqrt(var + _EPS)
    shift = beta_p - mean * scale
    C = s.shape[0]
    return scale.reshape(1, C), shift.reshape(1, C)


# ---------------------------------------------------------------------------
# DoubleConv forward: NCHW in, NCHW out (matches the PyTorch module).
# ---------------------------------------------------------------------------
@jax.jit
def double_conv_forward(x_nchw, params):
    w1, g1, b1, w2, g2, b2 = params
    B, Cin, H, W = x_nchw.shape
    Cmid, Cout = w1.shape[0], w2.shape[0]
    C = LANE
    if max(Cin, Cmid, Cout) > C:
        raise NotImplementedError("TODO(synk): channel tiling for C > 128")
    M = B * H * W

    # NCHW -> NHWC, zero-pad channels to the lane width and the 1-px conv halo.
    # TODO(synk): the first stage's halo pad is still one small host jnp.pad;
    # stage 2's halo is handled fully in-kernel.
    x = jnp.transpose(x_nchw, (0, 2, 3, 1))
    xp = jnp.pad(x, ((0, 0), (1, 1), (1, 1), (0, C - Cin))).astype(jnp.bfloat16)

    w1i = _im2col_weight(w1, C)
    w2i = _im2col_weight(w2, C)

    conv_cost = pl.CostEstimate(
        flops=2 * M * (9 * C) * C, transcendentals=0,
        bytes_accessed=xp.size * 2 + w1i.size * 2 + M * C * 2 + 2 * B * C * 4)

    # ---- stage 1: conv 3x3 + per-batch BN partial stats ----------------------
    y1, s1, q1 = pl.pallas_call(
        _conv1_kernel,
        out_shape=(
            jax.ShapeDtypeStruct((B, H * W, C), jnp.bfloat16),
            jax.ShapeDtypeStruct((B, 1, C), jnp.float32),
            jax.ShapeDtypeStruct((B, 1, C), jnp.float32),
        ),
        grid=(B,),
        in_specs=[
            pl.BlockSpec((1, H + 2, W + 2, C), lambda b: (b, 0, 0, 0)),
            pl.BlockSpec((9 * C, C), lambda b: (0, 0)),
        ],
        out_specs=(
            pl.BlockSpec((1, H * W, C), lambda b: (b, 0, 0)),
            pl.BlockSpec((1, 1, C), lambda b: (b, 0, 0)),
            pl.BlockSpec((1, 1, C), lambda b: (b, 0, 0)),
        ),
        scratch_shapes=[pltpu.VMEM((H * W, 9 * C), jnp.bfloat16)],
        compiler_params=pltpu.CompilerParams(
            dimension_semantics=("parallel",), vmem_limit_bytes=_VMEM_LIMIT),
        cost_estimate=conv_cost,
    )(xp, w1i)

    scale1, shift1 = _bn_scale_shift(
        s1, q1, _pad_channels(g1, C, 1.0), _pad_channels(b1, C, 0.0), float(M))

    # ---- stage 2: fused BN1 apply + ReLU + conv 3x3 + BN2 partial stats ------
    fused_cost = pl.CostEstimate(
        flops=2 * M * (9 * C) * C + 4 * M * C, transcendentals=0,
        bytes_accessed=M * C * 2 + w2i.size * 2 + M * C * 2 + 2 * B * C * 4 + 4 * C * 4)

    y2, s2, q2 = pl.pallas_call(
        _bn_relu_conv_kernel,
        out_shape=(
            jax.ShapeDtypeStruct((B, H * W, C), jnp.bfloat16),
            jax.ShapeDtypeStruct((B, 1, C), jnp.float32),
            jax.ShapeDtypeStruct((B, 1, C), jnp.float32),
        ),
        grid=(B,),
        in_specs=[
            pl.BlockSpec((1, H * W, C), lambda b: (b, 0, 0)),
            pl.BlockSpec((1, C), lambda b: (0, 0)),
            pl.BlockSpec((1, C), lambda b: (0, 0)),
            pl.BlockSpec((9 * C, C), lambda b: (0, 0)),
        ],
        out_specs=(
            pl.BlockSpec((1, H * W, C), lambda b: (b, 0, 0)),
            pl.BlockSpec((1, 1, C), lambda b: (b, 0, 0)),
            pl.BlockSpec((1, 1, C), lambda b: (b, 0, 0)),
        ),
        scratch_shapes=[
            pltpu.VMEM((H + 2, W + 2, C), jnp.bfloat16),
            pltpu.VMEM((H * W, 9 * C), jnp.bfloat16),
        ],
        compiler_params=pltpu.CompilerParams(
            dimension_semantics=("parallel",), vmem_limit_bytes=_VMEM_LIMIT),
        cost_estimate=fused_cost,
    )(y1, scale1, shift1, w2i)

    scale2, shift2 = _bn_scale_shift(
        s2, q2, _pad_channels(g2, C, 1.0), _pad_channels(b2, C, 0.0), float(M))

    # ---- stage 3: final BN2 apply + ReLU on lane-dense (tm, 128) tiles -------
    y2_flat = y2.reshape(M, C)
    tm = min(_round_up(M, 8), 4096)
    Mp = _round_up(M, tm)
    if Mp != M:
        y2_flat = jnp.pad(y2_flat, ((0, Mp - M), (0, 0)))

    bn_cost = pl.CostEstimate(
        flops=3 * M * C, transcendentals=0,
        bytes_accessed=M * C * 2 + M * C * 4 + 2 * C * 4)

    out_flat = pl.pallas_call(
        _bn_relu_kernel,
        out_shape=jax.ShapeDtypeStruct((Mp, C), jnp.float32),
        grid=(Mp // tm,),
        in_specs=[
            pl.BlockSpec((tm, C), lambda i: (i, 0)),
            pl.BlockSpec((1, C), lambda i: (0, 0)),
            pl.BlockSpec((1, C), lambda i: (0, 0)),
        ],
        out_specs=pl.BlockSpec((tm, C), lambda i: (i, 0)),
        compiler_params=pltpu.CompilerParams(
            dimension_semantics=("parallel",), vmem_limit_bytes=_VMEM_LIMIT),
        cost_estimate=bn_cost,
    )(y2_flat, scale2, shift2)

    out = out_flat[:M, :Cout].reshape(B, H, W, Cout)
    return jnp.transpose(out, (0, 3, 1, 2))


# ---------------------------------------------------------------------------
# Pure-JAX reference mirroring the kernel's dtype choices.
# ---------------------------------------------------------------------------
def _reference_double_conv(x_nchw, params):
    w1, g1, b1, w2, g2, b2 = params

    def conv(x_nhwc, w):
        wb = jnp.transpose(w, (2, 3, 1, 0)).astype(jnp.bfloat16).astype(jnp.float32)
        return lax.conv_general_dilated(
            x_nhwc, wb, (1, 1), ((1, 1), (1, 1)),
            dimension_numbers=("NHWC", "HWIO", "NHWC"),
            precision=lax.Precision.HIGHEST)

    def bn_relu(y, g, b, to_bf16):
        mean = jnp.mean(y, axis=(0, 1, 2))
        var = jnp.mean(jnp.square(y - mean), axis=(0, 1, 2))
        scale = g * lax.rsqrt(var + _EPS)
        shift = b - mean * scale
        yb = y.astype(jnp.bfloat16).astype(jnp.float32)   # kernel stores conv out in bf16
        a = jnp.maximum(yb * scale + shift, 0.0)
        if to_bf16:
            a = a.astype(jnp.bfloat16).astype(jnp.float32)
        return a

    x = jnp.transpose(x_nchw, (0, 2, 3, 1)).astype(jnp.bfloat16).astype(jnp.float32)
    a1 = bn_relu(conv(x, w1), g1, b1, to_bf16=True)
    a2 = bn_relu(conv(a1, w2), g2, b2, to_bf16=False)
    return jnp.transpose(a2, (0, 3, 1, 2))


if __name__ == "__main__":
    # DoubleConv(in_channels=4, out_channels=32) on a (2, 4, 16, 16) input.
    B, Cin, Cout, H, W = 2, 4, 32, 16, 16
    Cmid = Cout  # mid_channels defaults to out_channels

    key = jax.random.PRNGKey(0)
    kx, kw1, kg1, kb1, kw2, kg2, kb2 = jax.random.split(key, 7)
    x = jax.random.normal(kx, (B, Cin, H, W), jnp.float32)
    params = (
        jax.random.normal(kw1, (Cmid, Cin, 3, 3), jnp.float32) / jnp.sqrt(9.0 * Cin),
        1.0 + 0.1 * jax.random.normal(kg1, (Cmid,), jnp.float32),
        0.1 * jax.random.normal(kb1, (Cmid,), jnp.float32),
        jax.random.normal(kw2, (Cout, Cmid, 3, 3), jnp.float32) / jnp.sqrt(9.0 * Cmid),
        1.0 + 0.1 * jax.random.normal(kg2, (Cout,), jnp.float32),
        0.1 * jax.random.normal(kb2, (Cout,), jnp.float32),
    )

    out = jax.block_until_ready(double_conv_forward(x, params))
    assert out.shape == (B, Cout, H, W), out.shape
    assert bool(jnp.all(jnp.isfinite(out)))

    ref = jax.block_until_ready(_reference_double_conv(x, params))
    max_err = float(jnp.max(jnp.abs(out - ref)))
    assert max_err < 2e-2, f"max abs error vs reference: {max_err}"

    print("KERNEL_OK")
</pallas_src>

<mosaic_0001>
module attributes {stable_mosaic.version = 11 : i64} {
  func.func @_conv1_kernel(%arg0: i32, %arg1: memref<1x18x18x128xbf16, #tpu.memory_space<vmem>>, %arg2: memref<1152x128xbf16, #tpu.memory_space<vmem>>, %arg3: memref<1x256x128xbf16, #tpu.memory_space<vmem>>, %arg4: memref<1x1x128xf32, #tpu.memory_space<vmem>>, %arg5: memref<1x1x128xf32, #tpu.memory_space<vmem>>, %arg6: memref<256x1152xbf16, #tpu.memory_space<vmem>>) attributes {dimension_semantics = [#tpu.dimension_semantics<parallel>], iteration_bounds = array<i64: 2>, scalar_prefetch = 0 : i64, scratch_operands = 1 : i64, tpu.core_type = #tpu.core_type<tc>, window_params = [{transform_indices = @transform_0, window_bounds = array<i64: 1, 18, 18, 128>}, {pipeline_mode = #tpu.pipeline_mode<synchronous>, transform_indices = @transform_1, window_bounds = array<i64: 1152, 128>}, {transform_indices = @transform_2, window_bounds = array<i64: 1, 256, 128>}, {transform_indices = @transform_3, window_bounds = array<i64: 1, 1, 128>}, {transform_indices = @transform_4, window_bounds = array<i64: 1, 1, 128>}]} {
    %c0 = arith.constant 0 : index
    %c0_0 = arith.constant 0 : index
    %c0_1 = arith.constant 0 : index
    %c0_2 = arith.constant 0 : index
    %0 = vector.load %arg1[%c0, %c0_0, %c0_1, %c0_2] : memref<1x18x18x128xbf16, #tpu.memory_space<vmem>>, vector<1x16x16x128xbf16>
    %1 = vector.shape_cast %0 : vector<1x16x16x128xbf16> to vector<16x16x128xbf16>
    %2 = vector.shape_cast %1 : vector<16x16x128xbf16> to vector<256x128xbf16>
    %c0_3 = arith.constant 0 : index
    %c0_4 = arith.constant 0 : index
    %3 = vector.load %arg6[%c0_3, %c0_4] : memref<256x1152xbf16, #tpu.memory_space<vmem>>, vector<256x128xbf16>
    tpu.vector_store %arg6[%c0_3, %c0_4], %2 {strides = array<i32>} : memref<256x1152xbf16, #tpu.memory_space<vmem>>, vector<256x128xbf16>,
    %c0_5 = arith.constant 0 : index
    %c0_6 = arith.constant 0 : index
    %c1 = arith.constant 1 : index
    %c0_7 = arith.constant 0 : index
    %4 = vector.load %arg1[%c0_5, %c0_6, %c1, %c0_7] : memref<1x18x18x128xbf16, #tpu.memory_space<vmem>>, vector<1x16x16x128xbf16>
    %5 = vector.shape_cast %4 : vector<1x16x16x128xbf16> to vector<16x16x128xbf16>
    %6 = vector.shape_cast %5 : vector<16x16x128xbf16> to vector<256x128xbf16>
    %c0_8 = arith.constant 0 : index
    %c128 = arith.constant 128 : index
    %7 = vector.load %arg6[%c0_8, %c128] : memref<256x1152xbf16, #tpu.memory_space<vmem>>, vector<256x128xbf16>
    tpu.vector_store %arg6[%c0_8, %c128], %6 {strides = array<i32>} : memref<256x1152xbf16, #tpu.memory_space<vmem>>, vector<256x128xbf16>,
    %c0_9 = arith.constant 0 : index
    %c0_10 = arith.constant 0 : index
    %c2 = arith.constant 2 : index
    %c0_11 = arith.constant 0 : index
    %8 = vector.load %arg1[%c0_9, %c0_10, %c2, %c0_11] : memref<1x18x18x128xbf16, #tpu.memory_space<vmem>>, vector<1x16x16x128xbf16>
    %9 = vector.shape_cast %8 : vector<1x16x16x128xbf16> to vector<16x16x128xbf16>
    %10 = vector.shape_cast %9 : vector<16x16x128xbf16> to vector<256x128xbf16>
    %c0_12 = arith.constant 0 : index
    %c256 = arith.constant 256 : index
    %11 = vector.load %arg6[%c0_12, %c256] : memref<256x1152xbf16, #tpu.memory_space<vmem>>, vector<256x128xbf16>
    tpu.vector_store %arg6[%c0_12, %c256], %10 {strides = array<i32>} : memref<256x1152xbf16, #tpu.memory_space<vmem>>, vector<256x128xbf16>,
    %c0_13 = arith.constant 0 : index
    %c1_14 = arith.constant 1 : index
    %c0_15 = arith.constant 0 : index
    %c0_16 = arith.constant 0 : index
    %12 = vector.load %arg1[%c0_13, %c1_14, %c0_15, %c0_16] : memref<1x18x18x128xbf16, #tpu.memory_space<vmem>>, vector<1x16x16x128xbf16>
    %13 = vector.shape_cast %12 : vector<1x16x16x128xbf16> to vector<16x16x128xbf16>
    %14 = vector.shape_cast %13 : vector<16x16x128xbf16> to vector<256x128xbf16>
    %c0_17 = arith.constant 0 : index
    %c384 = arith.constant 384 : index
    %15 = vector.load %arg6[%c0_17, %c384] : memref<256x1152xbf16, #tpu.memory_space<vmem>>, vector<256x128xbf16>
    tpu.vector_store %arg6[%c0_17, %c384], %14 {strides = array<i32>} : memref<256x1152xbf16, #tpu.memory_space<vmem>>, vector<256x128xbf16>,
    %c0_18 = arith.constant 0 : index
    %c1_19 = arith.constant 1 : index
    %c1_20 = arith.constant 1 : index
    %c0_21 = arith.constant 0 : index
    %16 = vector.load %arg1[%c0_18, %c1_19, %c1_20, %c0_21] : memref<1x18x18x128xbf16, #tpu.memory_space<vmem>>, vector<1x16x16x128xbf16>
    %17 = vector.shape_cast %16 : vector<1x16x16x128xbf16> to vector<16x16x128xbf16>
    %18 = vector.shape_cast %17 : vector<16x16x128xbf16> to vector<256x128xbf16>
    %c0_22 = arith.constant 0 : index
    %c512 = arith.constant 512 : index
    %19 = vector.load %arg6[%c0_22, %c512] : memref<256x1152xbf16, #tpu.memory_space<vmem>>, vector<256x128xbf16>
    tpu.vector_store %arg6[%c0_22, %c512], %18 {strides = array<i32>} : memref<256x1152xbf16, #tpu.memory_space<vmem>>, vector<256x128xbf16>,
    %c0_23 = arith.constant 0 : index
    %c1_24 = arith.constant 1 : index
    %c2_25 = arith.constant 2 : index
    %c0_26 = arith.constant 0 : index
    %20 = vector.load %arg1[%c0_23, %c1_24, %c2_25, %c0_26] : memref<1x18x18x128xbf16, #tpu.memory_space<vmem>>, vector<1x16x16x128xbf16>
    %21 = vector.shape_cast %20 : vector<1x16x16x128xbf16> to vector<16x16x128xbf16>
    %22 = vector.shape_cast %21 : vector<16x16x128xbf16> to vector<256x128xbf16>
    %c0_27 = arith.constant 0 : index
    %c640 = arith.constant 640 : index
    %23 = vector.load %arg6[%c0_27, %c640] : memref<256x1152xbf16, #tpu.memory_space<vmem>>, vector<256x128xbf16>
    tpu.vector_store %arg6[%c0_27, %c640], %22 {strides = array<i32>} : memref<256x1152xbf16, #tpu.memory_space<vmem>>, vector<256x128xbf16>,
    %c0_28 = arith.constant 0 : index
    %c2_29 = arith.constant 2 : index
    %c0_30 = arith.constant 0 : index
    %c0_31 = arith.constant 0 : index
    %24 = vector.load %arg1[%c0_28, %c2_29, %c0_30, %c0_31] : memref<1x18x18x128xbf16, #tpu.memory_space<vmem>>, vector<1x16x16x128xbf16>
    %25 = vector.shape_cast %24 : vector<1x16x16x128xbf16> to vector<16x16x128xbf16>
    %26 = vector.shape_cast %25 : vector<16x16x128xbf16> to vector<256x128xbf16>
    %c0_32 = arith.constant 0 : index
    %c768 = arith.constant 768 : index
    %27 = vector.load %arg6[%c0_32, %c768] : memref<256x1152xbf16, #tpu.memory_space<vmem>>, vector<256x128xbf16>
    tpu.vector_store %arg6[%c0_32, %c768], %26 {strides = array<i32>} : memref<256x1152xbf16, #tpu.memory_space<vmem>>, vector<256x128xbf16>,
    %c0_33 = arith.constant 0 : index
    %c2_34 = arith.constant 2 : index
    %c1_35 = arith.constant 1 : index
    %c0_36 = arith.constant 0 : index
    %28 = vector.load %arg1[%c0_33, %c2_34, %c1_35, %c0_36] : memref<1x18x18x128xbf16, #tpu.memory_space<vmem>>, vector<1x16x16x128xbf16>
    %29 = vector.shape_cast %28 : vector<1x16x16x128xbf16> to vector<16x16x128xbf16>
    %30 = vector.shape_cast %29 : vector<16x16x128xbf16> to vector<256x128xbf16>
    %c0_37 = arith.constant 0 : index
    %c896 = arith.constant 896 : index
    %31 = vector.load %arg6[%c0_37, %c896] : memref<256x1152xbf16, #tpu.memory_space<vmem>>, vector<256x128xbf16>
    tpu.vector_store %arg6[%c0_37, %c896], %30 {strides = array<i32>} : memref<256x1152xbf16, #tpu.memory_space<vmem>>, vector<256x128xbf16>,
    %c0_38 = arith.constant 0 : index
    %c2_39 = arith.constant 2 : index
    %c2_40 = arith.constant 2 : index
    %c0_41 = arith.constant 0 : index
    %32 = vector.load %arg1[%c0_38, %c2_39, %c2_40, %c0_41] : memref<1x18x18x128xbf16, #tpu.memory_space<vmem>>, vector<1x16x16x128xbf16>
    %33 = vector.shape_cast %32 : vector<1x16x16x128xbf16> to vector<16x16x128xbf16>
    %34 = vector.shape_cast %33 : vector<16x16x128xbf16> to vector<256x128xbf16>
    %c0_42 = arith.constant 0 : index
    %c1024 = arith.constant 1024 : index
    %35 = vector.load %arg6[%c0_42, %c1024] : memref<256x1152xbf16, #tpu.memory_space<vmem>>, vector<256x128xbf16>
    tpu.vector_store %arg6[%c0_42, %c1024], %34 {strides = array<i32>} : memref<256x1152xbf16, #tpu.memory_space<vmem>>, vector<256x128xbf16>,
    %c0_43 = arith.constant 0 : index
    %c0_44 = arith.constant 0 : index
    %36 = vector.load %arg6[%c0_43, %c0_44] : memref<256x1152xbf16, #tpu.memory_space<vmem>>, vector<256x1152xbf16>
    %c0_45 = arith.constant 0 : index
    %c0_46 = arith.constant 0 : index
    %37 = vector.load %arg2[%c0_45, %c0_46] : memref<1152x128xbf16, #tpu.memory_space<vmem>>, vector<1152x128xbf16>
    %cst = arith.constant dense<0.000000e+00> : vector<256x128xf32>
    %38 = tpu.matmul %36, %37, %cst {dimension_numbers = #tpu.dot_dimension_numbers<[1], [0], [0], [1], [0, 0, 1, 1], [], []>} : vector<256x1152xbf16>, vector<1152x128xbf16>, vector<256x128xf32> -> vector<256x128xf32>
    %39 = arith.truncf %38 : vector<256x128xf32> to vector<256x128xbf16>
    %c0_47 = arith.constant 0 : index
    %c0_48 = arith.constant 0 : index
    %c0_49 = arith.constant 0 : index
    %40 = vector.load %arg3[%c0_47, %c0_48, %c0_49] : memref<1x256x128xbf16, #tpu.memory_space<vmem>>, vector<1x256x128xbf16>
    %41 = vector.shape_cast %40 : vector<1x256x128xbf16> to vector<256x128xbf16>
    %42 = vector.shape_cast %39 : vector<256x128xbf16> to vector<1x256x128xbf16>
    tpu.vector_store %arg3[%c0_47, %c0_48, %c0_49], %42 {strides = array<i32>} : memref<1x256x128xbf16, #tpu.memory_space<vmem>>, vector<1x256x128xbf16>,
    %cst_50 = arith.constant dense<0.000000e+00> : vector<128xf32>
    %43 = vector.multi_reduction <add>, %38, %cst_50 [0] : vector<256x128xf32> to vector<128xf32>
    %44 = vector.shape_cast %43 : vector<128xf32> to vector<1x128xf32>
    %c0_51 = arith.constant 0 : index
    %c0_52 = arith.constant 0 : index
    %c0_53 = arith.constant 0 : index
    %45 = vector.load %arg4[%c0_51, %c0_52, %c0_53] : memref<1x1x128xf32, #tpu.memory_space<vmem>>, vector<1x1x128xf32>
    %46 = vector.shape_cast %45 : vector<1x1x128xf32> to vector<1x128xf32>
    %47 = vector.shape_cast %44 : vector<1x128xf32> to vector<1x1x128xf32>
    tpu.vector_store %arg4[%c0_51, %c0_52, %c0_53], %47 {strides = array<i32>} : memref<1x1x128xf32, #tpu.memory_space<vmem>>, vector<1x1x128xf32>,
    %48 = arith.mulf %38, %38 : vector<256x128xf32>
    %cst_54 = arith.constant dense<0.000000e+00> : vector<128xf32>
    %49 = vector.multi_reduction <add>, %48, %cst_54 [0] : vector<256x128xf32> to vector<128xf32>
    %50 = vector.shape_cast %49 : vector<128xf32> to vector<1x128xf32>
    %c0_55 = arith.constant 0 : index
    %c0_56 = arith.constant 0 : index
    %c0_57 = arith.constant 0 : index
    %51 = vector.load %arg5[%c0_55, %c0_56, %c0_57] : memref<1x1x128xf32, #tpu.memory_space<vmem>>, vector<1x1x128xf32>
    %52 = vector.shape_cast %51 : vector<1x1x128xf32> to vector<1x128xf32>
    %53 = vector.shape_cast %50 : vector<1x128xf32> to vector<1x1x128xf32>
    tpu.vector_store %arg5[%c0_55, %c0_56, %c0_57], %53 {strides = array<i32>} : memref<1x1x128xf32, #tpu.memory_space<vmem>>, vector<1x1x128xf32>,
    return
  }
  func.func @transform_0(%arg0: i32) -> (i32, i32, i32, i32) {
    %c0_i32 = arith.constant 0 : i32
    %c0_i32_0 = arith.constant 0 : i32
    %c0_i32_1 = arith.constant 0 : i32
    %c0_i32_2 = arith.constant 0 : i32
    return %arg0, %c0_i32, %c0_i32_0, %c0_i32_1 : i32, i32, i32, i32
  }
  func.func @transform_1(%arg0: i32) -> (i32, i32) {
    %c0_i32 = arith.constant 0 : i32
    %c0_i32_0 = arith.constant 0 : i32
    %c0_i32_1 = arith.constant 0 : i32
    return %c0_i32, %c0_i32_0 : i32, i32
  }
  func.func @transform_2(%arg0: i32) -> (i32, i32, i32) {
    %c0_i32 = arith.constant 0 : i32
    %c0_i32_0 = arith.constant 0 : i32
    %c0_i32_1 = arith.constant 0 : i32
    return %arg0, %c0_i32, %c0_i32_0 : i32, i32, i32
  }
  func.func @transform_3(%arg0: i32) -> (i32, i32, i32) {
    %c0_i32 = arith.constant 0 : i32
    %c0_i32_0 = arith.constant 0 : i32
    %c0_i32_1 = arith.constant 0 : i32
    return %arg0, %c0_i32, %c0_i32_0 : i32, i32, i32
  }
  func.func @transform_4(%arg0: i32) -> (i32, i32, i32) {
    %c0_i32 = arith.constant 0 : i32
    %c0_i32_0 = arith.constant 0 : i32
    %c0_i32_1 = arith.constant 0 : i32
    return %arg0, %c0_i32, %c0_i32_0 : i32, i32, i32
  }
}

module attributes {stable_mosaic.version = 11 : i64} {
  func.func @_bn_relu_conv_kernel(%arg0: i32, %arg1: memref<1x256x128xbf16, #tpu.memory_space<vmem>>, %arg2: memref<1x128xf32, #tpu.memory_space<vmem>>, %arg3: memref<1x128xf32, #tpu.memory_space<vmem>>, %arg4: memref<1152x128xbf16, #tpu.memory_space<vmem>>, %arg5: memref<1x256x128xbf16, #tpu.memory_space<vmem>>, %arg6: memref<1x1x128xf32, #tpu.memory_space<vmem>>, %arg7: memref<1x1x128xf32, #tpu.memory_space<vmem>>, %arg8: memref<18x18x128xbf16, #tpu.memory_space<vmem>>, %arg9: memref<256x1152xbf16, #tpu.memory_space<vmem>>) attributes {dimension_semantics = [#tpu.dimension_semantics<parallel>], iteration_bounds = array<i64: 2>, scalar_prefetch = 0 : i64, scratch_operands = 2 : i64, tpu.core_type = #tpu.core_type<tc>, window_params = [{transform_indices = @transform_0, window_bounds = array<i64: 1, 256, 128>}, {pipeline_mode = #tpu.pipeline_mode<synchronous>, transform_indices = @transform_1, window_bounds = array<i64: 1, 128>}, {pipeline_mode = #tpu.pipeline_mode<synchronous>, transform_indices = @transform_2, window_bounds = array<i64: 1, 128>}, {pipeline_mode = #tpu.pipeline_mode<synchronous>, transform_indices = @transform_3, window_bounds = array<i64: 1152, 128>}, {transform_indices = @transform_4, window_bounds = array<i64: 1, 256, 128>}, {transform_indices = @transform_5, window_bounds = array<i64: 1, 1, 128>}, {transform_indices = @transform_6, window_bounds = array<i64: 1, 1, 128>}]} {
    %cst = arith.constant 0.000000e+00 : bf16
    %0 = vector.broadcast %cst : bf16 to vector<18x18x128xbf16>
    %c0 = arith.constant 0 : index
    %c0_0 = arith.constant 0 : index
    %c0_1 = arith.constant 0 : index
    %1 = vector.load %arg8[%c0, %c0_0, %c0_1] : memref<18x18x128xbf16, #tpu.memory_space<vmem>>, vector<18x18x128xbf16>
    tpu.vector_store %arg8[%c0, %c0_0, %c0_1], %0 {strides = array<i32>} : memref<18x18x128xbf16, #tpu.memory_space<vmem>>, vector<18x18x128xbf16>,
    %c0_2 = arith.constant 0 : index
    %c0_3 = arith.constant 0 : index
    %c0_4 = arith.constant 0 : index
    %2 = vector.load %arg1[%c0_2, %c0_3, %c0_4] : memref<1x256x128xbf16, #tpu.memory_space<vmem>>, vector<1x256x128xbf16>
    %3 = vector.shape_cast %2 : vector<1x256x128xbf16> to vector<256x128xbf16>
    %4 = arith.extf %3 : vector<256x128xbf16> to vector<256x128xf32>
    %c0_5 = arith.constant 0 : index
    %c0_6 = arith.constant 0 : index
    %5 = vector.load %arg2[%c0_5, %c0_6] : memref<1x128xf32, #tpu.memory_space<vmem>>, vector<1x128xf32>
    %6 = vector.broadcast %5 : vector<1x128xf32> to vector<256x128xf32>
    %7 = arith.mulf %4, %6 : vector<256x128xf32>
    %c0_7 = arith.constant 0 : index
    %c0_8 = arith.constant 0 : index
    %8 = vector.load %arg3[%c0_7, %c0_8] : memref<1x128xf32, #tpu.memory_space<vmem>>, vector<1x128xf32>
    %9 = vector.broadcast %8 : vector<1x128xf32> to vector<256x128xf32>
    %10 = arith.addf %7, %9 : vector<256x128xf32>
    %cst_9 = arith.constant 0.000000e+00 : f32
    %11 = vector.broadcast %cst_9 : f32 to vector<256x128xf32>
    %12 = arith.maximumf %10, %11 : vector<256x128xf32>
    %13 = arith.truncf %12 : vector<256x128xf32> to vector<256x128xbf16>
    %14 = vector.shape_cast %13 : vector<256x128xbf16> to vector<16x16x128xbf16>
    %c1 = arith.constant 1 : index
    %c1_10 = arith.constant 1 : index
    %c0_11 = arith.constant 0 : index
    %15 = vector.load %arg8[%c1, %c1_10, %c0_11] : memref<18x18x128xbf16, #tpu.memory_space<vmem>>, vector<16x16x128xbf16>
    tpu.vector_store %arg8[%c1, %c1_10, %c0_11], %14 {strides = array<i32>} : memref<18x18x128xbf16, #tpu.memory_space<vmem>>, vector<16x16x128xbf16>,
    %c0_12 = arith.constant 0 : index
    %c0_13 = arith.constant 0 : index
    %c0_14 = arith.constant 0 : index
    %16 = vector.load %arg8[%c0_12, %c0_13, %c0_14] : memref<18x18x128xbf16, #tpu.memory_space<vmem>>, vector<16x16x128xbf16>
    %17 = vector.shape_cast %16 : vector<16x16x128xbf16> to vector<256x128xbf16>
    %c0_15 = arith.constant 0 : index
    %c0_16 = arith.constant 0 : index
    %18 = vector.load %arg9[%c0_15, %c0_16] : memref<256x1152xbf16, #tpu.memory_space<vmem>>, vector<256x128xbf16>
    tpu.vector_store %arg9[%c0_15, %c0_16], %17 {strides = array<i32>} : memref<256x1152xbf16, #tpu.memory_space<vmem>>, vector<256x128xbf16>,
    %c0_17 = arith.constant 0 : index
    %c1_18 = arith.constant 1 : index
    %c0_19 = arith.constant 0 : index
    %19 = vector.load %arg8[%c0_17, %c1_18, %c0_19] : memref<18x18x128xbf16, #tpu.memory_space<vmem>>, vector<16x16x128xbf16>
    %20 = vector.shape_cast %19 : vector<16x16x128xbf16> to vector<256x128xbf16>
    %c0_20 = arith.constant 0 : index
    %c128 = arith.constant 128 : index
    %21 = vector.load %arg9[%c0_20, %c128] : memref<256x1152xbf16, #tpu.memory_space<vmem>>, vector<256x128xbf16>
    tpu.vector_store %arg9[%c0_20, %c128], %20 {strides = array<i32>} : memref<256x1152xbf16, #tpu.memory_space<vmem>>, vector<256x128xbf16>,
    %c0_21 = arith.constant 0 : index
    %c2 = arith.constant 2 : index
    %c0_22 = arith.constant 0 : index
    %22 = vector.load %arg8[%c0_21, %c2, %c0_22] : memref<18x18x128xbf16, #tpu.memory_space<vmem>>, vector<16x16x128xbf16>
    %23 = vector.shape_cast %22 : vector<16x16x128xbf16> to vector<256x128xbf16>
    %c0_23 = arith.constant 0 : index
    %c256 = arith.constant 256 : index
    %24 = vector.load %arg9[%c0_23, %c256] : memref<256x1152xbf16, #tpu.memory_space<vmem>>, vector<256x128xbf16>
    tpu.vector_store %arg9[%c0_23, %c256], %23 {strides = array<i32>} : memref<256x1152xbf16, #tpu.memory_space<vmem>>, vector<256x128xbf16>,
    %c1_24 = arith.constant 1 : index
    %c0_25 = arith.constant 0 : index
    %c0_26 = arith.constant 0 : index
    %25 = vector.load %arg8[%c1_24, %c0_25, %c0_26] : memref<18x18x128xbf16, #tpu.memory_space<vmem>>, vector<16x16x128xbf16>
    %26 = vector.shape_cast %25 : vector<16x16x128xbf16> to vector<256x128xbf16>
    %c0_27 = arith.constant 0 : index
    %c384 = arith.constant 384 : index
    %27 = vector.load %arg9[%c0_27, %c384] : memref<256x1152xbf16, #tpu.memory_space<vmem>>, vector<256x128xbf16>
    tpu.vector_store %arg9[%c0_27, %c384], %26 {strides = array<i32>} : memref<256x1152xbf16, #tpu.memory_space<vmem>>, vector<256x128xbf16>,
    %c1_28 = arith.constant 1 : index
    %c1_29 = arith.constant 1 : index
    %c0_30 = arith.constant 0 : index
    %28 = vector.load %arg8[%c1_28, %c1_29, %c0_30] : memref<18x18x128xbf16, #tpu.memory_space<vmem>>, vector<16x16x128xbf16>
    %29 = vector.shape_cast %28 : vector<16x16x128xbf16> to vector<256x128xbf16>
    %c0_31 = arith.constant 0 : index
    %c512 = arith.constant 512 : index
    %30 = vector.load %arg9[%c0_31, %c512] : memref<256x1152xbf16, #tpu.memory_space<vmem>>, vector<256x128xbf16>
    tpu.vector_store %arg9[%c0_31, %c512], %29 {strides = array<i32>} : memref<256x1152xbf16, #tpu.memory_space<vmem>>, vector<256x128xbf16>,
    %c1_32 = arith.constant 1 : index
    %c2_33 = arith.constant 2 : index
    %c0_34 = arith.constant 0 : index
    %31 = vector.load %arg8[%c1_32, %c2_33, %c0_34] : memref<18x18x128xbf16, #tpu.memory_space<vmem>>, vector<16x16x128xbf16>
    %32 = vector.shape_cast %31 : vector<16x16x128xbf16> to vector<256x128xbf16>
    %c0_35 = arith.constant 0 : index
    %c640 = arith.constant 640 : index
    %33 = vector.load %arg9[%c0_35, %c640] : memref<256x1152xbf16, #tpu.memory_space<vmem>>, vector<256x128xbf16>
    tpu.vector_store %arg9[%c0_35, %c640], %32 {strides = array<i32>} : memref<256x1152xbf16, #tpu.memory_space<vmem>>, vector<256x128xbf16>,
    %c2_36 = arith.constant 2 : index
    %c0_37 = arith.constant 0 : index
    %c0_38 = arith.constant 0 : index
    %34 = vector.load %arg8[%c2_36, %c0_37, %c0_38] : memref<18x18x128xbf16, #tpu.memory_space<vmem>>, vector<16x16x128xbf16>
    %35 = vector.shape_cast %34 : vector<16x16x128xbf16> to vector<256x128xbf16>
    %c0_39 = arith.constant 0 : index
    %c768 = arith.constant 768 : index
    %36 = vector.load %arg9[%c0_39, %c768] : memref<256x1152xbf16, #tpu.memory_space<vmem>>, vector<256x128xbf16>
    tpu.vector_store %arg9[%c0_39, %c768], %35 {strides = array<i32>} : memref<256x1152xbf16, #tpu.memory_space<vmem>>, vector<256x128xbf16>,
    %c2_40 = arith.constant 2 : index
    %c1_41 = arith.constant 1 : index
    %c0_42 = arith.constant 0 : index
    %37 = vector.load %arg8[%c2_40, %c1_41, %c0_42] : memref<18x18x128xbf16, #tpu.memory_space<vmem>>, vector<16x16x128xbf16>
    %38 = vector.shape_cast %37 : vector<16x16x128xbf16> to vector<256x128xbf16>
    %c0_43 = arith.constant 0 : index
    %c896 = arith.constant 896 : index
    %39 = vector.load %arg9[%c0_43, %c896] : memref<256x1152xbf16, #tpu.memory_space<vmem>>, vector<256x128xbf16>
    tpu.vector_store %arg9[%c0_43, %c896], %38 {strides = array<i32>} : memref<256x1152xbf16, #tpu.memory_space<vmem>>, vector<256x128xbf16>,
    %c2_44 = arith.constant 2 : index
    %c2_45 = arith.constant 2 : index
    %c0_46 = arith.constant 0 : index
    %40 = vector.load %arg8[%c2_44, %c2_45, %c0_46] : memref<18x18x128xbf16, #tpu.memory_space<vmem>>, vector<16x16x128xbf16>
    %41 = vector.shape_cast %40 : vector<16x16x128xbf16> to vector<256x128xbf16>
    %c0_47 = arith.constant 0 : index
    %c1024 = arith.constant 1024 : index
    %42 = vector.load %arg9[%c0_47, %c1024] : memref<256x1152xbf16, #tpu.memory_space<vmem>>, vector<256x128xbf16>
    tpu.vector_store %arg9[%c0_47, %c1024], %41 {strides = array<i32>} : memref<256x1152xbf16, #tpu.memory_space<vmem>>, vector<256x128xbf16>,
    %c0_48 = arith.constant 0 : index
    %c0_49 = arith.constant 0 : index
    %43 = vector.load %arg9[%c0_48, %c0_49] : memref<256x1152xbf16, #tpu.memory_space<vmem>>, vector<256x1152xbf16>
    %c0_50 = arith.constant 0 : index
    %c0_51 = arith.constant 0 : index
    %44 = vector.load %arg4[%c0_50, %c0_51] : memref<1152x128xbf16, #tpu.memory_space<vmem>>, vector<1152x128xbf16>
    %cst_52 = arith.constant dense<0.000000e+00> : vector<256x128xf32>
    %45 = tpu.matmul %43, %44, %cst_52 {dimension_numbers = #tpu.dot_dimension_numbers<[1], [0], [0], [1], [0, 0, 1, 1], [], []>} : vector<256x1152xbf16>, vector<1152x128xbf16>, vector<256x128xf32> -> vector<256x128xf32>
    %46 = arith.truncf %45 : vector<256x128xf32> to vector<256x128xbf16>
    %c0_53 = arith.constant 0 : index
    %c0_54 = arith.constant 0 : index
    %c0_55 = arith.constant 0 : index
    %47 = vector.load %arg5[%c0_53, %c0_54, %c0_55] : memref<1x256x128xbf16, #tpu.memory_space<vmem>>, vector<1x256x128xbf16>
    %48 = vector.shape_cast %47 : vector<1x256x128xbf16> to vector<256x128xbf16>
    %49 = vector.shape_cast %46 : vector<256x128xbf16> to vector<1x256x128xbf16>
    tpu.vector_store %arg5[%c0_53, %c0_54, %c0_55], %49 {strides = array<i32>} : memref<1x256x128xbf16, #tpu.memory_space<vmem>>, vector<1x256x128xbf16>,
    %cst_56 = arith.constant dense<0.000000e+00> : vector<128xf32>
    %50 = vector.multi_reduction <add>, %45, %cst_56 [0] : vector<256x128xf32> to vector<128xf32>
    %51 = vector.shape_cast %50 : vector<128xf32> to vector<1x128xf32>
    %c0_57 = arith.constant 0 : index
    %c0_58 = arith.constant 0 : index
    %c0_59 = arith.constant 0 : index
    %52 = vector.load %arg6[%c0_57, %c0_58, %c0_59] : memref<1x1x128xf32, #tpu.memory_space<vmem>>, vector<1x1x128xf32>
    %53 = vector.shape_cast %52 : vector<1x1x128xf32> to vector<1x128xf32>
    %54 = vector.shape_cast %51 : vector<1x128xf32> to vector<1x1x128xf32>
    tpu.vector_store %arg6[%c0_57, %c0_58, %c0_59], %54 {strides = array<i32>} : memref<1x1x128xf32, #tpu.memory_space<vmem>>, vector<1x1x128xf32>,
    %55 = arith.mulf %45, %45 : vector<256x128xf32>
    %cst_60 = arith.constant dense<0.000000e+00> : vector<128xf32>
    %56 = vector.multi_reduction <add>, %55, %cst_60 [0] : vector<256x128xf32> to vector<128xf32>
    %57 = vector.shape_cast %56 : vector<128xf32> to vector<1x128xf32>
    %c0_61 = arith.constant 0 : index
    %c0_62 = arith.constant 0 : index
    %c0_63 = arith.constant 0 : index
    %58 = vector.load %arg7[%c0_61, %c0_62, %c0_63] : memref<1x1x128xf32, #tpu.memory_space<vmem>>, vector<1x1x128xf32>
    %59 = vector.shape_cast %58 : vector<1x1x128xf32> to vector<1x128xf32>
    %60 = vector.shape_cast %57 : vector<1x128xf32> to vector<1x1x128xf32>
    tpu.vector_store %arg7[%c0_61, %c0_62, %c0_63], %60 {strides = array<i32>} : memref<1x1x128xf32, #tpu.memory_space<vmem>>, vector<1x1x128xf32>,
    return
  }
  func.func @transform_0(%arg0: i32) -> (i32, i32, i32) {
    %c0_i32 = arith.constant 0 : i32
    %c0_i32_0 = arith.constant 0 : i32
    %c0_i32_1 = arith.constant 0 : i32
    return %arg0, %c0_i32, %c0_i32_0 : i32, i32, i32
  }
  func.func @transform_1(%arg0: i32) -> (i32, i32) {
    %c0_i32 = arith.constant 0 : i32
    %c0_i32_0 = arith.constant 0 : i32
    %c0_i32_1 = arith.constant 0 : i32
    return %c0_i32, %c0_i32_0 : i32, i32
  }
  func.func @transform_2(%arg0: i32) -> (i32, i32) {
    %c0_i32 = arith.constant 0 : i32
    %c0_i32_0 = arith.constant 0 : i32
    %c0_i32_1 = arith.constant 0 : i32
    return %c0_i32, %c0_i32_0 : i32, i32
  }
  func.func @transform_3(%arg0: i32) -> (i32, i32) {
    %c0_i32 = arith.constant 0 : i32
    %c0_i32_0 = arith.constant 0 : i32
    %c0_i32_1 = arith.constant 0 : i32
    return %c0_i32, %c0_i32_0 : i32, i32
  }
  func.func @transform_4(%arg0: i32) -> (i32, i32, i32) {
    %c0_i32 = arith.constant 0 : i32
    %c0_i32_0 = arith.constant 0 : i32
    %c0_i32_1 = arith.constant 0 : i32
    return %arg0, %c0_i32, %c0_i32_0 : i32, i32, i32
  }
  func.func @transform_5(%arg0: i32) -> (i32, i32, i32) {
    %c0_i32 = arith.constant 0 : i32
    %c0_i32_0 = arith.constant 0 : i32
    %c0_i32_1 = arith.constant 0 : i32
    return %arg0, %c0_i32, %c0_i32_0 : i32, i32, i32
  }
  func.func @transform_6(%arg0: i32) -> (i32, i32, i32) {
    %c0_i32 = arith.constant 0 : i32
    %c0_i32_0 = arith.constant 0 : i32
    %c0_i32_1 = arith.constant 0 : i32
    return %arg0, %c0_i32, %c0_i32_0 : i32, i32, i32
  }
}

module attributes {stable_mosaic.version = 11 : i64} {
  func.func @_bn_relu_kernel(%arg0: i32, %arg1: memref<512x128xbf16, #tpu.memory_space<vmem>>, %arg2: memref<1x128xf32, #tpu.memory_space<vmem>>, %arg3: memref<1x128xf32, #tpu.memory_space<vmem>>, %arg4: memref<512x128xf32, #tpu.memory_space<vmem>>) attributes {dimension_semantics = [#tpu.dimension_semantics<parallel>], iteration_bounds = array<i64: 1>, scalar_prefetch = 0 : i64, scratch_operands = 0 : i64, tpu.core_type = #tpu.core_type<tc>, window_params = [{transform_indices = @transform_0, window_bounds = array<i64: 512, 128>}, {pipeline_mode = #tpu.pipeline_mode<synchronous>, transform_indices = @transform_1, window_bounds = array<i64: 1, 128>}, {pipeline_mode = #tpu.pipeline_mode<synchronous>, transform_indices = @transform_2, window_bounds = array<i64: 1, 128>}, {transform_indices = @transform_3, window_bounds = array<i64: 512, 128>}]} {
    %c0 = arith.constant 0 : index
    %c0_0 = arith.constant 0 : index
    %0 = vector.load %arg1[%c0, %c0_0] : memref<512x128xbf16, #tpu.memory_space<vmem>>, vector<512x128xbf16>
    %1 = arith.extf %0 : vector<512x128xbf16> to vector<512x128xf32>
    %c0_1 = arith.constant 0 : index
    %c0_2 = arith.constant 0 : index
    %2 = vector.load %arg2[%c0_1, %c0_2] : memref<1x128xf32, #tpu.memory_space<vmem>>, vector<1x128xf32>
    %3 = vector.broadcast %2 : vector<1x128xf32> to vector<512x128xf32>
    %4 = arith.mulf %1, %3 : vector<512x128xf32>
    %c0_3 = arith.constant 0 : index
    %c0_4 = arith.constant 0 : index
    %5 = vector.load %arg3[%c0_3, %c0_4] : memref<1x128xf32, #tpu.memory_space<vmem>>, vector<1x128xf32>
    %6 = vector.broadcast %5 : vector<1x128xf32> to vector<512x128xf32>
    %7 = arith.addf %4, %6 : vector<512x128xf32>
    %cst = arith.constant 0.000000e+00 : f32
    %8 = vector.broadcast %cst : f32 to vector<512x128xf32>
    %9 = arith.maximumf %7, %8 : vector<512x128xf32>
    %c0_5 = arith.constant 0 : index
    %c0_6 = arith.constant 0 : index
    %10 = vector.load %arg4[%c0_5, %c0_6] : memref<512x128xf32, #tpu.memory_space<vmem>>, vector<512x128xf32>
    tpu.vector_store %arg4[%c0_5, %c0_6], %9 {strides = array<i32>} : memref<512x128xf32, #tpu.memory_space<vmem>>, vector<512x128xf32>,
    return
  }
  func.func @transform_0(%arg0: i32) -> (i32, i32) {
    %c0_i32 = arith.constant 0 : i32
    %c0_i32_0 = arith.constant 0 : i32
    return %arg0, %c0_i32 : i32, i32
  }
  func.func @transform_1(%arg0: i32) -> (i32, i32) {
    %c0_i32 = arith.constant 0 : i32
    %c0_i32_0 = arith.constant 0 : i32
    %c0_i32_1 = arith.constant 0 : i32
    return %c0_i32, %c0_i32_0 : i32, i32
  }
  func.func @transform_2(%arg0: i32) -> (i32, i32) {
    %c0_i32 = arith.constant 0 : i32
    %c0_i32_0 = arith.constant 0 : i32
    %c0_i32_1 = arith.constant 0 : i32
    return %c0_i32, %c0_i32_0 : i32, i32
  }
  func.func @transform_3(%arg0: i32) -> (i32, i32) {
    %c0_i32 = arith.constant 0 : i32
    %c0_i32_0 = arith.constant 0 : i32
    return %arg0, %c0_i32 : i32, i32
  }
}

</mosaic_0001>

<llo_original>
// kernel: double_conv_forward.5
$region0: #{double_conv_forward.5}
  #allocation0 [shape = 'u32[]', space=smem, size = 0x4, offset = 0x4, fixed_abs, tag = 'smem constant byte address 0x4 - core index']
  #allocation1 [shape = 'u32[144,128]{1,0:T(1,128)}', space=vmem, size = 0x12000, scoped, tag = 'internal scratch']
  %s0 = inlined_call_operand.vmem [shape: bf16[512,128], index: 0, kind: input, shape index: {}]
  %s1 = inlined_call_operand.vmem [shape: f32[1,128], index: 1, kind: input, shape index: {}]
  %s2 = inlined_call_operand.vmem [shape: f32[1,128], index: 2, kind: input, shape index: {}]
  %s3 = inlined_call_operand.hbm [shape: f32[512,128], index: 3, kind: output, shape index: {}]
  %s4 = sld [smem:[#allocation0]]
  $region22: #{double_conv_forward.5} parent=0
    _
  %s6 = ssub.s32 1, %s4
  %s7 = scalar_select 0, %s6, %s4
  $region1: #{double_conv_forward.5} parent=0
    #allocation2 [shape = 'u8[262144]{0}', space=vmem, size = 0x40000, scoped, tag = 'output window, operand 0, single buffered']
    #allocation3 [shape = 's32[1]{0}', space=sflag, size = 0x4, scoped, tag = 'scoped memory for double_conv_forward.5']
    %8 = vsyncpa [#allocation3], 0
    // Predicated region
    $region2: #{double_conv_forward.5} parent=1 // pred_check
      _
    $region3: #{double_conv_forward.5} parent=1 // pred_check_branch
      %10 = sbr.rel (0) target = $region5
    $region4: #{double_conv_forward.5} parent=1 // pred_region
      _
    $region5: #{double_conv_forward.5} parent=1 // pred_fallthru
      _
    // Predicated region
    $region6: #{double_conv_forward.5} parent=1 // pred_check
      _
    $region7: #{double_conv_forward.5} parent=1 // pred_check_branch
      %12 = sbr.rel (0) target = $region9
    $region8: #{double_conv_forward.5} parent=1 // pred_region
      _
    $region9: #{double_conv_forward.5} parent=1 // pred_fallthru
      _
    // Predicated region
    $region10: #{double_conv_forward.5} parent=1 // pred_check
      _
    $region11: #{double_conv_forward.5} parent=1 // pred_check_branch
      %14 = sbr.rel (0) target = $region13
    $region12: #{double_conv_forward.5} parent=1 // pred_region
      _
    $region13: #{double_conv_forward.5} parent=1 // pred_fallthru
      _
    %v15 = vld [vmem:[%s0] sm:$0xf]
    %v16 = vld [vmem:[%s0 + $0x4] sm:$0xf]
    %v17 = vld [vmem:[%s0 + $0x8] sm:$0xf]
    %v18 = vld [vmem:[%s0 + $0xc] sm:$0xf]
    %v19 = vld [vmem:[%s0 + $0x10] sm:$0xf]
    %v20 = vld [vmem:[%s0 + $0x14] sm:$0xf]
    %v21 = vld [vmem:[%s0 + $0x18] sm:$0xf]
    %v22 = vld [vmem:[%s0 + $0x1c] sm:$0xf]
    %v23 = vld [vmem:[%s0 + $0x20] sm:$0xf]
    %v24 = vld [vmem:[%s0 + $0x24] sm:$0xf]
    %v25 = vld [vmem:[%s0 + $0x28] sm:$0xf]
    %v26 = vld [vmem:[%s0 + $0x2c] sm:$0xf]
    %v27 = vld [vmem:[%s0 + $0x30] sm:$0xf]
    %v28 = vld [vmem:[%s0 + $0x34] sm:$0xf]
    %v29 = vld [vmem:[%s0 + $0x38] sm:$0xf]
    %v30 = vld [vmem:[%s0 + $0x3c] sm:$0xf]
    %v31 = vld [vmem:[%s0 + $0x40] sm:$0xf]
    %v32 = vld [vmem:[%s0 + $0x44] sm:$0xf]
    %v33 = vld [vmem:[%s0 + $0x48] sm:$0xf]
    %v34 = vld [vmem:[%s0 + $0x4c] sm:$0xf]
    %v35 = vld [vmem:[%s0 + $0x50] sm:$0xf]
    %v36 = vld [vmem:[%s0 + $0x54] sm:$0xf]
    %v37 = vld [vmem:[%s0 + $0x58] sm:$0xf]
    %v38 = vld [vmem:[%s0 + $0x5c] sm:$0xf]
    %v39 = vld [vmem:[%s0 + $0x60] sm:$0xf]
    %v40 = vld [vmem:[%s0 + $0x64] sm:$0xf]
    %v41 = vld [vmem:[%s0 + $0x68] sm:$0xf]
    %v42 = vld [vmem:[%s0 + $0x6c] sm:$0xf]
    %v43 = vld [vmem:[%s0 + $0x70] sm:$0xf]
    %v44 = vld [vmem:[%s0 + $0x74] sm:$0xf]
    %v45 = vld [vmem:[%s0 + $0x78] sm:$0xf]
    %v46 = vld [vmem:[%s0 + $0x7c] sm:$0xf]
    %v47 = vld [vmem:[%s0 + $0x80] sm:$0xf]
    %v48 = vld [vmem:[%s0 + $0x84] sm:$0xf]
    %v49 = vld [vmem:[%s0 + $0x88] sm:$0xf]
    %v50 = vld [vmem:[%s0 + $0x8c] sm:$0xf]
    %v51 = vld [vmem:[%s0 + $0x90] sm:$0xf]
    %v52 = vld [vmem:[%s0 + $0x94] sm:$0xf]
    %v53 = vld [vmem:[%s0 + $0x98] sm:$0xf]
    %v54 = vld [vmem:[%s0 + $0x9c] sm:$0xf]
    %v55 = vld [vmem:[%s0 + $0xa0] sm:$0xf]
    %v56 = vld [vmem:[%s0 + $0xa4] sm:$0xf]
    %v57 = vld [vmem:[%s0 + $0xa8] sm:$0xf]
    %v58 = vld [vmem:[%s0 + $0xac] sm:$0xf]
    %v59 = vld [vmem:[%s0 + $0xb0] sm:$0xf]
    %v60 = vld [vmem:[%s0 + $0xb4] sm:$0xf]
    %v61 = vld [vmem:[%s0 + $0xb8] sm:$0xf]
    %v62 = vld [vmem:[%s0 + $0xbc] sm:$0xf]
    %v63 = vld [vmem:[%s0 + $0xc0] sm:$0xf]
    %v64 = vld [vmem:[%s0 + $0xc4] sm:$0xf]
    %v65 = vld [vmem:[%s0 + $0xc8] sm:$0xf]
    %v66 = vld [vmem:[%s0 + $0xcc] sm:$0xf]
    %v67 = vld [vmem:[%s0 + $0xd0] sm:$0xf]
    %v68 = vld [vmem:[%s0 + $0xd4] sm:$0xf]
    %v69 = vld [vmem:[%s0 + $0xd8] sm:$0xf]
    %v70 = vld [vmem:[%s0 + $0xdc] sm:$0xf]
    %v71 = vld [vmem:[%s0 + $0xe0] sm:$0xf]
    %v72 = vld [vmem:[%s0 + $0xe4] sm:$0xf]
    %v73 = vld [vmem:[%s0 + $0xe8] sm:$0xf]
    %v74 = vld [vmem:[%s0 + $0xec] sm:$0xf]
    %v75 = vld [vmem:[%s0 + $0xf0] sm:$0xf]
    %v76 = vld [vmem:[%s0 + $0xf4] sm:$0xf]
    %v77 = vld [vmem:[%s0 + $0xf8] sm:$0xf]
    %v78 = vld [vmem:[%s0 + $0xfc] sm:$0xf]
    %v79 = vunpack.c.l.bf16 %v15
    %v80 = vunpack.c.l.bf16 %v16
    %v81 = vunpack.c.l.bf16 %v17
    %v82 = vunpack.c.l.bf16 %v18
    %v83 = vunpack.c.l.bf16 %v19
    %v84 = vunpack.c.l.bf16 %v20
    %v85 = vunpack.c.l.bf16 %v21
    %v86 = vunpack.c.l.bf16 %v22
    %v87 = vunpack.c.l.bf16 %v23
    %v88 = vunpack.c.l.bf16 %v24
    %v89 = vunpack.c.l.bf16 %v25
    %v90 = vunpack.c.l.bf16 %v26
    %v91 = vunpack.c.l.bf16 %v27
    %v92 = vunpack.c.l.bf16 %v28
    %v93 = vunpack.c.l.bf16 %v29
    %v94 = vunpack.c.l.bf16 %v30
    %v95 = vunpack.c.l.bf16 %v31
    %v96 = vunpack.c.l.bf16 %v32
    %v97 = vunpack.c.l.bf16 %v33
    %v98 = vunpack.c.l.bf16 %v34
    %v99 = vunpack.c.l.bf16 %v35
    %v100 = vunpack.c.l.bf16 %v36
    %v101 = vunpack.c.l.bf16 %v37
    %v102 = vunpack.c.l.bf16 %v38
    %v103 = vunpack.c.l.bf16 %v39
    %v104 = vunpack.c.l.bf16 %v40
    %v105 = vunpack.c.l.bf16 %v41
    %v106 = vunpack.c.l.bf16 %v42
    %v107 = vunpack.c.l.bf16 %v43
    %v108 = vunpack.c.l.bf16 %v44
    %v109 = vunpack.c.l.bf16 %v45
    %v110 = vunpack.c.l.bf16 %v46
    %v111 = vunpack.c.l.bf16 %v47
    %v112 = vunpack.c.l.bf16 %v48
    %v113 = vunpack.c.l.bf16 %v49
    %v114 = vunpack.c.l.bf16 %v50
    %v115 = vunpack.c.l.bf16 %v51
    %v116 = vunpack.c.l.bf16 %v52
    %v117 = vunpack.c.l.bf16 %v53
    %v118 = vunpack.c.l.bf16 %v54
    %v119 = vunpack.c.l.bf16 %v55
    %v120 = vunpack.c.l.bf16 %v56
    %v121 = vunpack.c.l.bf16 %v57
    %v122 = vunpack.c.l.bf16 %v58
    %v123 = vunpack.c.l.bf16 %v59
    %v124 = vunpack.c.l.bf16 %v60
    %v125 = vunpack.c.l.bf16 %v61
    %v126 = vunpack.c.l.bf16 %v62
    %v127 = vunpack.c.l.bf16 %v63
    %v128 = vunpack.c.l.bf16 %v64
    %v129 = vunpack.c.l.bf16 %v65
    %v130 = vunpack.c.l.bf16 %v66
    %v131 = vunpack.c.l.bf16 %v67
    %v132 = vunpack.c.l.bf16 %v68
    %v133 = vunpack.c.l.bf16 %v69
    %v134 = vunpack.c.l.bf16 %v70
    %v135 = vunpack.c.l.bf16 %v71
    %v136 = vunpack.c.l.bf16 %v72
    %v137 = vunpack.c.l.bf16 %v73
    %v138 = vunpack.c.l.bf16 %v74
    %v139 = vunpack.c.l.bf16 %v75
    %v140 = vunpack.c.l.bf16 %v76
    %v141 = vunpack.c.l.bf16 %v77
    %v142 = vunpack.c.l.bf16 %v78
    %v143 = vld [vmem:[%s1] sm:$0x1]
    %v145 = vlaneseq
    %v146 = vshrl.u32 %v145, 7
    %v147 = vsub.s32 0, %v146
    %v148 = vrot.slane %v143, %v147
    %v150 = vmul.f32 %v79, %v148
    %v151 = vmul.f32 %v80, %v148
    %v152 = vmul.f32 %v81, %v148
    %v153 = vmul.f32 %v82, %v148
    %v154 = vmul.f32 %v83, %v148
    %v155 = vmul.f32 %v84, %v148
    %v156 = vmul.f32 %v85, %v148
    %v157 = vmul.f32 %v86, %v148
    %v158 = vmul.f32 %v87, %v148
    %v159 = vmul.f32 %v88, %v148
    %v160 = vmul.f32 %v89, %v148
    %v161 = vmul.f32 %v90, %v148
    %v162 = vmul.f32 %v91, %v148
    %v163 = vmul.f32 %v92, %v148
    %v164 = vmul.f32 %v93, %v148
    %v165 = vmul.f32 %v94, %v148
    %v166 = vmul.f32 %v95, %v148
    %v167 = vmul.f32 %v96, %v148
    %v168 = vmul.f32 %v97, %v148
    %v169 = vmul.f32 %v98, %v148
    %v170 = vmul.f32 %v99, %v148
    %v171 = vmul.f32 %v100, %v148
    %v172 = vmul.f32 %v101, %v148
    %v173 = vmul.f32 %v102, %v148
    %v174 = vmul.f32 %v103, %v148
    %v175 = vmul.f32 %v104, %v148
    %v176 = vmul.f32 %v105, %v148
    %v177 = vmul.f32 %v106, %v148
    %v178 = vmul.f32 %v107, %v148
    %v179 = vmul.f32 %v108, %v148
    %v180 = vmul.f32 %v109, %v148
    %v181 = vmul.f32 %v110, %v148
    %v182 = vmul.f32 %v111, %v148
    %v183 = vmul.f32 %v112, %v148
    %v184 = vmul.f32 %v113, %v148
    %v185 = vmul.f32 %v114, %v148
    %v186 = vmul.f32 %v115, %v148
    %v187 = vmul.f32 %v116, %v148
    %v188 = vmul.f32 %v117, %v148
    %v189 = vmul.f32 %v118, %v148
    %v190 = vmul.f32 %v119, %v148
    %v191 = vmul.f32 %v120, %v148
    %v192 = vmul.f32 %v121, %v148
    %v193 = vmul.f32 %v122, %v148
    %v194 = vmul.f32 %v123, %v148
    %v195 = vmul.f32 %v124, %v148
    %v196 = vmul.f32 %v125, %v148
    %v197 = vmul.f32 %v126, %v148
    %v198 = vmul.f32 %v127, %v148
    %v199 = vmul.f32 %v128, %v148
    %v200 = vmul.f32 %v129, %v148
    %v201 = vmul.f32 %v130, %v148
    %v202 = vmul.f32 %v131, %v148
    %v203 = vmul.f32 %v132, %v148
    %v204 = vmul.f32 %v133, %v148
    %v205 = vmul.f32 %v134, %v148
    %v206 = vmul.f32 %v135, %v148
    %v207 = vmul.f32 %v136, %v148
    %v208 = vmul.f32 %v137, %v148
    %v209 = vmul.f32 %v138, %v148
    %v210 = vmul.f32 %v139, %v148
    %v211 = vmul.f32 %v140, %v148
    %v212 = vmul.f32 %v141, %v148
    %v213 = vmul.f32 %v142, %v148
    %v214 = vld [vmem:[%s2] sm:$0x1]
    %v216 = vlaneseq
    %v217 = vshrl.u32 %v216, 7
    %v218 = vsub.s32 0, %v217
    %v219 = vrot.slane %v214, %v218
    %v221 = vadd.f32 %v150, %v219
    %v222 = vadd.f32 %v151, %v219
    %v223 = vadd.f32 %v152, %v219
    %v224 = vadd.f32 %v153, %v219
    %v225 = vadd.f32 %v154, %v219
    %v226 = vadd.f32 %v155, %v219
    %v227 = vadd.f32 %v156, %v219
    %v228 = vadd.f32 %v157, %v219
    %v229 = vadd.f32 %v158, %v219
    %v230 = vadd.f32 %v159, %v219
    %v231 = vadd.f32 %v160, %v219
    %v232 = vadd.f32 %v161, %v219
    %v233 = vadd.f32 %v162, %v219
    %v234 = vadd.f32 %v163, %v219
    %v235 = vadd.f32 %v164, %v219
    %v236 = vadd.f32 %v165, %v219
    %v237 = vadd.f32 %v166, %v219
    %v238 = vadd.f32 %v167, %v219
    %v239 = vadd.f32 %v168, %v219
    %v240 = vadd.f32 %v169, %v219
    %v241 = vadd.f32 %v170, %v219
    %v242 = vadd.f32 %v171, %v219
    %v243 = vadd.f32 %v172, %v219
    %v244 = vadd.f32 %v173, %v219
    %v245 = vadd.f32 %v174, %v219
    %v246 = vadd.f32 %v175, %v219
    %v247 = vadd.f32 %v176, %v219
    %v248 = vadd.f32 %v177, %v219
    %v249 = vadd.f32 %v178, %v219
    %v250 = vadd.f32 %v179, %v219
    %v251 = vadd.f32 %v180, %v219
    %v252 = vadd.f32 %v181, %v219
    %v253 = vadd.f32 %v182, %v219
    %v254 = vadd.f32 %v183, %v219
    %v255 = vadd.f32 %v184, %v219
    %v256 = vadd.f32 %v185, %v219
    %v257 = vadd.f32 %v186, %v219
    %v258 = vadd.f32 %v187, %v219
    %v259 = vadd.f32 %v188, %v219
    %v260 = vadd.f32 %v189, %v219
    %v261 = vadd.f32 %v190, %v219
    %v262 = vadd.f32 %v191, %v219
    %v263 = vadd.f32 %v192, %v219
    %v264 = vadd.f32 %v193, %v219
    %v265 = vadd.f32 %v194, %v219
    %v266 = vadd.f32 %v195, %v219
    %v267 = vadd.f32 %v196, %v219
    %v268 = vadd.f32 %v197, %v219
    %v269 = vadd.f32 %v198, %v219
    %v270 = vadd.f32 %v199, %v219
    %v271 = vadd.f32 %v200, %v219
    %v272 = vadd.f32 %v201, %v219
    %v273 = vadd.f32 %v202, %v219
    %v274 = vadd.f32 %v203, %v219
    %v275 = vadd.f32 %v204, %v219
    %v276 = vadd.f32 %v205, %v219
    %v277 = vadd.f32 %v206, %v219
    %v278 = vadd.f32 %v207, %v219
    %v279 = vadd.f32 %v208, %v219
    %v280 = vadd.f32 %v209, %v219
    %v281 = vadd.f32 %v210, %v219
    %v282 = vadd.f32 %v211, %v219
    %v283 = vadd.f32 %v212, %v219
    %v284 = vadd.f32 %v213, %v219
    %v285 = vmax.f32 %v221, 0.0
    %v286 = vmax.f32 %v222, 0.0
    %v287 = vmax.f32 %v223, 0.0
    %v288 = vmax.f32 %v224, 0.0
    %v289 = vmax.f32 %v225, 0.0
    %v290 = vmax.f32 %v226, 0.0
    %v291 = vmax.f32 %v227, 0.0
    %v292 = vmax.f32 %v228, 0.0
    %v293 = vmax.f32 %v229, 0.0
    %v294 = vmax.f32 %v230, 0.0
    %v295 = vmax.f32 %v231, 0.0
    %v296 = vmax.f32 %v232, 0.0
    %v297 = vmax.f32 %v233, 0.0
    %v298 = vmax.f32 %v234, 0.0
    %v299 = vmax.f32 %v235, 0.0
    %v300 = vmax.f32 %v236, 0.0
    %v301 = vmax.f32 %v237, 0.0
    %v302 = vmax.f32 %v238, 0.0
    %v303 = vmax.f32 %v239, 0.0
    %v304 = vmax.f32 %v240, 0.0
    %v305 = vmax.f32 %v241, 0.0
    %v306 = vmax.f32 %v242, 0.0
    %v307 = vmax.f32 %v243, 0.0
    %v308 = vmax.f32 %v244, 0.0
    %v309 = vmax.f32 %v245, 0.0
    %v310 = vmax.f32 %v246, 0.0
    %v311 = vmax.f32 %v247, 0.0
    %v312 = vmax.f32 %v248, 0.0
    %v313 = vmax.f32 %v249, 0.0
    %v314 = vmax.f32 %v250, 0.0
    %v315 = vmax.f32 %v251, 0.0
    %v316 = vmax.f32 %v252, 0.0
    %v317 = vmax.f32 %v253, 0.0
    %v318 = vmax.f32 %v254, 0.0
    %v319 = vmax.f32 %v255, 0.0
    %v320 = vmax.f32 %v256, 0.0
    %v321 = vmax.f32 %v257, 0.0
    %v322 = vmax.f32 %v258, 0.0
    %v323 = vmax.f32 %v259, 0.0
    %v324 = vmax.f32 %v260, 0.0
    %v325 = vmax.f32 %v261, 0.0
    %v326 = vmax.f32 %v262, 0.0
    %v327 = vmax.f32 %v263, 0.0
    %v328 = vmax.f32 %v264, 0.0
    %v329 = vmax.f32 %v265, 0.0
    %v330 = vmax.f32 %v266, 0.0
    %v331 = vmax.f32 %v267, 0.0
    %v332 = vmax.f32 %v268, 0.0
    %v333 = vmax.f32 %v269, 0.0
    %v334 = vmax.f32 %v270, 0.0
    %v335 = vmax.f32 %v271, 0.0
    %v336 = vmax.f32 %v272, 0.0
    %v337 = vmax.f32 %v273, 0.0
    %v338 = vmax.f32 %v274, 0.0
    %v339 = vmax.f32 %v275, 0.0
    %v340 = vmax.f32 %v276, 0.0
    %v341 = vmax.f32 %v277, 0.0
    %v342 = vmax.f32 %v278, 0.0
    %v343 = vmax.f32 %v279, 0.0
    %v344 = vmax.f32 %v280, 0.0
    %v345 = vmax.f32 %v281, 0.0
    %v346 = vmax.f32 %v282, 0.0
    %v347 = vmax.f32 %v283, 0.0
    %v348 = vmax.f32 %v284, 0.0
    %349 = vst [vmem:[#allocation2] sm:$0xff] %v285
    %350 = vst [vmem:[#allocation2 + $0x8] sm:$0xff] %v286
    %351 = vst [vmem:[#allocation2 + $0x10] sm:$0xff] %v287
    %352 = vst [vmem:[#allocation2 + $0x18] sm:$0xff] %v288
    %353 = vst [vmem:[#allocation2 + $0x20] sm:$0xff] %v289
    %354 = vst [vmem:[#allocation2 + $0x28] sm:$0xff] %v290
    %355 = vst [vmem:[#allocation2 + $0x30] sm:$0xff] %v291
    %356 = vst [vmem:[#allocation2 + $0x38] sm:$0xff] %v292
    %357 = vst [vmem:[#allocation2 + $0x40] sm:$0xff] %v293
    %358 = vst [vmem:[#allocation2 + $0x48] sm:$0xff] %v294
    %359 = vst [vmem:[#allocation2 + $0x50] sm:$0xff] %v295
    %360 = vst [vmem:[#allocation2 + $0x58] sm:$0xff] %v296
    %361 = vst [vmem:[#allocation2 + $0x60] sm:$0xff] %v297
    %362 = vst [vmem:[#allocation2 + $0x68] sm:$0xff] %v298
    %363 = vst [vmem:[#allocation2 + $0x70] sm:$0xff] %v299
    %364 = vst [vmem:[#allocation2 + $0x78] sm:$0xff] %v300
    %365 = vst [vmem:[#allocation2 + $0x80] sm:$0xff] %v301
    %366 = vst [vmem:[#allocation2 + $0x88] sm:$0xff] %v302
    %367 = vst [vmem:[#allocation2 + $0x90] sm:$0xff] %v303
    %368 = vst [vmem:[#allocation2 + $0x98] sm:$0xff] %v304
    %369 = vst [vmem:[#allocation2 + $0xa0] sm:$0xff] %v305
    %370 = vst [vmem:[#allocation2 + $0xa8] sm:$0xff] %v306
    %371 = vst [vmem:[#allocation2 + $0xb0] sm:$0xff] %v307
    %372 = vst [vmem:[#allocation2 + $0xb8] sm:$0xff] %v308
    %373 = vst [vmem:[#allocation2 + $0xc0] sm:$0xff] %v309
    %374 = vst [vmem:[#allocation2 + $0xc8] sm:$0xff] %v310
    %375 = vst [vmem:[#allocation2 + $0xd0] sm:$0xff] %v311
    %376 = vst [vmem:[#allocation2 + $0xd8] sm:$0xff] %v312
    %377 = vst [vmem:[#allocation2 + $0xe0] sm:$0xff] %v313
    %378 = vst [vmem:[#allocation2 + $0xe8] sm:$0xff] %v314
    %379 = vst [vmem:[#allocation2 + $0xf0] sm:$0xff] %v315
    %380 = vst [vmem:[#allocation2 + $0xf8] sm:$0xff] %v316
    %381 = vst [vmem:[#allocation2 + $0x100] sm:$0xff] %v317
    %382 = vst [vmem:[#allocation2 + $0x108] sm:$0xff] %v318
    %383 = vst [vmem:[#allocation2 + $0x110] sm:$0xff] %v319
    %384 = vst [vmem:[#allocation2 + $0x118] sm:$0xff] %v320
    %385 = vst [vmem:[#allocation2 + $0x120] sm:$0xff] %v321
    %386 = vst [vmem:[#allocation2 + $0x128] sm:$0xff] %v322
    %387 = vst [vmem:[#allocation2 + $0x130] sm:$0xff] %v323
    %388 = vst [vmem:[#allocation2 + $0x138] sm:$0xff] %v324
    %389 = vst [vmem:[#allocation2 + $0x140] sm:$0xff] %v325
    %390 = vst [vmem:[#allocation2 + $0x148] sm:$0xff] %v326
    %391 = vst [vmem:[#allocation2 + $0x150] sm:$0xff] %v327
    %392 = vst [vmem:[#allocation2 + $0x158] sm:$0xff] %v328
    %393 = vst [vmem:[#allocation2 + $0x160] sm:$0xff] %v329
    %394 = vst [vmem:[#allocation2 + $0x168] sm:$0xff] %v330
    %395 = vst [vmem:[#allocation2 + $0x170] sm:$0xff] %v331
    %396 = vst [vmem:[#allocation2 + $0x178] sm:$0xff] %v332
    %397 = vst [vmem:[#allocation2 + $0x180] sm:$0xff] %v333
    %398 = vst [vmem:[#allocation2 + $0x188] sm:$0xff] %v334
    %399 = vst [vmem:[#allocation2 + $0x190] sm:$0xff] %v335
    %400 = vst [vmem:[#allocation2 + $0x198] sm:$0xff] %v336
    %401 = vst [vmem:[#allocation2 + $0x1a0] sm:$0xff] %v337
    %402 = vst [vmem:[#allocation2 + $0x1a8] sm:$0xff] %v338
    %403 = vst [vmem:[#allocation2 + $0x1b0] sm:$0xff] %v339
    %404 = vst [vmem:[#allocation2 + $0x1b8] sm:$0xff] %v340
    %405 = vst [vmem:[#allocation2 + $0x1c0] sm:$0xff] %v341
    %406 = vst [vmem:[#allocation2 + $0x1c8] sm:$0xff] %v342
    %407 = vst [vmem:[#allocation2 + $0x1d0] sm:$0xff] %v343
    %408 = vst [vmem:[#allocation2 + $0x1d8] sm:$0xff] %v344
    %409 = vst [vmem:[#allocation2 + $0x1e0] sm:$0xff] %v345
    %410 = vst [vmem:[#allocation2 + $0x1e8] sm:$0xff] %v346
    %411 = vst [vmem:[#allocation2 + $0x1f0] sm:$0xff] %v347
    %412 = vst [vmem:[#allocation2 + $0x1f8] sm:$0xff] %v348
    // Predicated region
    $region14: #{double_conv_forward.5} parent=1 // pred_check
      _
    $region15: #{double_conv_forward.5} parent=1 // pred_check_branch
      %414 = sbr.rel (0) target = $region17
    $region16: #{double_conv_forward.5} parent=1 // pred_region
      %s416 = ssub.s32 8192, 8192
      %417 = vsyncadd [#allocation3], %s416
      %s418 = sshll.u32 [#allocation2], 4
      %s419 = int_to_ptr.vmem [resolvable:$true] %s418
      %424 = dma.vmem_to_hbm [thread:$0]  %s419, 8192, %s3, [#allocation3], 128, 128, 8
    $region17: #{double_conv_forward.5} parent=1 // pred_fallthru
      _
    // Predicated region
    $region18: #{double_conv_forward.5} parent=1 // pred_check
      _
    $region19: #{double_conv_forward.5} parent=1 // pred_check_branch
      %426 = sbr.rel (0) target = $region21
    $region20: #{double_conv_forward.5} parent=1 // pred_region
      %427 = dma.done [#allocation3], 8192
    $region21: #{double_conv_forward.5} parent=1 // pred_fallthru
      _
    %428 = vsyncpa [#allocation3], 1

// kernel: double_conv_forward.3
$region0: #{double_conv_forward.3}
  #allocation0 [shape = 'u32[]', space=smem, size = 0x4, offset = 0x4, fixed_abs, tag = 'smem constant byte address 0x4 - core index']
  #allocation1 [shape = 'u32[144,128]{1,0:T(1,128)}', space=vmem, size = 0x12000, scoped, tag = 'internal scratch']
  #allocation2 [shape = 'bf16[256,1152]{1,0:T(16,128)(2,1)}', space=vmem, size = 0x90000, scoped, tag = 'scratch operand']
  %s0 = inlined_call_operand.vmem [shape: bf16[2,18,18,128], index: 0, kind: input, shape index: {}]
  %s1 = inlined_call_operand.vmem [shape: bf16[1152,128], index: 1, kind: input, shape index: {}]
  %s2 = inlined_call_operand.vmem [shape: bf16[2,256,128], index: 2, kind: output, shape index: {0}]
  %s3 = inlined_call_operand.vmem [shape: f32[2,1,128], index: 3, kind: output, shape index: {1}]
  %s4 = inlined_call_operand.vmem [shape: f32[2,1,128], index: 4, kind: output, shape index: {2}]
  %5 = xla_tuple %s2, %s3, %s4
  %s6 = sld [smem:[#allocation0]]
  $region57: #{double_conv_forward.3} parent=0
    _
  %s8 = ssub.s32 1, %s6
  %s9 = scalar_select 0, %s8, %s6
  loop: start=0, step=1, limit=4
  $region2: #{double_conv_forward.3} parent=0 // loop_pre_header
    _
  $region3: #{double_conv_forward.3} parent=0 // loop_header
    %s11 = sphi 0, %s15
    %p12 = scmp.ge.s32.totalorder %s11, 4
    %s21 = sphi 0, %s23
    %s24 = sphi 0, %s21
    %s25 = sphi 0, %s24
    %s41 = sphi 0, %s25
    %s45 = sphi 0, %s45
    %s47 = sphi 0, %s45
    %s48 = sphi 0, %s47
    %s62 = sphi 0, %s48
    %s68 = sphi 0, %s70
    %s71 = sphi 0, %s68
    %s72 = sphi 0, %s71
    %s88 = sphi 0, %s72
    %s94 = sphi 0, %s96
    %s97 = sphi 0, %s94
    %s98 = sphi 0, %s97
    %s114 = sphi 0, %s98
    %s120 = sphi 0, %s122
    %s123 = sphi 0, %s120
    %s124 = sphi 0, %s123
    %s140 = sphi 0, %s124
  $region4: #{double_conv_forward.3} parent=0 // loop_header_branch
    %14 = sbr.rel (%p12) target = $region8
  $region5: #{double_conv_forward.3} parent=0 // loop_body
    %s16 = ssub.s32 %s11, 1
    %s17 = ssub.s32 %s11, 2
    %s18 = sadd.s32 %s11, 1
    %s19 = ssub.s32 %s11, %s18
    %p20 = scmp.eq.s32.totalorder %s19, 0
    %s22 = sadd.s32 %s21, 1
    %s23 = scalar_select %p20, %s21, %s22
    %p26 = pneg %p20
    %p27 = scmp.eq.s32.totalorder %s11, 1
    %p28 = por %p26, %p27
    %p29 = scmp.ne.s32.totalorder %s21, %s24
    %p30 = scmp.eq.s32.totalorder %s11, 0
    %p31 = por %p29, %p30
    %p32 = scmp.ne.s32.totalorder %s21, %s24
    %p33 = scmp.eq.s32.totalorder %s16, 1
    %p34 = por %p32, %p33
    %p35 = scmp.ne.s32.totalorder %s24, %s25
    %p36 = scmp.eq.s32.totalorder %s16, 0
    %p37 = por %p35, %p36
    %p38 = scmp.ne.s32.totalorder %s24, %s25
    %p39 = scmp.eq.s32.totalorder %s17, 1
    %p40 = por %p38, %p39
    %p42 = scmp.ne.s32.totalorder %s25, %s41
    %p43 = scmp.eq.s32.totalorder %s17, 0
    %p44 = por %p42, %p43
    %s46 = sadd.s32 %s45, 1
    %p49 = scmp.eq.s32.totalorder %s11, 1
    %p50 = scmp.ne.s32.totalorder %s45, %s47
    %p51 = scmp.eq.s32.totalorder %s11, 0
    %p52 = por %p50, %p51
    %p53 = scmp.ne.s32.totalorder %s45, %s47
    %p54 = scmp.eq.s32.totalorder %s16, 1
    %p55 = por %p53, %p54
    %p56 = scmp.ne.s32.totalorder %s47, %s48
    %p57 = scmp.eq.s32.totalorder %s16, 0
    %p58 = por %p56, %p57
    %p59 = scmp.ne.s32.totalorder %s47, %s48
    %p60 = scmp.eq.s32.totalorder %s17, 1
    %p61 = por %p59, %p60
    %p63 = scmp.ne.s32.totalorder %s48, %s62
    %p64 = scmp.eq.s32.totalorder %s17, 0
    %p65 = por %p63, %p64
    %s66 = ssub.s32 %s11, %s18
    %p67 = scmp.eq.s32.totalorder %s66, 0
    %s69 = sadd.s32 %s68, 1
    %s70 = scalar_select %p67, %s68, %s69
    %p73 = pneg %p67
    %p74 = scmp.eq.s32.totalorder %s11, 1
    %p75 = por %p73, %p74
    %p76 = scmp.ne.s32.totalorder %s68, %s71
    %p77 = scmp.eq.s32.totalorder %s11, 0
    %p78 = por %p76, %p77
    %p79 = scmp.ne.s32.totalorder %s68, %s71
    %p80 = scmp.eq.s32.totalorder %s16, 1
    %p81 = por %p79, %p80
    %p82 = scmp.ne.s32.totalorder %s71, %s72
    %p83 = scmp.eq.s32.totalorder %s16, 0
    %p84 = por %p82, %p83
    %p85 = scmp.ne.s32.totalorder %s71, %s72
    %p86 = scmp.eq.s32.totalorder %s17, 1
    %p87 = por %p85, %p86
    %p89 = scmp.ne.s32.totalorder %s72, %s88
    %p90 = scmp.eq.s32.totalorder %s17, 0
    %p91 = por %p89, %p90
    %s92 = ssub.s32 %s11, %s18
    %p93 = scmp.eq.s32.totalorder %s92, 0
    %s95 = sadd.s32 %s94, 1
    %s96 = scalar_select %p93, %s94, %s95
    %p99 = pneg %p93
    %p100 = scmp.eq.s32.totalorder %s11, 1
    %p101 = por %p99, %p100
    %p102 = scmp.ne.s32.totalorder %s94, %s97
    %p103 = scmp.eq.s32.totalorder %s11, 0
    %p104 = por %p102, %p103
    %p105 = scmp.ne.s32.totalorder %s94, %s97
    %p106 = scmp.eq.s32.totalorder %s16, 1
    %p107 = por %p105, %p106
    %p108 = scmp.ne.s32.totalorder %s97, %s98
    %p109 = scmp.eq.s32.totalorder %s16, 0
    %p110 = por %p108, %p109
    %p111 = scmp.ne.s32.totalorder %s97, %s98
    %p112 = scmp.eq.s32.totalorder %s17, 1
    %p113 = por %p111, %p112
    %p115 = scmp.ne.s32.totalorder %s98, %s114
    %p116 = scmp.eq.s32.totalorder %s17, 0
    %p117 = por %p115, %p116
    %s118 = ssub.s32 %s11, %s18
    %p119 = scmp.eq.s32.totalorder %s118, 0
    %s121 = sadd.s32 %s120, 1
    %s122 = scalar_select %p119, %s120, %s121
    %p125 = pneg %p119
    %p126 = scmp.eq.s32.totalorder %s11, 1
    %p127 = por %p125, %p126
    %p128 = scmp.ne.s32.totalorder %s120, %s123
    %p129 = scmp.eq.s32.totalorder %s11, 0
    %p130 = por %p128, %p129
    %p131 = scmp.ne.s32.totalorder %s120, %s123
    %p132 = scmp.eq.s32.totalorder %s16, 1
    %p133 = por %p131, %p132
    %p134 = scmp.ne.s32.totalorder %s123, %s124
    %p135 = scmp.eq.s32.totalorder %s16, 0
    %p136 = por %p134, %p135
    %p137 = scmp.ne.s32.totalorder %s123, %s124
    %p138 = scmp.eq.s32.totalorder %s17, 1
    %p139 = por %p137, %p138
    %p141 = scmp.ne.s32.totalorder %s124, %s140
    %p142 = scmp.eq.s32.totalorder %s17, 0
    %p143 = por %p141, %p142
    %p144 = scmp.le.s32.totalorder 1, %s11
    %p145 = scmp.lt.s32.totalorder %s11, 3
    %p146 = pnand %p144, %p145
    %p147 = pneg %p146
    // Predicated region
    $region9: #{double_conv_forward.3} parent=5 // pred_check
      _
    $region10: #{double_conv_forward.3} parent=5 // pred_check_branch
      %149 = sbr.rel (%p146) target = $region12
    $region11: #{double_conv_forward.3} parent=5 // pred_region
      %s150 = ssub.s32 %s11, 1
      // Predicated region
      $region13: #{double_conv_forward.3} parent=11 // pred_check
        %p151 = pneg %p58
      $region14: #{double_conv_forward.3} parent=11 // pred_check_branch
        %153 = sbr.rel (%p151) target = $region16
      $region15: #{double_conv_forward.3} parent=11 // pred_region
        _
      $region16: #{double_conv_forward.3} parent=11 // pred_fallthru
        _
    $region12: #{double_conv_forward.3} parent=5 // pred_fallthru
      _
    %p154 = scmp.lt.s32.totalorder %s11, 2
    // Predicated region
    $region17: #{double_conv_forward.3} parent=5 // pred_check
      %p155 = pneg %p154
    $region18: #{double_conv_forward.3} parent=5 // pred_check_branch
      %157 = sbr.rel (%p155) target = $region20
    $region19: #{double_conv_forward.3} parent=5 // pred_region
      // Predicated region
      $region21: #{double_conv_forward.3} parent=19 // pred_check
        %p158 = pneg %p31
      $region22: #{double_conv_forward.3} parent=19 // pred_check_branch
        %160 = sbr.rel (%p158) target = $region24
      $region23: #{double_conv_forward.3} parent=19 // pred_region
        %p161 = scmp.lt.s32.totalorder %s11, 1
        %s162 = scalar_select %p161, %s11, 1
        %s163 = smul.addr %s162, 54
        %s164 = smul.addr %s163, 4
        %s165 = scalar_lea.vmem %s0, %s164
      $region24: #{double_conv_forward.3} parent=19 // pred_fallthru
        _
    $region20: #{double_conv_forward.3} parent=5 // pred_fallthru
      _
    %p166 = scmp.le.s32.totalorder 1, %s11
    %p167 = scmp.lt.s32.totalorder %s11, 3
    %p168 = pnand %p166, %p167
    %p169 = pneg %p168
    // Predicated region
    $region25: #{double_conv_forward.3} parent=5 // pred_check
      _
    $region26: #{double_conv_forward.3} parent=5 // pred_check_branch
      %171 = sbr.rel (%p168) target = $region28
    $region27: #{double_conv_forward.3} parent=5 // pred_region
      %s172 = ssub.s32 %s11, 1
      %p173 = scmp.lt.s32.totalorder %s16, 1
      %s174 = scalar_select %p173, %s16, 1
      %s175 = smul.addr %s174, 54
      %s176 = smul.addr %s175, 4
      %s177 = scalar_lea.vmem %s0, %s176
      %p178 = pneg %p37
      %p179 = pneg %p34
      %p180 = pneg %p58
      %p181 = pneg %p55
      %p182 = pneg %p84
      %p183 = pneg %p81
      %p184 = scmp.lt.s32.totalorder %s16, 1
      %s185 = scalar_select %p184, %s16, 1
      %s186 = smul.addr %s185, 32
      %s187 = smul.addr %s186, 4
      %s188 = scalar_lea.vmem %s2, %s187
      %p189 = pneg %p110
      %p190 = pneg %p107
      %p191 = scmp.lt.s32.totalorder %s16, 1
      %s192 = scalar_select %p191, %s16, 1
      %s193 = scalar_lea.vmem %s3, %s192
      %p194 = pneg %p136
      %p195 = pneg %p133
      %p196 = scmp.lt.s32.totalorder %s16, 1
      %s197 = scalar_select %p196, %s16, 1
      %s198 = scalar_lea.vmem %s4, %s197
      %p199 = scmp.lt.s32.totalorder %s16, 1
      %s200 = scalar_select %p199, %s16, 1
      %s201 = smul.addr %s200, 54
      %s202 = smul.addr %s201, 4
      %s203 = scalar_lea.vmem %s0, %s202
      %p204 = scmp.lt.s32.totalorder %s16, 1
      %s205 = scalar_select %p204, %s16, 1
      %s206 = smul.addr %s205, 32
      %s207 = smul.addr %s206, 4
      %s208 = scalar_lea.vmem %s2, %s207
      %p209 = scmp.lt.s32.totalorder %s16, 1
      %s210 = scalar_select %p209, %s16, 1
      %s211 = scalar_lea.vmem %s3, %s210
      %p212 = scmp.lt.s32.totalorder %s16, 1
      %s213 = scalar_select %p212, %s16, 1
      %s214 = scalar_lea.vmem %s4, %s213
      %v216 = vld [vmem:[%s203] sm:$0xf]
      %v217 = vld [vmem:[%s203 + $0x4] sm:$0xf]
      %v218 = vld [vmem:[%s203 + $0xc] sm:$0xf]
      %v219 = vld [vmem:[%s203 + $0x10] sm:$0xf]
      %v220 = vld [vmem:[%s203 + $0x18] sm:$0xf]
      %v221 = vld [vmem:[%s203 + $0x1c] sm:$0xf]
      %v222 = vld [vmem:[%s203 + $0x24] sm:$0xf]
      %v223 = vld [vmem:[%s203 + $0x28] sm:$0xf]
      %v224 = vld [vmem:[%s203 + $0x30] sm:$0xf]
      %v225 = vld [vmem:[%s203 + $0x34] sm:$0xf]
      %v226 = vld [vmem:[%s203 + $0x3c] sm:$0xf]
      %v227 = vld [vmem:[%s203 + $0x40] sm:$0xf]
      %v228 = vld [vmem:[%s203 + $0x48] sm:$0xf]
      %v229 = vld [vmem:[%s203 + $0x4c] sm:$0xf]
      %v230 = vld [vmem:[%s203 + $0x54] sm:$0xf]
      %v231 = vld [vmem:[%s203 + $0x58] sm:$0xf]
      %v232 = vld [vmem:[%s203 + $0x60] sm:$0xf]
      %v233 = vld [vmem:[%s203 + $0x64] sm:$0xf]
      %v234 = vld [vmem:[%s203 + $0x6c] sm:$0xf]
      %v235 = vld [vmem:[%s203 + $0x70] sm:$0xf]
      %v236 = vld [vmem:[%s203 + $0x78] sm:$0xf]
      %v237 = vld [vmem:[%s203 + $0x7c] sm:$0xf]
      %v238 = vld [vmem:[%s203 + $0x84] sm:$0xf]
      %v239 = vld [vmem:[%s203 + $0x88] sm:$0xf]
      %v240 = vld [vmem:[%s203 + $0x90] sm:$0xf]
      %v241 = vld [vmem:[%s203 + $0x94] sm:$0xf]
      %v242 = vld [vmem:[%s203 + $0x9c] sm:$0xf]
      %v243 = vld [vmem:[%s203 + $0xa0] sm:$0xf]
      %v244 = vld [vmem:[%s203 + $0xa8] sm:$0xf]
      %v245 = vld [vmem:[%s203 + $0xac] sm:$0xf]
      %v246 = vld [vmem:[%s203 + $0xb4] sm:$0xf]
      %v247 = vld [vmem:[%s203 + $0xb8] sm:$0xf]
      %v280 = vunpack.c.l.b16 %v216
      %v281 = vunpack.c.l.b16 %v217
      %v282 = vunpack.c.l.b16 %v218
      %v283 = vunpack.c.l.b16 %v219
      %v284 = vunpack.c.l.b16 %v220
      %v285 = vunpack.c.l.b16 %v221
      %v286 = vunpack.c.l.b16 %v222
      %v287 = vunpack.c.l.b16 %v223
      %v288 = vunpack.c.l.b16 %v224
      %v289 = vunpack.c.l.b16 %v225
      %v290 = vunpack.c.l.b16 %v226
      %v291 = vunpack.c.l.b16 %v227
      %v292 = vunpack.c.l.b16 %v228
      %v293 = vunpack.c.l.b16 %v229
      %v294 = vunpack.c.l.b16 %v230
      %v295 = vunpack.c.l.b16 %v231
      %v296 = vunpack.c.l.b16 %v232
      %v297 = vunpack.c.l.b16 %v233
      %v298 = vunpack.c.l.b16 %v234
      %v299 = vunpack.c.l.b16 %v235
      %v300 = vunpack.c.l.b16 %v236
      %v301 = vunpack.c.l.b16 %v237
      %v302 = vunpack.c.l.b16 %v238
      %v303 = vunpack.c.l.b16 %v239
      %v304 = vunpack.c.l.b16 %v240
      %v305 = vunpack.c.l.b16 %v241
      %v306 = vunpack.c.l.b16 %v242
      %v307 = vunpack.c.l.b16 %v243
      %v308 = vunpack.c.l.b16 %v244
      %v309 = vunpack.c.l.b16 %v245
      %v310 = vunpack.c.l.b16 %v246
      %v311 = vunpack.c.l.b16 %v247
      %v312 = vpack.c.b16 %v281, %v280
      %v313 = vpack.c.b16 %v283, %v282
      %v314 = vpack.c.b16 %v285, %v284
      %v315 = vpack.c.b16 %v287, %v286
      %v316 = vpack.c.b16 %v289, %v288
      %v317 = vpack.c.b16 %v291, %v290
      %v318 = vpack.c.b16 %v293, %v292
      %v319 = vpack.c.b16 %v295, %v294
      %v320 = vpack.c.b16 %v297, %v296
      %v321 = vpack.c.b16 %v299, %v298
      %v322 = vpack.c.b16 %v301, %v300
      %v323 = vpack.c.b16 %v303, %v302
      %v324 = vpack.c.b16 %v305, %v304
      %v325 = vpack.c.b16 %v307, %v306
      %v326 = vpack.c.b16 %v309, %v308
      %v327 = vpack.c.b16 %v311, %v310
      %344 = vst [vmem:[#allocation2] sm:$0xff] %v312
      %345 = vst [vmem:[#allocation2 + $0x48] sm:$0xff] %v313
      %346 = vst [vmem:[#allocation2 + $0x90] sm:$0xff] %v314
      %347 = vst [vmem:[#allocation2 + $0xd8] sm:$0xff] %v315
      %348 = vst [vmem:[#allocation2 + $0x120] sm:$0xff] %v316
      %349 = vst [vmem:[#allocation2 + $0x168] sm:$0xff] %v317
      %350 = vst [vmem:[#allocation2 + $0x1b0] sm:$0xff] %v318
      %351 = vst [vmem:[#allocation2 + $0x1f8] sm:$0xff] %v319
      %352 = vst [vmem:[#allocation2 + $0x240] sm:$0xff] %v320
      %353 = vst [vmem:[#allocation2 + $0x288] sm:$0xff] %v321
      %354 = vst [vmem:[#allocation2 + $0x2d0] sm:$0xff] %v322
      %355 = vst [vmem:[#allocation2 + $0x318] sm:$0xff] %v323
      %356 = vst [vmem:[#allocation2 + $0x360] sm:$0xff] %v324
      %357 = vst [vmem:[#allocation2 + $0x3a8] sm:$0xff] %v325
      %358 = vst [vmem:[#allocation2 + $0x3f0] sm:$0xff] %v326
      %359 = vst [vmem:[#allocation2 + $0x438] sm:$0xff] %v327
      %v360 = vld [vmem:[%s203] sm:$0xf]
      %v361 = vld [vmem:[%s203 + $0x4] sm:$0xf]
      %v362 = vld [vmem:[%s203 + $0x8] sm:$0x1]
      %v363 = vld [vmem:[%s203 + $0xc] sm:$0xf]
      %v364 = vld [vmem:[%s203 + $0x10] sm:$0xf]
      %v365 = vld [vmem:[%s203 + $0x14] sm:$0x1]
      %v366 = vld [vmem:[%s203 + $0x18] sm:$0xf]
      %v367 = vld [vmem:[%s203 + $0x1c] sm:$0xf]
      %v368 = vld [vmem:[%s203 + $0x20] sm:$0x1]
      %v369 = vld [vmem:[%s203 + $0x24] sm:$0xf]
      %v370 = vld [vmem:[%s203 + $0x28] sm:$0xf]
      %v371 = vld [vmem:[%s203 + $0x2c] sm:$0x1]
      %v372 = vld [vmem:[%s203 + $0x30] sm:$0xf]
      %v373 = vld [vmem:[%s203 + $0x34] sm:$0xf]
      %v374 = vld [vmem:[%s203 + $0x38] sm:$0x1]
      %v375 = vld [vmem:[%s203 + $0x3c] sm:$0xf]
      %v376 = vld [vmem:[%s203 + $0x40] sm:$0xf]
      %v377 = vld [vmem:[%s203 + $0x44] sm:$0x1]
      %v378 = vld [vmem:[%s203 + $0x48] sm:$0xf]
      %v379 = vld [vmem:[%s203 + $0x4c] sm:$0xf]
      %v380 = vld [vmem:[%s203 + $0x50] sm:$0x1]
      %v381 = vld [vmem:[%s203 + $0x54] sm:$0xf]
      %v382 = vld [vmem:[%s203 + $0x58] sm:$0xf]
      %v383 = vld [vmem:[%s203 + $0x5c] sm:$0x1]
      %v384 = vld [vmem:[%s203 + $0x60] sm:$0xf]
      %v385 = vld [vmem:[%s203 + $0x64] sm:$0xf]
      %v386 = vld [vmem:[%s203 + $0x68] sm:$0x1]
      %v387 = vld [vmem:[%s203 + $0x6c] sm:$0xf]
      %v388 = vld [vmem:[%s203 + $0x70] sm:$0xf]
      %v389 = vld [vmem:[%s203 + $0x74] sm:$0x1]
      %v390 = vld [vmem:[%s203 + $0x78] sm:$0xf]
      %v391 = vld [vmem:[%s203 + $0x7c] sm:$0xf]
      %v392 = vld [vmem:[%s203 + $0x80] sm:$0x1]
      %v393 = vld [vmem:[%s203 + $0x84] sm:$0xf]
      %v394 = vld [vmem:[%s203 + $0x88] sm:$0xf]
      %v395 = vld [vmem:[%s203 + $0x8c] sm:$0x1]
      %v396 = vld [vmem:[%s203 + $0x90] sm:$0xf]
      %v397 = vld [vmem:[%s203 + $0x94] sm:$0xf]
      %v398 = vld [vmem:[%s203 + $0x98] sm:$0x1]
      %v399 = vld [vmem:[%s203 + $0x9c] sm:$0xf]
      %v400 = vld [vmem:[%s203 + $0xa0] sm:$0xf]
      %v401 = vld [vmem:[%s203 + $0xa4] sm:$0x1]
      %v402 = vld [vmem:[%s203 + $0xa8] sm:$0xf]
      %v403 = vld [vmem:[%s203 + $0xac] sm:$0xf]
      %v404 = vld [vmem:[%s203 + $0xb0] sm:$0x1]
      %v405 = vld [vmem:[%s203 + $0xb4] sm:$0xf]
      %v406 = vld [vmem:[%s203 + $0xb8] sm:$0xf]
      %v407 = vld [vmem:[%s203 + $0xbc] sm:$0x1]
      %vm408 = vsmask.f32 3328
      %vm409 = vsmask.f32 7440
      %vm410 = vmor %vm408, %vm409
      %v412 = vshrl.u32 %v360, 16
      %v414 = vrot.slane %v412, 4
      %v415 = vshll.u32 %v360, 16
      %v417 = vrot.slane %v415, 5
      %v418 = vor.u32 %v414, %v417
      %v419 = vrot.slane %v418, 4
      %v421 = vshll.u32 %v361, 16
      %v423 = vrot.slane %v421, 5
      %v424 = vsel %vm410, %v419, %v423
      %v425 = vshrl.u32 %v361, 16
      %v427 = vrot.slane %v425, 4
      %v428 = vor.u32 %v427, %v423
      %v429 = vrot.slane %v428, 4
      %v431 = vshll.u32 %v362, 16
      %v433 = vrot.slane %v431, 5
      %v434 = vsel %vm410, %v429, %v433
      %v436 = vshrl.u32 %v363, 16
      %v438 = vrot.slane %v436, 4
      %v439 = vshll.u32 %v363, 16
      %v441 = vrot.slane %v439, 5
      %v442 = vor.u32 %v438, %v441
      %v443 = vrot.slane %v442, 4
      %v445 = vshll.u32 %v364, 16
      %v447 = vrot.slane %v445, 5
      %v448 = vsel %vm410, %v443, %v447
      %v449 = vshrl.u32 %v364, 16
      %v451 = vrot.slane %v449, 4
      %v452 = vor.u32 %v451, %v447
      %v453 = vrot.slane %v452, 4
      %v455 = vshll.u32 %v365, 16
      %v457 = vrot.slane %v455, 5
      %v458 = vsel %vm410, %v453, %v457
      %v460 = vshrl.u32 %v366, 16
      %v462 = vrot.slane %v460, 4
      %v463 = vshll.u32 %v366, 16
      %v465 = vrot.slane %v463, 5
      %v466 = vor.u32 %v462, %v465
      %v467 = vrot.slane %v466, 4
      %v469 = vshll.u32 %v367, 16
      %v471 = vrot.slane %v469, 5
      %v472 = vsel %vm410, %v467, %v471
      %v473 = vshrl.u32 %v367, 16
      %v475 = vrot.slane %v473, 4
      %v476 = vor.u32 %v475, %v471
      %v477 = vrot.slane %v476, 4
      %v479 = vshll.u32 %v368, 16
      %v481 = vrot.slane %v479, 5
      %v482 = vsel %vm410, %v477, %v481
      %v484 = vshrl.u32 %v369, 16
      %v486 = vrot.slane %v484, 4
      %v487 = vshll.u32 %v369, 16
      %v489 = vrot.slane %v487, 5
      %v490 = vor.u32 %v486, %v489
      %v491 = vrot.slane %v490, 4
      %v493 = vshll.u32 %v370, 16
      %v495 = vrot.slane %v493, 5
      %v496 = vsel %vm410, %v491, %v495
      %v497 = vshrl.u32 %v370, 16
      %v499 = vrot.slane %v497, 4
      %v500 = vor.u32 %v499, %v495
      %v501 = vrot.slane %v500, 4
      %v503 = vshll.u32 %v371, 16
      %v505 = vrot.slane %v503, 5
      %v506 = vsel %vm410, %v501, %v505
      %v508 = vshrl.u32 %v372, 16
      %v510 = vrot.slane %v508, 4
      %v511 = vshll.u32 %v372, 16
      %v513 = vrot.slane %v511, 5
      %v514 = vor.u32 %v510, %v513
      %v515 = vrot.slane %v514, 4
      %v517 = vshll.u32 %v373, 16
      %v519 = vrot.slane %v517, 5
      %v520 = vsel %vm410, %v515, %v519
      %v521 = vshrl.u32 %v373, 16
      %v523 = vrot.slane %v521, 4
      %v524 = vor.u32 %v523, %v519
      %v525 = vrot.slane %v524, 4
      %v527 = vshll.u32 %v374, 16
      %v529 = vrot.slane %v527, 5
      %v530 = vsel %vm410, %v525, %v529
      %v532 = vshrl.u32 %v375, 16
      %v534 = vrot.slane %v532, 4
      %v535 = vshll.u32 %v375, 16
      %v537 = vrot.slane %v535, 5
      %v538 = vor.u32 %v534, %v537
      %v539 = vrot.slane %v538, 4
      %v541 = vshll.u32 %v376, 16
      %v543 = vrot.slane %v541, 5
      %v544 = vsel %vm410, %v539, %v543
      %v545 = vshrl.u32 %v376, 16
      %v547 = vrot.slane %v545, 4
      %v548 = vor.u32 %v547, %v543
      %v549 = vrot.slane %v548, 4
      %v551 = vshll.u32 %v377, 16
      %v553 = vrot.slane %v551, 5
      %v554 = vsel %vm410, %v549, %v553
      %v556 = vshrl.u32 %v378, 16
      %v558 = vrot.slane %v556, 4
      %v559 = vshll.u32 %v378, 16
      %v561 = vrot.slane %v559, 5
      %v562 = vor.u32 %v558, %v561
      %v563 = vrot.slane %v562, 4
      %v565 = vshll.u32 %v379, 16
      %v567 = vrot.slane %v565, 5
      %v568 = vsel %vm410, %v563, %v567
      %v569 = vshrl.u32 %v379, 16
      %v571 = vrot.slane %v569, 4
      %v572 = vor.u32 %v571, %v567
      %v573 = vrot.slane %v572, 4
      %v575 = vshll.u32 %v380, 16
      %v577 = vrot.slane %v575, 5
      %v578 = vsel %vm410, %v573, %v577
      %v580 = vshrl.u32 %v381, 16
      %v582 = vrot.slane %v580, 4
      %v583 = vshll.u32 %v381, 16
      %v585 = vrot.slane %v583, 5
      %v586 = vor.u32 %v582, %v585
      %v587 = vrot.slane %v586, 4
      %v589 = vshll.u32 %v382, 16
      %v591 = vrot.slane %v589, 5
      %v592 = vsel %vm410, %v587, %v591
      %v593 = vshrl.u32 %v382, 16
      %v595 = vrot.slane %v593, 4
      %v596 = vor.u32 %v595, %v591
      %v597 = vrot.slane %v596, 4
      %v599 = vshll.u32 %v383, 16
      %v601 = vrot.slane %v599, 5
      %v602 = vsel %vm410, %v597, %v601
      %v604 = vshrl.u32 %v384, 16
      %v606 = vrot.slane %v604, 4
      %v607 = vshll.u32 %v384, 16
      %v609 = vrot.slane %v607, 5
      %v610 = vor.u32 %v606, %v609
      %v611 = vrot.slane %v610, 4
      %v613 = vshll.u32 %v385, 16
      %v615 = vrot.slane %v613, 5
      %v616 = vsel %vm410, %v611, %v615
      %v617 = vshrl.u32 %v385, 16
      %v619 = vrot.slane %v617, 4
      %v620 = vor.u32 %v619, %v615
      %v621 = vrot.slane %v620, 4
      %v623 = vshll.u32 %v386, 16
      %v625 = vrot.slane %v623, 5
      %v626 = vsel %vm410, %v621, %v625
      %v628 = vshrl.u32 %v387, 16
      %v630 = vrot.slane %v628, 4
      %v631 = vshll.u32 %v387, 16
      %v633 = vrot.slane %v631, 5
      %v634 = vor.u32 %v630, %v633
      %v635 = vrot.slane %v634, 4
      %v637 = vshll.u32 %v388, 16
      %v639 = vrot.slane %v637, 5
      %v640 = vsel %vm410, %v635, %v639
      %v641 = vshrl.u32 %v388, 16
      %v643 = vrot.slane %v641, 4
      %v644 = vor.u32 %v643, %v639
      %v645 = vrot.slane %v644, 4
      %v647 = vshll.u32 %v389, 16
      %v649 = vrot.slane %v647, 5
      %v650 = vsel %vm410, %v645, %v649
      %v652 = vshrl.u32 %v390, 16
      %v654 = vrot.slane %v652, 4
      %v655 = vshll.u32 %v390, 16
      %v657 = vrot.slane %v655, 5
      %v658 = vor.u32 %v654, %v657
      %v659 = vrot.slane %v658, 4
      %v661 = vshll.u32 %v391, 16
      %v663 = vrot.slane %v661, 5
      %v664 = vsel %vm410, %v659, %v663
      %v665 = vshrl.u32 %v391, 16
      %v667 = vrot.slane %v665, 4
      %v668 = vor.u32 %v667, %v663
      %v669 = vrot.slane %v668, 4
      %v671 = vshll.u32 %v392, 16
      %v673 = vrot.slane %v671, 5
      %v674 = vsel %vm410, %v669, %v673
      %v676 = vshrl.u32 %v393, 16
      %v678 = vrot.slane %v676, 4
      %v679 = vshll.u32 %v393, 16
      %v681 = vrot.slane %v679, 5
      %v682 = vor.u32 %v678, %v681
      %v683 = vrot.slane %v682, 4
      %v685 = vshll.u32 %v394, 16
      %v687 = vrot.slane %v685, 5
      %v688 = vsel %vm410, %v683, %v687
      %v689 = vshrl.u32 %v394, 16
      %v691 = vrot.slane %v689, 4
      %v692 = vor.u32 %v691, %v687
      %v693 = vrot.slane %v692, 4
      %v695 = vshll.u32 %v395, 16
      %v697 = vrot.slane %v695, 5
      %v698 = vsel %vm410, %v693, %v697
      %v700 = vshrl.u32 %v396, 16
      %v702 = vrot.slane %v700, 4
      %v703 = vshll.u32 %v396, 16
      %v705 = vrot.slane %v703, 5
      %v706 = vor.u32 %v702, %v705
      %v707 = vrot.slane %v706, 4
      %v709 = vshll.u32 %v397, 16
      %v711 = vrot.slane %v709, 5
      %v712 = vsel %vm410, %v707, %v711
      %v713 = vshrl.u32 %v397, 16
      %v715 = vrot.slane %v713, 4
      %v716 = vor.u32 %v715, %v711
      %v717 = vrot.slane %v716, 4
      %v719 = vshll.u32 %v398, 16
      %v721 = vrot.slane %v719, 5
      %v722 = vsel %vm410, %v717, %v721
      %v724 = vshrl.u32 %v399, 16
      %v726 = vrot.slane %v724, 4
      %v727 = vshll.u32 %v399, 16
      %v729 = vrot.slane %v727, 5
      %v730 = vor.u32 %v726, %v729
      %v731 = vrot.slane %v730, 4
      %v733 = vshll.u32 %v400, 16
      %v735 = vrot.slane %v733, 5
      %v736 = vsel %vm410, %v731, %v735
      %v737 = vshrl.u32 %v400, 16
      %v739 = vrot.slane %v737, 4
      %v740 = vor.u32 %v739, %v735
      %v741 = vrot.slane %v740, 4
      %v743 = vshll.u32 %v401, 16
      %v745 = vrot.slane %v743, 5
      %v746 = vsel %vm410, %v741, %v745
      %v748 = vshrl.u32 %v402, 16
      %v750 = vrot.slane %v748, 4
      %v751 = vshll.u32 %v402, 16
      %v753 = vrot.slane %v751, 5
      %v754 = vor.u32 %v750, %v753
      %v755 = vrot.slane %v754, 4
      %v757 = vshll.u32 %v403, 16
      %v759 = vrot.slane %v757, 5
      %v760 = vsel %vm410, %v755, %v759
      %v761 = vshrl.u32 %v403, 16
      %v763 = vrot.slane %v761, 4
      %v764 = vor.u32 %v763, %v759
      %v765 = vrot.slane %v764, 4
      %v767 = vshll.u32 %v404, 16
      %v769 = vrot.slane %v767, 5
      %v770 = vsel %vm410, %v765, %v769
      %v772 = vshrl.u32 %v405, 16
      %v774 = vrot.slane %v772, 4
      %v775 = vshll.u32 %v405, 16
      %v777 = vrot.slane %v775, 5
      %v778 = vor.u32 %v774, %v777
      %v779 = vrot.slane %v778, 4
      %v781 = vshll.u32 %v406, 16
      %v783 = vrot.slane %v781, 5
      %v784 = vsel %vm410, %v779, %v783
      %v785 = vshrl.u32 %v406, 16
      %v787 = vrot.slane %v785, 4
      %v788 = vor.u32 %v787, %v783
      %v789 = vrot.slane %v788, 4
      %v791 = vshll.u32 %v407, 16
      %v793 = vrot.slane %v791, 5
      %v794 = vsel %vm410, %v789, %v793
      %v795 = vunpack.c.l.b16 %v424
      %v796 = vunpack.c.l.b16 %v434
      %v797 = vunpack.c.l.b16 %v448
      %v798 = vunpack.c.l.b16 %v458
      %v799 = vunpack.c.l.b16 %v472
      %v800 = vunpack.c.l.b16 %v482
      %v801 = vunpack.c.l.b16 %v496
      %v802 = vunpack.c.l.b16 %v506
      %v803 = vunpack.c.l.b16 %v520
      %v804 = vunpack.c.l.b16 %v530
      %v805 = vunpack.c.l.b16 %v544
      %v806 = vunpack.c.l.b16 %v554
      %v807 = vunpack.c.l.b16 %v568
      %v808 = vunpack.c.l.b16 %v578
      %v809 = vunpack.c.l.b16 %v592
      %v810 = vunpack.c.l.b16 %v602
      %v811 = vunpack.c.l.b16 %v616
      %v812 = vunpack.c.l.b16 %v626
      %v813 = vunpack.c.l.b16 %v640
      %v814 = vunpack.c.l.b16 %v650
      %v815 = vunpack.c.l.b16 %v664
      %v816 = vunpack.c.l.b16 %v674
      %v817 = vunpack.c.l.b16 %v688
      %v818 = vunpack.c.l.b16 %v698
      %v819 = vunpack.c.l.b16 %v712
      %v820 = vunpack.c.l.b16 %v722
      %v821 = vunpack.c.l.b16 %v736
      %v822 = vunpack.c.l.b16 %v746
      %v823 = vunpack.c.l.b16 %v760
      %v824 = vunpack.c.l.b16 %v770
      %v825 = vunpack.c.l.b16 %v784
      %v826 = vunpack.c.l.b16 %v794
      %v827 = vpack.c.b16 %v796, %v795
      %v828 = vpack.c.b16 %v798, %v797
      %v829 = vpack.c.b16 %v800, %v799
      %v830 = vpack.c.b16 %v802, %v801
      %v831 = vpack.c.b16 %v804, %v803
      %v832 = vpack.c.b16 %v806, %v805
      %v833 = vpack.c.b16 %v808, %v807
      %v834 = vpack.c.b16 %v810, %v809
      %v835 = vpack.c.b16 %v812, %v811
      %v836 = vpack.c.b16 %v814, %v813
      %v837 = vpack.c.b16 %v816, %v815
      %v838 = vpack.c.b16 %v818, %v817
      %v839 = vpack.c.b16 %v820, %v819
      %v840 = vpack.c.b16 %v822, %v821
      %v841 = vpack.c.b16 %v824, %v823
      %v842 = vpack.c.b16 %v826, %v825
      %859 = vst [vmem:[#allocation2 + $0x8] sm:$0xff] %v827
      %860 = vst [vmem:[#allocation2 + $0x50] sm:$0xff] %v828
      %861 = vst [vmem:[#allocation2 + $0x98] sm:$0xff] %v829
      %862 = vst [vmem:[#allocation2 + $0xe0] sm:$0xff] %v830
      %863 = vst [vmem:[#allocation2 + $0x128] sm:$0xff] %v831
      %864 = vst [vmem:[#allocation2 + $0x170] sm:$0xff] %v832
      %865 = vst [vmem:[#allocation2 + $0x1b8] sm:$0xff] %v833
      %866 = vst [vmem:[#allocation2 + $0x200] sm:$0xff] %v834
      %867 = vst [vmem:[#allocation2 + $0x248] sm:$0xff] %v835
      %868 = vst [vmem:[#allocation2 + $0x290] sm:$0xff] %v836
      %869 = vst [vmem:[#allocation2 + $0x2d8] sm:$0xff] %v837
      %870 = vst [vmem:[#allocation2 + $0x320] sm:$0xff] %v838
      %871 = vst [vmem:[#allocation2 + $0x368] sm:$0xff] %v839
      %872 = vst [vmem:[#allocation2 + $0x3b0] sm:$0xff] %v840
      %873 = vst [vmem:[#allocation2 + $0x3f8] sm:$0xff] %v841
      %874 = vst [vmem:[#allocation2 + $0x440] sm:$0xff] %v842
      %v875 = vld [vmem:[%s203] sm:$0xe]
      %v876 = vld [vmem:[%s203 + $0x4] sm:$0xf]
      %v877 = vld [vmem:[%s203 + $0x8] sm:$0x1]
      %v878 = vld [vmem:[%s203 + $0xc] sm:$0xe]
      %v879 = vld [vmem:[%s203 + $0x10] sm:$0xf]
      %v880 = vld [vmem:[%s203 + $0x14] sm:$0x1]
      %v881 = vld [vmem:[%s203 + $0x18] sm:$0xe]
      %v882 = vld [vmem:[%s203 + $0x1c] sm:$0xf]
      %v883 = vld [vmem:[%s203 + $0x20] sm:$0x1]
      %v884 = vld [vmem:[%s203 + $0x24] sm:$0xe]
      %v885 = vld [vmem:[%s203 + $0x28] sm:$0xf]
      %v886 = vld [vmem:[%s203 + $0x2c] sm:$0x1]
      %v887 = vld [vmem:[%s203 + $0x30] sm:$0xe]
      %v888 = vld [vmem:[%s203 + $0x34] sm:$0xf]
      %v889 = vld [vmem:[%s203 + $0x38] sm:$0x1]
      %v890 = vld [vmem:[%s203 + $0x3c] sm:$0xe]
      %v891 = vld [vmem:[%s203 + $0x40] sm:$0xf]
      %v892 = vld [vmem:[%s203 + $0x44] sm:$0x1]
      %v893 = vld [vmem:[%s203 + $0x48] sm:$0xe]
      %v894 = vld [vmem:[%s203 + $0x4c] sm:$0xf]
      %v895 = vld [vmem:[%s203 + $0x50] sm:$0x1]
      %v896 = vld [vmem:[%s203 + $0x54] sm:$0xe]
      %v897 = vld [vmem:[%s203 + $0x58] sm:$0xf]
      %v898 = vld [vmem:[%s203 + $0x5c] sm:$0x1]
      %v899 = vld [vmem:[%s203 + $0x60] sm:$0xe]
      %v900 = vld [vmem:[%s203 + $0x64] sm:$0xf]
      %v901 = vld [vmem:[%s203 + $0x68] sm:$0x1]
      %v902 = vld [vmem:[%s203 + $0x6c] sm:$0xe]
      %v903 = vld [vmem:[%s203 + $0x70] sm:$0xf]
      %v904 = vld [vmem:[%s203 + $0x74] sm:$0x1]
      %v905 = vld [vmem:[%s203 + $0x78] sm:$0xe]
      %v906 = vld [vmem:[%s203 + $0x7c] sm:$0xf]
      %v907 = vld [vmem:[%s203 + $0x80] sm:$0x1]
      %v908 = vld [vmem:[%s203 + $0x84] sm:$0xe]
      %v909 = vld [vmem:[%s203 + $0x88] sm:$0xf]
      %v910 = vld [vmem:[%s203 + $0x8c] sm:$0x1]
      %v911 = vld [vmem:[%s203 + $0x90] sm:$0xe]
      %v912 = vld [vmem:[%s203 + $0x94] sm:$0xf]
      %v913 = vld [vmem:[%s203 + $0x98] sm:$0x1]
      %v914 = vld [vmem:[%s203 + $0x9c] sm:$0xe]
      %v915 = vld [vmem:[%s203 + $0xa0] sm:$0xf]
      %v916 = vld [vmem:[%s203 + $0xa4] sm:$0x1]
      %v917 = vld [vmem:[%s203 + $0xa8] sm:$0xe]
      %v918 = vld [vmem:[%s203 + $0xac] sm:$0xf]
      %v919 = vld [vmem:[%s203 + $0xb0] sm:$0x1]
      %v920 = vld [vmem:[%s203 + $0xb4] sm:$0xe]
      %v921 = vld [vmem:[%s203 + $0xb8] sm:$0xf]
      %v922 = vld [vmem:[%s203 + $0xbc] sm:$0x1]
      %vm971 = vcmask 1042432
      %vm972 = vcmask 1046532
      %vm973 = vmor %vm971, %vm972
      %v974 = vrot.slane %v875, 5
      %v975 = vrot.slane %v974, 4
      %v976 = vrot.slane %v876, 5
      %v977 = vsel %vm973, %v975, %v976
      %v978 = vrot.slane %v976, 4
      %v979 = vrot.slane %v877, 5
      %v980 = vsel %vm973, %v978, %v979
      %v981 = vrot.slane %v878, 5
      %v982 = vrot.slane %v981, 4
      %v983 = vrot.slane %v879, 5
      %v984 = vsel %vm973, %v982, %v983
      %v985 = vrot.slane %v983, 4
      %v986 = vrot.slane %v880, 5
      %v987 = vsel %vm973, %v985, %v986
      %v988 = vrot.slane %v881, 5
      %v989 = vrot.slane %v988, 4
      %v990 = vrot.slane %v882, 5
      %v991 = vsel %vm973, %v989, %v990
      %v992 = vrot.slane %v990, 4
      %v993 = vrot.slane %v883, 5
      %v994 = vsel %vm973, %v992, %v993
      %v995 = vrot.slane %v884, 5
      %v996 = vrot.slane %v995, 4
      %v997 = vrot.slane %v885, 5
      %v998 = vsel %vm973, %v996, %v997
      %v999 = vrot.slane %v997, 4
      %v1000 = vrot.slane %v886, 5
      %v1001 = vsel %vm973, %v999, %v1000
      %v1002 = vrot.slane %v887, 5
      %v1003 = vrot.slane %v1002, 4
      %v1004 = vrot.slane %v888, 5
      %v1005 = vsel %vm973, %v1003, %v1004
      %v1006 = vrot.slane %v1004, 4
      %v1007 = vrot.slane %v889, 5
      %v1008 = vsel %vm973, %v1006, %v1007
      %v1009 = vrot.slane %v890, 5
      %v1010 = vrot.slane %v1009, 4
      %v1011 = vrot.slane %v891, 5
      %v1012 = vsel %vm973, %v1010, %v1011
      %v1013 = vrot.slane %v1011, 4
      %v1014 = vrot.slane %v892, 5
      %v1015 = vsel %vm973, %v1013, %v1014
      %v1016 = vrot.slane %v893, 5
      %v1017 = vrot.slane %v1016, 4
      %v1018 = vrot.slane %v894, 5
      %v1019 = vsel %vm973, %v1017, %v1018
      %v1020 = vrot.slane %v1018, 4
      %v1021 = vrot.slane %v895, 5
      %v1022 = vsel %vm973, %v1020, %v1021
      %v1023 = vrot.slane %v896, 5
      %v1024 = vrot.slane %v1023, 4
      %v1025 = vrot.slane %v897, 5
      %v1026 = vsel %vm973, %v1024, %v1025
      %v1027 = vrot.slane %v1025, 4
      %v1028 = vrot.slane %v898, 5
      %v1029 = vsel %vm973, %v1027, %v1028
      %v1030 = vrot.slane %v899, 5
      %v1031 = vrot.slane %v1030, 4
      %v1032 = vrot.slane %v900, 5
      %v1033 = vsel %vm973, %v1031, %v1032
      %v1034 = vrot.slane %v1032, 4
      %v1035 = vrot.slane %v901, 5
      %v1036 = vsel %vm973, %v1034, %v1035
      %v1037 = vrot.slane %v902, 5
      %v1038 = vrot.slane %v1037, 4
      %v1039 = vrot.slane %v903, 5
      %v1040 = vsel %vm973, %v1038, %v1039
      %v1041 = vrot.slane %v1039, 4
      %v1042 = vrot.slane %v904, 5
      %v1043 = vsel %vm973, %v1041, %v1042
      %v1044 = vrot.slane %v905, 5
      %v1045 = vrot.slane %v1044, 4
      %v1046 = vrot.slane %v906, 5
      %v1047 = vsel %vm973, %v1045, %v1046
      %v1048 = vrot.slane %v1046, 4
      %v1049 = vrot.slane %v907, 5
      %v1050 = vsel %vm973, %v1048, %v1049
      %v1051 = vrot.slane %v908, 5
      %v1052 = vrot.slane %v1051, 4
      %v1053 = vrot.slane %v909, 5
      %v1054 = vsel %vm973, %v1052, %v1053
      %v1055 = vrot.slane %v1053, 4
      %v1056 = vrot.slane %v910, 5
      %v1057 = vsel %vm973, %v1055, %v1056
      %v1058 = vrot.slane %v911, 5
      %v1059 = vrot.slane %v1058, 4
      %v1060 = vrot.slane %v912, 5
      %v1061 = vsel %vm973, %v1059, %v1060
      %v1062 = vrot.slane %v1060, 4
      %v1063 = vrot.slane %v913, 5
      %v1064 = vsel %vm973, %v1062, %v1063
      %v1065 = vrot.slane %v914, 5
      %v1066 = vrot.slane %v1065, 4
      %v1067 = vrot.slane %v915, 5
      %v1068 = vsel %vm973, %v1066, %v1067
      %v1069 = vrot.slane %v1067, 4
      %v1070 = vrot.slane %v916, 5
      %v1071 = vsel %vm973, %v1069, %v1070
      %v1072 = vrot.slane %v917, 5
      %v1073 = vrot.slane %v1072, 4
      %v1074 = vrot.slane %v918, 5
      %v1075 = vsel %vm973, %v1073, %v1074
      %v1076 = vrot.slane %v1074, 4
      %v1077 = vrot.slane %v919, 5
      %v1078 = vsel %vm973, %v1076, %v1077
      %v1079 = vrot.slane %v920, 5
      %v1080 = vrot.slane %v1079, 4
      %v1081 = vrot.slane %v921, 5
      %v1082 = vsel %vm973, %v1080, %v1081
      %v1083 = vrot.slane %v1081, 4
      %v1084 = vrot.slane %v922, 5
      %v1085 = vsel %vm973, %v1083, %v1084
      %v1086 = vunpack.c.l.b16 %v977
      %v1087 = vunpack.c.l.b16 %v980
      %v1088 = vunpack.c.l.b16 %v984
      %v1089 = vunpack.c.l.b16 %v987
      %v1090 = vunpack.c.l.b16 %v991
      %v1091 = vunpack.c.l.b16 %v994
      %v1092 = vunpack.c.l.b16 %v998
      %v1093 = vunpack.c.l.b16 %v1001
      %v1094 = vunpack.c.l.b16 %v1005
      %v1095 = vunpack.c.l.b16 %v1008
      %v1096 = vunpack.c.l.b16 %v1012
      %v1097 = vunpack.c.l.b16 %v1015
      %v1098 = vunpack.c.l.b16 %v1019
      %v1099 = vunpack.c.l.b16 %v1022
      %v1100 = vunpack.c.l.b16 %v1026
      %v1101 = vunpack.c.l.b16 %v1029
      %v1102 = vunpack.c.l.b16 %v1033
      %v1103 = vunpack.c.l.b16 %v1036
      %v1104 = vunpack.c.l.b16 %v1040
      %v1105 = vunpack.c.l.b16 %v1043
      %v1106 = vunpack.c.l.b16 %v1047
      %v1107 = vunpack.c.l.b16 %v1050
      %v1108 = vunpack.c.l.b16 %v1054
      %v1109 = vunpack.c.l.b16 %v1057
      %v1110 = vunpack.c.l.b16 %v1061
      %v1111 = vunpack.c.l.b16 %v1064
      %v1112 = vunpack.c.l.b16 %v1068
      %v1113 = vunpack.c.l.b16 %v1071
      %v1114 = vunpack.c.l.b16 %v1075
      %v1115 = vunpack.c.l.b16 %v1078
      %v1116 = vunpack.c.l.b16 %v1082
      %v1117 = vunpack.c.l.b16 %v1085
      %v1118 = vpack.c.b16 %v1087, %v1086
      %v1119 = vpack.c.b16 %v1089, %v1088
      %v1120 = vpack.c.b16 %v1091, %v1090
      %v1121 = vpack.c.b16 %v1093, %v1092
      %v1122 = vpack.c.b16 %v1095, %v1094
      %v1123 = vpack.c.b16 %v1097, %v1096
      %v1124 = vpack.c.b16 %v1099, %v1098
      %v1125 = vpack.c.b16 %v1101, %v1100
      %v1126 = vpack.c.b16 %v1103, %v1102
      %v1127 = vpack.c.b16 %v1105, %v1104
      %v1128 = vpack.c.b16 %v1107, %v1106
      %v1129 = vpack.c.b16 %v1109, %v1108
      %v1130 = vpack.c.b16 %v1111, %v1110
      %v1131 = vpack.c.b16 %v1113, %v1112
      %v1132 = vpack.c.b16 %v1115, %v1114
      %v1133 = vpack.c.b16 %v1117, %v1116
      %1150 = vst [vmem:[#allocation2 + $0x10] sm:$0xff] %v1118
      %1151 = vst [vmem:[#allocation2 + $0x58] sm:$0xff] %v1119
      %1152 = vst [vmem:[#allocation2 + $0xa0] sm:$0xff] %v1120
      %1153 = vst [vmem:[#allocation2 + $0xe8] sm:$0xff] %v1121
      %1154 = vst [vmem:[#allocation2 + $0x130] sm:$0xff] %v1122
      %1155 = vst [vmem:[#allocation2 + $0x178] sm:$0xff] %v1123
      %1156 = vst [vmem:[#allocation2 + $0x1c0] sm:$0xff] %v1124
      %1157 = vst [vmem:[#allocation2 + $0x208] sm:$0xff] %v1125
      %1158 = vst [vmem:[#allocation2 + $0x250] sm:$0xff] %v1126
      %1159 = vst [vmem:[#allocation2 + $0x298] sm:$0xff] %v1127
      %1160 = vst [vmem:[#allocation2 + $0x2e0] sm:$0xff] %v1128
      %1161 = vst [vmem:[#allocation2 + $0x328] sm:$0xff] %v1129
      %1162 = vst [vmem:[#allocation2 + $0x370] sm:$0xff] %v1130
      %1163 = vst [vmem:[#allocation2 + $0x3b8] sm:$0xff] %v1131
      %1164 = vst [vmem:[#allocation2 + $0x400] sm:$0xff] %v1132
      %1165 = vst [vmem:[#allocation2 + $0x448] sm:$0xff] %v1133
      %s1166 = scalar_lea.vmem %s203, 12
      %v1167 = vld [vmem:[%s1166] sm:$0xf]
      %v1168 = vld [vmem:[%s1166 + $0x4] sm:$0xf]
      %v1169 = vld [vmem:[%s1166 + $0xc] sm:$0xf]
      %v1170 = vld [vmem:[%s1166 + $0x10] sm:$0xf]
      %v1171 = vld [vmem:[%s1166 + $0x18] sm:$0xf]
      %v1172 = vld [vmem:[%s1166 + $0x1c] sm:$0xf]
      %v1173 = vld [vmem:[%s1166 + $0x24] sm:$0xf]
      %v1174 = vld [vmem:[%s1166 + $0x28] sm:$0xf]
      %v1175 = vld [vmem:[%s1166 + $0x30] sm:$0xf]
      %v1176 = vld [vmem:[%s1166 + $0x34] sm:$0xf]
      %v1177 = vld [vmem:[%s1166 + $0x3c] sm:$0xf]
      %v1178 = vld [vmem:[%s1166 + $0x40] sm:$0xf]
      %v1179 = vld [vmem:[%s1166 + $0x48] sm:$0xf]
      %v1180 = vld [vmem:[%s1166 + $0x4c] sm:$0xf]
      %v1181 = vld [vmem:[%s1166 + $0x54] sm:$0xf]
      %v1182 = vld [vmem:[%s1166 + $0x58] sm:$0xf]
      %v1183 = vld [vmem:[%s1166 + $0x60] sm:$0xf]
      %v1184 = vld [vmem:[%s1166 + $0x64] sm:$0xf]
      %v1185 = vld [vmem:[%s1166 + $0x6c] sm:$0xf]
      %v1186 = vld [vmem:[%s1166 + $0x70] sm:$0xf]
      %v1187 = vld [vmem:[%s1166 + $0x78] sm:$0xf]
      %v1188 = vld [vmem:[%s1166 + $0x7c] sm:$0xf]
      %v1189 = vld [vmem:[%s1166 + $0x84] sm:$0xf]
      %v1190 = vld [vmem:[%s1166 + $0x88] sm:$0xf]
      %v1191 = vld [vmem:[%s1166 + $0x90] sm:$0xf]
      %v1192 = vld [vmem:[%s1166 + $0x94] sm:$0xf]
      %v1193 = vld [vmem:[%s1166 + $0x9c] sm:$0xf]
      %v1194 = vld [vmem:[%s1166 + $0xa0] sm:$0xf]
      %v1195 = vld [vmem:[%s1166 + $0xa8] sm:$0xf]
      %v1196 = vld [vmem:[%s1166 + $0xac] sm:$0xf]
      %v1197 = vld [vmem:[%s1166 + $0xb4] sm:$0xf]
      %v1198 = vld [vmem:[%s1166 + $0xb8] sm:$0xf]
      %v1231 = vunpack.c.l.b16 %v1167
      %v1232 = vunpack.c.l.b16 %v1168
      %v1233 = vunpack.c.l.b16 %v1169
      %v1234 = vunpack.c.l.b16 %v1170
      %v1235 = vunpack.c.l.b16 %v1171
      %v1236 = vunpack.c.l.b16 %v1172
      %v1237 = vunpack.c.l.b16 %v1173
      %v1238 = vunpack.c.l.b16 %v1174
      %v1239 = vunpack.c.l.b16 %v1175
      %v1240 = vunpack.c.l.b16 %v1176
      %v1241 = vunpack.c.l.b16 %v1177
      %v1242 = vunpack.c.l.b16 %v1178
      %v1243 = vunpack.c.l.b16 %v1179
      %v1244 = vunpack.c.l.b16 %v1180
      %v1245 = vunpack.c.l.b16 %v1181
      %v1246 = vunpack.c.l.b16 %v1182
      %v1247 = vunpack.c.l.b16 %v1183
      %v1248 = vunpack.c.l.b16 %v1184
      %v1249 = vunpack.c.l.b16 %v1185
      %v1250 = vunpack.c.l.b16 %v1186
      %v1251 = vunpack.c.l.b16 %v1187
      %v1252 = vunpack.c.l.b16 %v1188
      %v1253 = vunpack.c.l.b16 %v1189
      %v1254 = vunpack.c.l.b16 %v1190
      %v1255 = vunpack.c.l.b16 %v1191
      %v1256 = vunpack.c.l.b16 %v1192
      %v1257 = vunpack.c.l.b16 %v1193
      %v1258 = vunpack.c.l.b16 %v1194
      %v1259 = vunpack.c.l.b16 %v1195
      %v1260 = vunpack.c.l.b16 %v1196
      %v1261 = vunpack.c.l.b16 %v1197
      %v1262 = vunpack.c.l.b16 %v1198
      %v1263 = vpack.c.b16 %v1232, %v1231
      %v1264 = vpack.c.b16 %v1234, %v1233
      %v1265 = vpack.c.b16 %v1236, %v1235
      %v1266 = vpack.c.b16 %v1238, %v1237
      %v1267 = vpack.c.b16 %v1240, %v1239
      %v1268 = vpack.c.b16 %v1242, %v1241
      %v1269 = vpack.c.b16 %v1244, %v1243
      %v1270 = vpack.c.b16 %v1246, %v1245
      %v1271 = vpack.c.b16 %v1248, %v1247
      %v1272 = vpack.c.b16 %v1250, %v1249
      %v1273 = vpack.c.b16 %v1252, %v1251
      %v1274 = vpack.c.b16 %v1254, %v1253
      %v1275 = vpack.c.b16 %v1256, %v1255
      %v1276 = vpack.c.b16 %v1258, %v1257
      %v1277 = vpack.c.b16 %v1260, %v1259
      %v1278 = vpack.c.b16 %v1262, %v1261
      %1295 = vst [vmem:[#allocation2 + $0x18] sm:$0xff] %v1263
      %1296 = vst [vmem:[#allocation2 + $0x60] sm:$0xff] %v1264
      %1297 = vst [vmem:[#allocation2 + $0xa8] sm:$0xff] %v1265
      %1298 = vst [vmem:[#allocation2 + $0xf0] sm:$0xff] %v1266
      %1299 = vst [vmem:[#allocation2 + $0x138] sm:$0xff] %v1267
      %1300 = vst [vmem:[#allocation2 + $0x180] sm:$0xff] %v1268
      %1301 = vst [vmem:[#allocation2 + $0x1c8] sm:$0xff] %v1269
      %1302 = vst [vmem:[#allocation2 + $0x210] sm:$0xff] %v1270
      %1303 = vst [vmem:[#allocation2 + $0x258] sm:$0xff] %v1271
      %1304 = vst [vmem:[#allocation2 + $0x2a0] sm:$0xff] %v1272
      %1305 = vst [vmem:[#allocation2 + $0x2e8] sm:$0xff] %v1273
      %1306 = vst [vmem:[#allocation2 + $0x330] sm:$0xff] %v1274
      %1307 = vst [vmem:[#allocation2 + $0x378] sm:$0xff] %v1275
      %1308 = vst [vmem:[#allocation2 + $0x3c0] sm:$0xff] %v1276
      %1309 = vst [vmem:[#allocation2 + $0x408] sm:$0xff] %v1277
      %1310 = vst [vmem:[#allocation2 + $0x450] sm:$0xff] %v1278
      %v1311 = vld [vmem:[%s1166] sm:$0xf]
      %v1312 = vld [vmem:[%s1166 + $0x4] sm:$0xf]
      %v1313 = vld [vmem:[%s1166 + $0x8] sm:$0x1]
      %v1314 = vld [vmem:[%s1166 + $0xc] sm:$0xf]
      %v1315 = vld [vmem:[%s1166 + $0x10] sm:$0xf]
      %v1316 = vld [vmem:[%s1166 + $0x14] sm:$0x1]
      %v1317 = vld [vmem:[%s1166 + $0x18] sm:$0xf]
      %v1318 = vld [vmem:[%s1166 + $0x1c] sm:$0xf]
      %v1319 = vld [vmem:[%s1166 + $0x20] sm:$0x1]
      %v1320 = vld [vmem:[%s1166 + $0x24] sm:$0xf]
      %v1321 = vld [vmem:[%s1166 + $0x28] sm:$0xf]
      %v1322 = vld [vmem:[%s1166 + $0x2c] sm:$0x1]
      %v1323 = vld [vmem:[%s1166 + $0x30] sm:$0xf]
      %v1324 = vld [vmem:[%s1166 + $0x34] sm:$0xf]
      %v1325 = vld [vmem:[%s1166 + $0x38] sm:$0x1]
      %v1326 = vld [vmem:[%s1166 + $0x3c] sm:$0xf]
      %v1327 = vld [vmem:[%s1166 + $0x40] sm:$0xf]
      %v1328 = vld [vmem:[%s1166 + $0x44] sm:$0x1]
      %v1329 = vld [vmem:[%s1166 + $0x48] sm:$0xf]
      %v1330 = vld [vmem:[%s1166 + $0x4c] sm:$0xf]
      %v1331 = vld [vmem:[%s1166 + $0x50] sm:$0x1]
      %v1332 = vld [vmem:[%s1166 + $0x54] sm:$0xf]
      %v1333 = vld [vmem:[%s1166 + $0x58] sm:$0xf]
      %v1334 = vld [vmem:[%s1166 + $0x5c] sm:$0x1]
      %v1335 = vld [vmem:[%s1166 + $0x60] sm:$0xf]
      %v1336 = vld [vmem:[%s1166 + $0x64] sm:$0xf]
      %v1337 = vld [vmem:[%s1166 + $0x68] sm:$0x1]
      %v1338 = vld [vmem:[%s1166 + $0x6c] sm:$0xf]
      %v1339 = vld [vmem:[%s1166 + $0x70] sm:$0xf]
      %v1340 = vld [vmem:[%s1166 + $0x74] sm:$0x1]
      %v1341 = vld [vmem:[%s1166 + $0x78] sm:$0xf]
      %v1342 = vld [vmem:[%s1166 + $0x7c] sm:$0xf]
      %v1343 = vld [vmem:[%s1166 + $0x80] sm:$0x1]
      %v1344 = vld [vmem:[%s1166 + $0x84] sm:$0xf]
      %v1345 = vld [vmem:[%s1166 + $0x88] sm:$0xf]
      %v1346 = vld [vmem:[%s1166 + $0x8c] sm:$0x1]
      %v1347 = vld [vmem:[%s1166 + $0x90] sm:$0xf]
      %v1348 = vld [vmem:[%s1166 + $0x94] sm:$0xf]
      %v1349 = vld [vmem:[%s1166 + $0x98] sm:$0x1]
      %v1350 = vld [vmem:[%s1166 + $0x9c] sm:$0xf]
      %v1351 = vld [vmem:[%s1166 + $0xa0] sm:$0xf]
      %v1352 = vld [vmem:[%s1166 + $0xa4] sm:$0x1]
      %v1353 = vld [vmem:[%s1166 + $0xa8] sm:$0xf]
      %v1354 = vld [vmem:[%s1166 + $0xac] sm:$0xf]
      %v1355 = vld [vmem:[%s1166 + $0xb0] sm:$0x1]
      %v1356 = vld [vmem:[%s1166 + $0xb4] sm:$0xf]
      %v1357 = vld [vmem:[%s1166 + $0xb8] sm:$0xf]
      %v1358 = vld [vmem:[%s1166 + $0xbc] sm:$0x1]
      %v1360 = vshrl.u32 %v1311, 16
      %v1362 = vrot.slane %v1360, 4
      %v1363 = vshll.u32 %v1311, 16
      %v1365 = vrot.slane %v1363, 5
      %v1366 = vor.u32 %v1362, %v1365
      %v1367 = vrot.slane %v1366, 4
      %v1369 = vshll.u32 %v1312, 16
      %v1371 = vrot.slane %v1369, 5
      %v1372 = vsel %vm410, %v1367, %v1371
      %v1373 = vshrl.u32 %v1312, 16
      %v1375 = vrot.slane %v1373, 4
      %v1376 = vor.u32 %v1375, %v1371
      %v1377 = vrot.slane %v1376, 4
      %v1379 = vshll.u32 %v1313, 16
      %v1381 = vrot.slane %v1379, 5
      %v1382 = vsel %vm410, %v1377, %v1381
      %v1384 = vshrl.u32 %v1314, 16
      %v1386 = vrot.slane %v1384, 4
      %v1387 = vshll.u32 %v1314, 16
      %v1389 = vrot.slane %v1387, 5
      %v1390 = vor.u32 %v1386, %v1389
      %v1391 = vrot.slane %v1390, 4
      %v1393 = vshll.u32 %v1315, 16
      %v1395 = vrot.slane %v1393, 5
      %v1396 = vsel %vm410, %v1391, %v1395
      %v1397 = vshrl.u32 %v1315, 16
      %v1399 = vrot.slane %v1397, 4
      %v1400 = vor.u32 %v1399, %v1395
      %v1401 = vrot.slane %v1400, 4
      %v1403 = vshll.u32 %v1316, 16
      %v1405 = vrot.slane %v1403, 5
      %v1406 = vsel %vm410, %v1401, %v1405
      %v1408 = vshrl.u32 %v1317, 16
      %v1410 = vrot.slane %v1408, 4
      %v1411 = vshll.u32 %v1317, 16
      %v1413 = vrot.slane %v1411, 5
      %v1414 = vor.u32 %v1410, %v1413
      %v1415 = vrot.slane %v1414, 4
      %v1417 = vshll.u32 %v1318, 16
      %v1419 = vrot.slane %v1417, 5
      %v1420 = vsel %vm410, %v1415, %v1419
      %v1421 = vshrl.u32 %v1318, 16
      %v1423 = vrot.slane %v1421, 4
      %v1424 = vor.u32 %v1423, %v1419
      %v1425 = vrot.slane %v1424, 4
      %v1427 = vshll.u32 %v1319, 16
      %v1429 = vrot.slane %v1427, 5
      %v1430 = vsel %vm410, %v1425, %v1429
      %v1432 = vshrl.u32 %v1320, 16
      %v1434 = vrot.slane %v1432, 4
      %v1435 = vshll.u32 %v1320, 16
      %v1437 = vrot.slane %v1435, 5
      %v1438 = vor.u32 %v1434, %v1437
      %v1439 = vrot.slane %v1438, 4
      %v1441 = vshll.u32 %v1321, 16
      %v1443 = vrot.slane %v1441, 5
      %v1444 = vsel %vm410, %v1439, %v1443
      %v1445 = vshrl.u32 %v1321, 16
      %v1447 = vrot.slane %v1445, 4
      %v1448 = vor.u32 %v1447, %v1443
      %v1449 = vrot.slane %v1448, 4
      %v1451 = vshll.u32 %v1322, 16
      %v1453 = vrot.slane %v1451, 5
      %v1454 = vsel %vm410, %v1449, %v1453
      %v1456 = vshrl.u32 %v1323, 16
      %v1458 = vrot.slane %v1456, 4
      %v1459 = vshll.u32 %v1323, 16
      %v1461 = vrot.slane %v1459, 5
      %v1462 = vor.u32 %v1458, %v1461
      %v1463 = vrot.slane %v1462, 4
      %v1465 = vshll.u32 %v1324, 16
      %v1467 = vrot.slane %v1465, 5
      %v1468 = vsel %vm410, %v1463, %v1467
      %v1469 = vshrl.u32 %v1324, 16
      %v1471 = vrot.slane %v1469, 4
      %v1472 = vor.u32 %v1471, %v1467
      %v1473 = vrot.slane %v1472, 4
      %v1475 = vshll.u32 %v1325, 16
      %v1477 = vrot.slane %v1475, 5
      %v1478 = vsel %vm410, %v1473, %v1477
      %v1480 = vshrl.u32 %v1326, 16
      %v1482 = vrot.slane %v1480, 4
      %v1483 = vshll.u32 %v1326, 16
      %v1485 = vrot.slane %v1483, 5
      %v1486 = vor.u32 %v1482, %v1485
      %v1487 = vrot.slane %v1486, 4
      %v1489 = vshll.u32 %v1327, 16
      %v1491 = vrot.slane %v1489, 5
      %v1492 = vsel %vm410, %v1487, %v1491
      %v1493 = vshrl.u32 %v1327, 16
      %v1495 = vrot.slane %v1493, 4
      %v1496 = vor.u32 %v1495, %v1491
      %v1497 = vrot.slane %v1496, 4
      %v1499 = vshll.u32 %v1328, 16
      %v1501 = vrot.slane %v1499, 5
      %v1502 = vsel %vm410, %v1497, %v1501
      %v1504 = vshrl.u32 %v1329, 16
      %v1506 = vrot.slane %v1504, 4
      %v1507 = vshll.u32 %v1329, 16
      %v1509 = vrot.slane %v1507, 5
      %v1510 = vor.u32 %v1506, %v1509
      %v1511 = vrot.slane %v1510, 4
      %v1513 = vshll.u32 %v1330, 16
      %v1515 = vrot.slane %v1513, 5
      %v1516 = vsel %vm410, %v1511, %v1515
      %v1517 = vshrl.u32 %v1330, 16
      %v1519 = vrot.slane %v1517, 4
      %v1520 = vor.u32 %v1519, %v1515
      %v1521 = vrot.slane %v1520, 4
      %v1523 = vshll.u32 %v1331, 16
      %v1525 = vrot.slane %v1523, 5
      %v1526 = vsel %vm410, %v1521, %v1525
      %v1528 = vshrl.u32 %v1332, 16
      %v1530 = vrot.slane %v1528, 4
      %v1531 = vshll.u32 %v1332, 16
      %v1533 = vrot.slane %v1531, 5
      %v1534 = vor.u32 %v1530, %v1533
      %v1535 = vrot.slane %v1534, 4
      %v1537 = vshll.u32 %v1333, 16
      %v1539 = vrot.slane %v1537, 5
      %v1540 = vsel %vm410, %v1535, %v1539
      %v1541 = vshrl.u32 %v1333, 16
      %v1543 = vrot.slane %v1541, 4
      %v1544 = vor.u32 %v1543, %v1539
      %v1545 = vrot.slane %v1544, 4
      %v1547 = vshll.u32 %v1334, 16
      %v1549 = vrot.slane %v1547, 5
      %v1550 = vsel %vm410, %v1545, %v1549
      %v1552 = vshrl.u32 %v1335, 16
      %v1554 = vrot.slane %v1552, 4
      %v1555 = vshll.u32 %v1335, 16
      %v1557 = vrot.slane %v1555, 5
      %v1558 = vor.u32 %v1554, %v1557
      %v1559 = vrot.slane %v1558, 4
      %v1561 = vshll.u32 %v1336, 16
      %v1563 = vrot.slane %v1561, 5
      %v1564 = vsel %vm410, %v1559, %v1563
      %v1565 = vshrl.u32 %v1336, 16
      %v1567 = vrot.slane %v1565, 4
      %v1568 = vor.u32 %v1567, %v1563
      %v1569 = vrot.slane %v1568, 4
      %v1571 = vshll.u32 %v1337, 16
      %v1573 = vrot.slane %v1571, 5
      %v1574 = vsel %vm410, %v1569, %v1573
      %v1576 = vshrl.u32 %v1338, 16
      %v1578 = vrot.slane %v1576, 4
      %v1579 = vshll.u32 %v1338, 16
      %v1581 = vrot.slane %v1579, 5
      %v1582 = vor.u32 %v1578, %v1581
      %v1583 = vrot.slane %v1582, 4
      %v1585 = vshll.u32 %v1339, 16
      %v1587 = vrot.slane %v1585, 5
      %v1588 = vsel %vm410, %v1583, %v1587
      %v1589 = vshrl.u32 %v1339, 16
      %v1591 = vrot.slane %v1589, 4
      %v1592 = vor.u32 %v1591, %v1587
      %v1593 = vrot.slane %v1592, 4
      %v1595 = vshll.u32 %v1340, 16
      %v1597 = vrot.slane %v1595, 5
      %v1598 = vsel %vm410, %v1593, %v1597
      %v1600 = vshrl.u32 %v1341, 16
      %v1602 = vrot.slane %v1600, 4
      %v1603 = vshll.u32 %v1341, 16
      %v1605 = vrot.slane %v1603, 5
      %v1606 = vor.u32 %v1602, %v1605
      %v1607 = vrot.slane %v1606, 4
      %v1609 = vshll.u32 %v1342, 16
      %v1611 = vrot.slane %v1609, 5
      %v1612 = vsel %vm410, %v1607, %v1611
      %v1613 = vshrl.u32 %v1342, 16
      %v1615 = vrot.slane %v1613, 4
      %v1616 = vor.u32 %v1615, %v1611
      %v1617 = vrot.slane %v1616, 4
      %v1619 = vshll.u32 %v1343, 16
      %v1621 = vrot.slane %v1619, 5
      %v1622 = vsel %vm410, %v1617, %v1621
      %v1624 = vshrl.u32 %v1344, 16
      %v1626 = vrot.slane %v1624, 4
      %v1627 = vshll.u32 %v1344, 16
      %v1629 = vrot.slane %v1627, 5
      %v1630 = vor.u32 %v1626, %v1629
      %v1631 = vrot.slane %v1630, 4
      %v1633 = vshll.u32 %v1345, 16
      %v1635 = vrot.slane %v1633, 5
      %v1636 = vsel %vm410, %v1631, %v1635
      %v1637 = vshrl.u32 %v1345, 16
      %v1639 = vrot.slane %v1637, 4
      %v1640 = vor.u32 %v1639, %v1635
      %v1641 = vrot.slane %v1640, 4
      %v1643 = vshll.u32 %v1346, 16
      %v1645 = vrot.slane %v1643, 5
      %v1646 = vsel %vm410, %v1641, %v1645
      %v1648 = vshrl.u32 %v1347, 16
      %v1650 = vrot.slane %v1648, 4
      %v1651 = vshll.u32 %v1347, 16
      %v1653 = vrot.slane %v1651, 5
      %v1654 = vor.u32 %v1650, %v1653
      %v1655 = vrot.slane %v1654, 4
      %v1657 = vshll.u32 %v1348, 16
      %v1659 = vrot.slane %v1657, 5
      %v1660 = vsel %vm410, %v1655, %v1659
      %v1661 = vshrl.u32 %v1348, 16
      %v1663 = vrot.slane %v1661, 4
      %v1664 = vor.u32 %v1663, %v1659
      %v1665 = vrot.slane %v1664, 4
      %v1667 = vshll.u32 %v1349, 16
      %v1669 = vrot.slane %v1667, 5
      %v1670 = vsel %vm410, %v1665, %v1669
      %v1672 = vshrl.u32 %v1350, 16
      %v1674 = vrot.slane %v1672, 4
      %v1675 = vshll.u32 %v1350, 16
      %v1677 = vrot.slane %v1675, 5
      %v1678 = vor.u32 %v1674, %v1677
      %v1679 = vrot.slane %v1678, 4
      %v1681 = vshll.u32 %v1351, 16
      %v1683 = vrot.slane %v1681, 5
      %v1684 = vsel %vm410, %v1679, %v1683
      %v1685 = vshrl.u32 %v1351, 16
      %v1687 = vrot.slane %v1685, 4
      %v1688 = vor.u32 %v1687, %v1683
      %v1689 = vrot.slane %v1688, 4
      %v1691 = vshll.u32 %v1352, 16
      %v1693 = vrot.slane %v1691, 5
      %v1694 = vsel %vm410, %v1689, %v1693
      %v1696 = vshrl.u32 %v1353, 16
      %v1698 = vrot.slane %v1696, 4
      %v1699 = vshll.u32 %v1353, 16
      %v1701 = vrot.slane %v1699, 5
      %v1702 = vor.u32 %v1698, %v1701
      %v1703 = vrot.slane %v1702, 4
      %v1705 = vshll.u32 %v1354, 16
      %v1707 = vrot.slane %v1705, 5
      %v1708 = vsel %vm410, %v1703, %v1707
      %v1709 = vshrl.u32 %v1354, 16
      %v1711 = vrot.slane %v1709, 4
      %v1712 = vor.u32 %v1711, %v1707
      %v1713 = vrot.slane %v1712, 4
      %v1715 = vshll.u32 %v1355, 16
      %v1717 = vrot.slane %v1715, 5
      %v1718 = vsel %vm410, %v1713, %v1717
      %v1720 = vshrl.u32 %v1356, 16
      %v1722 = vrot.slane %v1720, 4
      %v1723 = vshll.u32 %v1356, 16
      %v1725 = vrot.slane %v1723, 5
      %v1726 = vor.u32 %v1722, %v1725
      %v1727 = vrot.slane %v1726, 4
      %v1729 = vshll.u32 %v1357, 16
      %v1731 = vrot.slane %v1729, 5
      %v1732 = vsel %vm410, %v1727, %v1731
      %v1733 = vshrl.u32 %v1357, 16
      %v1735 = vrot.slane %v1733, 4
      %v1736 = vor.u32 %v1735, %v1731
      %v1737 = vrot.slane %v1736, 4
      %v1739 = vshll.u32 %v1358, 16
      %v1741 = vrot.slane %v1739, 5
      %v1742 = vsel %vm410, %v1737, %v1741
      %v1743 = vunpack.c.l.b16 %v1372
      %v1744 = vunpack.c.l.b16 %v1382
      %v1745 = vunpack.c.l.b16 %v1396
      %v1746 = vunpack.c.l.b16 %v1406
      %v1747 = vunpack.c.l.b16 %v1420
      %v1748 = vunpack.c.l.b16 %v1430
      %v1749 = vunpack.c.l.b16 %v1444
      %v1750 = vunpack.c.l.b16 %v1454
      %v1751 = vunpack.c.l.b16 %v1468
      %v1752 = vunpack.c.l.b16 %v1478
      %v1753 = vunpack.c.l.b16 %v1492
      %v1754 = vunpack.c.l.b16 %v1502
      %v1755 = vunpack.c.l.b16 %v1516
      %v1756 = vunpack.c.l.b16 %v1526
      %v1757 = vunpack.c.l.b16 %v1540
      %v1758 = vunpack.c.l.b16 %v1550
      %v1759 = vunpack.c.l.b16 %v1564
      %v1760 = vunpack.c.l.b16 %v1574
      %v1761 = vunpack.c.l.b16 %v1588
      %v1762 = vunpack.c.l.b16 %v1598
      %v1763 = vunpack.c.l.b16 %v1612
      %v1764 = vunpack.c.l.b16 %v1622
      %v1765 = vunpack.c.l.b16 %v1636
      %v1766 = vunpack.c.l.b16 %v1646
      %v1767 = vunpack.c.l.b16 %v1660
      %v1768 = vunpack.c.l.b16 %v1670
      %v1769 = vunpack.c.l.b16 %v1684
      %v1770 = vunpack.c.l.b16 %v1694
      %v1771 = vunpack.c.l.b16 %v1708
      %v1772 = vunpack.c.l.b16 %v1718
      %v1773 = vunpack.c.l.b16 %v1732
      %v1774 = vunpack.c.l.b16 %v1742
      %v1775 = vpack.c.b16 %v1744, %v1743
      %v1776 = vpack.c.b16 %v1746, %v1745
      %v1777 = vpack.c.b16 %v1748, %v1747
      %v1778 = vpack.c.b16 %v1750, %v1749
      %v1779 = vpack.c.b16 %v1752, %v1751
      %v1780 = vpack.c.b16 %v1754, %v1753
      %v1781 = vpack.c.b16 %v1756, %v1755
      %v1782 = vpack.c.b16 %v1758, %v1757
      %v1783 = vpack.c.b16 %v1760, %v1759
      %v1784 = vpack.c.b16 %v1762, %v1761
      %v1785 = vpack.c.b16 %v1764, %v1763
      %v1786 = vpack.c.b16 %v1766, %v1765
      %v1787 = vpack.c.b16 %v1768, %v1767
      %v1788 = vpack.c.b16 %v1770, %v1769
      %v1789 = vpack.c.b16 %v1772, %v1771
      %v1790 = vpack.c.b16 %v1774, %v1773
      %1807 = vst [vmem:[#allocation2 + $0x20] sm:$0xff] %v1775
      %1808 = vst [vmem:[#allocation2 + $0x68] sm:$0xff] %v1776
      %1809 = vst [vmem:[#allocation2 + $0xb0] sm:$0xff] %v1777
      %1810 = vst [vmem:[#allocation2 + $0xf8] sm:$0xff] %v1778
      %1811 = vst [vmem:[#allocation2 + $0x140] sm:$0xff] %v1779
      %1812 = vst [vmem:[#allocation2 + $0x188] sm:$0xff] %v1780
      %1813 = vst [vmem:[#allocation2 + $0x1d0] sm:$0xff] %v1781
      %1814 = vst [vmem:[#allocation2 + $0x218] sm:$0xff] %v1782
      %1815 = vst [vmem:[#allocation2 + $0x260] sm:$0xff] %v1783
      %1816 = vst [vmem:[#allocation2 + $0x2a8] sm:$0xff] %v1784
      %1817 = vst [vmem:[#allocation2 + $0x2f0] sm:$0xff] %v1785
      %1818 = vst [vmem:[#allocation2 + $0x338] sm:$0xff] %v1786
      %1819 = vst [vmem:[#allocation2 + $0x380] sm:$0xff] %v1787
      %1820 = vst [vmem:[#allocation2 + $0x3c8] sm:$0xff] %v1788
      %1821 = vst [vmem:[#allocation2 + $0x410] sm:$0xff] %v1789
      %1822 = vst [vmem:[#allocation2 + $0x458] sm:$0xff] %v1790
      %v1823 = vld [vmem:[%s1166] sm:$0xe]
      %v1824 = vld [vmem:[%s1166 + $0x4] sm:$0xf]
      %v1825 = vld [vmem:[%s1166 + $0x8] sm:$0x1]
      %v1826 = vld [vmem:[%s1166 + $0xc] sm:$0xe]
      %v1827 = vld [vmem:[%s1166 + $0x10] sm:$0xf]
      %v1828 = vld [vmem:[%s1166 + $0x14] sm:$0x1]
      %v1829 = vld [vmem:[%s1166 + $0x18] sm:$0xe]
      %v1830 = vld [vmem:[%s1166 + $0x1c] sm:$0xf]
      %v1831 = vld [vmem:[%s1166 + $0x20] sm:$0x1]
      %v1832 = vld [vmem:[%s1166 + $0x24] sm:$0xe]
      %v1833 = vld [vmem:[%s1166 + $0x28] sm:$0xf]
      %v1834 = vld [vmem:[%s1166 + $0x2c] sm:$0x1]
      %v1835 = vld [vmem:[%s1166 + $0x30] sm:$0xe]
      %v1836 = vld [vmem:[%s1166 + $0x34] sm:$0xf]
      %v1837 = vld [vmem:[%s1166 + $0x38] sm:$0x1]
      %v1838 = vld [vmem:[%s1166 + $0x3c] sm:$0xe]
      %v1839 = vld [vmem:[%s1166 + $0x40] sm:$0xf]
      %v1840 = vld [vmem:[%s1166 + $0x44] sm:$0x1]
      %v1841 = vld [vmem:[%s1166 + $0x48] sm:$0xe]
      %v1842 = vld [vmem:[%s1166 + $0x4c] sm:$0xf]
      %v1843 = vld [vmem:[%s1166 + $0x50] sm:$0x1]
      %v1844 = vld [vmem:[%s1166 + $0x54] sm:$0xe]
      %v1845 = vld [vmem:[%s1166 + $0x58] sm:$0xf]
      %v1846 = vld [vmem:[%s1166 + $0x5c] sm:$0x1]
      %v1847 = vld [vmem:[%s1166 + $0x60] sm:$0xe]
      %v1848 = vld [vmem:[%s1166 + $0x64] sm:$0xf]
      %v1849 = vld [vmem:[%s1166 + $0x68] sm:$0x1]
      %v1850 = vld [vmem:[%s1166 + $0x6c] sm:$0xe]
      %v1851 = vld [vmem:[%s1166 + $0x70] sm:$0xf]
      %v1852 = vld [vmem:[%s1166 + $0x74] sm:$0x1]
      %v1853 = vld [vmem:[%s1166 + $0x78] sm:$0xe]
      %v1854 = vld [vmem:[%s1166 + $0x7c] sm:$0xf]
      %v1855 = vld [vmem:[%s1166 + $0x80] sm:$0x1]
      %v1856 = vld [vmem:[%s1166 + $0x84] sm:$0xe]
      %v1857 = vld [vmem:[%s1166 + $0x88] sm:$0xf]
      %v1858 = vld [vmem:[%s1166 + $0x8c] sm:$0x1]
      %v1859 = vld [vmem:[%s1166 + $0x90] sm:$0xe]
      %v1860 = vld [vmem:[%s1166 + $0x94] sm:$0xf]
      %v1861 = vld [vmem:[%s1166 + $0x98] sm:$0x1]
      %v1862 = vld [vmem:[%s1166 + $0x9c] sm:$0xe]
      %v1863 = vld [vmem:[%s1166 + $0xa0] sm:$0xf]
      %v1864 = vld [vmem:[%s1166 + $0xa4] sm:$0x1]
      %v1865 = vld [vmem:[%s1166 + $0xa8] sm:$0xe]
      %v1866 = vld [vmem:[%s1166 + $0xac] sm:$0xf]
      %v1867 = vld [vmem:[%s1166 + $0xb0] sm:$0x1]
      %v1868 = vld [vmem:[%s1166 + $0xb4] sm:$0xe]
      %v1869 = vld [vmem:[%s1166 + $0xb8] sm:$0xf]
      %v1870 = vld [vmem:[%s1166 + $0xbc] sm:$0x1]
      %v1919 = vrot.slane %v1823, 5
      %v1920 = vrot.slane %v1919, 4
      %v1921 = vrot.slane %v1824, 5
      %v1922 = vsel %vm973, %v1920, %v1921
      %v1923 = vrot.slane %v1921, 4
      %v1924 = vrot.slane %v1825, 5
      %v1925 = vsel %vm973, %v1923, %v1924
      %v1926 = vrot.slane %v1826, 5
      %v1927 = vrot.slane %v1926, 4
      %v1928 = vrot.slane %v1827, 5
      %v1929 = vsel %vm973, %v1927, %v1928
      %v1930 = vrot.slane %v1928, 4
      %v1931 = vrot.slane %v1828, 5
      %v1932 = vsel %vm973, %v1930, %v1931
      %v1933 = vrot.slane %v1829, 5
      %v1934 = vrot.slane %v1933, 4
      %v1935 = vrot.slane %v1830, 5
      %v1936 = vsel %vm973, %v1934, %v1935
      %v1937 = vrot.slane %v1935, 4
      %v1938 = vrot.slane %v1831, 5
      %v1939 = vsel %vm973, %v1937, %v1938
      %v1940 = vrot.slane %v1832, 5
      %v1941 = vrot.slane %v1940, 4
      %v1942 = vrot.slane %v1833, 5
      %v1943 = vsel %vm973, %v1941, %v1942
      %v1944 = vrot.slane %v1942, 4
      %v1945 = vrot.slane %v1834, 5
      %v1946 = vsel %vm973, %v1944, %v1945
      %v1947 = vrot.slane %v1835, 5
      %v1948 = vrot.slane %v1947, 4
      %v1949 = vrot.slane %v1836, 5
      %v1950 = vsel %vm973, %v1948, %v1949
      %v1951 = vrot.slane %v1949, 4
      %v1952 = vrot.slane %v1837, 5
      %v1953 = vsel %vm973, %v1951, %v1952
      %v1954 = vrot.slane %v1838, 5
      %v1955 = vrot.slane %v1954, 4
      %v1956 = vrot.slane %v1839, 5
      %v1957 = vsel %vm973, %v1955, %v1956
      %v1958 = vrot.slane %v1956, 4
      %v1959 = vrot.slane %v1840, 5
      %v1960 = vsel %vm973, %v1958, %v1959
      %v1961 = vrot.slane %v1841, 5
      %v1962 = vrot.slane %v1961, 4
      %v1963 = vrot.slane %v1842, 5
      %v1964 = vsel %vm973, %v1962, %v1963
      %v1965 = vrot.slane %v1963, 4
      %v1966 = vrot.slane %v1843, 5
      %v1967 = vsel %vm973, %v1965, %v1966
      %v1968 = vrot.slane %v1844, 5
      %v1969 = vrot.slane %v1968, 4
      %v1970 = vrot.slane %v1845, 5
      %v1971 = vsel %vm973, %v1969, %v1970
      %v1972 = vrot.slane %v1970, 4
      %v1973 = vrot.slane %v1846, 5
      %v1974 = vsel %vm973, %v1972, %v1973
      %v1975 = vrot.slane %v1847, 5
      %v1976 = vrot.slane %v1975, 4
      %v1977 = vrot.slane %v1848, 5
      %v1978 = vsel %vm973, %v1976, %v1977
      %v1979 = vrot.slane %v1977, 4
      %v1980 = vrot.slane %v1849, 5
      %v1981 = vsel %vm973, %v1979, %v1980
      %v1982 = vrot.slane %v1850, 5
      %v1983 = vrot.slane %v1982, 4
      %v1984 = vrot.slane %v1851, 5
      %v1985 = vsel %vm973, %v1983, %v1984
      %v1986 = vrot.slane %v1984, 4
      %v1987 = vrot.slane %v1852, 5
      %v1988 = vsel %vm973, %v1986, %v1987
      %v1989 = vrot.slane %v1853, 5
      %v1990 = vrot.slane %v1989, 4
      %v1991 = vrot.slane %v1854, 5
      %v1992 = vsel %vm973, %v1990, %v1991
      %v1993 = vrot.slane %v1991, 4
      %v1994 = vrot.slane %v1855, 5
      %v1995 = vsel %vm973, %v1993, %v1994
      %v1996 = vrot.slane %v1856, 5
      %v1997 = vrot.slane %v1996, 4
      %v1998 = vrot.slane %v1857, 5
      %v1999 = vsel %vm973, %v1997, %v1998
      %v2000 = vrot.slane %v1998, 4
      %v2001 = vrot.slane %v1858, 5
      %v2002 = vsel %vm973, %v2000, %v2001
      %v2003 = vrot.slane %v1859, 5
      %v2004 = vrot.slane %v2003, 4
      %v2005 = vrot.slane %v1860, 5
      %v2006 = vsel %vm973, %v2004, %v2005
      %v2007 = vrot.slane %v2005, 4
      %v2008 = vrot.slane %v1861, 5
      %v2009 = vsel %vm973, %v2007, %v2008
      %v2010 = vrot.slane %v1862, 5
      %v2011 = vrot.slane %v2010, 4
      %v2012 = vrot.slane %v1863, 5
      %v2013 = vsel %vm973, %v2011, %v2012
      %v2014 = vrot.slane %v2012, 4
      %v2015 = vrot.slane %v1864, 5
      %v2016 = vsel %vm973, %v2014, %v2015
      %v2017 = vrot.slane %v1865, 5
      %v2018 = vrot.slane %v2017, 4
      %v2019 = vrot.slane %v1866, 5
      %v2020 = vsel %vm973, %v2018, %v2019
      %v2021 = vrot.slane %v2019, 4
      %v2022 = vrot.slane %v1867, 5
      %v2023 = vsel %vm973, %v2021, %v2022
      %v2024 = vrot.slane %v1868, 5
      %v2025 = vrot.slane %v2024, 4
      %v2026 = vrot.slane %v1869, 5
      %v2027 = vsel %vm973, %v2025, %v2026
      %v2028 = vrot.slane %v2026, 4
      %v2029 = vrot.slane %v1870, 5
      %v2030 = vsel %vm973, %v2028, %v2029
      %v2031 = vunpack.c.l.b16 %v1922
      %v2032 = vunpack.c.l.b16 %v1925
      %v2033 = vunpack.c.l.b16 %v1929
      %v2034 = vunpack.c.l.b16 %v1932
      %v2035 = vunpack.c.l.b16 %v1936
      %v2036 = vunpack.c.l.b16 %v1939
      %v2037 = vunpack.c.l.b16 %v1943
      %v2038 = vunpack.c.l.b16 %v1946
      %v2039 = vunpack.c.l.b16 %v1950
      %v2040 = vunpack.c.l.b16 %v1953
      %v2041 = vunpack.c.l.b16 %v1957
      %v2042 = vunpack.c.l.b16 %v1960
      %v2043 = vunpack.c.l.b16 %v1964
      %v2044 = vunpack.c.l.b16 %v1967
      %v2045 = vunpack.c.l.b16 %v1971
      %v2046 = vunpack.c.l.b16 %v1974
      %v2047 = vunpack.c.l.b16 %v1978
      %v2048 = vunpack.c.l.b16 %v1981
      %v2049 = vunpack.c.l.b16 %v1985
      %v2050 = vunpack.c.l.b16 %v1988
      %v2051 = vunpack.c.l.b16 %v1992
      %v2052 = vunpack.c.l.b16 %v1995
      %v2053 = vunpack.c.l.b16 %v1999
      %v2054 = vunpack.c.l.b16 %v2002
      %v2055 = vunpack.c.l.b16 %v2006
      %v2056 = vunpack.c.l.b16 %v2009
      %v2057 = vunpack.c.l.b16 %v2013
      %v2058 = vunpack.c.l.b16 %v2016
      %v2059 = vunpack.c.l.b16 %v2020
      %v2060 = vunpack.c.l.b16 %v2023
      %v2061 = vunpack.c.l.b16 %v2027
      %v2062 = vunpack.c.l.b16 %v2030
      %v2063 = vpack.c.b16 %v2032, %v2031
      %v2064 = vpack.c.b16 %v2034, %v2033
      %v2065 = vpack.c.b16 %v2036, %v2035
      %v2066 = vpack.c.b16 %v2038, %v2037
      %v2067 = vpack.c.b16 %v2040, %v2039
      %v2068 = vpack.c.b16 %v2042, %v2041
      %v2069 = vpack.c.b16 %v2044, %v2043
      %v2070 = vpack.c.b16 %v2046, %v2045
      %v2071 = vpack.c.b16 %v2048, %v2047
      %v2072 = vpack.c.b16 %v2050, %v2049
      %v2073 = vpack.c.b16 %v2052, %v2051
      %v2074 = vpack.c.b16 %v2054, %v2053
      %v2075 = vpack.c.b16 %v2056, %v2055
      %v2076 = vpack.c.b16 %v2058, %v2057
      %v2077 = vpack.c.b16 %v2060, %v2059
      %v2078 = vpack.c.b16 %v2062, %v2061
      %2095 = vst [vmem:[#allocation2 + $0x28] sm:$0xff] %v2063
      %2096 = vst [vmem:[#allocation2 + $0x70] sm:$0xff] %v2064
      %2097 = vst [vmem:[#allocation2 + $0xb8] sm:$0xff] %v2065
      %2098 = vst [vmem:[#allocation2 + $0x100] sm:$0xff] %v2066
      %2099 = vst [vmem:[#allocation2 + $0x148] sm:$0xff] %v2067
      %2100 = vst [vmem:[#allocation2 + $0x190] sm:$0xff] %v2068
      %2101 = vst [vmem:[#allocation2 + $0x1d8] sm:$0xff] %v2069
      %2102 = vst [vmem:[#allocation2 + $0x220] sm:$0xff] %v2070
      %2103 = vst [vmem:[#allocation2 + $0x268] sm:$0xff] %v2071
      %2104 = vst [vmem:[#allocation2 + $0x2b0] sm:$0xff] %v2072
      %2105 = vst [vmem:[#allocation2 + $0x2f8] sm:$0xff] %v2073
      %2106 = vst [vmem:[#allocation2 + $0x340] sm:$0xff] %v2074
      %2107 = vst [vmem:[#allocation2 + $0x388] sm:$0xff] %v2075
      %2108 = vst [vmem:[#allocation2 + $0x3d0] sm:$0xff] %v2076
      %2109 = vst [vmem:[#allocation2 + $0x418] sm:$0xff] %v2077
      %2110 = vst [vmem:[#allocation2 + $0x460] sm:$0xff] %v2078
      %s2111 = scalar_lea.vmem %s203, 24
      %v2112 = vld [vmem:[%s2111] sm:$0xf]
      %v2113 = vld [vmem:[%s2111 + $0x4] sm:$0xf]
      %v2114 = vld [vmem:[%s2111 + $0xc] sm:$0xf]
      %v2115 = vld [vmem:[%s2111 + $0x10] sm:$0xf]
      %v2116 = vld [vmem:[%s2111 + $0x18] sm:$0xf]
      %v2117 = vld [vmem:[%s2111 + $0x1c] sm:$0xf]
      %v2118 = vld [vmem:[%s2111 + $0x24] sm:$0xf]
      %v2119 = vld [vmem:[%s2111 + $0x28] sm:$0xf]
      %v2120 = vld [vmem:[%s2111 + $0x30] sm:$0xf]
      %v2121 = vld [vmem:[%s2111 + $0x34] sm:$0xf]
      %v2122 = vld [vmem:[%s2111 + $0x3c] sm:$0xf]
      %v2123 = vld [vmem:[%s2111 + $0x40] sm:$0xf]
      %v2124 = vld [vmem:[%s2111 + $0x48] sm:$0xf]
      %v2125 = vld [vmem:[%s2111 + $0x4c] sm:$0xf]
      %v2126 = vld [vmem:[%s2111 + $0x54] sm:$0xf]
      %v2127 = vld [vmem:[%s2111 + $0x58] sm:$0xf]
      %v2128 = vld [vmem:[%s2111 + $0x60] sm:$0xf]
      %v2129 = vld [vmem:[%s2111 + $0x64] sm:$0xf]
      %v2130 = vld [vmem:[%s2111 + $0x6c] sm:$0xf]
      %v2131 = vld [vmem:[%s2111 + $0x70] sm:$0xf]
      %v2132 = vld [vmem:[%s2111 + $0x78] sm:$0xf]
      %v2133 = vld [vmem:[%s2111 + $0x7c] sm:$0xf]
      %v2134 = vld [vmem:[%s2111 + $0x84] sm:$0xf]
      %v2135 = vld [vmem:[%s2111 + $0x88] sm:$0xf]
      %v2136 = vld [vmem:[%s2111 + $0x90] sm:$0xf]
      %v2137 = vld [vmem:[%s2111 + $0x94] sm:$0xf]
      %v2138 = vld [vmem:[%s2111 + $0x9c] sm:$0xf]
      %v2139 = vld [vmem:[%s2111 + $0xa0] sm:$0xf]
      %v2140 = vld [vmem:[%s2111 + $0xa8] sm:$0xf]
      %v2141 = vld [vmem:[%s2111 + $0xac] sm:$0xf]
      %v2142 = vld [vmem:[%s2111 + $0xb4] sm:$0xf]
      %v2143 = vld [vmem:[%s2111 + $0xb8] sm:$0xf]
      %v2176 = vunpack.c.l.b16 %v2112
      %v2177 = vunpack.c.l.b16 %v2113
      %v2178 = vunpack.c.l.b16 %v2114
      %v2179 = vunpack.c.l.b16 %v2115
      %v2180 = vunpack.c.l.b16 %v2116
      %v2181 = vunpack.c.l.b16 %v2117
      %v2182 = vunpack.c.l.b16 %v2118
      %v2183 = vunpack.c.l.b16 %v2119
      %v2184 = vunpack.c.l.b16 %v2120
      %v2185 = vunpack.c.l.b16 %v2121
      %v2186 = vunpack.c.l.b16 %v2122
      %v2187 = vunpack.c.l.b16 %v2123
      %v2188 = vunpack.c.l.b16 %v2124
      %v2189 = vunpack.c.l.b16 %v2125
      %v2190 = vunpack.c.l.b16 %v2126
      %v2191 = vunpack.c.l.b16 %v2127
      %v2192 = vunpack.c.l.b16 %v2128
      %v2193 = vunpack.c.l.b16 %v2129
      %v2194 = vunpack.c.l.b16 %v2130
      %v2195 = vunpack.c.l.b16 %v2131
      %v2196 = vunpack.c.l.b16 %v2132
      %v2197 = vunpack.c.l.b16 %v2133
      %v2198 = vunpack.c.l.b16 %v2134
      %v2199 = vunpack.c.l.b16 %v2135
      %v2200 = vunpack.c.l.b16 %v2136
      %v2201 = vunpack.c.l.b16 %v2137
      %v2202 = vunpack.c.l.b16 %v2138
      %v2203 = vunpack.c.l.b16 %v2139
      %v2204 = vunpack.c.l.b16 %v2140
      %v2205 = vunpack.c.l.b16 %v2141
      %v2206 = vunpack.c.l.b16 %v2142
      %v2207 = vunpack.c.l.b16 %v2143
      %v2208 = vpack.c.b16 %v2177, %v2176
      %v2209 = vpack.c.b16 %v2179, %v2178
      %v2210 = vpack.c.b16 %v2181, %v2180
      %v2211 = vpack.c.b16 %v2183, %v2182
      %v2212 = vpack.c.b16 %v2185, %v2184
      %v2213 = vpack.c.b16 %v2187, %v2186
      %v2214 = vpack.c.b16 %v2189, %v2188
      %v2215 = vpack.c.b16 %v2191, %v2190
      %v2216 = vpack.c.b16 %v2193, %v2192
      %v2217 = vpack.c.b16 %v2195, %v2194
      %v2218 = vpack.c.b16 %v2197, %v2196
      %v2219 = vpack.c.b16 %v2199, %v2198
      %v2220 = vpack.c.b16 %v2201, %v2200
      %v2221 = vpack.c.b16 %v2203, %v2202
      %v2222 = vpack.c.b16 %v2205, %v2204
      %v2223 = vpack.c.b16 %v2207, %v2206
      %2240 = vst [vmem:[#allocation2 + $0x30] sm:$0xff] %v2208
      %2241 = vst [vmem:[#allocation2 + $0x78] sm:$0xff] %v2209
      %2242 = vst [vmem:[#allocation2 + $0xc0] sm:$0xff] %v2210
      %2243 = vst [vmem:[#allocation2 + $0x108] sm:$0xff] %v2211
      %2244 = vst [vmem:[#allocation2 + $0x150] sm:$0xff] %v2212
      %2245 = vst [vmem:[#allocation2 + $0x198] sm:$0xff] %v2213
      %2246 = vst [vmem:[#allocation2 + $0x1e0] sm:$0xff] %v2214
      %2247 = vst [vmem:[#allocation2 + $0x228] sm:$0xff] %v2215
      %2248 = vst [vmem:[#allocation2 + $0x270] sm:$0xff] %v2216
      %2249 = vst [vmem:[#allocation2 + $0x2b8] sm:$0xff] %v2217
      %2250 = vst [vmem:[#allocation2 + $0x300] sm:$0xff] %v2218
      %2251 = vst [vmem:[#allocation2 + $0x348] sm:$0xff] %v2219
      %2252 = vst [vmem:[#allocation2 + $0x390] sm:$0xff] %v2220
      %2253 = vst [vmem:[#allocation2 + $0x3d8] sm:$0xff] %v2221
      %2254 = vst [vmem:[#allocation2 + $0x420] sm:$0xff] %v2222
      %2255 = vst [vmem:[#allocation2 + $0x468] sm:$0xff] %v2223
      %v2256 = vld [vmem:[%s2111] sm:$0xf]
      %v2257 = vld [vmem:[%s2111 + $0x4] sm:$0xf]
      %v2258 = vld [vmem:[%s2111 + $0x8] sm:$0x1]
      %v2259 = vld [vmem:[%s2111 + $0xc] sm:$0xf]
      %v2260 = vld [vmem:[%s2111 + $0x10] sm:$0xf]
      %v2261 = vld [vmem:[%s2111 + $0x14] sm:$0x1]
      %v2262 = vld [vmem:[%s2111 + $0x18] sm:$0xf]
      %v2263 = vld [vmem:[%s2111 + $0x1c] sm:$0xf]
      %v2264 = vld [vmem:[%s2111 + $0x20] sm:$0x1]
      %v2265 = vld [vmem:[%s2111 + $0x24] sm:$0xf]
      %v2266 = vld [vmem:[%s2111 + $0x28] sm:$0xf]
      %v2267 = vld [vmem:[%s2111 + $0x2c] sm:$0x1]
      %v2268 = vld [vmem:[%s2111 + $0x30] sm:$0xf]
      %v2269 = vld [vmem:[%s2111 + $0x34] sm:$0xf]
      %v2270 = vld [vmem:[%s2111 + $0x38] sm:$0x1]
      %v2271 = vld [vmem:[%s2111 + $0x3c] sm:$0xf]
      %v2272 = vld [vmem:[%s2111 + $0x40] sm:$0xf]
      %v2273 = vld [vmem:[%s2111 + $0x44] sm:$0x1]
      %v2274 = vld [vmem:[%s2111 + $0x48] sm:$0xf]
      %v2275 = vld [vmem:[%s2111 + $0x4c] sm:$0xf]
      %v2276 = vld [vmem:[%s2111 + $0x50] sm:$0x1]
      %v2277 = vld [vmem:[%s2111 + $0x54] sm:$0xf]
      %v2278 = vld [vmem:[%s2111 + $0x58] sm:$0xf]
      %v2279 = vld [vmem:[%s2111 + $0x5c] sm:$0x1]
      %v2280 = vld [vmem:[%s2111 + $0x60] sm:$0xf]
      %v2281 = vld [vmem:[%s2111 + $0x64] sm:$0xf]
      %v2282 = vld [vmem:[%s2111 + $0x68] sm:$0x1]
      %v2283 = vld [vmem:[%s2111 + $0x6c] sm:$0xf]
      %v2284 = vld [vmem:[%s2111 + $0x70] sm:$0xf]
      %v2285 = vld [vmem:[%s2111 + $0x74] sm:$0x1]
      %v2286 = vld [vmem:[%s2111 + $0x78] sm:$0xf]
      %v2287 = vld [vmem:[%s2111 + $0x7c] sm:$0xf]
      %v2288 = vld [vmem:[%s2111 + $0x80] sm:$0x1]
      %v2289 = vld [vmem:[%s2111 + $0x84] sm:$0xf]
      %v2290 = vld [vmem:[%s2111 + $0x88] sm:$0xf]
      %v2291 = vld [vmem:[%s2111 + $0x8c] sm:$0x1]
      %v2292 = vld [vmem:[%s2111 + $0x90] sm:$0xf]
      %v2293 = vld [vmem:[%s2111 + $0x94] sm:$0xf]
      %v2294 = vld [vmem:[%s2111 + $0x98] sm:$0x1]
      %v2295 = vld [vmem:[%s2111 + $0x9c] sm:$0xf]
      %v2296 = vld [vmem:[%s2111 + $0xa0] sm:$0xf]
      %v2297 = vld [vmem:[%s2111 + $0xa4] sm:$0x1]
      %v2298 = vld [vmem:[%s2111 + $0xa8] sm:$0xf]
      %v2299 = vld [vmem:[%s2111 + $0xac] sm:$0xf]
      %v2300 = vld [vmem:[%s2111 + $0xb0] sm:$0x1]
      %v2301 = vld [vmem:[%s2111 + $0xb4] sm:$0xf]
      %v2302 = vld [vmem:[%s2111 + $0xb8] sm:$0xf]
      %v2303 = vld [vmem:[%s2111 + $0xbc] sm:$0x1]
      %v2305 = vshrl.u32 %v2256, 16
      %v2307 = vrot.slane %v2305, 4
      %v2308 = vshll.u32 %v2256, 16
      %v2310 = vrot.slane %v2308, 5
      %v2311 = vor.u32 %v2307, %v2310
      %v2312 = vrot.slane %v2311, 4
      %v2314 = vshll.u32 %v2257, 16
      %v2316 = vrot.slane %v2314, 5
      %v2317 = vsel %vm410, %v2312, %v2316
      %v2318 = vshrl.u32 %v2257, 16
      %v2320 = vrot.slane %v2318, 4
      %v2321 = vor.u32 %v2320, %v2316
      %v2322 = vrot.slane %v2321, 4
      %v2324 = vshll.u32 %v2258, 16
      %v2326 = vrot.slane %v2324, 5
      %v2327 = vsel %vm410, %v2322, %v2326
      %v2329 = vshrl.u32 %v2259, 16
      %v2331 = vrot.slane %v2329, 4
      %v2332 = vshll.u32 %v2259, 16
      %v2334 = vrot.slane %v2332, 5
      %v2335 = vor.u32 %v2331, %v2334
      %v2336 = vrot.slane %v2335, 4
      %v2338 = vshll.u32 %v2260, 16
      %v2340 = vrot.slane %v2338, 5
      %v2341 = vsel %vm410, %v2336, %v2340
      %v2342 = vshrl.u32 %v2260, 16
      %v2344 = vrot.slane %v2342, 4
      %v2345 = vor.u32 %v2344, %v2340
      %v2346 = vrot.slane %v2345, 4
      %v2348 = vshll.u32 %v2261, 16
      %v2350 = vrot.slane %v2348, 5
      %v2351 = vsel %vm410, %v2346, %v2350
      %v2353 = vshrl.u32 %v2262, 16
      %v2355 = vrot.slane %v2353, 4
      %v2356 = vshll.u32 %v2262, 16
      %v2358 = vrot.slane %v2356, 5
      %v2359 = vor.u32 %v2355, %v2358
      %v2360 = vrot.slane %v2359, 4
      %v2362 = vshll.u32 %v2263, 16
      %v2364 = vrot.slane %v2362, 5
      %v2365 = vsel %vm410, %v2360, %v2364
      %v2366 = vshrl.u32 %v2263, 16
      %v2368 = vrot.slane %v2366, 4
      %v2369 = vor.u32 %v2368, %v2364
      %v2370 = vrot.slane %v2369, 4
      %v2372 = vshll.u32 %v2264, 16
      %v2374 = vrot.slane %v2372, 5
      %v2375 = vsel %vm410, %v2370, %v2374
      %v2377 = vshrl.u32 %v2265, 16
      %v2379 = vrot.slane %v2377, 4
      %v2380 = vshll.u32 %v2265, 16
      %v2382 = vrot.slane %v2380, 5
      %v2383 = vor.u32 %v2379, %v2382
      %v2384 = vrot.slane %v2383, 4
      %v2386 = vshll.u32 %v2266, 16
      %v2388 = vrot.slane %v2386, 5
      %v2389 = vsel %vm410, %v2384, %v2388
      %v2390 = vshrl.u32 %v2266, 16
      %v2392 = vrot.slane %v2390, 4
      %v2393 = vor.u32 %v2392, %v2388
      %v2394 = vrot.slane %v2393, 4
      %v2396 = vshll.u32 %v2267, 16
      %v2398 = vrot.slane %v2396, 5
      %v2399 = vsel %vm410, %v2394, %v2398
      %v2401 = vshrl.u32 %v2268, 16
      %v2403 = vrot.slane %v2401, 4
      %v2404 = vshll.u32 %v2268, 16
      %v2406 = vrot.slane %v2404, 5
      %v2407 = vor.u32 %v2403, %v2406
      %v2408 = vrot.slane %v2407, 4
      %v2410 = vshll.u32 %v2269, 16
      %v2412 = vrot.slane %v2410, 5
      %v2413 = vsel %vm410, %v2408, %v2412
      %v2414 = vshrl.u32 %v2269, 16
      %v2416 = vrot.slane %v2414, 4
      %v2417 = vor.u32 %v2416, %v2412
      %v2418 = vrot.slane %v2417, 4
      %v2420 = vshll.u32 %v2270, 16
      %v2422 = vrot.slane %v2420, 5
      %v2423 = vsel %vm410, %v2418, %v2422
      %v2425 = vshrl.u32 %v2271, 16
      %v2427 = vrot.slane %v2425, 4
      %v2428 = vshll.u32 %v2271, 16
      %v2430 = vrot.slane %v2428, 5
      %v2431 = vor.u32 %v2427, %v2430
      %v2432 = vrot.slane %v2431, 4
      %v2434 = vshll.u32 %v2272, 16
      %v2436 = vrot.slane %v2434, 5
      %v2437 = vsel %vm410, %v2432, %v2436
      %v2438 = vshrl.u32 %v2272, 16
      %v2440 = vrot.slane %v2438, 4
      %v2441 = vor.u32 %v2440, %v2436
      %v2442 = vrot.slane %v2441, 4
      %v2444 = vshll.u32 %v2273, 16
      %v2446 = vrot.slane %v2444, 5
      %v2447 = vsel %vm410, %v2442, %v2446
      %v2449 = vshrl.u32 %v2274, 16
      %v2451 = vrot.slane %v2449, 4
      %v2452 = vshll.u32 %v2274, 16
      %v2454 = vrot.slane %v2452, 5
      %v2455 = vor.u32 %v2451, %v2454
      %v2456 = vrot.slane %v2455, 4
      %v2458 = vshll.u32 %v2275, 16
      %v2460 = vrot.slane %v2458, 5
      %v2461 = vsel %vm410, %v2456, %v2460
      %v2462 = vshrl.u32 %v2275, 16
      %v2464 = vrot.slane %v2462, 4
      %v2465 = vor.u32 %v2464, %v2460
      %v2466 = vrot.slane %v2465, 4
      %v2468 = vshll.u32 %v2276, 16
      %v2470 = vrot.slane %v2468, 5
      %v2471 = vsel %vm410, %v2466, %v2470
      %v2473 = vshrl.u32 %v2277, 16
      %v2475 = vrot.slane %v2473, 4
      %v2476 = vshll.u32 %v2277, 16
      %v2478 = vrot.slane %v2476, 5
      %v2479 = vor.u32 %v2475, %v2478
      %v2480 = vrot.slane %v2479, 4
      %v2482 = vshll.u32 %v2278, 16
      %v2484 = vrot.slane %v2482, 5
      %v2485 = vsel %vm410, %v2480, %v2484
      %v2486 = vshrl.u32 %v2278, 16
      %v2488 = vrot.slane %v2486, 4
      %v2489 = vor.u32 %v2488, %v2484
      %v2490 = vrot.slane %v2489, 4
      %v2492 = vshll.u32 %v2279, 16
      %v2494 = vrot.slane %v2492, 5
      %v2495 = vsel %vm410, %v2490, %v2494
      %v2497 = vshrl.u32 %v2280, 16
      %v2499 = vrot.slane %v2497, 4
      %v2500 = vshll.u32 %v2280, 16
      %v2502 = vrot.slane %v2500, 5
      %v2503 = vor.u32 %v2499, %v2502
      %v2504 = vrot.slane %v2503, 4
      %v2506 = vshll.u32 %v2281, 16
      %v2508 = vrot.slane %v2506, 5
      %v2509 = vsel %vm410, %v2504, %v2508
      %v2510 = vshrl.u32 %v2281, 16
      %v2512 = vrot.slane %v2510, 4
      %v2513 = vor.u32 %v2512, %v2508
      %v2514 = vrot.slane %v2513, 4
      %v2516 = vshll.u32 %v2282, 16
      %v2518 = vrot.slane %v2516, 5
      %v2519 = vsel %vm410, %v2514, %v2518
      %v2521 = vshrl.u32 %v2283, 16
      %v2523 = vrot.slane %v2521, 4
      %v2524 = vshll.u32 %v2283, 16
      %v2526 = vrot.slane %v2524, 5
      %v2527 = vor.u32 %v2523, %v2526
      %v2528 = vrot.slane %v2527, 4
      %v2530 = vshll.u32 %v2284, 16
      %v2532 = vrot.slane %v2530, 5
      %v2533 = vsel %vm410, %v2528, %v2532
      %v2534 = vshrl.u32 %v2284, 16
      %v2536 = vrot.slane %v2534, 4
      %v2537 = vor.u32 %v2536, %v2532
      %v2538 = vrot.slane %v2537, 4
      %v2540 = vshll.u32 %v2285, 16
      %v2542 = vrot.slane %v2540, 5
      %v2543 = vsel %vm410, %v2538, %v2542
      %v2545 = vshrl.u32 %v2286, 16
      %v2547 = vrot.slane %v2545, 4
      %v2548 = vshll.u32 %v2286, 16
      %v2550 = vrot.slane %v2548, 5
      %v2551 = vor.u32 %v2547, %v2550
      %v2552 = vrot.slane %v2551, 4
      %v2554 = vshll.u32 %v2287, 16
      %v2556 = vrot.slane %v2554, 5
      %v2557 = vsel %vm410, %v2552, %v2556
      %v2558 = vshrl.u32 %v2287, 16
      %v2560 = vrot.slane %v2558, 4
      %v2561 = vor.u32 %v2560, %v2556
      %v2562 = vrot.slane %v2561, 4
      %v2564 = vshll.u32 %v2288, 16
      %v2566 = vrot.slane %v2564, 5
      %v2567 = vsel %vm410, %v2562, %v2566
      %v2569 = vshrl.u32 %v2289, 16
      %v2571 = vrot.slane %v2569, 4
      %v2572 = vshll.u32 %v2289, 16
      %v2574 = vrot.slane %v2572, 5
      %v2575 = vor.u32 %v2571, %v2574
      %v2576 = vrot.slane %v2575, 4
      %v2578 = vshll.u32 %v2290, 16
      %v2580 = vrot.slane %v2578, 5
      %v2581 = vsel %vm410, %v2576, %v2580
      %v2582 = vshrl.u32 %v2290, 16
      %v2584 = vrot.slane %v2582, 4
      %v2585 = vor.u32 %v2584, %v2580
      %v2586 = vrot.slane %v2585, 4
      %v2588 = vshll.u32 %v2291, 16
      %v2590 = vrot.slane %v2588, 5
      %v2591 = vsel %vm410, %v2586, %v2590
      %v2593 = vshrl.u32 %v2292, 16
      %v2595 = vrot.slane %v2593, 4
      %v2596 = vshll.u32 %v2292, 16
      %v2598 = vrot.slane %v2596, 5
      %v2599 = vor.u32 %v2595, %v2598
      %v2600 = vrot.slane %v2599, 4
      %v2602 = vshll.u32 %v2293, 16
      %v2604 = vrot.slane %v2602, 5
      %v2605 = vsel %vm410, %v2600, %v2604
      %v2606 = vshrl.u32 %v2293, 16
      %v2608 = vrot.slane %v2606, 4
      %v2609 = vor.u32 %v2608, %v2604
      %v2610 = vrot.slane %v2609, 4
      %v2612 = vshll.u32 %v2294, 16
      %v2614 = vrot.slane %v2612, 5
      %v2615 = vsel %vm410, %v2610, %v2614
      %v2617 = vshrl.u32 %v2295, 16
      %v2619 = vrot.slane %v2617, 4
      %v2620 = vshll.u32 %v2295, 16
      %v2622 = vrot.slane %v2620, 5
      %v2623 = vor.u32 %v2619, %v2622
      %v2624 = vrot.slane %v2623, 4
      %v2626 = vshll.u32 %v2296, 16
      %v2628 = vrot.slane %v2626, 5
      %v2629 = vsel %vm410, %v2624, %v2628
      %v2630 = vshrl.u32 %v2296, 16
      %v2632 = vrot.slane %v2630, 4
      %v2633 = vor.u32 %v2632, %v2628
      %v2634 = vrot.slane %v2633, 4
      %v2636 = vshll.u32 %v2297, 16
      %v2638 = vrot.slane %v2636, 5
      %v2639 = vsel %vm410, %v2634, %v2638
      %v2641 = vshrl.u32 %v2298, 16
      %v2643 = vrot.slane %v2641, 4
      %v2644 = vshll.u32 %v2298, 16
      %v2646 = vrot.slane %v2644, 5
      %v2647 = vor.u32 %v2643, %v2646
      %v2648 = vrot.slane %v2647, 4
      %v2650 = vshll.u32 %v2299, 16
      %v2652 = vrot.slane %v2650, 5
      %v2653 = vsel %vm410, %v2648, %v2652
      %v2654 = vshrl.u32 %v2299, 16
      %v2656 = vrot.slane %v2654, 4
      %v2657 = vor.u32 %v2656, %v2652
      %v2658 = vrot.slane %v2657, 4
      %v2660 = vshll.u32 %v2300, 16
      %v2662 = vrot.slane %v2660, 5
      %v2663 = vsel %vm410, %v2658, %v2662
      %v2665 = vshrl.u32 %v2301, 16
      %v2667 = vrot.slane %v2665, 4
      %v2668 = vshll.u32 %v2301, 16
      %v2670 = vrot.slane %v2668, 5
      %v2671 = vor.u32 %v2667, %v2670
      %v2672 = vrot.slane %v2671, 4
      %v2674 = vshll.u32 %v2302, 16
      %v2676 = vrot.slane %v2674, 5
      %v2677 = vsel %vm410, %v2672, %v2676
      %v2678 = vshrl.u32 %v2302, 16
      %v2680 = vrot.slane %v2678, 4
      %v2681 = vor.u32 %v2680, %v2676
      %v2682 = vrot.slane %v2681, 4
      %v2684 = vshll.u32 %v2303, 16
      %v2686 = vrot.slane %v2684, 5
      %v2687 = vsel %vm410, %v2682, %v2686
      %v2688 = vunpack.c.l.b16 %v2317
      %v2689 = vunpack.c.l.b16 %v2327
      %v2690 = vunpack.c.l.b16 %v2341
      %v2691 = vunpack.c.l.b16 %v2351
      %v2692 = vunpack.c.l.b16 %v2365
      %v2693 = vunpack.c.l.b16 %v2375
      %v2694 = vunpack.c.l.b16 %v2389
      %v2695 = vunpack.c.l.b16 %v2399
      %v2696 = vunpack.c.l.b16 %v2413
      %v2697 = vunpack.c.l.b16 %v2423
      %v2698 = vunpack.c.l.b16 %v2437
      %v2699 = vunpack.c.l.b16 %v2447
      %v2700 = vunpack.c.l.b16 %v2461
      %v2701 = vunpack.c.l.b16 %v2471
      %v2702 = vunpack.c.l.b16 %v2485
      %v2703 = vunpack.c.l.b16 %v2495
      %v2704 = vunpack.c.l.b16 %v2509
      %v2705 = vunpack.c.l.b16 %v2519
      %v2706 = vunpack.c.l.b16 %v2533
      %v2707 = vunpack.c.l.b16 %v2543
      %v2708 = vunpack.c.l.b16 %v2557
      %v2709 = vunpack.c.l.b16 %v2567
      %v2710 = vunpack.c.l.b16 %v2581
      %v2711 = vunpack.c.l.b16 %v2591
      %v2712 = vunpack.c.l.b16 %v2605
      %v2713 = vunpack.c.l.b16 %v2615
      %v2714 = vunpack.c.l.b16 %v2629
      %v2715 = vunpack.c.l.b16 %v2639
      %v2716 = vunpack.c.l.b16 %v2653
      %v2717 = vunpack.c.l.b16 %v2663
      %v2718 = vunpack.c.l.b16 %v2677
      %v2719 = vunpack.c.l.b16 %v2687
      %v2720 = vpack.c.b16 %v2689, %v2688
      %v2721 = vpack.c.b16 %v2691, %v2690
      %v2722 = vpack.c.b16 %v2693, %v2692
      %v2723 = vpack.c.b16 %v2695, %v2694
      %v2724 = vpack.c.b16 %v2697, %v2696
      %v2725 = vpack.c.b16 %v2699, %v2698
      %v2726 = vpack.c.b16 %v2701, %v2700
      %v2727 = vpack.c.b16 %v2703, %v2702
      %v2728 = vpack.c.b16 %v2705, %v2704
      %v2729 = vpack.c.b16 %v2707, %v2706
      %v2730 = vpack.c.b16 %v2709, %v2708
      %v2731 = vpack.c.b16 %v2711, %v2710
      %v2732 = vpack.c.b16 %v2713, %v2712
      %v2733 = vpack.c.b16 %v2715, %v2714
      %v2734 = vpack.c.b16 %v2717, %v2716
      %v2735 = vpack.c.b16 %v2719, %v2718
      %2752 = vst [vmem:[#allocation2 + $0x38] sm:$0xff] %v2720
      %2753 = vst [vmem:[#allocation2 + $0x80] sm:$0xff] %v2721
      %2754 = vst [vmem:[#allocation2 + $0xc8] sm:$0xff] %v2722
      %2755 = vst [vmem:[#allocation2 + $0x110] sm:$0xff] %v2723
      %2756 = vst [vmem:[#allocation2 + $0x158] sm:$0xff] %v2724
      %2757 = vst [vmem:[#allocation2 + $0x1a0] sm:$0xff] %v2725
      %2758 = vst [vmem:[#allocation2 + $0x1e8] sm:$0xff] %v2726
      %2759 = vst [vmem:[#allocation2 + $0x230] sm:$0xff] %v2727
      %2760 = vst [vmem:[#allocation2 + $0x278] sm:$0xff] %v2728
      %2761 = vst [vmem:[#allocation2 + $0x2c0] sm:$0xff] %v2729
      %2762 = vst [vmem:[#allocation2 + $0x308] sm:$0xff] %v2730
      %2763 = vst [vmem:[#allocation2 + $0x350] sm:$0xff] %v2731
      %2764 = vst [vmem:[#allocation2 + $0x398] sm:$0xff] %v2732
      %2765 = vst [vmem:[#allocation2 + $0x3e0] sm:$0xff] %v2733
      %2766 = vst [vmem:[#allocation2 + $0x428] sm:$0xff] %v2734
      %2767 = vst [vmem:[#allocation2 + $0x470] sm:$0xff] %v2735
      %v2768 = vld [vmem:[%s2111] sm:$0xe]
      %v2769 = vld [vmem:[%s2111 + $0x4] sm:$0xf]
      %v2770 = vld [vmem:[%s2111 + $0x8] sm:$0x1]
      %v2771 = vld [vmem:[%s2111 + $0xc] sm:$0xe]
      %v2772 = vld [vmem:[%s2111 + $0x10] sm:$0xf]
      %v2773 = vld [vmem:[%s2111 + $0x14] sm:$0x1]
      %v2774 = vld [vmem:[%s2111 + $0x18] sm:$0xe]
      %v2775 = vld [vmem:[%s2111 + $0x1c] sm:$0xf]
      %v2776 = vld [vmem:[%s2111 + $0x20] sm:$0x1]
      %v2777 = vld [vmem:[%s2111 + $0x24] sm:$0xe]
      %v2778 = vld [vmem:[%s2111 + $0x28] sm:$0xf]
      %v2779 = vld [vmem:[%s2111 + $0x2c] sm:$0x1]
      %v2780 = vld [vmem:[%s2111 + $0x30] sm:$0xe]
      %v2781 = vld [vmem:[%s2111 + $0x34] sm:$0xf]
      %v2782 = vld [vmem:[%s2111 + $0x38] sm:$0x1]
      %v2783 = vld [vmem:[%s2111 + $0x3c] sm:$0xe]
      %v2784 = vld [vmem:[%s2111 + $0x40] sm:$0xf]
      %v2785 = vld [vmem:[%s2111 + $0x44] sm:$0x1]
      %v2786 = vld [vmem:[%s2111 + $0x48] sm:$0xe]
      %v2787 = vld [vmem:[%s2111 + $0x4c] sm:$0xf]
      %v2788 = vld [vmem:[%s2111 + $0x50] sm:$0x1]
      %v2789 = vld [vmem:[%s2111 + $0x54] sm:$0xe]
      %v2790 = vld [vmem:[%s2111 + $0x58] sm:$0xf]
      %v2791 = vld [vmem:[%s2111 + $0x5c] sm:$0x1]
      %v2792 = vld [vmem:[%s2111 + $0x60] sm:$0xe]
      %v2793 = vld [vmem:[%s2111 + $0x64] sm:$0xf]
      %v2794 = vld [vmem:[%s2111 + $0x68] sm:$0x1]
      %v2795 = vld [vmem:[%s2111 + $0x6c] sm:$0xe]
      %v2796 = vld [vmem:[%s2111 + $0x70] sm:$0xf]
      %v2797 = vld [vmem:[%s2111 + $0x74] sm:$0x1]
      %v2798 = vld [vmem:[%s2111 + $0x78] sm:$0xe]
      %v2799 = vld [vmem:[%s2111 + $0x7c] sm:$0xf]
      %v2800 = vld [vmem:[%s2111 + $0x80] sm:$0x1]
      %v2801 = vld [vmem:[%s2111 + $0x84] sm:$0xe]
      %v2802 = vld [vmem:[%s2111 + $0x88] sm:$0xf]
      %v2803 = vld [vmem:[%s2111 + $0x8c] sm:$0x1]
      %v2804 = vld [vmem:[%s2111 + $0x90] sm:$0xe]
      %v2805 = vld [vmem:[%s2111 + $0x94] sm:$0xf]
      %v2806 = vld [vmem:[%s2111 + $0x98] sm:$0x1]
      %v2807 = vld [vmem:[%s2111 + $0x9c] sm:$0xe]
      %v2808 = vld [vmem:[%s2111 + $0xa0] sm:$0xf]
      %v2809 = vld [vmem:[%s2111 + $0xa4] sm:$0x1]
      %v2810 = vld [vmem:[%s2111 + $0xa8] sm:$0xe]
      %v2811 = vld [vmem:[%s2111 + $0xac] sm:$0xf]
      %v2812 = vld [vmem:[%s2111 + $0xb0] sm:$0x1]
      %v2813 = vld [vmem:[%s2111 + $0xb4] sm:$0xe]
      %v2814 = vld [vmem:[%s2111 + $0xb8] sm:$0xf]
      %v2815 = vld [vmem:[%s2111 + $0xbc] sm:$0x1]
      %v2864 = vrot.slane %v2768, 5
      %v2865 = vrot.slane %v2864, 4
      %v2866 = vrot.slane %v2769, 5
      %v2867 = vsel %vm973, %v2865, %v2866
      %v2868 = vrot.slane %v2866, 4
      %v2869 = vrot.slane %v2770, 5
      %v2870 = vsel %vm973, %v2868, %v2869
      %v2871 = vrot.slane %v2771, 5
      %v2872 = vrot.slane %v2871, 4
      %v2873 = vrot.slane %v2772, 5
      %v2874 = vsel %vm973, %v2872, %v2873
      %v2875 = vrot.slane %v2873, 4
      %v2876 = vrot.slane %v2773, 5
      %v2877 = vsel %vm973, %v2875, %v2876
      %v2878 = vrot.slane %v2774, 5
      %v2879 = vrot.slane %v2878, 4
      %v2880 = vrot.slane %v2775, 5
      %v2881 = vsel %vm973, %v2879, %v2880
      %v2882 = vrot.slane %v2880, 4
      %v2883 = vrot.slane %v2776, 5
      %v2884 = vsel %vm973, %v2882, %v2883
      %v2885 = vrot.slane %v2777, 5
      %v2886 = vrot.slane %v2885, 4
      %v2887 = vrot.slane %v2778, 5
      %v2888 = vsel %vm973, %v2886, %v2887
      %v2889 = vrot.slane %v2887, 4
      %v2890 = vrot.slane %v2779, 5
      %v2891 = vsel %vm973, %v2889, %v2890
      %v2892 = vrot.slane %v2780, 5
      %v2893 = vrot.slane %v2892, 4
      %v2894 = vrot.slane %v2781, 5
      %v2895 = vsel %vm973, %v2893, %v2894
      %v2896 = vrot.slane %v2894, 4
      %v2897 = vrot.slane %v2782, 5
      %v2898 = vsel %vm973, %v2896, %v2897
      %v2899 = vrot.slane %v2783, 5
      %v2900 = vrot.slane %v2899, 4
      %v2901 = vrot.slane %v2784, 5
      %v2902 = vsel %vm973, %v2900, %v2901
      %v2903 = vrot.slane %v2901, 4
      %v2904 = vrot.slane %v2785, 5
      %v2905 = vsel %vm973, %v2903, %v2904
      %v2906 = vrot.slane %v2786, 5
      %v2907 = vrot.slane %v2906, 4
      %v2908 = vrot.slane %v2787, 5
      %v2909 = vsel %vm973, %v2907, %v2908
      %v2910 = vrot.slane %v2908, 4
      %v2911 = vrot.slane %v2788, 5
      %v2912 = vsel %vm973, %v2910, %v2911
      %v2913 = vrot.slane %v2789, 5
      %v2914 = vrot.slane %v2913, 4
      %v2915 = vrot.slane %v2790, 5
      %v2916 = vsel %vm973, %v2914, %v2915
      %v2917 = vrot.slane %v2915, 4
      %v2918 = vrot.slane %v2791, 5
      %v2919 = vsel %vm973, %v2917, %v2918
      %v2920 = vrot.slane %v2792, 5
      %v2921 = vrot.slane %v2920, 4
      %v2922 = vrot.slane %v2793, 5
      %v2923 = vsel %vm973, %v2921, %v2922
      %v2924 = vrot.slane %v2922, 4
      %v2925 = vrot.slane %v2794, 5
      %v2926 = vsel %vm973, %v2924, %v2925
      %v2927 = vrot.slane %v2795, 5
      %v2928 = vrot.slane %v2927, 4
      %v2929 = vrot.slane %v2796, 5
      %v2930 = vsel %vm973, %v2928, %v2929
      %v2931 = vrot.slane %v2929, 4
      %v2932 = vrot.slane %v2797, 5
      %v2933 = vsel %vm973, %v2931, %v2932
      %v2934 = vrot.slane %v2798, 5
      %v2935 = vrot.slane %v2934, 4
      %v2936 = vrot.slane %v2799, 5
      %v2937 = vsel %vm973, %v2935, %v2936
      %v2938 = vrot.slane %v2936, 4
      %v2939 = vrot.slane %v2800, 5
      %v2940 = vsel %vm973, %v2938, %v2939
      %v2941 = vrot.slane %v2801, 5
      %v2942 = vrot.slane %v2941, 4
      %v2943 = vrot.slane %v2802, 5
      %v2944 = vsel %vm973, %v2942, %v2943
      %v2945 = vrot.slane %v2943, 4
      %v2946 = vrot.slane %v2803, 5
      %v2947 = vsel %vm973, %v2945, %v2946
      %v2948 = vrot.slane %v2804, 5
      %v2949 = vrot.slane %v2948, 4
      %v2950 = vrot.slane %v2805, 5
      %v2951 = vsel %vm973, %v2949, %v2950
      %v2952 = vrot.slane %v2950, 4
      %v2953 = vrot.slane %v2806, 5
      %v2954 = vsel %vm973, %v2952, %v2953
      %v2955 = vrot.slane %v2807, 5
      %v2956 = vrot.slane %v2955, 4
      %v2957 = vrot.slane %v2808, 5
      %v2958 = vsel %vm973, %v2956, %v2957
      %v2959 = vrot.slane %v2957, 4
      %v2960 = vrot.slane %v2809, 5
      %v2961 = vsel %vm973, %v2959, %v2960
      %v2962 = vrot.slane %v2810, 5
      %v2963 = vrot.slane %v2962, 4
      %v2964 = vrot.slane %v2811, 5
      %v2965 = vsel %vm973, %v2963, %v2964
      %v2966 = vrot.slane %v2964, 4
      %v2967 = vrot.slane %v2812, 5
      %v2968 = vsel %vm973, %v2966, %v2967
      %v2969 = vrot.slane %v2813, 5
      %v2970 = vrot.slane %v2969, 4
      %v2971 = vrot.slane %v2814, 5
      %v2972 = vsel %vm973, %v2970, %v2971
      %v2973 = vrot.slane %v2971, 4
      %v2974 = vrot.slane %v2815, 5
      %v2975 = vsel %vm973, %v2973, %v2974
      %v2976 = vunpack.c.l.b16 %v2867
      %v2977 = vunpack.c.l.b16 %v2870
      %v2978 = vunpack.c.l.b16 %v2874
      %v2979 = vunpack.c.l.b16 %v2877
      %v2980 = vunpack.c.l.b16 %v2881
      %v2981 = vunpack.c.l.b16 %v2884
      %v2982 = vunpack.c.l.b16 %v2888
      %v2983 = vunpack.c.l.b16 %v2891
      %v2984 = vunpack.c.l.b16 %v2895
      %v2985 = vunpack.c.l.b16 %v2898
      %v2986 = vunpack.c.l.b16 %v2902
      %v2987 = vunpack.c.l.b16 %v2905
      %v2988 = vunpack.c.l.b16 %v2909
      %v2989 = vunpack.c.l.b16 %v2912
      %v2990 = vunpack.c.l.b16 %v2916
      %v2991 = vunpack.c.l.b16 %v2919
      %v2992 = vunpack.c.l.b16 %v2923
      %v2993 = vunpack.c.l.b16 %v2926
      %v2994 = vunpack.c.l.b16 %v2930
      %v2995 = vunpack.c.l.b16 %v2933
      %v2996 = vunpack.c.l.b16 %v2937
      %v2997 = vunpack.c.l.b16 %v2940
      %v2998 = vunpack.c.l.b16 %v2944
      %v2999 = vunpack.c.l.b16 %v2947
      %v3000 = vunpack.c.l.b16 %v2951
      %v3001 = vunpack.c.l.b16 %v2954
      %v3002 = vunpack.c.l.b16 %v2958
      %v3003 = vunpack.c.l.b16 %v2961
      %v3004 = vunpack.c.l.b16 %v2965
      %v3005 = vunpack.c.l.b16 %v2968
      %v3006 = vunpack.c.l.b16 %v2972
      %v3007 = vunpack.c.l.b16 %v2975
      %v3008 = vpack.c.b16 %v2977, %v2976
      %v3009 = vpack.c.b16 %v2979, %v2978
      %v3010 = vpack.c.b16 %v2981, %v2980
      %v3011 = vpack.c.b16 %v2983, %v2982
      %v3012 = vpack.c.b16 %v2985, %v2984
      %v3013 = vpack.c.b16 %v2987, %v2986
      %v3014 = vpack.c.b16 %v2989, %v2988
      %v3015 = vpack.c.b16 %v2991, %v2990
      %v3016 = vpack.c.b16 %v2993, %v2992
      %v3017 = vpack.c.b16 %v2995, %v2994
      %v3018 = vpack.c.b16 %v2997, %v2996
      %v3019 = vpack.c.b16 %v2999, %v2998
      %v3020 = vpack.c.b16 %v3001, %v3000
      %v3021 = vpack.c.b16 %v3003, %v3002
      %v3022 = vpack.c.b16 %v3005, %v3004
      %v3023 = vpack.c.b16 %v3007, %v3006
      %3040 = vst [vmem:[#allocation2 + $0x40] sm:$0xff] %v3008
      %3041 = vst [vmem:[#allocation2 + $0x88] sm:$0xff] %v3009
      %3042 = vst [vmem:[#allocation2 + $0xd0] sm:$0xff] %v3010
      %3043 = vst [vmem:[#allocation2 + $0x118] sm:$0xff] %v3011
      %3044 = vst [vmem:[#allocation2 + $0x160] sm:$0xff] %v3012
      %3045 = vst [vmem:[#allocation2 + $0x1a8] sm:$0xff] %v3013
      %3046 = vst [vmem:[#allocation2 + $0x1f0] sm:$0xff] %v3014
      %3047 = vst [vmem:[#allocation2 + $0x238] sm:$0xff] %v3015
      %3048 = vst [vmem:[#allocation2 + $0x280] sm:$0xff] %v3016
      %3049 = vst [vmem:[#allocation2 + $0x2c8] sm:$0xff] %v3017
      %3050 = vst [vmem:[#allocation2 + $0x310] sm:$0xff] %v3018
      %3051 = vst [vmem:[#allocation2 + $0x358] sm:$0xff] %v3019
      %3052 = vst [vmem:[#allocation2 + $0x3a0] sm:$0xff] %v3020
      %3053 = vst [vmem:[#allocation2 + $0x3e8] sm:$0xff] %v3021
      %3054 = vst [vmem:[#allocation2 + $0x430] sm:$0xff] %v3022
      %3055 = vst [vmem:[#allocation2 + $0x478] sm:$0xff] %v3023
      %v3056 = vld [vmem:[#allocation2] sm:$0xff]
      %v3057 = vld [vmem:[#allocation2 + $0x8] sm:$0xff]
      %v3058 = vld [vmem:[#allocation2 + $0x10] sm:$0xff]
      %v3059 = vld [vmem:[#allocation2 + $0x18] sm:$0xff]
      %v3060 = vld [vmem:[#allocation2 + $0x20] sm:$0xff]
      %v3061 = vld [vmem:[#allocation2 + $0x28] sm:$0xff]
      %v3062 = vld [vmem:[#allocation2 + $0x30] sm:$0xff]
      %v3063 = vld [vmem:[#allocation2 + $0x38] sm:$0xff]
      %v3064 = vld [vmem:[#allocation2 + $0x40] sm:$0xff]
      %v3065 = vld [vmem:[#allocation2 + $0x48] sm:$0xff]
      %v3066 = vld [vmem:[#allocation2 + $0x50] sm:$0xff]
      %v3067 = vld [vmem:[#allocation2 + $0x58] sm:$0xff]
      %v3068 = vld [vmem:[#allocation2 + $0x60] sm:$0xff]
      %v3069 = vld [vmem:[#allocation2 + $0x68] sm:$0xff]
      %v3070 = vld [vmem:[#allocation2 + $0x70] sm:$0xff]
      %v3071 = vld [vmem:[#allocation2 + $0x78] sm:$0xff]
      %v3072 = vld [vmem:[#allocation2 + $0x80] sm:$0xff]
      %v3073 = vld [vmem:[#allocation2 + $0x88] sm:$0xff]
      %v3074 = vld [vmem:[#allocation2 + $0x90] sm:$0xff]
      %v3075 = vld [vmem:[#allocation2 + $0x98] sm:$0xff]
      %v3076 = vld [vmem:[#allocation2 + $0xa0] sm:$0xff]
      %v3077 = vld [vmem:[#allocation2 + $0xa8] sm:$0xff]
      %v3078 = vld [vmem:[#allocation2 + $0xb0] sm:$0xff]
      %v3079 = vld [vmem:[#allocation2 + $0xb8] sm:$0xff]
      %v3080 = vld [vmem:[#allocation2 + $0xc0] sm:$0xff]
      %v3081 = vld [vmem:[#allocation2 + $0xc8] sm:$0xff]
      %v3082 = vld [vmem:[#allocation2 + $0xd0] sm:$0xff]
      %v3083 = vld [vmem:[#allocation2 + $0xd8] sm:$0xff]
      %v3084 = vld [vmem:[#allocation2 + $0xe0] sm:$0xff]
      %v3085 = vld [vmem:[#allocation2 + $0xe8] sm:$0xff]
      %v3086 = vld [vmem:[#allocation2 + $0xf0] sm:$0xff]
      %v3087 = vld [vmem:[#allocation2 + $0xf8] sm:$0xff]
      %v3088 = vld [vmem:[#allocation2 + $0x100] sm:$0xff]
      %v3089 = vld [vmem:[#allocation2 + $0x108] sm:$0xff]
      %v3090 = vld [vmem:[#allocation2 + $0x110] sm:$0xff]
      %v3091 = vld [vmem:[#allocation2 + $0x118] sm:$0xff]
      %v3092 = vld [vmem:[#allocation2 + $0x120] sm:$0xff]
      %v3093 = vld [vmem:[#allocation2 + $0x128] sm:$0xff]
      %v3094 = vld [vmem:[#allocation2 + $0x130] sm:$0xff]
      %v3095 = vld [vmem:[#allocation2 + $0x138] sm:$0xff]
      %v3096 = vld [vmem:[#allocation2 + $0x140] sm:$0xff]
      %v3097 = vld [vmem:[#allocation2 + $0x148] sm:$0xff]
      %v3098 = vld [vmem:[#allocation2 + $0x150] sm:$0xff]
      %v3099 = vld [vmem:[#allocation2 + $0x158] sm:$0xff]
      %v3100 = vld [vmem:[#allocation2 + $0x160] sm:$0xff]
      %v3101 = vld [vmem:[#allocation2 + $0x168] sm:$0xff]
      %v3102 = vld [vmem:[#allocation2 + $0x170] sm:$0xff]
      %v3103 = vld [vmem:[#allocation2 + $0x178] sm:$0xff]
      %v3104 = vld [vmem:[#allocation2 + $0x180] sm:$0xff]
      %v3105 = vld [vmem:[#allocation2 + $0x188] sm:$0xff]
      %v3106 = vld [vmem:[#allocation2 + $0x190] sm:$0xff]
      %v3107 = vld [vmem:[#allocation2 + $0x198] sm:$0xff]
      %v3108 = vld [vmem:[#allocation2 + $0x1a0] sm:$0xff]
      %v3109 = vld [vmem:[#allocation2 + $0x1a8] sm:$0xff]
      %v3110 = vld [vmem:[#allocation2 + $0x1b0] sm:$0xff]
      %v3111 = vld [vmem:[#allocation2 + $0x1b8] sm:$0xff]
      %v3112 = vld [vmem:[#allocation2 + $0x1c0] sm:$0xff]
      %v3113 = vld [vmem:[#allocation2 + $0x1c8] sm:$0xff]
      %v3114 = vld [vmem:[#allocation2 + $0x1d0] sm:$0xff]
      %v3115 = vld [vmem:[#allocation2 + $0x1d8] sm:$0xff]
      %v3116 = vld [vmem:[#allocation2 + $0x1e0] sm:$0xff]
      %v3117 = vld [vmem:[#allocation2 + $0x1e8] sm:$0xff]
      %v3118 = vld [vmem:[#allocation2 + $0x1f0] sm:$0xff]
      %v3119 = vld [vmem:[#allocation2 + $0x1f8] sm:$0xff]
      %v3120 = vld [vmem:[#allocation2 + $0x200] sm:$0xff]
      %v3121 = vld [vmem:[#allocation2 + $0x208] sm:$0xff]
      %v3122 = vld [vmem:[#allocation2 + $0x210] sm:$0xff]
      %v3123 = vld [vmem:[#allocation2 + $0x218] sm:$0xff]
      %v3124 = vld [vmem:[#allocation2 + $0x220] sm:$0xff]
      %v3125 = vld [vmem:[#allocation2 + $0x228] sm:$0xff]
      %v3126 = vld [vmem:[#allocation2 + $0x230] sm:$0xff]
      %v3127 = vld [vmem:[#allocation2 + $0x238] sm:$0xff]
      %v3128 = vld [vmem:[#allocation2 + $0x240] sm:$0xff]
      %v3129 = vld [vmem:[#allocation2 + $0x248] sm:$0xff]
      %v3130 = vld [vmem:[#allocation2 + $0x250] sm:$0xff]
      %v3131 = vld [vmem:[#allocation2 + $0x258] sm:$0xff]
      %v3132 = vld [vmem:[#allocation2 + $0x260] sm:$0xff]
      %v3133 = vld [vmem:[#allocation2 + $0x268] sm:$0xff]
      %v3134 = vld [vmem:[#allocation2 + $0x270] sm:$0xff]
      %v3135 = vld [vmem:[#allocation2 + $0x278] sm:$0xff]
      %v3136 = vld [vmem:[#allocation2 + $0x280] sm:$0xff]
      %v3137 = vld [vmem:[#allocation2 + $0x288] sm:$0xff]
      %v3138 = vld [vmem:[#allocation2 + $0x290] sm:$0xff]
      %v3139 = vld [vmem:[#allocation2 + $0x298] sm:$0xff]
      %v3140 = vld [vmem:[#allocation2 + $0x2a0] sm:$0xff]
      %v3141 = vld [vmem:[#allocation2 + $0x2a8] sm:$0xff]
      %v3142 = vld [vmem:[#allocation2 + $0x2b0] sm:$0xff]
      %v3143 = vld [vmem:[#allocation2 + $0x2b8] sm:$0xff]
      %v3144 = vld [vmem:[#allocation2 + $0x2c0] sm:$0xff]
      %v3145 = vld [vmem:[#allocation2 + $0x2c8] sm:$0xff]
      %v3146 = vld [vmem:[#allocation2 + $0x2d0] sm:$0xff]
      %v3147 = vld [vmem:[#allocation2 + $0x2d8] sm:$0xff]
      %v3148 = vld [vmem:[#allocation2 + $0x2e0] sm:$0xff]
      %v3149 = vld [vmem:[#allocation2 + $0x2e8] sm:$0xff]
      %v3150 = vld [vmem:[#allocation2 + $0x2f0] sm:$0xff]
      %v3151 = vld [vmem:[#allocation2 + $0x2f8] sm:$0xff]
      %v3152 = vld [vmem:[#allocation2 + $0x300] sm:$0xff]
      %v3153 = vld [vmem:[#allocation2 + $0x308] sm:$0xff]
      %v3154 = vld [vmem:[#allocation2 + $0x310] sm:$0xff]
      %v3155 = vld [vmem:[#allocation2 + $0x318] sm:$0xff]
      %v3156 = vld [vmem:[#allocation2 + $0x320] sm:$0xff]
      %v3157 = vld [vmem:[#allocation2 + $0x328] sm:$0xff]
      %v3158 = vld [vmem:[#allocation2 + $0x330] sm:$0xff]
      %v3159 = vld [vmem:[#allocation2 + $0x338] sm:$0xff]
      %v3160 = vld [vmem:[#allocation2 + $0x340] sm:$0xff]
      %v3161 = vld [vmem:[#allocation2 + $0x348] sm:$0xff]
      %v3162 = vld [vmem:[#allocation2 + $0x350] sm:$0xff]
      %v3163 = vld [vmem:[#allocation2 + $0x358] sm:$0xff]
      %v3164 = vld [vmem:[#allocation2 + $0x360] sm:$0xff]
      %v3165 = vld [vmem:[#allocation2 + $0x368] sm:$0xff]
      %v3166 = vld [vmem:[#allocation2 + $0x370] sm:$0xff]
      %v3167 = vld [vmem:[#allocation2 + $0x378] sm:$0xff]
      %v3168 = vld [vmem:[#allocation2 + $0x380] sm:$0xff]
      %v3169 = vld [vmem:[#allocation2 + $0x388] sm:$0xff]
      %v3170 = vld [vmem:[#allocation2 + $0x390] sm:$0xff]
      %v3171 = vld [vmem:[#allocation2 + $0x398] sm:$0xff]
      %v3172 = vld [vmem:[#allocation2 + $0x3a0] sm:$0xff]
      %v3173 = vld [vmem:[#allocation2 + $0x3a8] sm:$0xff]
      %v3174 = vld [vmem:[#allocation2 + $0x3b0] sm:$0xff]
      %v3175 = vld [vmem:[#allocation2 + $0x3b8] sm:$0xff]
      %v3176 = vld [vmem:[#allocation2 + $0x3c0] sm:$0xff]
      %v3177 = vld [vmem:[#allocation2 + $0x3c8] sm:$0xff]
      %v3178 = vld [vmem:[#allocation2 + $0x3d0] sm:$0xff]
      %v3179 = vld [vmem:[#allocation2 + $0x3d8] sm:$0xff]
      %v3180 = vld [vmem:[#allocation2 + $0x3e0] sm:$0xff]
      %v3181 = vld [vmem:[#allocation2 + $0x3e8] sm:$0xff]
      %v3182 = vld [vmem:[#allocation2 + $0x3f0] sm:$0xff]
      %v3183 = vld [vmem:[#allocation2 + $0x3f8] sm:$0xff]
      %v3184 = vld [vmem:[#allocation2 + $0x400] sm:$0xff]
      %v3185 = vld [vmem:[#allocation2 + $0x408] sm:$0xff]
      %v3186 = vld [vmem:[#allocation2 + $0x410] sm:$0xff]
      %v3187 = vld [vmem:[#allocation2 + $0x418] sm:$0xff]
      %v3188 = vld [vmem:[#allocation2 + $0x420] sm:$0xff]
      %v3189 = vld [vmem:[#allocation2 + $0x428] sm:$0xff]
      %v3190 = vld [vmem:[#allocation2 + $0x430] sm:$0xff]
      %v3191 = vld [vmem:[#allocation2 + $0x438] sm:$0xff]
      %v3192 = vld [vmem:[#allocation2 + $0x440] sm:$0xff]
      %v3193 = vld [vmem:[#allocation2 + $0x448] sm:$0xff]
      %v3194 = vld [vmem:[#allocation2 + $0x450] sm:$0xff]
      %v3195 = vld [vmem:[#allocation2 + $0x458] sm:$0xff]
      %v3196 = vld [vmem:[#allocation2 + $0x460] sm:$0xff]
      %v3197 = vld [vmem:[#allocation2 + $0x468] sm:$0xff]
      %v3198 = vld [vmem:[#allocation2 + $0x470] sm:$0xff]
      %v3199 = vld [vmem:[#allocation2 + $0x478] sm:$0xff]
      %v3200 = vld [vmem:[%s1] sm:$0xf]
      %v3201 = vld [vmem:[%s1 + $0x4] sm:$0xf]
      %v3202 = vld [vmem:[%s1 + $0x8] sm:$0xf]
      %v3203 = vld [vmem:[%s1 + $0xc] sm:$0xf]
      %v3204 = vld [vmem:[%s1 + $0x10] sm:$0xf]
      %v3205 = vld [vmem:[%s1 + $0x14] sm:$0xf]
      %v3206 = vld [vmem:[%s1 + $0x18] sm:$0xf]
      %v3207 = vld [vmem:[%s1 + $0x1c] sm:$0xf]
      %v3208 = vld [vmem:[%s1 + $0x20] sm:$0xf]
      %v3209 = vld [vmem:[%s1 + $0x24] sm:$0xf]
      %v3210 = vld [vmem:[%s1 + $0x28] sm:$0xf]
      %v3211 = vld [vmem:[%s1 + $0x2c] sm:$0xf]
      %v3212 = vld [vmem:[%s1 + $0x30] sm:$0xf]
      %v3213 = vld [vmem:[%s1 + $0x34] sm:$0xf]
      %v3214 = vld [vmem:[%s1 + $0x38] sm:$0xf]
      %v3215 = vld [vmem:[%s1 + $0x3c] sm:$0xf]
      %v3216 = vld [vmem:[%s1 + $0x40] sm:$0xf]
      %v3217 = vld [vmem:[%s1 + $0x44] sm:$0xf]
      %v3218 = vld [vmem:[%s1 + $0x48] sm:$0xf]
      %v3219 = vld [vmem:[%s1 + $0x4c] sm:$0xf]
      %v3220 = vld [vmem:[%s1 + $0x50] sm:$0xf]
      %v3221 = vld [vmem:[%s1 + $0x54] sm:$0xf]
      %v3222 = vld [vmem:[%s1 + $0x58] sm:$0xf]
      %v3223 = vld [vmem:[%s1 + $0x5c] sm:$0xf]
      %v3224 = vld [vmem:[%s1 + $0x60] sm:$0xf]
      %v3225 = vld [vmem:[%s1 + $0x64] sm:$0xf]
      %v3226 = vld [vmem:[%s1 + $0x68] sm:$0xf]
      %v3227 = vld [vmem:[%s1 + $0x6c] sm:$0xf]
      %v3228 = vld [vmem:[%s1 + $0x70] sm:$0xf]
      %v3229 = vld [vmem:[%s1 + $0x74] sm:$0xf]
      %v3230 = vld [vmem:[%s1 + $0x78] sm:$0xf]
      %v3231 = vld [vmem:[%s1 + $0x7c] sm:$0xf]
      %v3232 = vld [vmem:[%s1 + $0x80] sm:$0xf]
      %v3233 = vld [vmem:[%s1 + $0x84] sm:$0xf]
      %v3234 = vld [vmem:[%s1 + $0x88] sm:$0xf]
      %v3235 = vld [vmem:[%s1 + $0x8c] sm:$0xf]
      %v3236 = vld [vmem:[%s1 + $0x90] sm:$0xf]
      %v3237 = vld [vmem:[%s1 + $0x94] sm:$0xf]
      %v3238 = vld [vmem:[%s1 + $0x98] sm:$0xf]
      %v3239 = vld [vmem:[%s1 + $0x9c] sm:$0xf]
      %v3240 = vld [vmem:[%s1 + $0xa0] sm:$0xf]
      %v3241 = vld [vmem:[%s1 + $0xa4] sm:$0xf]
      %v3242 = vld [vmem:[%s1 + $0xa8] sm:$0xf]
      %v3243 = vld [vmem:[%s1 + $0xac] sm:$0xf]
      %v3244 = vld [vmem:[%s1 + $0xb0] sm:$0xf]
      %v3245 = vld [vmem:[%s1 + $0xb4] sm:$0xf]
      %v3246 = vld [vmem:[%s1 + $0xb8] sm:$0xf]
      %v3247 = vld [vmem:[%s1 + $0xbc] sm:$0xf]
      %v3248 = vld [vmem:[%s1 + $0xc0] sm:$0xf]
      %v3249 = vld [vmem:[%s1 + $0xc4] sm:$0xf]
      %v3250 = vld [vmem:[%s1 + $0xc8] sm:$0xf]
      %v3251 = vld [vmem:[%s1 + $0xcc] sm:$0xf]
      %v3252 = vld [vmem:[%s1 + $0xd0] sm:$0xf]
      %v3253 = vld [vmem:[%s1 + $0xd4] sm:$0xf]
      %v3254 = vld [vmem:[%s1 + $0xd8] sm:$0xf]
      %v3255 = vld [vmem:[%s1 + $0xdc] sm:$0xf]
      %v3256 = vld [vmem:[%s1 + $0xe0] sm:$0xf]
      %v3257 = vld [vmem:[%s1 + $0xe4] sm:$0xf]
      %v3258 = vld [vmem:[%s1 + $0xe8] sm:$0xf]
      %v3259 = vld [vmem:[%s1 + $0xec] sm:$0xf]
      %v3260 = vld [vmem:[%s1 + $0xf0] sm:$0xf]
      %v3261 = vld [vmem:[%s1 + $0xf4] sm:$0xf]
      %v3262 = vld [vmem:[%s1 + $0xf8] sm:$0xf]
      %v3263 = vld [vmem:[%s1 + $0xfc] sm:$0xf]
      %v3264 = vld [vmem:[%s1 + $0x100] sm:$0xf]
      %v3265 = vld [vmem:[%s1 + $0x104] sm:$0xf]
      %v3266 = vld [vmem:[%s1 + $0x108] sm:$0xf]
      %v3267 = vld [vmem:[%s1 + $0x10c] sm:$0xf]
      %v3268 = vld [vmem:[%s1 + $0x110] sm:$0xf]
      %v3269 = vld [vmem:[%s1 + $0x114] sm:$0xf]
      %v3270 = vld [vmem:[%s1 + $0x118] sm:$0xf]
      %v3271 = vld [vmem:[%s1 + $0x11c] sm:$0xf]
      %v3272 = vld [vmem:[%s1 + $0x120] sm:$0xf]
      %v3273 = vld [vmem:[%s1 + $0x124] sm:$0xf]
      %v3274 = vld [vmem:[%s1 + $0x128] sm:$0xf]
      %v3275 = vld [vmem:[%s1 + $0x12c] sm:$0xf]
      %v3276 = vld [vmem:[%s1 + $0x130] sm:$0xf]
      %v3277 = vld [vmem:[%s1 + $0x134] sm:$0xf]
      %v3278 = vld [vmem:[%s1 + $0x138] sm:$0xf]
      %v3279 = vld [vmem:[%s1 + $0x13c] sm:$0xf]
      %v3280 = vld [vmem:[%s1 + $0x140] sm:$0xf]
      %v3281 = vld [vmem:[%s1 + $0x144] sm:$0xf]
      %v3282 = vld [vmem:[%s1 + $0x148] sm:$0xf]
      %v3283 = vld [vmem:[%s1 + $0x14c] sm:$0xf]
      %v3284 = vld [vmem:[%s1 + $0x150] sm:$0xf]
      %v3285 = vld [vmem:[%s1 + $0x154] sm:$0xf]
      %v3286 = vld [vmem:[%s1 + $0x158] sm:$0xf]
      %v3287 = vld [vmem:[%s1 + $0x15c] sm:$0xf]
      %v3288 = vld [vmem:[%s1 + $0x160] sm:$0xf]
      %v3289 = vld [vmem:[%s1 + $0x164] sm:$0xf]
      %v3290 = vld [vmem:[%s1 + $0x168] sm:$0xf]
      %v3291 = vld [vmem:[%s1 + $0x16c] sm:$0xf]
      %v3292 = vld [vmem:[%s1 + $0x170] sm:$0xf]
      %v3293 = vld [vmem:[%s1 + $0x174] sm:$0xf]
      %v3294 = vld [vmem:[%s1 + $0x178] sm:$0xf]
      %v3295 = vld [vmem:[%s1 + $0x17c] sm:$0xf]
      %v3296 = vld [vmem:[%s1 + $0x180] sm:$0xf]
      %v3297 = vld [vmem:[%s1 + $0x184] sm:$0xf]
      %v3298 = vld [vmem:[%s1 + $0x188] sm:$0xf]
      %v3299 = vld [vmem:[%s1 + $0x18c] sm:$0xf]
      %v3300 = vld [vmem:[%s1 + $0x190] sm:$0xf]
      %v3301 = vld [vmem:[%s1 + $0x194] sm:$0xf]
      %v3302 = vld [vmem:[%s1 + $0x198] sm:$0xf]
      %v3303 = vld [vmem:[%s1 + $0x19c] sm:$0xf]
      %v3304 = vld [vmem:[%s1 + $0x1a0] sm:$0xf]
      %v3305 = vld [vmem:[%s1 + $0x1a4] sm:$0xf]
      %v3306 = vld [vmem:[%s1 + $0x1a8] sm:$0xf]
      %v3307 = vld [vmem:[%s1 + $0x1ac] sm:$0xf]
      %v3308 = vld [vmem:[%s1 + $0x1b0] sm:$0xf]
      %v3309 = vld [vmem:[%s1 + $0x1b4] sm:$0xf]
      %v3310 = vld [vmem:[%s1 + $0x1b8] sm:$0xf]
      %v3311 = vld [vmem:[%s1 + $0x1bc] sm:$0xf]
      %v3312 = vld [vmem:[%s1 + $0x1c0] sm:$0xf]
      %v3313 = vld [vmem:[%s1 + $0x1c4] sm:$0xf]
      %v3314 = vld [vmem:[%s1 + $0x1c8] sm:$0xf]
      %v3315 = vld [vmem:[%s1 + $0x1cc] sm:$0xf]
      %v3316 = vld [vmem:[%s1 + $0x1d0] sm:$0xf]
      %v3317 = vld [vmem:[%s1 + $0x1d4] sm:$0xf]
      %v3318 = vld [vmem:[%s1 + $0x1d8] sm:$0xf]
      %v3319 = vld [vmem:[%s1 + $0x1dc] sm:$0xf]
      %v3320 = vld [vmem:[%s1 + $0x1e0] sm:$0xf]
      %v3321 = vld [vmem:[%s1 + $0x1e4] sm:$0xf]
      %v3322 = vld [vmem:[%s1 + $0x1e8] sm:$0xf]
      %v3323 = vld [vmem:[%s1 + $0x1ec] sm:$0xf]
      %v3324 = vld [vmem:[%s1 + $0x1f0] sm:$0xf]
      %v3325 = vld [vmem:[%s1 + $0x1f4] sm:$0xf]
      %v3326 = vld [vmem:[%s1 + $0x1f8] sm:$0xf]
      %v3327 = vld [vmem:[%s1 + $0x1fc] sm:$0xf]
      %v3328 = vld [vmem:[%s1 + $0x200] sm:$0xf]
      %v3329 = vld [vmem:[%s1 + $0x204] sm:$0xf]
      %v3330 = vld [vmem:[%s1 + $0x208] sm:$0xf]
      %v3331 = vld [vmem:[%s1 + $0x20c] sm:$0xf]
      %v3332 = vld [vmem:[%s1 + $0x210] sm:$0xf]
      %v3333 = vld [vmem:[%s1 + $0x214] sm:$0xf]
      %v3334 = vld [vmem:[%s1 + $0x218] sm:$0xf]
      %v3335 = vld [vmem:[%s1 + $0x21c] sm:$0xf]
      %v3336 = vld [vmem:[%s1 + $0x220] sm:$0xf]
      %v3337 = vld [vmem:[%s1 + $0x224] sm:$0xf]
      %v3338 = vld [vmem:[%s1 + $0x228] sm:$0xf]
      %v3339 = vld [vmem:[%s1 + $0x22c] sm:$0xf]
      %v3340 = vld [vmem:[%s1 + $0x230] sm:$0xf]
      %v3341 = vld [vmem:[%s1 + $0x234] sm:$0xf]
      %v3342 = vld [vmem:[%s1 + $0x238] sm:$0xf]
      %v3343 = vld [vmem:[%s1 + $0x23c] sm:$0xf]
      %v3488 = vunpack.c.l.b16 %v3200
      %v3489 = vunpack.c.l.b16 %v3201
      %v3490 = vunpack.c.l.b16 %v3202
      %v3491 = vunpack.c.l.b16 %v3203
      %v3492 = vunpack.c.l.b16 %v3204
      %v3493 = vunpack.c.l.b16 %v3205
      %v3494 = vunpack.c.l.b16 %v3206
      %v3495 = vunpack.c.l.b16 %v3207
      %v3496 = vunpack.c.l.b16 %v3208
      %v3497 = vunpack.c.l.b16 %v3209
      %v3498 = vunpack.c.l.b16 %v3210
      %v3499 = vunpack.c.l.b16 %v3211
      %v3500 = vunpack.c.l.b16 %v3212
      %v3501 = vunpack.c.l.b16 %v3213
      %v3502 = vunpack.c.l.b16 %v3214
      %v3503 = vunpack.c.l.b16 %v3215
      %v3504 = vunpack.c.l.b16 %v3216
      %v3505 = vunpack.c.l.b16 %v3217
      %v3506 = vunpack.c.l.b16 %v3218
      %v3507 = vunpack.c.l.b16 %v3219
      %v3508 = vunpack.c.l.b16 %v3220
      %v3509 = vunpack.c.l.b16 %v3221
      %v3510 = vunpack.c.l.b16 %v3222
      %v3511 = vunpack.c.l.b16 %v3223
      %v3512 = vunpack.c.l.b16 %v3224
      %v3513 = vunpack.c.l.b16 %v3225
      %v3514 = vunpack.c.l.b16 %v3226
      %v3515 = vunpack.c.l.b16 %v3227
      %v3516 = vunpack.c.l.b16 %v3228
      %v3517 = vunpack.c.l.b16 %v3229
      %v3518 = vunpack.c.l.b16 %v3230
      %v3519 = vunpack.c.l.b16 %v3231
      %v3520 = vunpack.c.l.b16 %v3232
      %v3521 = vunpack.c.l.b16 %v3233
      %v3522 = vunpack.c.l.b16 %v3234
      %v3523 = vunpack.c.l.b16 %v3235
      %v3524 = vunpack.c.l.b16 %v3236
      %v3525 = vunpack.c.l.b16 %v3237
      %v3526 = vunpack.c.l.b16 %v3238
      %v3527 = vunpack.c.l.b16 %v3239
      %v3528 = vunpack.c.l.b16 %v3240
      %v3529 = vunpack.c.l.b16 %v3241
      %v3530 = vunpack.c.l.b16 %v3242
      %v3531 = vunpack.c.l.b16 %v3243
      %v3532 = vunpack.c.l.b16 %v3244
      %v3533 = vunpack.c.l.b16 %v3245
      %v3534 = vunpack.c.l.b16 %v3246
      %v3535 = vunpack.c.l.b16 %v3247
      %v3536 = vunpack.c.l.b16 %v3248
      %v3537 = vunpack.c.l.b16 %v3249
      %v3538 = vunpack.c.l.b16 %v3250
      %v3539 = vunpack.c.l.b16 %v3251
      %v3540 = vunpack.c.l.b16 %v3252
      %v3541 = vunpack.c.l.b16 %v3253
      %v3542 = vunpack.c.l.b16 %v3254
      %v3543 = vunpack.c.l.b16 %v3255
      %v3544 = vunpack.c.l.b16 %v3256
      %v3545 = vunpack.c.l.b16 %v3257
      %v3546 = vunpack.c.l.b16 %v3258
      %v3547 = vunpack.c.l.b16 %v3259
      %v3548 = vunpack.c.l.b16 %v3260
      %v3549 = vunpack.c.l.b16 %v3261
      %v3550 = vunpack.c.l.b16 %v3262
      %v3551 = vunpack.c.l.b16 %v3263
      %v3552 = vunpack.c.l.b16 %v3264
      %v3553 = vunpack.c.l.b16 %v3265
      %v3554 = vunpack.c.l.b16 %v3266
      %v3555 = vunpack.c.l.b16 %v3267
      %v3556 = vunpack.c.l.b16 %v3268
      %v3557 = vunpack.c.l.b16 %v3269
      %v3558 = vunpack.c.l.b16 %v3270
      %v3559 = vunpack.c.l.b16 %v3271
      %v3560 = vunpack.c.l.b16 %v3272
      %v3561 = vunpack.c.l.b16 %v3273
      %v3562 = vunpack.c.l.b16 %v3274
      %v3563 = vunpack.c.l.b16 %v3275
      %v3564 = vunpack.c.l.b16 %v3276
      %v3565 = vunpack.c.l.b16 %v3277
      %v3566 = vunpack.c.l.b16 %v3278
      %v3567 = vunpack.c.l.b16 %v3279
      %v3568 = vunpack.c.l.b16 %v3280
      %v3569 = vunpack.c.l.b16 %v3281
      %v3570 = vunpack.c.l.b16 %v3282
      %v3571 = vunpack.c.l.b16 %v3283
      %v3572 = vunpack.c.l.b16 %v3284
      %v3573 = vunpack.c.l.b16 %v3285
      %v3574 = vunpack.c.l.b16 %v3286
      %v3575 = vunpack.c.l.b16 %v3287
      %v3576 = vunpack.c.l.b16 %v3288
      %v3577 = vunpack.c.l.b16 %v3289
      %v3578 = vunpack.c.l.b16 %v3290
      %v3579 = vunpack.c.l.b16 %v3291
      %v3580 = vunpack.c.l.b16 %v3292
      %v3581 = vunpack.c.l.b16 %v3293
      %v3582 = vunpack.c.l.b16 %v3294
      %v3583 = vunpack.c.l.b16 %v3295
      %v3584 = vunpack.c.l.b16 %v3296
      %v3585 = vunpack.c.l.b16 %v3297
      %v3586 = vunpack.c.l.b16 %v3298
      %v3587 = vunpack.c.l.b16 %v3299
      %v3588 = vunpack.c.l.b16 %v3300
      %v3589 = vunpack.c.l.b16 %v3301
      %v3590 = vunpack.c.l.b16 %v3302
      %v3591 = vunpack.c.l.b16 %v3303
      %v3592 = vunpack.c.l.b16 %v3304
      %v3593 = vunpack.c.l.b16 %v3305
      %v3594 = vunpack.c.l.b16 %v3306
      %v3595 = vunpack.c.l.b16 %v3307
      %v3596 = vunpack.c.l.b16 %v3308
      %v3597 = vunpack.c.l.b16 %v3309
      %v3598 = vunpack.c.l.b16 %v3310
      %v3599 = vunpack.c.l.b16 %v3311
      %v3600 = vunpack.c.l.b16 %v3312
      %v3601 = vunpack.c.l.b16 %v3313
      %v3602 = vunpack.c.l.b16 %v3314
      %v3603 = vunpack.c.l.b16 %v3315
      %v3604 = vunpack.c.l.b16 %v3316
      %v3605 = vunpack.c.l.b16 %v3317
      %v3606 = vunpack.c.l.b16 %v3318
      %v3607 = vunpack.c.l.b16 %v3319
      %v3608 = vunpack.c.l.b16 %v3320
      %v3609 = vunpack.c.l.b16 %v3321
      %v3610 = vunpack.c.l.b16 %v3322
      %v3611 = vunpack.c.l.b16 %v3323
      %v3612 = vunpack.c.l.b16 %v3324
      %v3613 = vunpack.c.l.b16 %v3325
      %v3614 = vunpack.c.l.b16 %v3326
      %v3615 = vunpack.c.l.b16 %v3327
      %v3616 = vunpack.c.l.b16 %v3328
      %v3617 = vunpack.c.l.b16 %v3329
      %v3618 = vunpack.c.l.b16 %v3330
      %v3619 = vunpack.c.l.b16 %v3331
      %v3620 = vunpack.c.l.b16 %v3332
      %v3621 = vunpack.c.l.b16 %v3333
      %v3622 = vunpack.c.l.b16 %v3334
      %v3623 = vunpack.c.l.b16 %v3335
      %v3624 = vunpack.c.l.b16 %v3336
      %v3625 = vunpack.c.l.b16 %v3337
      %v3626 = vunpack.c.l.b16 %v3338
      %v3627 = vunpack.c.l.b16 %v3339
      %v3628 = vunpack.c.l.b16 %v3340
      %v3629 = vunpack.c.l.b16 %v3341
      %v3630 = vunpack.c.l.b16 %v3342
      %v3631 = vunpack.c.l.b16 %v3343
      %v3632 = vpack.c.b16 %v3489, %v3488
      %v3633 = vpack.c.b16 %v3491, %v3490
      %v3634 = vpack.c.b16 %v3493, %v3492
      %v3635 = vpack.c.b16 %v3495, %v3494
      %v3636 = vpack.c.b16 %v3497, %v3496
      %v3637 = vpack.c.b16 %v3499, %v3498
      %v3638 = vpack.c.b16 %v3501, %v3500
      %v3639 = vpack.c.b16 %v3503, %v3502
      %v3640 = vpack.c.b16 %v3505, %v3504
      %v3641 = vpack.c.b16 %v3507, %v3506
      %v3642 = vpack.c.b16 %v3509, %v3508
      %v3643 = vpack.c.b16 %v3511, %v3510
      %v3644 = vpack.c.b16 %v3513, %v3512
      %v3645 = vpack.c.b16 %v3515, %v3514
      %v3646 = vpack.c.b16 %v3517, %v3516
      %v3647 = vpack.c.b16 %v3519, %v3518
      %v3648 = vpack.c.b16 %v3521, %v3520
      %v3649 = vpack.c.b16 %v3523, %v3522
      %v3650 = vpack.c.b16 %v3525, %v3524
      %v3651 = vpack.c.b16 %v3527, %v3526
      %v3652 = vpack.c.b16 %v3529, %v3528
      %v3653 = vpack.c.b16 %v3531, %v3530
      %v3654 = vpack.c.b16 %v3533, %v3532
      %v3655 = vpack.c.b16 %v3535, %v3534
      %v3656 = vpack.c.b16 %v3537, %v3536
      %v3657 = vpack.c.b16 %v3539, %v3538
      %v3658 = vpack.c.b16 %v3541, %v3540
      %v3659 = vpack.c.b16 %v3543, %v3542
      %v3660 = vpack.c.b16 %v3545, %v3544
      %v3661 = vpack.c.b16 %v3547, %v3546
      %v3662 = vpack.c.b16 %v3549, %v3548
      %v3663 = vpack.c.b16 %v3551, %v3550
      %v3664 = vpack.c.b16 %v3553, %v3552
      %v3665 = vpack.c.b16 %v3555, %v3554
      %v3666 = vpack.c.b16 %v3557, %v3556
      %v3667 = vpack.c.b16 %v3559, %v3558
      %v3668 = vpack.c.b16 %v3561, %v3560
      %v3669 = vpack.c.b16 %v3563, %v3562
      %v3670 = vpack.c.b16 %v3565, %v3564
      %v3671 = vpack.c.b16 %v3567, %v3566
      %v3672 = vpack.c.b16 %v3569, %v3568
      %v3673 = vpack.c.b16 %v3571, %v3570
      %v3674 = vpack.c.b16 %v3573, %v3572
      %v3675 = vpack.c.b16 %v3575, %v3574
      %v3676 = vpack.c.b16 %v3577, %v3576
      %v3677 = vpack.c.b16 %v3579, %v3578
      %v3678 = vpack.c.b16 %v3581, %v3580
      %v3679 = vpack.c.b16 %v3583, %v3582
      %v3680 = vpack.c.b16 %v3585, %v3584
      %v3681 = vpack.c.b16 %v3587, %v3586
      %v3682 = vpack.c.b16 %v3589, %v3588
      %v3683 = vpack.c.b16 %v3591, %v3590
      %v3684 = vpack.c.b16 %v3593, %v3592
      %v3685 = vpack.c.b16 %v3595, %v3594
      %v3686 = vpack.c.b16 %v3597, %v3596
      %v3687 = vpack.c.b16 %v3599, %v3598
      %v3688 = vpack.c.b16 %v3601, %v3600
      %v3689 = vpack.c.b16 %v3603, %v3602
      %v3690 = vpack.c.b16 %v3605, %v3604
      %v3691 = vpack.c.b16 %v3607, %v3606
      %v3692 = vpack.c.b16 %v3609, %v3608
      %v3693 = vpack.c.b16 %v3611, %v3610
      %v3694 = vpack.c.b16 %v3613, %v3612
      %v3695 = vpack.c.b16 %v3615, %v3614
      %v3696 = vpack.c.b16 %v3617, %v3616
      %v3697 = vpack.c.b16 %v3619, %v3618
      %v3698 = vpack.c.b16 %v3621, %v3620
      %v3699 = vpack.c.b16 %v3623, %v3622
      %v3700 = vpack.c.b16 %v3625, %v3624
      %v3701 = vpack.c.b16 %v3627, %v3626
      %v3702 = vpack.c.b16 %v3629, %v3628
      %v3703 = vpack.c.b16 %v3631, %v3630
      %3776 = vmatprep.subr.bf16.mxu0 0
      %3777 = vmatpush1.bf16.msra.mxu0 %v3632
      %3778 = vmatprep.subr.bf16.mxu0 0
      %3779 = vmatpush1.bf16.msra.mxu0 %v3633
      %3780 = vmatprep.subr.bf16.mxu0 0
      %3781 = vmatpush1.bf16.msra.mxu0 %v3634
      %3782 = vmatprep.subr.bf16.mxu0 0
      %3783 = vmatpush1.bf16.msra.mxu0 %v3635
      %3784 = vmatprep.subr.bf16.mxu0 0
      %3785 = vmatpush1.bf16.msra.mxu0 %v3636
      %3786 = vmatprep.subr.bf16.mxu0 0
      %3787 = vmatpush1.bf16.msra.mxu0 %v3637
      %3788 = vmatprep.subr.bf16.mxu0 0
      %3789 = vmatpush1.bf16.msra.mxu0 %v3638
      %3790 = vmatprep.subr.bf16.mxu0 0
      %3791 = vmatpush1.bf16.msra.mxu0 %v3639
      %3792 = vmatprep.subr.bf16.mxu0 0
      %3793 = vmatpush1.bf16.msra.mxu0 %v3640
      %3794 = vmatprep.subr.bf16.mxu0 0
      %3795 = vmatpush1.bf16.msra.mxu0 %v3641
      %3796 = vmatprep.subr.bf16.mxu0 0
      %3797 = vmatpush1.bf16.msra.mxu0 %v3642
      %3798 = vmatprep.subr.bf16.mxu0 0
      %3799 = vmatpush1.bf16.msra.mxu0 %v3643
      %3800 = vmatprep.subr.bf16.mxu0 0
      %3801 = vmatpush1.bf16.msra.mxu0 %v3644
      %3802 = vmatprep.subr.bf16.mxu0 0
      %3803 = vmatpush1.bf16.msra.mxu0 %v3645
      %3804 = vmatprep.subr.bf16.mxu0 0
      %3805 = vmatpush1.bf16.msra.mxu0 %v3646
      %3806 = vmatprep.subr.bf16.mxu0 0
      %3807 = vmatpush1.bf16.msra.mxu0 %v3647
      %3808 = vmatprep.mubr.bf16.mxu0 %v3057
      %3809 = vmatmul.mubr.bf16.gmra.mrb[0].mxu0 %v3056
      %v3810 = vpop.f32.mrb[0].mxu0
      %v3811 = vadd.f32 0.0, %v3810
      %v3812 = vpop.f32.mrb[0].mxu0
      %v3813 = vpop.f32.mrb[0].mxu0
      %v3814 = vadd.f32 0.0, %v3813
      %v3815 = vpop.f32.mrb[0].mxu0
      %3816 = vmatprep.mubr.bf16.mxu0 %v3066
      %3817 = vmatmul.mubr.bf16.gmra.mrb[0].mxu0 %v3065
      %v3818 = vpop.f32.mrb[0].mxu0
      %v3819 = vadd.f32 0.0, %v3818
      %v3820 = vpop.f32.mrb[0].mxu0
      %v3821 = vpop.f32.mrb[0].mxu0
      %v3822 = vadd.f32 0.0, %v3821
      %v3823 = vpop.f32.mrb[0].mxu0
      %3824 = vmatprep.mubr.bf16.mxu0 %v3075
      %3825 = vmatmul.mubr.bf16.gmra.mrb[0].mxu0 %v3074
      %v3826 = vpop.f32.mrb[0].mxu0
      %v3827 = vadd.f32 0.0, %v3826
      %v3828 = vpop.f32.mrb[0].mxu0
      %v3829 = vpop.f32.mrb[0].mxu0
      %v3830 = vadd.f32 0.0, %v3829
      %v3831 = vpop.f32.mrb[0].mxu0
      %3832 = vmatprep.mubr.bf16.mxu0 %v3084
      %3833 = vmatmul.mubr.bf16.gmra.mrb[0].mxu0 %v3083
      %v3834 = vpop.f32.mrb[0].mxu0
      %v3835 = vadd.f32 0.0, %v3834
      %v3836 = vpop.f32.mrb[0].mxu0
      %v3837 = vpop.f32.mrb[0].mxu0
      %v3838 = vadd.f32 0.0, %v3837
      %v3839 = vpop.f32.mrb[0].mxu0
      %3840 = vmatprep.mubr.bf16.mxu0 %v3093
      %3841 = vmatmul.mubr.bf16.gmra.mrb[0].mxu0 %v3092
      %v3842 = vpop.f32.mrb[0].mxu0
      %v3843 = vadd.f32 0.0, %v3842
      %v3844 = vpop.f32.mrb[0].mxu0
      %v3845 = vpop.f32.mrb[0].mxu0
      %v3846 = vadd.f32 0.0, %v3845
      %v3847 = vpop.f32.mrb[0].mxu0
      %3848 = vmatprep.mubr.bf16.mxu0 %v3102
      %3849 = vmatmul.mubr.bf16.gmra.mrb[0].mxu0 %v3101
      %v3850 = vpop.f32.mrb[0].mxu0
      %v3851 = vadd.f32 0.0, %v3850
      %v3852 = vpop.f32.mrb[0].mxu0
      %v3853 = vpop.f32.mrb[0].mxu0
      %v3854 = vadd.f32 0.0, %v3853
      %v3855 = vpop.f32.mrb[0].mxu0
      %3856 = vmatprep.mubr.bf16.mxu0 %v3111
      %3857 = vmatmul.mubr.bf16.gmra.mrb[0].mxu0 %v3110
      %v3858 = vpop.f32.mrb[0].mxu0
      %v3859 = vadd.f32 0.0, %v3858
      %v3860 = vpop.f32.mrb[0].mxu0
      %v3861 = vpop.f32.mrb[0].mxu0
      %v3862 = vadd.f32 0.0, %v3861
      %v3863 = vpop.f32.mrb[0].mxu0
      %3864 = vmatprep.mubr.bf16.mxu0 %v3120
      %3865 = vmatmul.mubr.bf16.gmra.mrb[0].mxu0 %v3119
      %v3866 = vpop.f32.mrb[0].mxu0
      %v3867 = vadd.f32 0.0, %v3866
      %v3868 = vpop.f32.mrb[0].mxu0
      %v3869 = vpop.f32.mrb[0].mxu0
      %v3870 = vadd.f32 0.0, %v3869
      %v3871 = vpop.f32.mrb[0].mxu0
      %3872 = vmatprep.mubr.bf16.mxu0 %v3129
      %3873 = vmatmul.mubr.bf16.gmra.mrb[0].mxu0 %v3128
      %v3874 = vpop.f32.mrb[0].mxu0
      %v3875 = vadd.f32 0.0, %v3874
      %v3876 = vpop.f32.mrb[0].mxu0
      %v3877 = vpop.f32.mrb[0].mxu0
      %v3878 = vadd.f32 0.0, %v3877
      %v3879 = vpop.f32.mrb[0].mxu0
      %3880 = vmatprep.mubr.bf16.mxu0 %v3138
      %3881 = vmatmul.mubr.bf16.gmra.mrb[0].mxu0 %v3137
      %v3882 = vpop.f32.mrb[0].mxu0
      %v3883 = vadd.f32 0.0, %v3882
      %v3884 = vpop.f32.mrb[0].mxu0
      %v3885 = vpop.f32.mrb[0].mxu0
      %v3886 = vadd.f32 0.0, %v3885
      %v3887 = vpop.f32.mrb[0].mxu0
      %3888 = vmatprep.mubr.bf16.mxu0 %v3147
      %3889 = vmatmul.mubr.bf16.gmra.mrb[0].mxu0 %v3146
      %v3890 = vpop.f32.mrb[0].mxu0
      %v3891 = vadd.f32 0.0, %v3890
      %v3892 = vpop.f32.mrb[0].mxu0
      %v3893 = vpop.f32.mrb[0].mxu0
      %v3894 = vadd.f32 0.0, %v3893
      %v3895 = vpop.f32.mrb[0].mxu0
      %3896 = vmatprep.mubr.bf16.mxu0 %v3156
      %3897 = vmatmul.mubr.bf16.gmra.mrb[0].mxu0 %v3155
      %v3898 = vpop.f32.mrb[0].mxu0
      %v3899 = vadd.f32 0.0, %v3898
      %v3900 = vpop.f32.mrb[0].mxu0
      %v3901 = vpop.f32.mrb[0].mxu0
      %v3902 = vadd.f32 0.0, %v3901
      %v3903 = vpop.f32.mrb[0].mxu0
      %3904 = vmatprep.mubr.bf16.mxu0 %v3165
      %3905 = vmatmul.mubr.bf16.gmra.mrb[0].mxu0 %v3164
      %v3906 = vpop.f32.mrb[0].mxu0
      %v3907 = vadd.f32 0.0, %v3906
      %v3908 = vpop.f32.mrb[0].mxu0
      %v3909 = vpop.f32.mrb[0].mxu0
      %v3910 = vadd.f32 0.0, %v3909
      %v3911 = vpop.f32.mrb[0].mxu0
      %3912 = vmatprep.mubr.bf16.mxu0 %v3174
      %3913 = vmatmul.mubr.bf16.gmra.mrb[0].mxu0 %v3173
      %v3914 = vpop.f32.mrb[0].mxu0
      %v3915 = vadd.f32 0.0, %v3914
      %v3916 = vpop.f32.mrb[0].mxu0
      %v3917 = vpop.f32.mrb[0].mxu0
      %v3918 = vadd.f32 0.0, %v3917
      %v3919 = vpop.f32.mrb[0].mxu0
      %3920 = vmatprep.mubr.bf16.mxu0 %v3183
      %3921 = vmatmul.mubr.bf16.gmra.mrb[0].mxu0 %v3182
      %v3922 = vpop.f32.mrb[0].mxu0
      %v3923 = vadd.f32 0.0, %v3922
      %v3924 = vpop.f32.mrb[0].mxu0
      %v3925 = vpop.f32.mrb[0].mxu0
      %v3926 = vadd.f32 0.0, %v3925
      %v3927 = vpop.f32.mrb[0].mxu0
      %3928 = vmatprep.mubr.bf16.mxu0 %v3192
      %3929 = vmatmul.mubr.bf16.gmra.mrb[0].mxu0 %v3191
      %v3930 = vpop.f32.mrb[0].mxu0
      %v3931 = vadd.f32 0.0, %v3930
      %v3932 = vpop.f32.mrb[0].mxu0
      %v3933 = vpop.f32.mrb[0].mxu0
      %v3934 = vadd.f32 0.0, %v3933
      %v3935 = vpop.f32.mrb[0].mxu0
      %3936 = vdwg.mxu0
      %3937 = vmatprep.subr.bf16.mxu0 0
      %3938 = vmatpush1.bf16.msra.mxu0 %v3648
      %3939 = vmatprep.subr.bf16.mxu0 0
      %3940 = vmatpush1.bf16.msra.mxu0 %v3649
      %3941 = vmatprep.subr.bf16.mxu0 0
      %3942 = vmatpush1.bf16.msra.mxu0 %v3650
      %3943 = vmatprep.subr.bf16.mxu0 0
      %3944 = vmatpush1.bf16.msra.mxu0 %v3651
      %3945 = vmatprep.subr.bf16.mxu0 0
      %3946 = vmatpush1.bf16.msra.mxu0 %v3652
      %3947 = vmatprep.subr.bf16.mxu0 0
      %3948 = vmatpush1.bf16.msra.mxu0 %v3653
      %3949 = vmatprep.subr.bf16.mxu0 0
      %3950 = vmatpush1.bf16.msra.mxu0 %v3654
      %3951 = vmatprep.subr.bf16.mxu0 0
      %3952 = vmatpush1.bf16.msra.mxu0 %v3655
      %3953 = vmatprep.subr.bf16.mxu0 0
      %3954 = vmatpush1.bf16.msra.mxu0 %v3656
      %3955 = vmatprep.subr.bf16.mxu0 0
      %3956 = vmatpush1.bf16.msra.mxu0 %v3657
      %3957 = vmatprep.subr.bf16.mxu0 0
      %3958 = vmatpush1.bf16.msra.mxu0 %v3658
      %3959 = vmatprep.subr.bf16.mxu0 0
      %3960 = vmatpush1.bf16.msra.mxu0 %v3659
      %3961 = vmatprep.subr.bf16.mxu0 0
      %3962 = vmatpush1.bf16.msra.mxu0 %v3660
      %3963 = vmatprep.subr.bf16.mxu0 0
      %3964 = vmatpush1.bf16.msra.mxu0 %v3661
      %3965 = vmatprep.subr.bf16.mxu0 0
      %3966 = vmatpush1.bf16.msra.mxu0 %v3662
      %3967 = vmatprep.subr.bf16.mxu0 0
      %3968 = vmatpush1.bf16.msra.mxu0 %v3663
      %3969 = vmatprep.mubr.bf16.mxu0 %v3059
      %3970 = vmatmul.mubr.bf16.gmra.mrb[0].mxu0 %v3058
      %v3971 = vpop.f32.mrb[0].mxu0
      %v3972 = vadd.f32 %v3811, %v3971
      %v3973 = vpop.f32.mrb[0].mxu0
      %v3974 = vpop.f32.mrb[0].mxu0
      %v3975 = vadd.f32 %v3814, %v3974
      %v3976 = vpop.f32.mrb[0].mxu0
      %3977 = vmatprep.mubr.bf16.mxu0 %v3068
      %3978 = vmatmul.mubr.bf16.gmra.mrb[0].mxu0 %v3067
      %v3979 = vpop.f32.mrb[0].mxu0
      %v3980 = vadd.f32 %v3819, %v3979
      %v3981 = vpop.f32.mrb[0].mxu0
      %v3982 = vpop.f32.mrb[0].mxu0
      %v3983 = vadd.f32 %v3822, %v3982
      %v3984 = vpop.f32.mrb[0].mxu0
      %3985 = vmatprep.mubr.bf16.mxu0 %v3077
      %3986 = vmatmul.mubr.bf16.gmra.mrb[0].mxu0 %v3076
      %v3987 = vpop.f32.mrb[0].mxu0
      %v3988 = vadd.f32 %v3827, %v3987
      %v3989 = vpop.f32.mrb[0].mxu0
      %v3990 = vpop.f32.mrb[0].mxu0
      %v3991 = vadd.f32 %v3830, %v3990
      %v3992 = vpop.f32.mrb[0].mxu0
      %3993 = vmatprep.mubr.bf16.mxu0 %v3086
      %3994 = vmatmul.mubr.bf16.gmra.mrb[0].mxu0 %v3085
      %v3995 = vpop.f32.mrb[0].mxu0
      %v3996 = vadd.f32 %v3835, %v3995
      %v3997 = vpop.f32.mrb[0].mxu0
      %v3998 = vpop.f32.mrb[0].mxu0
      %v3999 = vadd.f32 %v3838, %v3998
      %v4000 = vpop.f32.mrb[0].mxu0
      %4001 = vmatprep.mubr.bf16.mxu0 %v3095
      %4002 = vmatmul.mubr.bf16.gmra.mrb[0].mxu0 %v3094
      %v4003 = vpop.f32.mrb[0].mxu0
      %v4004 = vadd.f32 %v3843, %v4003
      %v4005 = vpop.f32.mrb[0].mxu0
      %v4006 = vpop.f32.mrb[0].mxu0
      %v4007 = vadd.f32 %v3846, %v4006
      %v4008 = vpop.f32.mrb[0].mxu0
      %4009 = vmatprep.mubr.bf16.mxu0 %v3104
      %4010 = vmatmul.mubr.bf16.gmra.mrb[0].mxu0 %v3103
      %v4011 = vpop.f32.mrb[0].mxu0
      %v4012 = vadd.f32 %v3851, %v4011
      %v4013 = vpop.f32.mrb[0].mxu0
      %v4014 = vpop.f32.mrb[0].mxu0
      %v4015 = vadd.f32 %v3854, %v4014
      %v4016 = vpop.f32.mrb[0].mxu0
      %4017 = vmatprep.mubr.bf16.mxu0 %v3113
      %4018 = vmatmul.mubr.bf16.gmra.mrb[0].mxu0 %v3112
      %v4019 = vpop.f32.mrb[0].mxu0
      %v4020 = vadd.f32 %v3859, %v4019
      %v4021 = vpop.f32.mrb[0].mxu0
      %v4022 = vpop.f32.mrb[0].mxu0
      %v4023 = vadd.f32 %v3862, %v4022
      %v4024 = vpop.f32.mrb[0].mxu0
      %4025 = vmatprep.mubr.bf16.mxu0 %v3122
      %4026 = vmatmul.mubr.bf16.gmra.mrb[0].mxu0 %v3121
      %v4027 = vpop.f32.mrb[0].mxu0
      %v4028 = vadd.f32 %v3867, %v4027
      %v4029 = vpop.f32.mrb[0].mxu0
      %v4030 = vpop.f32.mrb[0].mxu0
      %v4031 = vadd.f32 %v3870, %v4030
      %v4032 = vpop.f32.mrb[0].mxu0
      %4033 = vmatprep.mubr.bf16.mxu0 %v3131
      %4034 = vmatmul.mubr.bf16.gmra.mrb[0].mxu0 %v3130
      %v4035 = vpop.f32.mrb[0].mxu0
      %v4036 = vadd.f32 %v3875, %v4035
      %v4037 = vpop.f32.mrb[0].mxu0
      %v4038 = vpop.f32.mrb[0].mxu0
      %v4039 = vadd.f32 %v3878, %v4038
      %v4040 = vpop.f32.mrb[0].mxu0
      %4041 = vmatprep.mubr.bf16.mxu0 %v3140
      %4042 = vmatmul.mubr.bf16.gmra.mrb[0].mxu0 %v3139
      %v4043 = vpop.f32.mrb[0].mxu0
      %v4044 = vadd.f32 %v3883, %v4043
      %v4045 = vpop.f32.mrb[0].mxu0
      %v4046 = vpop.f32.mrb[0].mxu0
      %v4047 = vadd.f32 %v3886, %v4046
      %v4048 = vpop.f32.mrb[0].mxu0
      %4049 = vmatprep.mubr.bf16.mxu0 %v3149
      %4050 = vmatmul.mubr.bf16.gmra.mrb[0].mxu0 %v3148
      %v4051 = vpop.f32.mrb[0].mxu0
      %v4052 = vadd.f32 %v3891, %v4051
      %v4053 = vpop.f32.mrb[0].mxu0
      %v4054 = vpop.f32.mrb[0].mxu0
      %v4055 = vadd.f32 %v3894, %v4054
      %v4056 = vpop.f32.mrb[0].mxu0
      %4057 = vmatprep.mubr.bf16.mxu0 %v3158
      %4058 = vmatmul.mubr.bf16.gmra.mrb[0].mxu0 %v3157
      %v4059 = vpop.f32.mrb[0].mxu0
      %v4060 = vadd.f32 %v3899, %v4059
      %v4061 = vpop.f32.mrb[0].mxu0
      %v4062 = vpop.f32.mrb[0].mxu0
      %v4063 = vadd.f32 %v3902, %v4062
      %v4064 = vpop.f32.mrb[0].mxu0
      %4065 = vmatprep.mubr.bf16.mxu0 %v3167
      %4066 = vmatmul.mubr.bf16.gmra.mrb[0].mxu0 %v3166
      %v4067 = vpop.f32.mrb[0].mxu0
      %v4068 = vadd.f32 %v3907, %v4067
      %v4069 = vpop.f32.mrb[0].mxu0
      %v4070 = vpop.f32.mrb[0].mxu0
      %v4071 = vadd.f32 %v3910, %v4070
      %v4072 = vpop.f32.mrb[0].mxu0
      %4073 = vmatprep.mubr.bf16.mxu0 %v3176
      %4074 = vmatmul.mubr.bf16.gmra.mrb[0].mxu0 %v3175
      %v4075 = vpop.f32.mrb[0].mxu0
      %v4076 = vadd.f32 %v3915, %v4075
      %v4077 = vpop.f32.mrb[0].mxu0
      %v4078 = vpop.f32.mrb[0].mxu0
      %v4079 = vadd.f32 %v3918, %v4078
      %v4080 = vpop.f32.mrb[0].mxu0
      %4081 = vmatprep.mubr.bf16.mxu0 %v3185
      %4082 = vmatmul.mubr.bf16.gmra.mrb[0].mxu0 %v3184
      %v4083 = vpop.f32.mrb[0].mxu0
      %v4084 = vadd.f32 %v3923, %v4083
      %v4085 = vpop.f32.mrb[0].mxu0
      %v4086 = vpop.f32.mrb[0].mxu0
      %v4087 = vadd.f32 %v3926, %v4086
      %v4088 = vpop.f32.mrb[0].mxu0
      %4089 = vmatprep.mubr.bf16.mxu0 %v3194
      %4090 = vmatmul.mubr.bf16.gmra.mrb[0].mxu0 %v3193
      %v4091 = vpop.f32.mrb[0].mxu0
      %v4092 = vadd.f32 %v3931, %v4091
      %v4093 = vpop.f32.mrb[0].mxu0
      %v4094 = vpop.f32.mrb[0].mxu0
      %v4095 = vadd.f32 %v3934, %v4094
      %v4096 = vpop.f32.mrb[0].mxu0
      %4097 = vdwg.mxu0
      %4098 = vmatprep.subr.bf16.mxu0 0
      %4099 = vmatpush1.bf16.msra.mxu0 %v3664
      %4100 = vmatprep.subr.bf16.mxu0 0
      %4101 = vmatpush1.bf16.msra.mxu0 %v3665
      %4102 = vmatprep.subr.bf16.mxu0 0
      %4103 = vmatpush1.bf16.msra.mxu0 %v3666
      %4104 = vmatprep.subr.bf16.mxu0 0
      %4105 = vmatpush1.bf16.msra.mxu0 %v3667
      %4106 = vmatprep.subr.bf16.mxu0 0
      %4107 = vmatpush1.bf16.msra.mxu0 %v3668
      %4108 = vmatprep.subr.bf16.mxu0 0
      %4109 = vmatpush1.bf16.msra.mxu0 %v3669
      %4110 = vmatprep.subr.bf16.mxu0 0
      %4111 = vmatpush1.bf16.msra.mxu0 %v3670
      %4112 = vmatprep.subr.bf16.mxu0 0
      %4113 = vmatpush1.bf16.msra.mxu0 %v3671
      %4114 = vmatprep.subr.bf16.mxu0 0
      %4115 = vmatpush1.bf16.msra.mxu0 %v3672
      %4116 = vmatprep.subr.bf16.mxu0 0
      %4117 = vmatpush1.bf16.msra.mxu0 %v3673
      %4118 = vmatprep.subr.bf16.mxu0 0
      %4119 = vmatpush1.bf16.msra.mxu0 %v3674
      %4120 = vmatprep.subr.bf16.mxu0 0
      %4121 = vmatpush1.bf16.msra.mxu0 %v3675
      %4122 = vmatprep.subr.bf16.mxu0 0
      %4123 = vmatpush1.bf16.msra.mxu0 %v3676
      %4124 = vmatprep.subr.bf16.mxu0 0
      %4125 = vmatpush1.bf16.msra.mxu0 %v3677
      %4126 = vmatprep.subr.bf16.mxu0 0
      %4127 = vmatpush1.bf16.msra.mxu0 %v3678
      %4128 = vmatprep.subr.bf16.mxu0 0
      %4129 = vmatpush1.bf16.msra.mxu0 %v3679
      %4130 = vmatprep.mubr.bf16.mxu0 %v3061
      %4131 = vmatmul.mubr.bf16.gmra.mrb[0].mxu0 %v3060
      %v4132 = vpop.f32.mrb[0].mxu0
      %v4133 = vadd.f32 %v3972, %v4132
      %v4134 = vpop.f32.mrb[0].mxu0
      %v4135 = vpop.f32.mrb[0].mxu0
      %v4136 = vadd.f32 %v3975, %v4135
      %v4137 = vpop.f32.mrb[0].mxu0
      %4138 = vmatprep.mubr.bf16.mxu0 %v3070
      %4139 = vmatmul.mubr.bf16.gmra.mrb[0].mxu0 %v3069
      %v4140 = vpop.f32.mrb[0].mxu0
      %v4141 = vadd.f32 %v3980, %v4140
      %v4142 = vpop.f32.mrb[0].mxu0
      %v4143 = vpop.f32.mrb[0].mxu0
      %v4144 = vadd.f32 %v3983, %v4143
      %v4145 = vpop.f32.mrb[0].mxu0
      %4146 = vmatprep.mubr.bf16.mxu0 %v3079
      %4147 = vmatmul.mubr.bf16.gmra.mrb[0].mxu0 %v3078
      %v4148 = vpop.f32.mrb[0].mxu0
      %v4149 = vadd.f32 %v3988, %v4148
      %v4150 = vpop.f32.mrb[0].mxu0
      %v4151 = vpop.f32.mrb[0].mxu0
      %v4152 = vadd.f32 %v3991, %v4151
      %v4153 = vpop.f32.mrb[0].mxu0
      %4154 = vmatprep.mubr.bf16.mxu0 %v3088
      %4155 = vmatmul.mubr.bf16.gmra.mrb[0].mxu0 %v3087
      %v4156 = vpop.f32.mrb[0].mxu0
      %v4157 = vadd.f32 %v3996, %v4156
      %v4158 = vpop.f32.mrb[0].mxu0
      %v4159 = vpop.f32.mrb[0].mxu0
      %v4160 = vadd.f32 %v3999, %v4159
      %v4161 = vpop.f32.mrb[0].mxu0
      %4162 = vmatprep.mubr.bf16.mxu0 %v3097
      %4163 = vmatmul.mubr.bf16.gmra.mrb[0].mxu0 %v3096
      %v4164 = vpop.f32.mrb[0].mxu0
      %v4165 = vadd.f32 %v4004, %v4164
      %v4166 = vpop.f32.mrb[0].mxu0
      %v4167 = vpop.f32.mrb[0].mxu0
      %v4168 = vadd.f32 %v4007, %v4167
      %v4169 = vpop.f32.mrb[0].mxu0
      %4170 = vmatprep.mubr.bf16.mxu0 %v3106
      %4171 = vmatmul.mubr.bf16.gmra.mrb[0].mxu0 %v3105
      %v4172 = vpop.f32.mrb[0].mxu0
      %v4173 = vadd.f32 %v4012, %v4172
      %v4174 = vpop.f32.mrb[0].mxu0
      %v4175 = vpop.f32.mrb[0].mxu0
      %v4176 = vadd.f32 %v4015, %v4175
      %v4177 = vpop.f32.mrb[0].mxu0
      %4178 = vmatprep.mubr.bf16.mxu0 %v3115
      %4179 = vmatmul.mubr.bf16.gmra.mrb[0].mxu0 %v3114
      %v4180 = vpop.f32.mrb[0].mxu0
      %v4181 = vadd.f32 %v4020, %v4180
      %v4182 = vpop.f32.mrb[0].mxu0
      %v4183 = vpop.f32.mrb[0].mxu0
      %v4184 = vadd.f32 %v4023, %v4183
      %v4185 = vpop.f32.mrb[0].mxu0
      %4186 = vmatprep.mubr.bf16.mxu0 %v3124
      %4187 = vmatmul.mubr.bf16.gmra.mrb[0].mxu0 %v3123
      %v4188 = vpop.f32.mrb[0].mxu0
      %v4189 = vadd.f32 %v4028, %v4188
      %v4190 = vpop.f32.mrb[0].mxu0
      %v4191 = vpop.f32.mrb[0].mxu0
      %v4192 = vadd.f32 %v4031, %v4191
      %v4193 = vpop.f32.mrb[0].mxu0
      %4194 = vmatprep.mubr.bf16.mxu0 %v3133
      %4195 = vmatmul.mubr.bf16.gmra.mrb[0].mxu0 %v3132
      %v4196 = vpop.f32.mrb[0].mxu0
      %v4197 = vadd.f32 %v4036, %v4196
      %v4198 = vpop.f32.mrb[0].mxu0
      %v4199 = vpop.f32.mrb[0].mxu0
      %v4200 = vadd.f32 %v4039, %v4199
      %v4201 = vpop.f32.mrb[0].mxu0
      %4202 = vmatprep.mubr.bf16.mxu0 %v3142
      %4203 = vmatmul.mubr.bf16.gmra.mrb[0].mxu0 %v3141
      %v4204 = vpop.f32.mrb[0].mxu0
      %v4205 = vadd.f32 %v4044, %v4204
      %v4206 = vpop.f32.mrb[0].mxu0
      %v4207 = vpop.f32.mrb[0].mxu0
      %v4208 = vadd.f32 %v4047, %v4207
      %v4209 = vpop.f32.mrb[0].mxu0
      %4210 = vmatprep.mubr.bf16.mxu0 %v3151
      %4211 = vmatmul.mubr.bf16.gmra.mrb[0].mxu0 %v3150
      %v4212 = vpop.f32.mrb[0].mxu0
      %v4213 = vadd.f32 %v4052, %v4212
      %v4214 = vpop.f32.mrb[0].mxu0
      %v4215 = vpop.f32.mrb[0].mxu0
      %v4216 = vadd.f32 %v4055, %v4215
      %v4217 = vpop.f32.mrb[0].mxu0
      %4218 = vmatprep.mubr.bf16.mxu0 %v3160
      %4219 = vmatmul.mubr.bf16.gmra.mrb[0].mxu0 %v3159
      %v4220 = vpop.f32.mrb[0].mxu0
      %v4221 = vadd.f32 %v4060, %v4220
      %v4222 = vpop.f32.mrb[0].mxu0
      %v4223 = vpop.f32.mrb[0].mxu0
      %v4224 = vadd.f32 %v4063, %v4223
      %v4225 = vpop.f32.mrb[0].mxu0
      %4226 = vmatprep.mubr.bf16.mxu0 %v3169
      %4227 = vmatmul.mubr.bf16.gmra.mrb[0].mxu0 %v3168
      %v4228 = vpop.f32.mrb[0].mxu0
      %v4229 = vadd.f32 %v4068, %v4228
      %v4230 = vpop.f32.mrb[0].mxu0
      %v4231 = vpop.f32.mrb[0].mxu0
      %v4232 = vadd.f32 %v4071, %v4231
      %v4233 = vpop.f32.mrb[0].mxu0
      %4234 = vmatprep.mubr.bf16.mxu0 %v3178
      %4235 = vmatmul.mubr.bf16.gmra.mrb[0].mxu0 %v3177
      %v4236 = vpop.f32.mrb[0].mxu0
      %v4237 = vadd.f32 %v4076, %v4236
      %v4238 = vpop.f32.mrb[0].mxu0
      %v4239 = vpop.f32.mrb[0].mxu0
      %v4240 = vadd.f32 %v4079, %v4239
      %v4241 = vpop.f32.mrb[0].mxu0
      %4242 = vmatprep.mubr.bf16.mxu0 %v3187
      %4243 = vmatmul.mubr.bf16.gmra.mrb[0].mxu0 %v3186
      %v4244 = vpop.f32.mrb[0].mxu0
      %v4245 = vadd.f32 %v4084, %v4244
      %v4246 = vpop.f32.mrb[0].mxu0
      %v4247 = vpop.f32.mrb[0].mxu0
      %v4248 = vadd.f32 %v4087, %v4247
      %v4249 = vpop.f32.mrb[0].mxu0
      %4250 = vmatprep.mubr.bf16.mxu0 %v3196
      %4251 = vmatmul.mubr.bf16.gmra.mrb[0].mxu0 %v3195
      %v4252 = vpop.f32.mrb[0].mxu0
      %v4253 = vadd.f32 %v4092, %v4252
      %v4254 = vpop.f32.mrb[0].mxu0
      %v4255 = vpop.f32.mrb[0].mxu0
      %v4256 = vadd.f32 %v4095, %v4255
      %v4257 = vpop.f32.mrb[0].mxu0
      %4258 = vdwg.mxu0
      %4259 = vmatprep.subr.bf16.mxu0 0
      %4260 = vmatpush1.bf16.msra.mxu0 %v3680
      %4261 = vmatprep.subr.bf16.mxu0 0
      %4262 = vmatpush1.bf16.msra.mxu0 %v3681
      %4263 = vmatprep.subr.bf16.mxu0 0
      %4264 = vmatpush1.bf16.msra.mxu0 %v3682
      %4265 = vmatprep.subr.bf16.mxu0 0
      %4266 = vmatpush1.bf16.msra.mxu0 %v3683
      %4267 = vmatprep.subr.bf16.mxu0 0
      %4268 = vmatpush1.bf16.msra.mxu0 %v3684
      %4269 = vmatprep.subr.bf16.mxu0 0
      %4270 = vmatpush1.bf16.msra.mxu0 %v3685
      %4271 = vmatprep.subr.bf16.mxu0 0
      %4272 = vmatpush1.bf16.msra.mxu0 %v3686
      %4273 = vmatprep.subr.bf16.mxu0 0
      %4274 = vmatpush1.bf16.msra.mxu0 %v3687
      %4275 = vmatprep.subr.bf16.mxu0 0
      %4276 = vmatpush1.bf16.msra.mxu0 %v3688
      %4277 = vmatprep.subr.bf16.mxu0 0
      %4278 = vmatpush1.bf16.msra.mxu0 %v3689
      %4279 = vmatprep.subr.bf16.mxu0 0
      %4280 = vmatpush1.bf16.msra.mxu0 %v3690
      %4281 = vmatprep.subr.bf16.mxu0 0
      %4282 = vmatpush1.bf16.msra.mxu0 %v3691
      %4283 = vmatprep.subr.bf16.mxu0 0
      %4284 = vmatpush1.bf16.msra.mxu0 %v3692
      %4285 = vmatprep.subr.bf16.mxu0 0
      %4286 = vmatpush1.bf16.msra.mxu0 %v3693
      %4287 = vmatprep.subr.bf16.mxu0 0
      %4288 = vmatpush1.bf16.msra.mxu0 %v3694
      %4289 = vmatprep.subr.bf16.mxu0 0
      %4290 = vmatpush1.bf16.msra.mxu0 %v3695
      %4291 = vmatprep.mubr.bf16.mxu0 %v3063
      %4292 = vmatmul.mubr.bf16.gmra.mrb[0].mxu0 %v3062
      %v4293 = vpop.f32.mrb[0].mxu0
      %v4294 = vadd.f32 %v4133, %v4293
      %v4295 = vpop.f32.mrb[0].mxu0
      %v4296 = vpop.f32.mrb[0].mxu0
      %v4297 = vadd.f32 %v4136, %v4296
      %v4298 = vpop.f32.mrb[0].mxu0
      %4299 = vmatprep.mubr.bf16.mxu0 %v3072
      %4300 = vmatmul.mubr.bf16.gmra.mrb[0].mxu0 %v3071
      %v4301 = vpop.f32.mrb[0].mxu0
      %v4302 = vadd.f32 %v4141, %v4301
      %v4303 = vpop.f32.mrb[0].mxu0
      %v4304 = vpop.f32.mrb[0].mxu0
      %v4305 = vadd.f32 %v4144, %v4304
      %v4306 = vpop.f32.mrb[0].mxu0
      %4307 = vmatprep.mubr.bf16.mxu0 %v3081
      %4308 = vmatmul.mubr.bf16.gmra.mrb[0].mxu0 %v3080
      %v4309 = vpop.f32.mrb[0].mxu0
      %v4310 = vadd.f32 %v4149, %v4309
      %v4311 = vpop.f32.mrb[0].mxu0
      %v4312 = vpop.f32.mrb[0].mxu0
      %v4313 = vadd.f32 %v4152, %v4312
      %v4314 = vpop.f32.mrb[0].mxu0
      %4315 = vmatprep.mubr.bf16.mxu0 %v3090
      %4316 = vmatmul.mubr.bf16.gmra.mrb[0].mxu0 %v3089
      %v4317 = vpop.f32.mrb[0].mxu0
      %v4318 = vadd.f32 %v4157, %v4317
      %v4319 = vpop.f32.mrb[0].mxu0
      %v4320 = vpop.f32.mrb[0].mxu0
      %v4321 = vadd.f32 %v4160, %v4320
      %v4322 = vpop.f32.mrb[0].mxu0
      %4323 = vmatprep.mubr.bf16.mxu0 %v3099
      %4324 = vmatmul.mubr.bf16.gmra.mrb[0].mxu0 %v3098
      %v4325 = vpop.f32.mrb[0].mxu0
      %v4326 = vadd.f32 %v4165, %v4325
      %v4327 = vpop.f32.mrb[0].mxu0
      %v4328 = vpop.f32.mrb[0].mxu0
      %v4329 = vadd.f32 %v4168, %v4328
      %v4330 = vpop.f32.mrb[0].mxu0
      %4331 = vmatprep.mubr.bf16.mxu0 %v3108
      %4332 = vmatmul.mubr.bf16.gmra.mrb[0].mxu0 %v3107
      %v4333 = vpop.f32.mrb[0].mxu0
      %v4334 = vadd.f32 %v4173, %v4333
      %v4335 = vpop.f32.mrb[0].mxu0
      %v4336 = vpop.f32.mrb[0].mxu0
      %v4337 = vadd.f32 %v4176, %v4336
      %v4338 = vpop.f32.mrb[0].mxu0
      %4339 = vmatprep.mubr.bf16.mxu0 %v3117
      %4340 = vmatmul.mubr.bf16.gmra.mrb[0].mxu0 %v3116
      %v4341 = vpop.f32.mrb[0].mxu0
      %v4342 = vadd.f32 %v4181, %v4341
      %v4343 = vpop.f32.mrb[0].mxu0
      %v4344 = vpop.f32.mrb[0].mxu0
      %v4345 = vadd.f32 %v4184, %v4344
      %v4346 = vpop.f32.mrb[0].mxu0
      %4347 = vmatprep.mubr.bf16.mxu0 %v3126
      %4348 = vmatmul.mubr.bf16.gmra.mrb[0].mxu0 %v3125
      %v4349 = vpop.f32.mrb[0].mxu0
      %v4350 = vadd.f32 %v4189, %v4349
      %v4351 = vpop.f32.mrb[0].mxu0
      %v4352 = vpop.f32.mrb[0].mxu0
      %v4353 = vadd.f32 %v4192, %v4352
      %v4354 = vpop.f32.mrb[0].mxu0
      %4355 = vmatprep.mubr.bf16.mxu0 %v3135
      %4356 = vmatmul.mubr.bf16.gmra.mrb[0].mxu0 %v3134
      %v4357 = vpop.f32.mrb[0].mxu0
      %v4358 = vadd.f32 %v4197, %v4357
      %v4359 = vpop.f32.mrb[0].mxu0
      %v4360 = vpop.f32.mrb[0].mxu0
      %v4361 = vadd.f32 %v4200, %v4360
      %v4362 = vpop.f32.mrb[0].mxu0
      %4363 = vmatprep.mubr.bf16.mxu0 %v3144
      %4364 = vmatmul.mubr.bf16.gmra.mrb[0].mxu0 %v3143
      %v4365 = vpop.f32.mrb[0].mxu0
      %v4366 = vadd.f32 %v4205, %v4365
      %v4367 = vpop.f32.mrb[0].mxu0
      %v4368 = vpop.f32.mrb[0].mxu0
      %v4369 = vadd.f32 %v4208, %v4368
      %v4370 = vpop.f32.mrb[0].mxu0
      %4371 = vmatprep.mubr.bf16.mxu0 %v3153
      %4372 = vmatmul.mubr.bf16.gmra.mrb[0].mxu0 %v3152
      %v4373 = vpop.f32.mrb[0].mxu0
      %v4374 = vadd.f32 %v4213, %v4373
      %v4375 = vpop.f32.mrb[0].mxu0
      %v4376 = vpop.f32.mrb[0].mxu0
      %v4377 = vadd.f32 %v4216, %v4376
      %v4378 = vpop.f32.mrb[0].mxu0
      %4379 = vmatprep.mubr.bf16.mxu0 %v3162
      %4380 = vmatmul.mubr.bf16.gmra.mrb[0].mxu0 %v3161
      %v4381 = vpop.f32.mrb[0].mxu0
      %v4382 = vadd.f32 %v4221, %v4381
      %v4383 = vpop.f32.mrb[0].mxu0
      %v4384 = vpop.f32.mrb[0].mxu0
      %v4385 = vadd.f32 %v4224, %v4384
      %v4386 = vpop.f32.mrb[0].mxu0
      %4387 = vmatprep.mubr.bf16.mxu0 %v3171
      %4388 = vmatmul.mubr.bf16.gmra.mrb[0].mxu0 %v3170
      %v4389 = vpop.f32.mrb[0].mxu0
      %v4390 = vadd.f32 %v4229, %v4389
      %v4391 = vpop.f32.mrb[0].mxu0
      %v4392 = vpop.f32.mrb[0].mxu0
      %v4393 = vadd.f32 %v4232, %v4392
      %v4394 = vpop.f32.mrb[0].mxu0
      %4395 = vmatprep.mubr.bf16.mxu0 %v3180
      %4396 = vmatmul.mubr.bf16.gmra.mrb[0].mxu0 %v3179
      %v4397 = vpop.f32.mrb[0].mxu0
      %v4398 = vadd.f32 %v4237, %v4397
      %v4399 = vpop.f32.mrb[0].mxu0
      %v4400 = vpop.f32.mrb[0].mxu0
      %v4401 = vadd.f32 %v4240, %v4400
      %v4402 = vpop.f32.mrb[0].mxu0
      %4403 = vmatprep.mubr.bf16.mxu0 %v3189
      %4404 = vmatmul.mubr.bf16.gmra.mrb[0].mxu0 %v3188
      %v4405 = vpop.f32.mrb[0].mxu0
      %v4406 = vadd.f32 %v4245, %v4405
      %v4407 = vpop.f32.mrb[0].mxu0
      %v4408 = vpop.f32.mrb[0].mxu0
      %v4409 = vadd.f32 %v4248, %v4408
      %v4410 = vpop.f32.mrb[0].mxu0
      %4411 = vmatprep.mubr.bf16.mxu0 %v3198
      %4412 = vmatmul.mubr.bf16.gmra.mrb[0].mxu0 %v3197
      %v4413 = vpop.f32.mrb[0].mxu0
      %v4414 = vadd.f32 %v4253, %v4413
      %v4415 = vpop.f32.mrb[0].mxu0
      %v4416 = vpop.f32.mrb[0].mxu0
      %v4417 = vadd.f32 %v4256, %v4416
      %v4418 = vpop.f32.mrb[0].mxu0
      %4419 = vdwg.mxu0
      %4420 = vmatprep.subr.bf16.mxu0 0
      %4421 = vmatpush1.bf16.msra.mxu0 %v3696
      %4422 = vmatprep.subr.bf16.mxu0 0
      %4423 = vmatpush1.bf16.msra.mxu0 %v3697
      %4424 = vmatprep.subr.bf16.mxu0 0
      %4425 = vmatpush1.bf16.msra.mxu0 %v3698
      %4426 = vmatprep.subr.bf16.mxu0 0
      %4427 = vmatpush1.bf16.msra.mxu0 %v3699
      %4428 = vmatprep.subr.bf16.mxu0 0
      %4429 = vmatpush1.bf16.msra.mxu0 %v3700
      %4430 = vmatprep.subr.bf16.mxu0 0
      %4431 = vmatpush1.bf16.msra.mxu0 %v3701
      %4432 = vmatprep.subr.bf16.mxu0 0
      %4433 = vmatpush1.bf16.msra.mxu0 %v3702
      %4434 = vmatprep.subr.bf16.mxu0 0
      %4435 = vmatpush1.bf16.msra.mxu0 %v3703
      %4436 = vmatprep.subr.bf16.mxu0 0
      %4437 = vmatpush1.bf16.msra.mxu0 0
      %4438 = vmatprep.subr.bf16.mxu0 0
      %4439 = vmatpush1.bf16.msra.mxu0 0
      %4440 = vmatprep.subr.bf16.mxu0 0
      %4441 = vmatpush1.bf16.msra.mxu0 0
      %4442 = vmatprep.subr.bf16.mxu0 0
      %4443 = vmatpush1.bf16.msra.mxu0 0
      %4444 = vmatprep.subr.bf16.mxu0 0
      %4445 = vmatpush1.bf16.msra.mxu0 0
      %4446 = vmatprep.subr.bf16.mxu0 0
      %4447 = vmatpush1.bf16.msra.mxu0 0
      %4448 = vmatprep.subr.bf16.mxu0 0
      %4449 = vmatpush1.bf16.msra.mxu0 0
      %4450 = vmatprep.subr.bf16.mxu0 0
      %4451 = vmatpush1.bf16.msra.mxu0 0
      %4452 = vmatprep.mubr.bf16.mxu0 0
      %4453 = vmatmul.mubr.bf16.gmra.mrb[0].mxu0 %v3064
      %v4454 = vpop.f32.mrb[0].mxu0
      %v4455 = vadd.f32 %v4294, %v4454
      %v4456 = vpop.f32.mrb[0].mxu0
      %v4457 = vpop.f32.mrb[0].mxu0
      %v4458 = vadd.f32 %v4297, %v4457
      %v4459 = vpop.f32.mrb[0].mxu0
      %4460 = vmatprep.mubr.bf16.mxu0 0
      %4461 = vmatmul.mubr.bf16.gmra.mrb[0].mxu0 %v3073
      %v4462 = vpop.f32.mrb[0].mxu0
      %v4463 = vadd.f32 %v4302, %v4462
      %v4464 = vpop.f32.mrb[0].mxu0
      %v4465 = vpop.f32.mrb[0].mxu0
      %v4466 = vadd.f32 %v4305, %v4465
      %v4467 = vpop.f32.mrb[0].mxu0
      %4468 = vmatprep.mubr.bf16.mxu0 0
      %4469 = vmatmul.mubr.bf16.gmra.mrb[0].mxu0 %v3082
      %v4470 = vpop.f32.mrb[0].mxu0
      %v4471 = vadd.f32 %v4310, %v4470
      %v4472 = vpop.f32.mrb[0].mxu0
      %v4473 = vpop.f32.mrb[0].mxu0
      %v4474 = vadd.f32 %v4313, %v4473
      %v4475 = vpop.f32.mrb[0].mxu0
      %4476 = vmatprep.mubr.bf16.mxu0 0
      %4477 = vmatmul.mubr.bf16.gmra.mrb[0].mxu0 %v3091
      %v4478 = vpop.f32.mrb[0].mxu0
      %v4479 = vadd.f32 %v4318, %v4478
      %v4480 = vpop.f32.mrb[0].mxu0
      %v4481 = vpop.f32.mrb[0].mxu0
      %v4482 = vadd.f32 %v4321, %v4481
      %v4483 = vpop.f32.mrb[0].mxu0
      %4484 = vmatprep.mubr.bf16.mxu0 0
      %4485 = vmatmul.mubr.bf16.gmra.mrb[0].mxu0 %v3100
      %v4486 = vpop.f32.mrb[0].mxu0
      %v4487 = vadd.f32 %v4326, %v4486
      %v4488 = vpop.f32.mrb[0].mxu0
      %v4489 = vpop.f32.mrb[0].mxu0
      %v4490 = vadd.f32 %v4329, %v4489
      %v4491 = vpop.f32.mrb[0].mxu0
      %4492 = vmatprep.mubr.bf16.mxu0 0
      %4493 = vmatmul.mubr.bf16.gmra.mrb[0].mxu0 %v3109
      %v4494 = vpop.f32.mrb[0].mxu0
      %v4495 = vadd.f32 %v4334, %v4494
      %v4496 = vpop.f32.mrb[0].mxu0
      %v4497 = vpop.f32.mrb[0].mxu0
      %v4498 = vadd.f32 %v4337, %v4497
      %v4499 = vpop.f32.mrb[0].mxu0
      %4500 = vmatprep.mubr.bf16.mxu0 0
      %4501 = vmatmul.mubr.bf16.gmra.mrb[0].mxu0 %v3118
      %v4502 = vpop.f32.mrb[0].mxu0
      %v4503 = vadd.f32 %v4342, %v4502
      %v4504 = vpop.f32.mrb[0].mxu0
      %v4505 = vpop.f32.mrb[0].mxu0
      %v4506 = vadd.f32 %v4345, %v4505
      %v4507 = vpop.f32.mrb[0].mxu0
      %4508 = vmatprep.mubr.bf16.mxu0 0
      %4509 = vmatmul.mubr.bf16.gmra.mrb[0].mxu0 %v3127
      %v4510 = vpop.f32.mrb[0].mxu0
      %v4511 = vadd.f32 %v4350, %v4510
      %v4512 = vpop.f32.mrb[0].mxu0
      %v4513 = vpop.f32.mrb[0].mxu0
      %v4514 = vadd.f32 %v4353, %v4513
      %v4515 = vpop.f32.mrb[0].mxu0
      %4516 = vmatprep.mubr.bf16.mxu0 0
      %4517 = vmatmul.mubr.bf16.gmra.mrb[0].mxu0 %v3136
      %v4518 = vpop.f32.mrb[0].mxu0
      %v4519 = vadd.f32 %v4358, %v4518
      %v4520 = vpop.f32.mrb[0].mxu0
      %v4521 = vpop.f32.mrb[0].mxu0
      %v4522 = vadd.f32 %v4361, %v4521
      %v4523 = vpop.f32.mrb[0].mxu0
      %4524 = vmatprep.mubr.bf16.mxu0 0
      %4525 = vmatmul.mubr.bf16.gmra.mrb[0].mxu0 %v3145
      %v4526 = vpop.f32.mrb[0].mxu0
      %v4527 = vadd.f32 %v4366, %v4526
      %v4528 = vpop.f32.mrb[0].mxu0
      %v4529 = vpop.f32.mrb[0].mxu0
      %v4530 = vadd.f32 %v4369, %v4529
      %v4531 = vpop.f32.mrb[0].mxu0
      %4532 = vmatprep.mubr.bf16.mxu0 0
      %4533 = vmatmul.mubr.bf16.gmra.mrb[0].mxu0 %v3154
      %v4534 = vpop.f32.mrb[0].mxu0
      %v4535 = vadd.f32 %v4374, %v4534
      %v4536 = vpop.f32.mrb[0].mxu0
      %v4537 = vpop.f32.mrb[0].mxu0
      %v4538 = vadd.f32 %v4377, %v4537
      %v4539 = vpop.f32.mrb[0].mxu0
      %4540 = vmatprep.mubr.bf16.mxu0 0
      %4541 = vmatmul.mubr.bf16.gmra.mrb[0].mxu0 %v3163
      %v4542 = vpop.f32.mrb[0].mxu0
      %v4543 = vadd.f32 %v4382, %v4542
      %v4544 = vpop.f32.mrb[0].mxu0
      %v4545 = vpop.f32.mrb[0].mxu0
      %v4546 = vadd.f32 %v4385, %v4545
      %v4547 = vpop.f32.mrb[0].mxu0
      %4548 = vmatprep.mubr.bf16.mxu0 0
      %4549 = vmatmul.mubr.bf16.gmra.mrb[0].mxu0 %v3172
      %v4550 = vpop.f32.mrb[0].mxu0
      %v4551 = vadd.f32 %v4390, %v4550
      %v4552 = vpop.f32.mrb[0].mxu0
      %v4553 = vpop.f32.mrb[0].mxu0
      %v4554 = vadd.f32 %v4393, %v4553
      %v4555 = vpop.f32.mrb[0].mxu0
      %4556 = vmatprep.mubr.bf16.mxu0 0
      %4557 = vmatmul.mubr.bf16.gmra.mrb[0].mxu0 %v3181
      %v4558 = vpop.f32.mrb[0].mxu0
      %v4559 = vadd.f32 %v4398, %v4558
      %v4560 = vpop.f32.mrb[0].mxu0
      %v4561 = vpop.f32.mrb[0].mxu0
      %v4562 = vadd.f32 %v4401, %v4561
      %v4563 = vpop.f32.mrb[0].mxu0
      %4564 = vmatprep.mubr.bf16.mxu0 0
      %4565 = vmatmul.mubr.bf16.gmra.mrb[0].mxu0 %v3190
      %v4566 = vpop.f32.mrb[0].mxu0
      %v4567 = vadd.f32 %v4406, %v4566
      %v4568 = vpop.f32.mrb[0].mxu0
      %v4569 = vpop.f32.mrb[0].mxu0
      %v4570 = vadd.f32 %v4409, %v4569
      %v4571 = vpop.f32.mrb[0].mxu0
      %4572 = vmatprep.mubr.bf16.mxu0 0
      %4573 = vmatmul.mubr.bf16.gmra.mrb[0].mxu0 %v3199
      %v4574 = vpop.f32.mrb[0].mxu0
      %v4575 = vadd.f32 %v4414, %v4574
      %v4576 = vpop.f32.mrb[0].mxu0
      %v4577 = vpop.f32.mrb[0].mxu0
      %v4578 = vadd.f32 %v4417, %v4577
      %v4579 = vpop.f32.mrb[0].mxu0
      %4580 = vdwg.mxu0
      %v4581 = vpack.c.bf16 %v4458, %v4455
      %v4582 = vpack.c.bf16 %v4466, %v4463
      %v4583 = vpack.c.bf16 %v4474, %v4471
      %v4584 = vpack.c.bf16 %v4482, %v4479
      %v4585 = vpack.c.bf16 %v4490, %v4487
      %v4586 = vpack.c.bf16 %v4498, %v4495
      %v4587 = vpack.c.bf16 %v4506, %v4503
      %v4588 = vpack.c.bf16 %v4514, %v4511
      %v4589 = vpack.c.bf16 %v4522, %v4519
      %v4590 = vpack.c.bf16 %v4530, %v4527
      %v4591 = vpack.c.bf16 %v4538, %v4535
      %v4592 = vpack.c.bf16 %v4546, %v4543
      %v4593 = vpack.c.bf16 %v4554, %v4551
      %v4594 = vpack.c.bf16 %v4562, %v4559
      %v4595 = vpack.c.bf16 %v4570, %v4567
      %v4596 = vpack.c.bf16 %v4578, %v4575
      %v4613 = vunpack.c.l.b16 %v4581
      %v4614 = vunpack.c.h.b16 %v4581
      %v4615 = vunpack.c.l.b16 %v4582
      %v4616 = vunpack.c.h.b16 %v4582
      %v4617 = vunpack.c.l.b16 %v4583
      %v4618 = vunpack.c.h.b16 %v4583
      %v4619 = vunpack.c.l.b16 %v4584
      %v4620 = vunpack.c.h.b16 %v4584
      %v4621 = vunpack.c.l.b16 %v4585
      %v4622 = vunpack.c.h.b16 %v4585
      %v4623 = vunpack.c.l.b16 %v4586
      %v4624 = vunpack.c.h.b16 %v4586
      %v4625 = vunpack.c.l.b16 %v4587
      %v4626 = vunpack.c.h.b16 %v4587
      %v4627 = vunpack.c.l.b16 %v4588
      %v4628 = vunpack.c.h.b16 %v4588
      %v4629 = vunpack.c.l.b16 %v4589
      %v4630 = vunpack.c.h.b16 %v4589
      %v4631 = vunpack.c.l.b16 %v4590
      %v4632 = vunpack.c.h.b16 %v4590
      %v4633 = vunpack.c.l.b16 %v4591
      %v4634 = vunpack.c.h.b16 %v4591
      %v4635 = vunpack.c.l.b16 %v4592
      %v4636 = vunpack.c.h.b16 %v4592
      %v4637 = vunpack.c.l.b16 %v4593
      %v4638 = vunpack.c.h.b16 %v4593
      %v4639 = vunpack.c.l.b16 %v4594
      %v4640 = vunpack.c.h.b16 %v4594
      %v4641 = vunpack.c.l.b16 %v4595
      %v4642 = vunpack.c.h.b16 %v4595
      %v4643 = vunpack.c.l.b16 %v4596
      %v4644 = vunpack.c.h.b16 %v4596
      %v4645 = vpack.c.b16 %v4613, %v4613
      %v4646 = vpack.c.b16 %v4614, %v4614
      %v4647 = vpack.c.b16 %v4615, %v4615
      %v4648 = vpack.c.b16 %v4616, %v4616
      %v4649 = vpack.c.b16 %v4617, %v4617
      %v4650 = vpack.c.b16 %v4618, %v4618
      %v4651 = vpack.c.b16 %v4619, %v4619
      %v4652 = vpack.c.b16 %v4620, %v4620
      %v4653 = vpack.c.b16 %v4621, %v4621
      %v4654 = vpack.c.b16 %v4622, %v4622
      %v4655 = vpack.c.b16 %v4623, %v4623
      %v4656 = vpack.c.b16 %v4624, %v4624
      %v4657 = vpack.c.b16 %v4625, %v4625
      %v4658 = vpack.c.b16 %v4626, %v4626
      %v4659 = vpack.c.b16 %v4627, %v4627
      %v4660 = vpack.c.b16 %v4628, %v4628
      %v4661 = vpack.c.b16 %v4629, %v4629
      %v4662 = vpack.c.b16 %v4630, %v4630
      %v4663 = vpack.c.b16 %v4631, %v4631
      %v4664 = vpack.c.b16 %v4632, %v4632
      %v4665 = vpack.c.b16 %v4633, %v4633
      %v4666 = vpack.c.b16 %v4634, %v4634
      %v4667 = vpack.c.b16 %v4635, %v4635
      %v4668 = vpack.c.b16 %v4636, %v4636
      %v4669 = vpack.c.b16 %v4637, %v4637
      %v4670 = vpack.c.b16 %v4638, %v4638
      %v4671 = vpack.c.b16 %v4639, %v4639
      %v4672 = vpack.c.b16 %v4640, %v4640
      %v4673 = vpack.c.b16 %v4641, %v4641
      %v4674 = vpack.c.b16 %v4642, %v4642
      %v4675 = vpack.c.b16 %v4643, %v4643
      %v4676 = vpack.c.b16 %v4644, %v4644
      %4709 = vst [vmem:[%s208] sm:$0xf] %v4645
      %4710 = vst [vmem:[%s208 + $0x4] sm:$0xf] %v4646
      %4711 = vst [vmem:[%s208 + $0x8] sm:$0xf] %v4647
      %4712 = vst [vmem:[%s208 + $0xc] sm:$0xf] %v4648
      %4713 = vst [vmem:[%s208 + $0x10] sm:$0xf] %v4649
      %4714 = vst [vmem:[%s208 + $0x14] sm:$0xf] %v4650
      %4715 = vst [vmem:[%s208 + $0x18] sm:$0xf] %v4651
      %4716 = vst [vmem:[%s208 + $0x1c] sm:$0xf] %v4652
      %4717 = vst [vmem:[%s208 + $0x20] sm:$0xf] %v4653
      %4718 = vst [vmem:[%s208 + $0x24] sm:$0xf] %v4654
      %4719 = vst [vmem:[%s208 + $0x28] sm:$0xf] %v4655
      %4720 = vst [vmem:[%s208 + $0x2c] sm:$0xf] %v4656
      %4721 = vst [vmem:[%s208 + $0x30] sm:$0xf] %v4657
      %4722 = vst [vmem:[%s208 + $0x34] sm:$0xf] %v4658
      %4723 = vst [vmem:[%s208 + $0x38] sm:$0xf] %v4659
      %4724 = vst [vmem:[%s208 + $0x3c] sm:$0xf] %v4660
      %4725 = vst [vmem:[%s208 + $0x40] sm:$0xf] %v4661
      %4726 = vst [vmem:[%s208 + $0x44] sm:$0xf] %v4662
      %4727 = vst [vmem:[%s208 + $0x48] sm:$0xf] %v4663
      %4728 = vst [vmem:[%s208 + $0x4c] sm:$0xf] %v4664
      %4729 = vst [vmem:[%s208 + $0x50] sm:$0xf] %v4665
      %4730 = vst [vmem:[%s208 + $0x54] sm:$0xf] %v4666
      %4731 = vst [vmem:[%s208 + $0x58] sm:$0xf] %v4667
      %4732 = vst [vmem:[%s208 + $0x5c] sm:$0xf] %v4668
      %4733 = vst [vmem:[%s208 + $0x60] sm:$0xf] %v4669
      %4734 = vst [vmem:[%s208 + $0x64] sm:$0xf] %v4670
      %4735 = vst [vmem:[%s208 + $0x68] sm:$0xf] %v4671
      %4736 = vst [vmem:[%s208 + $0x6c] sm:$0xf] %v4672
      %4737 = vst [vmem:[%s208 + $0x70] sm:$0xf] %v4673
      %4738 = vst [vmem:[%s208 + $0x74] sm:$0xf] %v4674
      %4739 = vst [vmem:[%s208 + $0x78] sm:$0xf] %v4675
      %4740 = vst [vmem:[%s208 + $0x7c] sm:$0xf] %v4676
      %v4741 = vadd.f32 %v4455, %v4458
      %v4742 = vadd.f32 %v4741, %v4463
      %v4743 = vadd.f32 %v4742, %v4466
      %v4744 = vadd.f32 %v4743, %v4471
      %v4745 = vadd.f32 %v4744, %v4474
      %v4746 = vadd.f32 %v4745, %v4479
      %v4747 = vadd.f32 %v4746, %v4482
      %v4748 = vadd.f32 %v4747, %v4487
      %v4749 = vadd.f32 %v4748, %v4490
      %v4750 = vadd.f32 %v4749, %v4495
      %v4751 = vadd.f32 %v4750, %v4498
      %v4752 = vadd.f32 %v4751, %v4503
      %v4753 = vadd.f32 %v4752, %v4506
      %v4754 = vadd.f32 %v4753, %v4511
      %v4755 = vadd.f32 %v4754, %v4514
      %v4756 = vadd.f32 %v4755, %v4519
      %v4757 = vadd.f32 %v4756, %v4522
      %v4758 = vadd.f32 %v4757, %v4527
      %v4759 = vadd.f32 %v4758, %v4530
      %v4760 = vadd.f32 %v4759, %v4535
      %v4761 = vadd.f32 %v4760, %v4538
      %v4762 = vadd.f32 %v4761, %v4543
      %v4763 = vadd.f32 %v4762, %v4546
      %v4764 = vadd.f32 %v4763, %v4551
      %v4765 = vadd.f32 %v4764, %v4554
      %v4766 = vadd.f32 %v4765, %v4559
      %v4767 = vadd.f32 %v4766, %v4562
      %v4768 = vadd.f32 %v4767, %v4567
      %v4769 = vadd.f32 %v4768, %v4570
      %v4770 = vadd.f32 %v4769, %v4575
      %v4771 = vadd.f32 %v4770, %v4578
      %v4772 = vrot.slane %v4771, 4
      %v4773 = vadd.f32 %v4771, %v4772
      %v4774 = vrot.slane %v4773, 2
      %v4775 = vadd.f32 %v4773, %v4774
      %v4776 = vrot.slane %v4775, 1
      %v4777 = vadd.f32 %v4775, %v4776
      %4778 = vst [vmem:[%s211] sm:$0x1] %v4777
      %v4779 = vmul.f32 %v4455, %v4455
      %v4780 = vmul.f32 %v4458, %v4458
      %v4781 = vmul.f32 %v4463, %v4463
      %v4782 = vmul.f32 %v4466, %v4466
      %v4783 = vmul.f32 %v4471, %v4471
      %v4784 = vmul.f32 %v4474, %v4474
      %v4785 = vmul.f32 %v4479, %v4479
      %v4786 = vmul.f32 %v4482, %v4482
      %v4787 = vmul.f32 %v4487, %v4487
      %v4788 = vmul.f32 %v4490, %v4490
      %v4789 = vmul.f32 %v4495, %v4495
      %v4790 = vmul.f32 %v4498, %v4498
      %v4791 = vmul.f32 %v4503, %v4503
      %v4792 = vmul.f32 %v4506, %v4506
      %v4793 = vmul.f32 %v4511, %v4511
      %v4794 = vmul.f32 %v4514, %v4514
      %v4795 = vmul.f32 %v4519, %v4519
      %v4796 = vmul.f32 %v4522, %v4522
      %v4797 = vmul.f32 %v4527, %v4527
      %v4798 = vmul.f32 %v4530, %v4530
      %v4799 = vmul.f32 %v4535, %v4535
      %v4800 = vmul.f32 %v4538, %v4538
      %v4801 = vmul.f32 %v4543, %v4543
      %v4802 = vmul.f32 %v4546, %v4546
      %v4803 = vmul.f32 %v4551, %v4551
      %v4804 = vmul.f32 %v4554, %v4554
      %v4805 = vmul.f32 %v4559, %v4559
      %v4806 = vmul.f32 %v4562, %v4562
      %v4807 = vmul.f32 %v4567, %v4567
      %v4808 = vmul.f32 %v4570, %v4570
      %v4809 = vmul.f32 %v4575, %v4575
      %v4810 = vmul.f32 %v4578, %v4578
      %v4811 = vadd.f32 %v4779, %v4780
      %v4812 = vadd.f32 %v4811, %v4781
      %v4813 = vadd.f32 %v4812, %v4782
      %v4814 = vadd.f32 %v4813, %v4783
      %v4815 = vadd.f32 %v4814, %v4784
      %v4816 = vadd.f32 %v4815, %v4785
      %v4817 = vadd.f32 %v4816, %v4786
      %v4818 = vadd.f32 %v4817, %v4787
      %v4819 = vadd.f32 %v4818, %v4788
      %v4820 = vadd.f32 %v4819, %v4789
      %v4821 = vadd.f32 %v4820, %v4790
      %v4822 = vadd.f32 %v4821, %v4791
      %v4823 = vadd.f32 %v4822, %v4792
      %v4824 = vadd.f32 %v4823, %v4793
      %v4825 = vadd.f32 %v4824, %v4794
      %v4826 = vadd.f32 %v4825, %v4795
      %v4827 = vadd.f32 %v4826, %v4796
      %v4828 = vadd.f32 %v4827, %v4797
      %v4829 = vadd.f32 %v4828, %v4798
      %v4830 = vadd.f32 %v4829, %v4799
      %v4831 = vadd.f32 %v4830, %v4800
      %v4832 = vadd.f32 %v4831, %v4801
      %v4833 = vadd.f32 %v4832, %v4802
      %v4834 = vadd.f32 %v4833, %v4803
      %v4835 = vadd.f32 %v4834, %v4804
      %v4836 = vadd.f32 %v4835, %v4805
      %v4837 = vadd.f32 %v4836, %v4806
      %v4838 = vadd.f32 %v4837, %v4807
      %v4839 = vadd.f32 %v4838, %v4808
      %v4840 = vadd.f32 %v4839, %v4809
      %v4841 = vadd.f32 %v4840, %v4810
      %v4842 = vrot.slane %v4841, 4
      %v4843 = vadd.f32 %v4841, %v4842
      %v4844 = vrot.slane %v4843, 2
      %v4845 = vadd.f32 %v4843, %v4844
      %v4846 = vrot.slane %v4845, 1
      %v4847 = vadd.f32 %v4845, %v4846
      %4848 = vst [vmem:[%s214] sm:$0x1] %v4847
      %p4849 = scmp.lt.s32.totalorder %s16, 1
      %s4850 = scalar_select %p4849, %s16, 1
      %s4851 = smul.addr %s4850, 32
      %s4852 = smul.addr %s4851, 4
      %s4853 = scalar_lea.vmem %s2, %s4852
      %p4854 = scmp.lt.s32.totalorder %s16, 1
      %s4855 = scalar_select %p4854, %s16, 1
      %s4856 = scalar_lea.vmem %s3, %s4855
      %p4857 = scmp.lt.s32.totalorder %s16, 1
      %s4858 = scalar_select %p4857, %s16, 1
      %s4859 = scalar_lea.vmem %s4, %s4858
      // Predicated region
      $region29: #{double_conv_forward.3} parent=27 // pred_check
        %p4860 = pneg %p81
      $region30: #{double_conv_forward.3} parent=27 // pred_check_branch
        %4862 = sbr.rel (%p4860) target = $region32
      $region31: #{double_conv_forward.3} parent=27 // pred_region
        _
      $region32: #{double_conv_forward.3} parent=27 // pred_fallthru
        _
      // Predicated region
      $region33: #{double_conv_forward.3} parent=27 // pred_check
        %p4863 = pneg %p107
      $region34: #{double_conv_forward.3} parent=27 // pred_check_branch
        %4865 = sbr.rel (%p4863) target = $region36
      $region35: #{double_conv_forward.3} parent=27 // pred_region
        _
      $region36: #{double_conv_forward.3} parent=27 // pred_fallthru
        _
      // Predicated region
      $region37: #{double_conv_forward.3} parent=27 // pred_check
        %p4866 = pneg %p133
      $region38: #{double_conv_forward.3} parent=27 // pred_check_branch
        %4868 = sbr.rel (%p4866) target = $region40
      $region39: #{double_conv_forward.3} parent=27 // pred_region
        _
      $region40: #{double_conv_forward.3} parent=27 // pred_fallthru
        _
    $region28: #{double_conv_forward.3} parent=5 // pred_fallthru
      _
    %p4869 = scmp.le.s32.totalorder 2, %s11
    // Predicated region
    $region41: #{double_conv_forward.3} parent=5 // pred_check
      %p4870 = pneg %p4869
    $region42: #{double_conv_forward.3} parent=5 // pred_check_branch
      %4872 = sbr.rel (%p4870) target = $region44
    $region43: #{double_conv_forward.3} parent=5 // pred_region
      %s4873 = ssub.s32 %s11, 2
      // Predicated region
      $region45: #{double_conv_forward.3} parent=43 // pred_check
        %p4874 = pneg %p87
      $region46: #{double_conv_forward.3} parent=43 // pred_check_branch
        %4876 = sbr.rel (%p4874) target = $region48
      $region47: #{double_conv_forward.3} parent=43 // pred_region
        %p4877 = scmp.lt.s32.totalorder %s17, 1
        %s4878 = scalar_select %p4877, %s17, 1
        %s4879 = smul.addr %s4878, 32
        %s4880 = smul.addr %s4879, 4
        %s4881 = scalar_lea.vmem %s2, %s4880
      $region48: #{double_conv_forward.3} parent=43 // pred_fallthru
        _
      // Predicated region
      $region49: #{double_conv_forward.3} parent=43 // pred_check
        %p4882 = pneg %p113
      $region50: #{double_conv_forward.3} parent=43 // pred_check_branch
        %4884 = sbr.rel (%p4882) target = $region52
      $region51: #{double_conv_forward.3} parent=43 // pred_region
        %p4885 = scmp.lt.s32.totalorder %s17, 1
        %s4886 = scalar_select %p4885, %s17, 1
        %s4887 = scalar_lea.vmem %s3, %s4886
      $region52: #{double_conv_forward.3} parent=43 // pred_fallthru
        _
      // Predicated region
      $region53: #{double_conv_forward.3} parent=43 // pred_check
        %p4888 = pneg %p139
      $region54: #{double_conv_forward.3} parent=43 // pred_check_branch
        %4890 = sbr.rel (%p4888) target = $region56
      $region55: #{double_conv_forward.3} parent=43 // pred_region
        %p4891 = scmp.lt.s32.totalorder %s17, 1
        %s4892 = scalar_select %p4891, %s17, 1
        %s4893 = scalar_lea.vmem %s4, %s4892
      $region56: #{double_conv_forward.3} parent=43 // pred_fallthru
        _
    $region44: #{double_conv_forward.3} parent=5 // pred_fallthru
      _
  $region6: #{double_conv_forward.3} parent=0 // loop_footer
    %s15 = sadd.s32 1, %s11
  $region7: #{double_conv_forward.3} parent=0 // loop_footer_branch
    %10 = sbr.rel target = $region3
  $region8: #{double_conv_forward.3} parent=0 // loop_exit
    _

// kernel: double_conv_forward.4
$region0: #{double_conv_forward.4}
  #allocation0 [shape = 'u32[]', space=smem, size = 0x4, offset = 0x4, fixed_abs, tag = 'smem constant byte address 0x4 - core index']
  #allocation1 [shape = 'u32[144,128]{1,0:T(1,128)}', space=vmem, size = 0x12000, scoped, tag = 'internal scratch']
  #allocation2 [shape = 'bf16[18,18,128]{2,1,0:T(8,128)(2,1)}', space=vmem, size = 0x1b000, scoped, tag = 'scratch operand']
  #allocation3 [shape = 'bf16[256,1152]{1,0:T(16,128)(2,1)}', space=vmem, size = 0x90000, scoped, tag = 'scratch operand']
  %s0 = inlined_call_operand.vmem [shape: bf16[2,256,128], index: 0, kind: input, shape index: {}]
  %s1 = inlined_call_operand.vmem [shape: f32[1,128], index: 1, kind: input, shape index: {}]
  %s2 = inlined_call_operand.vmem [shape: f32[1,128], index: 2, kind: input, shape index: {}]
  %s3 = inlined_call_operand.vmem [shape: bf16[1152,128], index: 3, kind: input, shape index: {}]
  %s4 = inlined_call_operand.vmem [shape: bf16[2,256,128], index: 4, kind: output, shape index: {0}]
  %s5 = inlined_call_operand.vmem [shape: f32[2,1,128], index: 5, kind: output, shape index: {1}]
  %s6 = inlined_call_operand.vmem [shape: f32[2,1,128], index: 6, kind: output, shape index: {2}]
  %7 = xla_tuple %s4, %s5, %s6
  %s8 = sld [smem:[#allocation0]]
  $region65: #{double_conv_forward.4} parent=0
    _
  %s10 = ssub.s32 1, %s8
  %s11 = scalar_select 0, %s10, %s8
  loop: start=0, step=1, limit=4
  $region2: #{double_conv_forward.4} parent=0 // loop_pre_header
    _
  $region3: #{double_conv_forward.4} parent=0 // loop_header
    %s13 = sphi 0, %s17
    %p14 = scmp.ge.s32.totalorder %s13, 4
    %s23 = sphi 0, %s25
    %s26 = sphi 0, %s23
    %s27 = sphi 0, %s26
    %s43 = sphi 0, %s27
    %s47 = sphi 0, %s47
    %s49 = sphi 0, %s47
    %s50 = sphi 0, %s49
    %s64 = sphi 0, %s50
    %s68 = sphi 0, %s68
    %s70 = sphi 0, %s68
    %s71 = sphi 0, %s70
    %s85 = sphi 0, %s71
    %s89 = sphi 0, %s89
    %s91 = sphi 0, %s89
    %s92 = sphi 0, %s91
    %s106 = sphi 0, %s92
    %s112 = sphi 0, %s114
    %s115 = sphi 0, %s112
    %s116 = sphi 0, %s115
    %s132 = sphi 0, %s116
    %s138 = sphi 0, %s140
    %s141 = sphi 0, %s138
    %s142 = sphi 0, %s141
    %s158 = sphi 0, %s142
    %s164 = sphi 0, %s166
    %s167 = sphi 0, %s164
    %s168 = sphi 0, %s167
    %s184 = sphi 0, %s168
  $region4: #{double_conv_forward.4} parent=0 // loop_header_branch
    %16 = sbr.rel (%p14) target = $region8
  $region5: #{double_conv_forward.4} parent=0 // loop_body
    %s18 = ssub.s32 %s13, 1
    %s19 = ssub.s32 %s13, 2
    %s20 = sadd.s32 %s13, 1
    %s21 = ssub.s32 %s13, %s20
    %p22 = scmp.eq.s32.totalorder %s21, 0
    %s24 = sadd.s32 %s23, 1
    %s25 = scalar_select %p22, %s23, %s24
    %p28 = pneg %p22
    %p29 = scmp.eq.s32.totalorder %s13, 1
    %p30 = por %p28, %p29
    %p31 = scmp.ne.s32.totalorder %s23, %s26
    %p32 = scmp.eq.s32.totalorder %s13, 0
    %p33 = por %p31, %p32
    %p34 = scmp.ne.s32.totalorder %s23, %s26
    %p35 = scmp.eq.s32.totalorder %s18, 1
    %p36 = por %p34, %p35
    %p37 = scmp.ne.s32.totalorder %s26, %s27
    %p38 = scmp.eq.s32.totalorder %s18, 0
    %p39 = por %p37, %p38
    %p40 = scmp.ne.s32.totalorder %s26, %s27
    %p41 = scmp.eq.s32.totalorder %s19, 1
    %p42 = por %p40, %p41
    %p44 = scmp.ne.s32.totalorder %s27, %s43
    %p45 = scmp.eq.s32.totalorder %s19, 0
    %p46 = por %p44, %p45
    %s48 = sadd.s32 %s47, 1
    %p51 = scmp.eq.s32.totalorder %s13, 1
    %p52 = scmp.ne.s32.totalorder %s47, %s49
    %p53 = scmp.eq.s32.totalorder %s13, 0
    %p54 = por %p52, %p53
    %p55 = scmp.ne.s32.totalorder %s47, %s49
    %p56 = scmp.eq.s32.totalorder %s18, 1
    %p57 = por %p55, %p56
    %p58 = scmp.ne.s32.totalorder %s49, %s50
    %p59 = scmp.eq.s32.totalorder %s18, 0
    %p60 = por %p58, %p59
    %p61 = scmp.ne.s32.totalorder %s49, %s50
    %p62 = scmp.eq.s32.totalorder %s19, 1
    %p63 = por %p61, %p62
    %p65 = scmp.ne.s32.totalorder %s50, %s64
    %p66 = scmp.eq.s32.totalorder %s19, 0
    %p67 = por %p65, %p66
    %s69 = sadd.s32 %s68, 1
    %p72 = scmp.eq.s32.totalorder %s13, 1
    %p73 = scmp.ne.s32.totalorder %s68, %s70
    %p74 = scmp.eq.s32.totalorder %s13, 0
    %p75 = por %p73, %p74
    %p76 = scmp.ne.s32.totalorder %s68, %s70
    %p77 = scmp.eq.s32.totalorder %s18, 1
    %p78 = por %p76, %p77
    %p79 = scmp.ne.s32.totalorder %s70, %s71
    %p80 = scmp.eq.s32.totalorder %s18, 0
    %p81 = por %p79, %p80
    %p82 = scmp.ne.s32.totalorder %s70, %s71
    %p83 = scmp.eq.s32.totalorder %s19, 1
    %p84 = por %p82, %p83
    %p86 = scmp.ne.s32.totalorder %s71, %s85
    %p87 = scmp.eq.s32.totalorder %s19, 0
    %p88 = por %p86, %p87
    %s90 = sadd.s32 %s89, 1
    %p93 = scmp.eq.s32.totalorder %s13, 1
    %p94 = scmp.ne.s32.totalorder %s89, %s91
    %p95 = scmp.eq.s32.totalorder %s13, 0
    %p96 = por %p94, %p95
    %p97 = scmp.ne.s32.totalorder %s89, %s91
    %p98 = scmp.eq.s32.totalorder %s18, 1
    %p99 = por %p97, %p98
    %p100 = scmp.ne.s32.totalorder %s91, %s92
    %p101 = scmp.eq.s32.totalorder %s18, 0
    %p102 = por %p100, %p101
    %p103 = scmp.ne.s32.totalorder %s91, %s92
    %p104 = scmp.eq.s32.totalorder %s19, 1
    %p105 = por %p103, %p104
    %p107 = scmp.ne.s32.totalorder %s92, %s106
    %p108 = scmp.eq.s32.totalorder %s19, 0
    %p109 = por %p107, %p108
    %s110 = ssub.s32 %s13, %s20
    %p111 = scmp.eq.s32.totalorder %s110, 0
    %s113 = sadd.s32 %s112, 1
    %s114 = scalar_select %p111, %s112, %s113
    %p117 = pneg %p111
    %p118 = scmp.eq.s32.totalorder %s13, 1
    %p119 = por %p117, %p118
    %p120 = scmp.ne.s32.totalorder %s112, %s115
    %p121 = scmp.eq.s32.totalorder %s13, 0
    %p122 = por %p120, %p121
    %p123 = scmp.ne.s32.totalorder %s112, %s115
    %p124 = scmp.eq.s32.totalorder %s18, 1
    %p125 = por %p123, %p124
    %p126 = scmp.ne.s32.totalorder %s115, %s116
    %p127 = scmp.eq.s32.totalorder %s18, 0
    %p128 = por %p126, %p127
    %p129 = scmp.ne.s32.totalorder %s115, %s116
    %p130 = scmp.eq.s32.totalorder %s19, 1
    %p131 = por %p129, %p130
    %p133 = scmp.ne.s32.totalorder %s116, %s132
    %p134 = scmp.eq.s32.totalorder %s19, 0
    %p135 = por %p133, %p134
    %s136 = ssub.s32 %s13, %s20
    %p137 = scmp.eq.s32.totalorder %s136, 0
    %s139 = sadd.s32 %s138, 1
    %s140 = scalar_select %p137, %s138, %s139
    %p143 = pneg %p137
    %p144 = scmp.eq.s32.totalorder %s13, 1
    %p145 = por %p143, %p144
    %p146 = scmp.ne.s32.totalorder %s138, %s141
    %p147 = scmp.eq.s32.totalorder %s13, 0
    %p148 = por %p146, %p147
    %p149 = scmp.ne.s32.totalorder %s138, %s141
    %p150 = scmp.eq.s32.totalorder %s18, 1
    %p151 = por %p149, %p150
    %p152 = scmp.ne.s32.totalorder %s141, %s142
    %p153 = scmp.eq.s32.totalorder %s18, 0
    %p154 = por %p152, %p153
    %p155 = scmp.ne.s32.totalorder %s141, %s142
    %p156 = scmp.eq.s32.totalorder %s19, 1
    %p157 = por %p155, %p156
    %p159 = scmp.ne.s32.totalorder %s142, %s158
    %p160 = scmp.eq.s32.totalorder %s19, 0
    %p161 = por %p159, %p160
    %s162 = ssub.s32 %s13, %s20
    %p163 = scmp.eq.s32.totalorder %s162, 0
    %s165 = sadd.s32 %s164, 1
    %s166 = scalar_select %p163, %s164, %s165
    %p169 = pneg %p163
    %p170 = scmp.eq.s32.totalorder %s13, 1
    %p171 = por %p169, %p170
    %p172 = scmp.ne.s32.totalorder %s164, %s167
    %p173 = scmp.eq.s32.totalorder %s13, 0
    %p174 = por %p172, %p173
    %p175 = scmp.ne.s32.totalorder %s164, %s167
    %p176 = scmp.eq.s32.totalorder %s18, 1
    %p177 = por %p175, %p176
    %p178 = scmp.ne.s32.totalorder %s167, %s168
    %p179 = scmp.eq.s32.totalorder %s18, 0
    %p180 = por %p178, %p179
    %p181 = scmp.ne.s32.totalorder %s167, %s168
    %p182 = scmp.eq.s32.totalorder %s19, 1
    %p183 = por %p181, %p182
    %p185 = scmp.ne.s32.totalorder %s168, %s184
    %p186 = scmp.eq.s32.totalorder %s19, 0
    %p187 = por %p185, %p186
    %p188 = scmp.le.s32.totalorder 1, %s13
    %p189 = scmp.lt.s32.totalorder %s13, 3
    %p190 = pnand %p188, %p189
    %p191 = pneg %p190
    // Predicated region
    $region9: #{double_conv_forward.4} parent=5 // pred_check
      _
    $region10: #{double_conv_forward.4} parent=5 // pred_check_branch
      %193 = sbr.rel (%p190) target = $region12
    $region11: #{double_conv_forward.4} parent=5 // pred_region
      %s194 = ssub.s32 %s13, 1
      // Predicated region
      $region13: #{double_conv_forward.4} parent=11 // pred_check
        %p195 = pneg %p60
      $region14: #{double_conv_forward.4} parent=11 // pred_check_branch
        %197 = sbr.rel (%p195) target = $region16
      $region15: #{double_conv_forward.4} parent=11 // pred_region
        _
      $region16: #{double_conv_forward.4} parent=11 // pred_fallthru
        _
      // Predicated region
      $region17: #{double_conv_forward.4} parent=11 // pred_check
        %p198 = pneg %p81
      $region18: #{double_conv_forward.4} parent=11 // pred_check_branch
        %200 = sbr.rel (%p198) target = $region20
      $region19: #{double_conv_forward.4} parent=11 // pred_region
        _
      $region20: #{double_conv_forward.4} parent=11 // pred_fallthru
        _
      // Predicated region
      $region21: #{double_conv_forward.4} parent=11 // pred_check
        %p201 = pneg %p102
      $region22: #{double_conv_forward.4} parent=11 // pred_check_branch
        %203 = sbr.rel (%p201) target = $region24
      $region23: #{double_conv_forward.4} parent=11 // pred_region
        _
      $region24: #{double_conv_forward.4} parent=11 // pred_fallthru
        _
    $region12: #{double_conv_forward.4} parent=5 // pred_fallthru
      _
    %p204 = scmp.lt.s32.totalorder %s13, 2
    // Predicated region
    $region25: #{double_conv_forward.4} parent=5 // pred_check
      %p205 = pneg %p204
    $region26: #{double_conv_forward.4} parent=5 // pred_check_branch
      %207 = sbr.rel (%p205) target = $region28
    $region27: #{double_conv_forward.4} parent=5 // pred_region
      // Predicated region
      $region29: #{double_conv_forward.4} parent=27 // pred_check
        %p208 = pneg %p33
      $region30: #{double_conv_forward.4} parent=27 // pred_check_branch
        %210 = sbr.rel (%p208) target = $region32
      $region31: #{double_conv_forward.4} parent=27 // pred_region
        %p211 = scmp.lt.s32.totalorder %s13, 1
        %s212 = scalar_select %p211, %s13, 1
        %s213 = smul.addr %s212, 32
        %s214 = smul.addr %s213, 4
        %s215 = scalar_lea.vmem %s0, %s214
      $region32: #{double_conv_forward.4} parent=27 // pred_fallthru
        _
    $region28: #{double_conv_forward.4} parent=5 // pred_fallthru
      _
    %p216 = scmp.le.s32.totalorder 1, %s13
    %p217 = scmp.lt.s32.totalorder %s13, 3
    %p218 = pnand %p216, %p217
    %p219 = pneg %p218
    // Predicated region
    $region33: #{double_conv_forward.4} parent=5 // pred_check
      _
    $region34: #{double_conv_forward.4} parent=5 // pred_check_branch
      %221 = sbr.rel (%p218) target = $region36
    $region35: #{double_conv_forward.4} parent=5 // pred_region
      %s222 = ssub.s32 %s13, 1
      %p223 = scmp.lt.s32.totalorder %s18, 1
      %s224 = scalar_select %p223, %s18, 1
      %s225 = smul.addr %s224, 32
      %s226 = smul.addr %s225, 4
      %s227 = scalar_lea.vmem %s0, %s226
      %p228 = pneg %p39
      %p229 = pneg %p36
      %p230 = pneg %p60
      %p231 = pneg %p57
      %p232 = pneg %p81
      %p233 = pneg %p78
      %p234 = pneg %p102
      %p235 = pneg %p99
      %p236 = pneg %p128
      %p237 = pneg %p125
      %p238 = scmp.lt.s32.totalorder %s18, 1
      %s239 = scalar_select %p238, %s18, 1
      %s240 = smul.addr %s239, 32
      %s241 = smul.addr %s240, 4
      %s242 = scalar_lea.vmem %s4, %s241
      %p243 = pneg %p154
      %p244 = pneg %p151
      %p245 = scmp.lt.s32.totalorder %s18, 1
      %s246 = scalar_select %p245, %s18, 1
      %s247 = scalar_lea.vmem %s5, %s246
      %p248 = pneg %p180
      %p249 = pneg %p177
      %p250 = scmp.lt.s32.totalorder %s18, 1
      %s251 = scalar_select %p250, %s18, 1
      %s252 = scalar_lea.vmem %s6, %s251
      %p253 = scmp.lt.s32.totalorder %s18, 1
      %s254 = scalar_select %p253, %s18, 1
      %s255 = smul.addr %s254, 32
      %s256 = smul.addr %s255, 4
      %s257 = scalar_lea.vmem %s0, %s256
      %p258 = scmp.lt.s32.totalorder %s18, 1
      %s259 = scalar_select %p258, %s18, 1
      %s260 = smul.addr %s259, 32
      %s261 = smul.addr %s260, 4
      %s262 = scalar_lea.vmem %s4, %s261
      %p263 = scmp.lt.s32.totalorder %s18, 1
      %s264 = scalar_select %p263, %s18, 1
      %s265 = scalar_lea.vmem %s5, %s264
      %p266 = scmp.lt.s32.totalorder %s18, 1
      %s267 = scalar_select %p266, %s18, 1
      %s268 = scalar_lea.vmem %s6, %s267
      %270 = vst [vmem:[#allocation2] sm:$0xf] 0
      %271 = vst [vmem:[#allocation2 + $0x4] sm:$0xf] 0
      %272 = vst [vmem:[#allocation2 + $0x8] sm:$0x1] 0
      %273 = vst [vmem:[#allocation2 + $0xc] sm:$0xf] 0
      %274 = vst [vmem:[#allocation2 + $0x10] sm:$0xf] 0
      %275 = vst [vmem:[#allocation2 + $0x14] sm:$0x1] 0
      %276 = vst [vmem:[#allocation2 + $0x18] sm:$0xf] 0
      %277 = vst [vmem:[#allocation2 + $0x1c] sm:$0xf] 0
      %278 = vst [vmem:[#allocation2 + $0x20] sm:$0x1] 0
      %279 = vst [vmem:[#allocation2 + $0x24] sm:$0xf] 0
      %280 = vst [vmem:[#allocation2 + $0x28] sm:$0xf] 0
      %281 = vst [vmem:[#allocation2 + $0x2c] sm:$0x1] 0
      %282 = vst [vmem:[#allocation2 + $0x30] sm:$0xf] 0
      %283 = vst [vmem:[#allocation2 + $0x34] sm:$0xf] 0
      %284 = vst [vmem:[#allocation2 + $0x38] sm:$0x1] 0
      %285 = vst [vmem:[#allocation2 + $0x3c] sm:$0xf] 0
      %286 = vst [vmem:[#allocation2 + $0x40] sm:$0xf] 0
      %287 = vst [vmem:[#allocation2 + $0x44] sm:$0x1] 0
      %288 = vst [vmem:[#allocation2 + $0x48] sm:$0xf] 0
      %289 = vst [vmem:[#allocation2 + $0x4c] sm:$0xf] 0
      %290 = vst [vmem:[#allocation2 + $0x50] sm:$0x1] 0
      %291 = vst [vmem:[#allocation2 + $0x54] sm:$0xf] 0
      %292 = vst [vmem:[#allocation2 + $0x58] sm:$0xf] 0
      %293 = vst [vmem:[#allocation2 + $0x5c] sm:$0x1] 0
      %294 = vst [vmem:[#allocation2 + $0x60] sm:$0xf] 0
      %295 = vst [vmem:[#allocation2 + $0x64] sm:$0xf] 0
      %296 = vst [vmem:[#allocation2 + $0x68] sm:$0x1] 0
      %297 = vst [vmem:[#allocation2 + $0x6c] sm:$0xf] 0
      %298 = vst [vmem:[#allocation2 + $0x70] sm:$0xf] 0
      %299 = vst [vmem:[#allocation2 + $0x74] sm:$0x1] 0
      %300 = vst [vmem:[#allocation2 + $0x78] sm:$0xf] 0
      %301 = vst [vmem:[#allocation2 + $0x7c] sm:$0xf] 0
      %302 = vst [vmem:[#allocation2 + $0x80] sm:$0x1] 0
      %303 = vst [vmem:[#allocation2 + $0x84] sm:$0xf] 0
      %304 = vst [vmem:[#allocation2 + $0x88] sm:$0xf] 0
      %305 = vst [vmem:[#allocation2 + $0x8c] sm:$0x1] 0
      %306 = vst [vmem:[#allocation2 + $0x90] sm:$0xf] 0
      %307 = vst [vmem:[#allocation2 + $0x94] sm:$0xf] 0
      %308 = vst [vmem:[#allocation2 + $0x98] sm:$0x1] 0
      %309 = vst [vmem:[#allocation2 + $0x9c] sm:$0xf] 0
      %310 = vst [vmem:[#allocation2 + $0xa0] sm:$0xf] 0
      %311 = vst [vmem:[#allocation2 + $0xa4] sm:$0x1] 0
      %312 = vst [vmem:[#allocation2 + $0xa8] sm:$0xf] 0
      %313 = vst [vmem:[#allocation2 + $0xac] sm:$0xf] 0
      %314 = vst [vmem:[#allocation2 + $0xb0] sm:$0x1] 0
      %315 = vst [vmem:[#allocation2 + $0xb4] sm:$0xf] 0
      %316 = vst [vmem:[#allocation2 + $0xb8] sm:$0xf] 0
      %317 = vst [vmem:[#allocation2 + $0xbc] sm:$0x1] 0
      %318 = vst [vmem:[#allocation2 + $0xc0] sm:$0xf] 0
      %319 = vst [vmem:[#allocation2 + $0xc4] sm:$0xf] 0
      %320 = vst [vmem:[#allocation2 + $0xc8] sm:$0x1] 0
      %321 = vst [vmem:[#allocation2 + $0xcc] sm:$0xf] 0
      %322 = vst [vmem:[#allocation2 + $0xd0] sm:$0xf] 0
      %323 = vst [vmem:[#allocation2 + $0xd4] sm:$0x1] 0
      %v324 = vld [vmem:[%s257] sm:$0xf]
      %v325 = vld [vmem:[%s257 + $0x4] sm:$0xf]
      %v326 = vld [vmem:[%s257 + $0x8] sm:$0xf]
      %v327 = vld [vmem:[%s257 + $0xc] sm:$0xf]
      %v328 = vld [vmem:[%s257 + $0x10] sm:$0xf]
      %v329 = vld [vmem:[%s257 + $0x14] sm:$0xf]
      %v330 = vld [vmem:[%s257 + $0x18] sm:$0xf]
      %v331 = vld [vmem:[%s257 + $0x1c] sm:$0xf]
      %v332 = vld [vmem:[%s257 + $0x20] sm:$0xf]
      %v333 = vld [vmem:[%s257 + $0x24] sm:$0xf]
      %v334 = vld [vmem:[%s257 + $0x28] sm:$0xf]
      %v335 = vld [vmem:[%s257 + $0x2c] sm:$0xf]
      %v336 = vld [vmem:[%s257 + $0x30] sm:$0xf]
      %v337 = vld [vmem:[%s257 + $0x34] sm:$0xf]
      %v338 = vld [vmem:[%s257 + $0x38] sm:$0xf]
      %v339 = vld [vmem:[%s257 + $0x3c] sm:$0xf]
      %v340 = vld [vmem:[%s257 + $0x40] sm:$0xf]
      %v341 = vld [vmem:[%s257 + $0x44] sm:$0xf]
      %v342 = vld [vmem:[%s257 + $0x48] sm:$0xf]
      %v343 = vld [vmem:[%s257 + $0x4c] sm:$0xf]
      %v344 = vld [vmem:[%s257 + $0x50] sm:$0xf]
      %v345 = vld [vmem:[%s257 + $0x54] sm:$0xf]
      %v346 = vld [vmem:[%s257 + $0x58] sm:$0xf]
      %v347 = vld [vmem:[%s257 + $0x5c] sm:$0xf]
      %v348 = vld [vmem:[%s257 + $0x60] sm:$0xf]
      %v349 = vld [vmem:[%s257 + $0x64] sm:$0xf]
      %v350 = vld [vmem:[%s257 + $0x68] sm:$0xf]
      %v351 = vld [vmem:[%s257 + $0x6c] sm:$0xf]
      %v352 = vld [vmem:[%s257 + $0x70] sm:$0xf]
      %v353 = vld [vmem:[%s257 + $0x74] sm:$0xf]
      %v354 = vld [vmem:[%s257 + $0x78] sm:$0xf]
      %v355 = vld [vmem:[%s257 + $0x7c] sm:$0xf]
      %v356 = vunpack.c.l.bf16 %v324
      %v357 = vunpack.c.l.bf16 %v325
      %v358 = vunpack.c.l.bf16 %v326
      %v359 = vunpack.c.l.bf16 %v327
      %v360 = vunpack.c.l.bf16 %v328
      %v361 = vunpack.c.l.bf16 %v329
      %v362 = vunpack.c.l.bf16 %v330
      %v363 = vunpack.c.l.bf16 %v331
      %v364 = vunpack.c.l.bf16 %v332
      %v365 = vunpack.c.l.bf16 %v333
      %v366 = vunpack.c.l.bf16 %v334
      %v367 = vunpack.c.l.bf16 %v335
      %v368 = vunpack.c.l.bf16 %v336
      %v369 = vunpack.c.l.bf16 %v337
      %v370 = vunpack.c.l.bf16 %v338
      %v371 = vunpack.c.l.bf16 %v339
      %v372 = vunpack.c.l.bf16 %v340
      %v373 = vunpack.c.l.bf16 %v341
      %v374 = vunpack.c.l.bf16 %v342
      %v375 = vunpack.c.l.bf16 %v343
      %v376 = vunpack.c.l.bf16 %v344
      %v377 = vunpack.c.l.bf16 %v345
      %v378 = vunpack.c.l.bf16 %v346
      %v379 = vunpack.c.l.bf16 %v347
      %v380 = vunpack.c.l.bf16 %v348
      %v381 = vunpack.c.l.bf16 %v349
      %v382 = vunpack.c.l.bf16 %v350
      %v383 = vunpack.c.l.bf16 %v351
      %v384 = vunpack.c.l.bf16 %v352
      %v385 = vunpack.c.l.bf16 %v353
      %v386 = vunpack.c.l.bf16 %v354
      %v387 = vunpack.c.l.bf16 %v355
      %v388 = vld [vmem:[%s1] sm:$0x1]
      %v390 = vlaneseq
      %v391 = vshrl.u32 %v390, 7
      %v392 = vsub.s32 0, %v391
      %v393 = vrot.slane %v388, %v392
      %v395 = vmul.f32 %v356, %v393
      %v396 = vmul.f32 %v357, %v393
      %v397 = vmul.f32 %v358, %v393
      %v398 = vmul.f32 %v359, %v393
      %v399 = vmul.f32 %v360, %v393
      %v400 = vmul.f32 %v361, %v393
      %v401 = vmul.f32 %v362, %v393
      %v402 = vmul.f32 %v363, %v393
      %v403 = vmul.f32 %v364, %v393
      %v404 = vmul.f32 %v365, %v393
      %v405 = vmul.f32 %v366, %v393
      %v406 = vmul.f32 %v367, %v393
      %v407 = vmul.f32 %v368, %v393
      %v408 = vmul.f32 %v369, %v393
      %v409 = vmul.f32 %v370, %v393
      %v410 = vmul.f32 %v371, %v393
      %v411 = vmul.f32 %v372, %v393
      %v412 = vmul.f32 %v373, %v393
      %v413 = vmul.f32 %v374, %v393
      %v414 = vmul.f32 %v375, %v393
      %v415 = vmul.f32 %v376, %v393
      %v416 = vmul.f32 %v377, %v393
      %v417 = vmul.f32 %v378, %v393
      %v418 = vmul.f32 %v379, %v393
      %v419 = vmul.f32 %v380, %v393
      %v420 = vmul.f32 %v381, %v393
      %v421 = vmul.f32 %v382, %v393
      %v422 = vmul.f32 %v383, %v393
      %v423 = vmul.f32 %v384, %v393
      %v424 = vmul.f32 %v385, %v393
      %v425 = vmul.f32 %v386, %v393
      %v426 = vmul.f32 %v387, %v393
      %v427 = vld [vmem:[%s2] sm:$0x1]
      %v429 = vlaneseq
      %v430 = vshrl.u32 %v429, 7
      %v431 = vsub.s32 0, %v430
      %v432 = vrot.slane %v427, %v431
      %v434 = vadd.f32 %v395, %v432
      %v435 = vadd.f32 %v396, %v432
      %v436 = vadd.f32 %v397, %v432
      %v437 = vadd.f32 %v398, %v432
      %v438 = vadd.f32 %v399, %v432
      %v439 = vadd.f32 %v400, %v432
      %v440 = vadd.f32 %v401, %v432
      %v441 = vadd.f32 %v402, %v432
      %v442 = vadd.f32 %v403, %v432
      %v443 = vadd.f32 %v404, %v432
      %v444 = vadd.f32 %v405, %v432
      %v445 = vadd.f32 %v406, %v432
      %v446 = vadd.f32 %v407, %v432
      %v447 = vadd.f32 %v408, %v432
      %v448 = vadd.f32 %v409, %v432
      %v449 = vadd.f32 %v410, %v432
      %v450 = vadd.f32 %v411, %v432
      %v451 = vadd.f32 %v412, %v432
      %v452 = vadd.f32 %v413, %v432
      %v453 = vadd.f32 %v414, %v432
      %v454 = vadd.f32 %v415, %v432
      %v455 = vadd.f32 %v416, %v432
      %v456 = vadd.f32 %v417, %v432
      %v457 = vadd.f32 %v418, %v432
      %v458 = vadd.f32 %v419, %v432
      %v459 = vadd.f32 %v420, %v432
      %v460 = vadd.f32 %v421, %v432
      %v461 = vadd.f32 %v422, %v432
      %v462 = vadd.f32 %v423, %v432
      %v463 = vadd.f32 %v424, %v432
      %v464 = vadd.f32 %v425, %v432
      %v465 = vadd.f32 %v426, %v432
      %v466 = vmax.f32 %v434, 0.0
      %v467 = vmax.f32 %v435, 0.0
      %v468 = vmax.f32 %v436, 0.0
      %v469 = vmax.f32 %v437, 0.0
      %v470 = vmax.f32 %v438, 0.0
      %v471 = vmax.f32 %v439, 0.0
      %v472 = vmax.f32 %v440, 0.0
      %v473 = vmax.f32 %v441, 0.0
      %v474 = vmax.f32 %v442, 0.0
      %v475 = vmax.f32 %v443, 0.0
      %v476 = vmax.f32 %v444, 0.0
      %v477 = vmax.f32 %v445, 0.0
      %v478 = vmax.f32 %v446, 0.0
      %v479 = vmax.f32 %v447, 0.0
      %v480 = vmax.f32 %v448, 0.0
      %v481 = vmax.f32 %v449, 0.0
      %v482 = vmax.f32 %v450, 0.0
      %v483 = vmax.f32 %v451, 0.0
      %v484 = vmax.f32 %v452, 0.0
      %v485 = vmax.f32 %v453, 0.0
      %v486 = vmax.f32 %v454, 0.0
      %v487 = vmax.f32 %v455, 0.0
      %v488 = vmax.f32 %v456, 0.0
      %v489 = vmax.f32 %v457, 0.0
      %v490 = vmax.f32 %v458, 0.0
      %v491 = vmax.f32 %v459, 0.0
      %v492 = vmax.f32 %v460, 0.0
      %v493 = vmax.f32 %v461, 0.0
      %v494 = vmax.f32 %v462, 0.0
      %v495 = vmax.f32 %v463, 0.0
      %v496 = vmax.f32 %v464, 0.0
      %v497 = vmax.f32 %v465, 0.0
      %v498 = vpack.c.bf16 %v467, %v466
      %v499 = vpack.c.bf16 %v469, %v468
      %v500 = vpack.c.bf16 %v471, %v470
      %v501 = vpack.c.bf16 %v473, %v472
      %v502 = vpack.c.bf16 %v475, %v474
      %v503 = vpack.c.bf16 %v477, %v476
      %v504 = vpack.c.bf16 %v479, %v478
      %v505 = vpack.c.bf16 %v481, %v480
      %v506 = vpack.c.bf16 %v483, %v482
      %v507 = vpack.c.bf16 %v485, %v484
      %v508 = vpack.c.bf16 %v487, %v486
      %v509 = vpack.c.bf16 %v489, %v488
      %v510 = vpack.c.bf16 %v491, %v490
      %v511 = vpack.c.bf16 %v493, %v492
      %v512 = vpack.c.bf16 %v495, %v494
      %v513 = vpack.c.bf16 %v497, %v496
      %v530 = vunpack.c.l.b16 %v498
      %v531 = vunpack.c.h.b16 %v498
      %v532 = vunpack.c.l.b16 %v499
      %v533 = vunpack.c.h.b16 %v499
      %v534 = vunpack.c.l.b16 %v500
      %v535 = vunpack.c.h.b16 %v500
      %v536 = vunpack.c.l.b16 %v501
      %v537 = vunpack.c.h.b16 %v501
      %v538 = vunpack.c.l.b16 %v502
      %v539 = vunpack.c.h.b16 %v502
      %v540 = vunpack.c.l.b16 %v503
      %v541 = vunpack.c.h.b16 %v503
      %v542 = vunpack.c.l.b16 %v504
      %v543 = vunpack.c.h.b16 %v504
      %v544 = vunpack.c.l.b16 %v505
      %v545 = vunpack.c.h.b16 %v505
      %v546 = vunpack.c.l.b16 %v506
      %v547 = vunpack.c.h.b16 %v506
      %v548 = vunpack.c.l.b16 %v507
      %v549 = vunpack.c.h.b16 %v507
      %v550 = vunpack.c.l.b16 %v508
      %v551 = vunpack.c.h.b16 %v508
      %v552 = vunpack.c.l.b16 %v509
      %v553 = vunpack.c.h.b16 %v509
      %v554 = vunpack.c.l.b16 %v510
      %v555 = vunpack.c.h.b16 %v510
      %v556 = vunpack.c.l.b16 %v511
      %v557 = vunpack.c.h.b16 %v511
      %v558 = vunpack.c.l.b16 %v512
      %v559 = vunpack.c.h.b16 %v512
      %v560 = vunpack.c.l.b16 %v513
      %v561 = vunpack.c.h.b16 %v513
      %v562 = vpack.c.b16 %v530, %v530
      %v563 = vpack.c.b16 %v531, %v531
      %v564 = vpack.c.b16 %v532, %v532
      %v565 = vpack.c.b16 %v533, %v533
      %v566 = vpack.c.b16 %v534, %v534
      %v567 = vpack.c.b16 %v535, %v535
      %v568 = vpack.c.b16 %v536, %v536
      %v569 = vpack.c.b16 %v537, %v537
      %v570 = vpack.c.b16 %v538, %v538
      %v571 = vpack.c.b16 %v539, %v539
      %v572 = vpack.c.b16 %v540, %v540
      %v573 = vpack.c.b16 %v541, %v541
      %v574 = vpack.c.b16 %v542, %v542
      %v575 = vpack.c.b16 %v543, %v543
      %v576 = vpack.c.b16 %v544, %v544
      %v577 = vpack.c.b16 %v545, %v545
      %v578 = vpack.c.b16 %v546, %v546
      %v579 = vpack.c.b16 %v547, %v547
      %v580 = vpack.c.b16 %v548, %v548
      %v581 = vpack.c.b16 %v549, %v549
      %v582 = vpack.c.b16 %v550, %v550
      %v583 = vpack.c.b16 %v551, %v551
      %v584 = vpack.c.b16 %v552, %v552
      %v585 = vpack.c.b16 %v553, %v553
      %v586 = vpack.c.b16 %v554, %v554
      %v587 = vpack.c.b16 %v555, %v555
      %v588 = vpack.c.b16 %v556, %v556
      %v589 = vpack.c.b16 %v557, %v557
      %v590 = vpack.c.b16 %v558, %v558
      %v591 = vpack.c.b16 %v559, %v559
      %v592 = vpack.c.b16 %v560, %v560
      %v593 = vpack.c.b16 %v561, %v561
      %vm594 = vsmask.f32 256
      %vm595 = vsmask.f32 4368
      %vm596 = vmor %vm594, %vm595
      %v598 = vshrl.u32 %v562, 16
      %v600 = vrot.slane %v598, 7
      %v601 = vshll.u32 %v562, 16
      %v603 = vor.u32 %v600, %v601
      %v604 = vrot.slane %v600, 4
      %v606 = vshrl.u32 %v563, 16
      %v608 = vrot.slane %v606, 7
      %v609 = vshll.u32 %v563, 16
      %v611 = vor.u32 %v608, %v609
      %v612 = vsel %vm596, %v604, %v611
      %v613 = vrot.slane %v608, 4
      %v615 = vshrl.u32 %v564, 16
      %v617 = vrot.slane %v615, 7
      %v618 = vshll.u32 %v564, 16
      %v620 = vor.u32 %v617, %v618
      %v621 = vrot.slane %v617, 4
      %v623 = vshrl.u32 %v565, 16
      %v625 = vrot.slane %v623, 7
      %v626 = vshll.u32 %v565, 16
      %v628 = vor.u32 %v625, %v626
      %v629 = vsel %vm596, %v621, %v628
      %v630 = vrot.slane %v625, 4
      %v632 = vshrl.u32 %v566, 16
      %v634 = vrot.slane %v632, 7
      %v635 = vshll.u32 %v566, 16
      %v637 = vor.u32 %v634, %v635
      %v638 = vrot.slane %v634, 4
      %v640 = vshrl.u32 %v567, 16
      %v642 = vrot.slane %v640, 7
      %v643 = vshll.u32 %v567, 16
      %v645 = vor.u32 %v642, %v643
      %v646 = vsel %vm596, %v638, %v645
      %v647 = vrot.slane %v642, 4
      %v649 = vshrl.u32 %v568, 16
      %v651 = vrot.slane %v649, 7
      %v652 = vshll.u32 %v568, 16
      %v654 = vor.u32 %v651, %v652
      %v655 = vrot.slane %v651, 4
      %v657 = vshrl.u32 %v569, 16
      %v659 = vrot.slane %v657, 7
      %v660 = vshll.u32 %v569, 16
      %v662 = vor.u32 %v659, %v660
      %v663 = vsel %vm596, %v655, %v662
      %v664 = vrot.slane %v659, 4
      %v666 = vshrl.u32 %v570, 16
      %v668 = vrot.slane %v666, 7
      %v669 = vshll.u32 %v570, 16
      %v671 = vor.u32 %v668, %v669
      %v672 = vrot.slane %v668, 4
      %v674 = vshrl.u32 %v571, 16
      %v676 = vrot.slane %v674, 7
      %v677 = vshll.u32 %v571, 16
      %v679 = vor.u32 %v676, %v677
      %v680 = vsel %vm596, %v672, %v679
      %v681 = vrot.slane %v676, 4
      %v683 = vshrl.u32 %v572, 16
      %v685 = vrot.slane %v683, 7
      %v686 = vshll.u32 %v572, 16
      %v688 = vor.u32 %v685, %v686
      %v689 = vrot.slane %v685, 4
      %v691 = vshrl.u32 %v573, 16
      %v693 = vrot.slane %v691, 7
      %v694 = vshll.u32 %v573, 16
      %v696 = vor.u32 %v693, %v694
      %v697 = vsel %vm596, %v689, %v696
      %v698 = vrot.slane %v693, 4
      %v700 = vshrl.u32 %v574, 16
      %v702 = vrot.slane %v700, 7
      %v703 = vshll.u32 %v574, 16
      %v705 = vor.u32 %v702, %v703
      %v706 = vrot.slane %v702, 4
      %v708 = vshrl.u32 %v575, 16
      %v710 = vrot.slane %v708, 7
      %v711 = vshll.u32 %v575, 16
      %v713 = vor.u32 %v710, %v711
      %v714 = vsel %vm596, %v706, %v713
      %v715 = vrot.slane %v710, 4
      %v717 = vshrl.u32 %v576, 16
      %v719 = vrot.slane %v717, 7
      %v720 = vshll.u32 %v576, 16
      %v722 = vor.u32 %v719, %v720
      %v723 = vrot.slane %v719, 4
      %v725 = vshrl.u32 %v577, 16
      %v727 = vrot.slane %v725, 7
      %v728 = vshll.u32 %v577, 16
      %v730 = vor.u32 %v727, %v728
      %v731 = vsel %vm596, %v723, %v730
      %v732 = vrot.slane %v727, 4
      %v734 = vshrl.u32 %v578, 16
      %v736 = vrot.slane %v734, 7
      %v737 = vshll.u32 %v578, 16
      %v739 = vor.u32 %v736, %v737
      %v740 = vrot.slane %v736, 4
      %v742 = vshrl.u32 %v579, 16
      %v744 = vrot.slane %v742, 7
      %v745 = vshll.u32 %v579, 16
      %v747 = vor.u32 %v744, %v745
      %v748 = vsel %vm596, %v740, %v747
      %v749 = vrot.slane %v744, 4
      %v751 = vshrl.u32 %v580, 16
      %v753 = vrot.slane %v751, 7
      %v754 = vshll.u32 %v580, 16
      %v756 = vor.u32 %v753, %v754
      %v757 = vrot.slane %v753, 4
      %v759 = vshrl.u32 %v581, 16
      %v761 = vrot.slane %v759, 7
      %v762 = vshll.u32 %v581, 16
      %v764 = vor.u32 %v761, %v762
      %v765 = vsel %vm596, %v757, %v764
      %v766 = vrot.slane %v761, 4
      %v768 = vshrl.u32 %v582, 16
      %v770 = vrot.slane %v768, 7
      %v771 = vshll.u32 %v582, 16
      %v773 = vor.u32 %v770, %v771
      %v774 = vrot.slane %v770, 4
      %v776 = vshrl.u32 %v583, 16
      %v778 = vrot.slane %v776, 7
      %v779 = vshll.u32 %v583, 16
      %v781 = vor.u32 %v778, %v779
      %v782 = vsel %vm596, %v774, %v781
      %v783 = vrot.slane %v778, 4
      %v785 = vshrl.u32 %v584, 16
      %v787 = vrot.slane %v785, 7
      %v788 = vshll.u32 %v584, 16
      %v790 = vor.u32 %v787, %v788
      %v791 = vrot.slane %v787, 4
      %v793 = vshrl.u32 %v585, 16
      %v795 = vrot.slane %v793, 7
      %v796 = vshll.u32 %v585, 16
      %v798 = vor.u32 %v795, %v796
      %v799 = vsel %vm596, %v791, %v798
      %v800 = vrot.slane %v795, 4
      %v802 = vshrl.u32 %v586, 16
      %v804 = vrot.slane %v802, 7
      %v805 = vshll.u32 %v586, 16
      %v807 = vor.u32 %v804, %v805
      %v808 = vrot.slane %v804, 4
      %v810 = vshrl.u32 %v587, 16
      %v812 = vrot.slane %v810, 7
      %v813 = vshll.u32 %v587, 16
      %v815 = vor.u32 %v812, %v813
      %v816 = vsel %vm596, %v808, %v815
      %v817 = vrot.slane %v812, 4
      %v819 = vshrl.u32 %v588, 16
      %v821 = vrot.slane %v819, 7
      %v822 = vshll.u32 %v588, 16
      %v824 = vor.u32 %v821, %v822
      %v825 = vrot.slane %v821, 4
      %v827 = vshrl.u32 %v589, 16
      %v829 = vrot.slane %v827, 7
      %v830 = vshll.u32 %v589, 16
      %v832 = vor.u32 %v829, %v830
      %v833 = vsel %vm596, %v825, %v832
      %v834 = vrot.slane %v829, 4
      %v836 = vshrl.u32 %v590, 16
      %v838 = vrot.slane %v836, 7
      %v839 = vshll.u32 %v590, 16
      %v841 = vor.u32 %v838, %v839
      %v842 = vrot.slane %v838, 4
      %v844 = vshrl.u32 %v591, 16
      %v846 = vrot.slane %v844, 7
      %v847 = vshll.u32 %v591, 16
      %v849 = vor.u32 %v846, %v847
      %v850 = vsel %vm596, %v842, %v849
      %v851 = vrot.slane %v846, 4
      %v853 = vshrl.u32 %v592, 16
      %v855 = vrot.slane %v853, 7
      %v856 = vshll.u32 %v592, 16
      %v858 = vor.u32 %v855, %v856
      %v859 = vrot.slane %v855, 4
      %v861 = vshrl.u32 %v593, 16
      %v863 = vrot.slane %v861, 7
      %v864 = vshll.u32 %v593, 16
      %v866 = vor.u32 %v863, %v864
      %v867 = vsel %vm596, %v859, %v866
      %v868 = vrot.slane %v863, 4
      %s917 = scalar_lea.vmem [#allocation2], 12
      %vm918 = vcmask 1043456
      %vm919 = vsmask.f32 7938
      %vm920 = vmand %vm918, %vm919
      %v921 = vld [vmem:[%s917] sm:$0xf]
      %v922 = vsel %vm920, %v603, %v921
      %923 = vst [vmem:[%s917] sm:$0xf] %v922
      %924 = vst [vmem:[%s917 + $0x4] sm:$0xf] %v612
      %vm925 = vcmask 1040384
      %vm926 = vmand %vm925, %vm594
      %v927 = vld [vmem:[%s917 + $0x8] sm:$0x1]
      %v928 = vsel %vm926, %v613, %v927
      %929 = vst [vmem:[%s917 + $0x8] sm:$0x1] %v928
      %v930 = vld [vmem:[%s917 + $0xc] sm:$0xf]
      %v931 = vsel %vm920, %v620, %v930
      %932 = vst [vmem:[%s917 + $0xc] sm:$0xf] %v931
      %933 = vst [vmem:[%s917 + $0x10] sm:$0xf] %v629
      %v934 = vld [vmem:[%s917 + $0x14] sm:$0x1]
      %v935 = vsel %vm926, %v630, %v934
      %936 = vst [vmem:[%s917 + $0x14] sm:$0x1] %v935
      %v937 = vld [vmem:[%s917 + $0x18] sm:$0xf]
      %v938 = vsel %vm920, %v637, %v937
      %939 = vst [vmem:[%s917 + $0x18] sm:$0xf] %v938
      %940 = vst [vmem:[%s917 + $0x1c] sm:$0xf] %v646
      %v941 = vld [vmem:[%s917 + $0x20] sm:$0x1]
      %v942 = vsel %vm926, %v647, %v941
      %943 = vst [vmem:[%s917 + $0x20] sm:$0x1] %v942
      %v944 = vld [vmem:[%s917 + $0x24] sm:$0xf]
      %v945 = vsel %vm920, %v654, %v944
      %946 = vst [vmem:[%s917 + $0x24] sm:$0xf] %v945
      %947 = vst [vmem:[%s917 + $0x28] sm:$0xf] %v663
      %v948 = vld [vmem:[%s917 + $0x2c] sm:$0x1]
      %v949 = vsel %vm926, %v664, %v948
      %950 = vst [vmem:[%s917 + $0x2c] sm:$0x1] %v949
      %v951 = vld [vmem:[%s917 + $0x30] sm:$0xf]
      %v952 = vsel %vm920, %v671, %v951
      %953 = vst [vmem:[%s917 + $0x30] sm:$0xf] %v952
      %954 = vst [vmem:[%s917 + $0x34] sm:$0xf] %v680
      %v955 = vld [vmem:[%s917 + $0x38] sm:$0x1]
      %v956 = vsel %vm926, %v681, %v955
      %957 = vst [vmem:[%s917 + $0x38] sm:$0x1] %v956
      %v958 = vld [vmem:[%s917 + $0x3c] sm:$0xf]
      %v959 = vsel %vm920, %v688, %v958
      %960 = vst [vmem:[%s917 + $0x3c] sm:$0xf] %v959
      %961 = vst [vmem:[%s917 + $0x40] sm:$0xf] %v697
      %v962 = vld [vmem:[%s917 + $0x44] sm:$0x1]
      %v963 = vsel %vm926, %v698, %v962
      %964 = vst [vmem:[%s917 + $0x44] sm:$0x1] %v963
      %v965 = vld [vmem:[%s917 + $0x48] sm:$0xf]
      %v966 = vsel %vm920, %v705, %v965
      %967 = vst [vmem:[%s917 + $0x48] sm:$0xf] %v966
      %968 = vst [vmem:[%s917 + $0x4c] sm:$0xf] %v714
      %v969 = vld [vmem:[%s917 + $0x50] sm:$0x1]
      %v970 = vsel %vm926, %v715, %v969
      %971 = vst [vmem:[%s917 + $0x50] sm:$0x1] %v970
      %v972 = vld [vmem:[%s917 + $0x54] sm:$0xf]
      %v973 = vsel %vm920, %v722, %v972
      %974 = vst [vmem:[%s917 + $0x54] sm:$0xf] %v973
      %975 = vst [vmem:[%s917 + $0x58] sm:$0xf] %v731
      %v976 = vld [vmem:[%s917 + $0x5c] sm:$0x1]
      %v977 = vsel %vm926, %v732, %v976
      %978 = vst [vmem:[%s917 + $0x5c] sm:$0x1] %v977
      %v979 = vld [vmem:[%s917 + $0x60] sm:$0xf]
      %v980 = vsel %vm920, %v739, %v979
      %981 = vst [vmem:[%s917 + $0x60] sm:$0xf] %v980
      %982 = vst [vmem:[%s917 + $0x64] sm:$0xf] %v748
      %v983 = vld [vmem:[%s917 + $0x68] sm:$0x1]
      %v984 = vsel %vm926, %v749, %v983
      %985 = vst [vmem:[%s917 + $0x68] sm:$0x1] %v984
      %v986 = vld [vmem:[%s917 + $0x6c] sm:$0xf]
      %v987 = vsel %vm920, %v756, %v986
      %988 = vst [vmem:[%s917 + $0x6c] sm:$0xf] %v987
      %989 = vst [vmem:[%s917 + $0x70] sm:$0xf] %v765
      %v990 = vld [vmem:[%s917 + $0x74] sm:$0x1]
      %v991 = vsel %vm926, %v766, %v990
      %992 = vst [vmem:[%s917 + $0x74] sm:$0x1] %v991
      %v993 = vld [vmem:[%s917 + $0x78] sm:$0xf]
      %v994 = vsel %vm920, %v773, %v993
      %995 = vst [vmem:[%s917 + $0x78] sm:$0xf] %v994
      %996 = vst [vmem:[%s917 + $0x7c] sm:$0xf] %v782
      %v997 = vld [vmem:[%s917 + $0x80] sm:$0x1]
      %v998 = vsel %vm926, %v783, %v997
      %999 = vst [vmem:[%s917 + $0x80] sm:$0x1] %v998
      %v1000 = vld [vmem:[%s917 + $0x84] sm:$0xf]
      %v1001 = vsel %vm920, %v790, %v1000
      %1002 = vst [vmem:[%s917 + $0x84] sm:$0xf] %v1001
      %1003 = vst [vmem:[%s917 + $0x88] sm:$0xf] %v799
      %v1004 = vld [vmem:[%s917 + $0x8c] sm:$0x1]
      %v1005 = vsel %vm926, %v800, %v1004
      %1006 = vst [vmem:[%s917 + $0x8c] sm:$0x1] %v1005
      %v1007 = vld [vmem:[%s917 + $0x90] sm:$0xf]
      %v1008 = vsel %vm920, %v807, %v1007
      %1009 = vst [vmem:[%s917 + $0x90] sm:$0xf] %v1008
      %1010 = vst [vmem:[%s917 + $0x94] sm:$0xf] %v816
      %v1011 = vld [vmem:[%s917 + $0x98] sm:$0x1]
      %v1012 = vsel %vm926, %v817, %v1011
      %1013 = vst [vmem:[%s917 + $0x98] sm:$0x1] %v1012
      %v1014 = vld [vmem:[%s917 + $0x9c] sm:$0xf]
      %v1015 = vsel %vm920, %v824, %v1014
      %1016 = vst [vmem:[%s917 + $0x9c] sm:$0xf] %v1015
      %1017 = vst [vmem:[%s917 + $0xa0] sm:$0xf] %v833
      %v1018 = vld [vmem:[%s917 + $0xa4] sm:$0x1]
      %v1019 = vsel %vm926, %v834, %v1018
      %1020 = vst [vmem:[%s917 + $0xa4] sm:$0x1] %v1019
      %v1021 = vld [vmem:[%s917 + $0xa8] sm:$0xf]
      %v1022 = vsel %vm920, %v841, %v1021
      %1023 = vst [vmem:[%s917 + $0xa8] sm:$0xf] %v1022
      %1024 = vst [vmem:[%s917 + $0xac] sm:$0xf] %v850
      %v1025 = vld [vmem:[%s917 + $0xb0] sm:$0x1]
      %v1026 = vsel %vm926, %v851, %v1025
      %1027 = vst [vmem:[%s917 + $0xb0] sm:$0x1] %v1026
      %v1028 = vld [vmem:[%s917 + $0xb4] sm:$0xf]
      %v1029 = vsel %vm920, %v858, %v1028
      %1030 = vst [vmem:[%s917 + $0xb4] sm:$0xf] %v1029
      %1031 = vst [vmem:[%s917 + $0xb8] sm:$0xf] %v867
      %v1032 = vld [vmem:[%s917 + $0xbc] sm:$0x1]
      %v1033 = vsel %vm926, %v868, %v1032
      %1034 = vst [vmem:[%s917 + $0xbc] sm:$0x1] %v1033
      %v1035 = vld [vmem:[#allocation2] sm:$0xf]
      %v1036 = vld [vmem:[#allocation2 + $0x4] sm:$0xf]
      %v1037 = vld [vmem:[#allocation2 + $0xc] sm:$0xf]
      %v1038 = vld [vmem:[#allocation2 + $0x10] sm:$0xf]
      %v1039 = vld [vmem:[#allocation2 + $0x18] sm:$0xf]
      %v1040 = vld [vmem:[#allocation2 + $0x1c] sm:$0xf]
      %v1041 = vld [vmem:[#allocation2 + $0x24] sm:$0xf]
      %v1042 = vld [vmem:[#allocation2 + $0x28] sm:$0xf]
      %v1043 = vld [vmem:[#allocation2 + $0x30] sm:$0xf]
      %v1044 = vld [vmem:[#allocation2 + $0x34] sm:$0xf]
      %v1045 = vld [vmem:[#allocation2 + $0x3c] sm:$0xf]
      %v1046 = vld [vmem:[#allocation2 + $0x40] sm:$0xf]
      %v1047 = vld [vmem:[#allocation2 + $0x48] sm:$0xf]
      %v1048 = vld [vmem:[#allocation2 + $0x4c] sm:$0xf]
      %v1049 = vld [vmem:[#allocation2 + $0x54] sm:$0xf]
      %v1050 = vld [vmem:[#allocation2 + $0x58] sm:$0xf]
      %v1051 = vld [vmem:[#allocation2 + $0x60] sm:$0xf]
      %v1052 = vld [vmem:[#allocation2 + $0x64] sm:$0xf]
      %v1053 = vld [vmem:[#allocation2 + $0x6c] sm:$0xf]
      %v1054 = vld [vmem:[#allocation2 + $0x70] sm:$0xf]
      %v1055 = vld [vmem:[#allocation2 + $0x78] sm:$0xf]
      %v1056 = vld [vmem:[#allocation2 + $0x7c] sm:$0xf]
      %v1057 = vld [vmem:[#allocation2 + $0x84] sm:$0xf]
      %v1058 = vld [vmem:[#allocation2 + $0x88] sm:$0xf]
      %v1059 = vld [vmem:[#allocation2 + $0x90] sm:$0xf]
      %v1060 = vld [vmem:[#allocation2 + $0x94] sm:$0xf]
      %v1061 = vld [vmem:[#allocation2 + $0x9c] sm:$0xf]
      %v1062 = vld [vmem:[#allocation2 + $0xa0] sm:$0xf]
      %v1063 = vld [vmem:[#allocation2 + $0xa8] sm:$0xf]
      %v1064 = vld [vmem:[#allocation2 + $0xac] sm:$0xf]
      %v1065 = vld [vmem:[#allocation2 + $0xb4] sm:$0xf]
      %v1066 = vld [vmem:[#allocation2 + $0xb8] sm:$0xf]
      %v1099 = vunpack.c.l.b16 %v1035
      %v1100 = vunpack.c.l.b16 %v1036
      %v1101 = vunpack.c.l.b16 %v1037
      %v1102 = vunpack.c.l.b16 %v1038
      %v1103 = vunpack.c.l.b16 %v1039
      %v1104 = vunpack.c.l.b16 %v1040
      %v1105 = vunpack.c.l.b16 %v1041
      %v1106 = vunpack.c.l.b16 %v1042
      %v1107 = vunpack.c.l.b16 %v1043
      %v1108 = vunpack.c.l.b16 %v1044
      %v1109 = vunpack.c.l.b16 %v1045
      %v1110 = vunpack.c.l.b16 %v1046
      %v1111 = vunpack.c.l.b16 %v1047
      %v1112 = vunpack.c.l.b16 %v1048
      %v1113 = vunpack.c.l.b16 %v1049
      %v1114 = vunpack.c.l.b16 %v1050
      %v1115 = vunpack.c.l.b16 %v1051
      %v1116 = vunpack.c.l.b16 %v1052
      %v1117 = vunpack.c.l.b16 %v1053
      %v1118 = vunpack.c.l.b16 %v1054
      %v1119 = vunpack.c.l.b16 %v1055
      %v1120 = vunpack.c.l.b16 %v1056
      %v1121 = vunpack.c.l.b16 %v1057
      %v1122 = vunpack.c.l.b16 %v1058
      %v1123 = vunpack.c.l.b16 %v1059
      %v1124 = vunpack.c.l.b16 %v1060
      %v1125 = vunpack.c.l.b16 %v1061
      %v1126 = vunpack.c.l.b16 %v1062
      %v1127 = vunpack.c.l.b16 %v1063
      %v1128 = vunpack.c.l.b16 %v1064
      %v1129 = vunpack.c.l.b16 %v1065
      %v1130 = vunpack.c.l.b16 %v1066
      %v1131 = vpack.c.b16 %v1100, %v1099
      %v1132 = vpack.c.b16 %v1102, %v1101
      %v1133 = vpack.c.b16 %v1104, %v1103
      %v1134 = vpack.c.b16 %v1106, %v1105
      %v1135 = vpack.c.b16 %v1108, %v1107
      %v1136 = vpack.c.b16 %v1110, %v1109
      %v1137 = vpack.c.b16 %v1112, %v1111
      %v1138 = vpack.c.b16 %v1114, %v1113
      %v1139 = vpack.c.b16 %v1116, %v1115
      %v1140 = vpack.c.b16 %v1118, %v1117
      %v1141 = vpack.c.b16 %v1120, %v1119
      %v1142 = vpack.c.b16 %v1122, %v1121
      %v1143 = vpack.c.b16 %v1124, %v1123
      %v1144 = vpack.c.b16 %v1126, %v1125
      %v1145 = vpack.c.b16 %v1128, %v1127
      %v1146 = vpack.c.b16 %v1130, %v1129
      %1163 = vst [vmem:[#allocation3] sm:$0xff] %v1131
      %1164 = vst [vmem:[#allocation3 + $0x48] sm:$0xff] %v1132
      %1165 = vst [vmem:[#allocation3 + $0x90] sm:$0xff] %v1133
      %1166 = vst [vmem:[#allocation3 + $0xd8] sm:$0xff] %v1134
      %1167 = vst [vmem:[#allocation3 + $0x120] sm:$0xff] %v1135
      %1168 = vst [vmem:[#allocation3 + $0x168] sm:$0xff] %v1136
      %1169 = vst [vmem:[#allocation3 + $0x1b0] sm:$0xff] %v1137
      %1170 = vst [vmem:[#allocation3 + $0x1f8] sm:$0xff] %v1138
      %1171 = vst [vmem:[#allocation3 + $0x240] sm:$0xff] %v1139
      %1172 = vst [vmem:[#allocation3 + $0x288] sm:$0xff] %v1140
      %1173 = vst [vmem:[#allocation3 + $0x2d0] sm:$0xff] %v1141
      %1174 = vst [vmem:[#allocation3 + $0x318] sm:$0xff] %v1142
      %1175 = vst [vmem:[#allocation3 + $0x360] sm:$0xff] %v1143
      %1176 = vst [vmem:[#allocation3 + $0x3a8] sm:$0xff] %v1144
      %1177 = vst [vmem:[#allocation3 + $0x3f0] sm:$0xff] %v1145
      %1178 = vst [vmem:[#allocation3 + $0x438] sm:$0xff] %v1146
      %v1179 = vld [vmem:[#allocation2] sm:$0xf]
      %v1180 = vld [vmem:[#allocation2 + $0x4] sm:$0xf]
      %v1181 = vld [vmem:[#allocation2 + $0x8] sm:$0x1]
      %v1182 = vld [vmem:[#allocation2 + $0xc] sm:$0xf]
      %v1183 = vld [vmem:[#allocation2 + $0x10] sm:$0xf]
      %v1184 = vld [vmem:[#allocation2 + $0x14] sm:$0x1]
      %v1185 = vld [vmem:[#allocation2 + $0x18] sm:$0xf]
      %v1186 = vld [vmem:[#allocation2 + $0x1c] sm:$0xf]
      %v1187 = vld [vmem:[#allocation2 + $0x20] sm:$0x1]
      %v1188 = vld [vmem:[#allocation2 + $0x24] sm:$0xf]
      %v1189 = vld [vmem:[#allocation2 + $0x28] sm:$0xf]
      %v1190 = vld [vmem:[#allocation2 + $0x2c] sm:$0x1]
      %v1191 = vld [vmem:[#allocation2 + $0x30] sm:$0xf]
      %v1192 = vld [vmem:[#allocation2 + $0x34] sm:$0xf]
      %v1193 = vld [vmem:[#allocation2 + $0x38] sm:$0x1]
      %v1194 = vld [vmem:[#allocation2 + $0x3c] sm:$0xf]
      %v1195 = vld [vmem:[#allocation2 + $0x40] sm:$0xf]
      %v1196 = vld [vmem:[#allocation2 + $0x44] sm:$0x1]
      %v1197 = vld [vmem:[#allocation2 + $0x48] sm:$0xf]
      %v1198 = vld [vmem:[#allocation2 + $0x4c] sm:$0xf]
      %v1199 = vld [vmem:[#allocation2 + $0x50] sm:$0x1]
      %v1200 = vld [vmem:[#allocation2 + $0x54] sm:$0xf]
      %v1201 = vld [vmem:[#allocation2 + $0x58] sm:$0xf]
      %v1202 = vld [vmem:[#allocation2 + $0x5c] sm:$0x1]
      %v1203 = vld [vmem:[#allocation2 + $0x60] sm:$0xf]
      %v1204 = vld [vmem:[#allocation2 + $0x64] sm:$0xf]
      %v1205 = vld [vmem:[#allocation2 + $0x68] sm:$0x1]
      %v1206 = vld [vmem:[#allocation2 + $0x6c] sm:$0xf]
      %v1207 = vld [vmem:[#allocation2 + $0x70] sm:$0xf]
      %v1208 = vld [vmem:[#allocation2 + $0x74] sm:$0x1]
      %v1209 = vld [vmem:[#allocation2 + $0x78] sm:$0xf]
      %v1210 = vld [vmem:[#allocation2 + $0x7c] sm:$0xf]
      %v1211 = vld [vmem:[#allocation2 + $0x80] sm:$0x1]
      %v1212 = vld [vmem:[#allocation2 + $0x84] sm:$0xf]
      %v1213 = vld [vmem:[#allocation2 + $0x88] sm:$0xf]
      %v1214 = vld [vmem:[#allocation2 + $0x8c] sm:$0x1]
      %v1215 = vld [vmem:[#allocation2 + $0x90] sm:$0xf]
      %v1216 = vld [vmem:[#allocation2 + $0x94] sm:$0xf]
      %v1217 = vld [vmem:[#allocation2 + $0x98] sm:$0x1]
      %v1218 = vld [vmem:[#allocation2 + $0x9c] sm:$0xf]
      %v1219 = vld [vmem:[#allocation2 + $0xa0] sm:$0xf]
      %v1220 = vld [vmem:[#allocation2 + $0xa4] sm:$0x1]
      %v1221 = vld [vmem:[#allocation2 + $0xa8] sm:$0xf]
      %v1222 = vld [vmem:[#allocation2 + $0xac] sm:$0xf]
      %v1223 = vld [vmem:[#allocation2 + $0xb0] sm:$0x1]
      %v1224 = vld [vmem:[#allocation2 + $0xb4] sm:$0xf]
      %v1225 = vld [vmem:[#allocation2 + $0xb8] sm:$0xf]
      %v1226 = vld [vmem:[#allocation2 + $0xbc] sm:$0x1]
      %vm1227 = vsmask.f32 3328
      %vm1228 = vsmask.f32 7440
      %vm1229 = vmor %vm1227, %vm1228
      %v1231 = vshrl.u32 %v1179, 16
      %v1233 = vrot.slane %v1231, 4
      %v1234 = vshll.u32 %v1179, 16
      %v1236 = vrot.slane %v1234, 5
      %v1237 = vor.u32 %v1233, %v1236
      %v1238 = vrot.slane %v1237, 4
      %v1240 = vshll.u32 %v1180, 16
      %v1242 = vrot.slane %v1240, 5
      %v1243 = vsel %vm1229, %v1238, %v1242
      %v1244 = vshrl.u32 %v1180, 16
      %v1246 = vrot.slane %v1244, 4
      %v1247 = vor.u32 %v1246, %v1242
      %v1248 = vrot.slane %v1247, 4
      %v1250 = vshll.u32 %v1181, 16
      %v1252 = vrot.slane %v1250, 5
      %v1253 = vsel %vm1229, %v1248, %v1252
      %v1255 = vshrl.u32 %v1182, 16
      %v1257 = vrot.slane %v1255, 4
      %v1258 = vshll.u32 %v1182, 16
      %v1260 = vrot.slane %v1258, 5
      %v1261 = vor.u32 %v1257, %v1260
      %v1262 = vrot.slane %v1261, 4
      %v1264 = vshll.u32 %v1183, 16
      %v1266 = vrot.slane %v1264, 5
      %v1267 = vsel %vm1229, %v1262, %v1266
      %v1268 = vshrl.u32 %v1183, 16
      %v1270 = vrot.slane %v1268, 4
      %v1271 = vor.u32 %v1270, %v1266
      %v1272 = vrot.slane %v1271, 4
      %v1274 = vshll.u32 %v1184, 16
      %v1276 = vrot.slane %v1274, 5
      %v1277 = vsel %vm1229, %v1272, %v1276
      %v1279 = vshrl.u32 %v1185, 16
      %v1281 = vrot.slane %v1279, 4
      %v1282 = vshll.u32 %v1185, 16
      %v1284 = vrot.slane %v1282, 5
      %v1285 = vor.u32 %v1281, %v1284
      %v1286 = vrot.slane %v1285, 4
      %v1288 = vshll.u32 %v1186, 16
      %v1290 = vrot.slane %v1288, 5
      %v1291 = vsel %vm1229, %v1286, %v1290
      %v1292 = vshrl.u32 %v1186, 16
      %v1294 = vrot.slane %v1292, 4
      %v1295 = vor.u32 %v1294, %v1290
      %v1296 = vrot.slane %v1295, 4
      %v1298 = vshll.u32 %v1187, 16
      %v1300 = vrot.slane %v1298, 5
      %v1301 = vsel %vm1229, %v1296, %v1300
      %v1303 = vshrl.u32 %v1188, 16
      %v1305 = vrot.slane %v1303, 4
      %v1306 = vshll.u32 %v1188, 16
      %v1308 = vrot.slane %v1306, 5
      %v1309 = vor.u32 %v1305, %v1308
      %v1310 = vrot.slane %v1309, 4
      %v1312 = vshll.u32 %v1189, 16
      %v1314 = vrot.slane %v1312, 5
      %v1315 = vsel %vm1229, %v1310, %v1314
      %v1316 = vshrl.u32 %v1189, 16
      %v1318 = vrot.slane %v1316, 4
      %v1319 = vor.u32 %v1318, %v1314
      %v1320 = vrot.slane %v1319, 4
      %v1322 = vshll.u32 %v1190, 16
      %v1324 = vrot.slane %v1322, 5
      %v1325 = vsel %vm1229, %v1320, %v1324
      %v1327 = vshrl.u32 %v1191, 16
      %v1329 = vrot.slane %v1327, 4
      %v1330 = vshll.u32 %v1191, 16
      %v1332 = vrot.slane %v1330, 5
      %v1333 = vor.u32 %v1329, %v1332
      %v1334 = vrot.slane %v1333, 4
      %v1336 = vshll.u32 %v1192, 16
      %v1338 = vrot.slane %v1336, 5
      %v1339 = vsel %vm1229, %v1334, %v1338
      %v1340 = vshrl.u32 %v1192, 16
      %v1342 = vrot.slane %v1340, 4
      %v1343 = vor.u32 %v1342, %v1338
      %v1344 = vrot.slane %v1343, 4
      %v1346 = vshll.u32 %v1193, 16
      %v1348 = vrot.slane %v1346, 5
      %v1349 = vsel %vm1229, %v1344, %v1348
      %v1351 = vshrl.u32 %v1194, 16
      %v1353 = vrot.slane %v1351, 4
      %v1354 = vshll.u32 %v1194, 16
      %v1356 = vrot.slane %v1354, 5
      %v1357 = vor.u32 %v1353, %v1356
      %v1358 = vrot.slane %v1357, 4
      %v1360 = vshll.u32 %v1195, 16
      %v1362 = vrot.slane %v1360, 5
      %v1363 = vsel %vm1229, %v1358, %v1362
      %v1364 = vshrl.u32 %v1195, 16
      %v1366 = vrot.slane %v1364, 4
      %v1367 = vor.u32 %v1366, %v1362
      %v1368 = vrot.slane %v1367, 4
      %v1370 = vshll.u32 %v1196, 16
      %v1372 = vrot.slane %v1370, 5
      %v1373 = vsel %vm1229, %v1368, %v1372
      %v1375 = vshrl.u32 %v1197, 16
      %v1377 = vrot.slane %v1375, 4
      %v1378 = vshll.u32 %v1197, 16
      %v1380 = vrot.slane %v1378, 5
      %v1381 = vor.u32 %v1377, %v1380
      %v1382 = vrot.slane %v1381, 4
      %v1384 = vshll.u32 %v1198, 16
      %v1386 = vrot.slane %v1384, 5
      %v1387 = vsel %vm1229, %v1382, %v1386
      %v1388 = vshrl.u32 %v1198, 16
      %v1390 = vrot.slane %v1388, 4
      %v1391 = vor.u32 %v1390, %v1386
      %v1392 = vrot.slane %v1391, 4
      %v1394 = vshll.u32 %v1199, 16
      %v1396 = vrot.slane %v1394, 5
      %v1397 = vsel %vm1229, %v1392, %v1396
      %v1399 = vshrl.u32 %v1200, 16
      %v1401 = vrot.slane %v1399, 4
      %v1402 = vshll.u32 %v1200, 16
      %v1404 = vrot.slane %v1402, 5
      %v1405 = vor.u32 %v1401, %v1404
      %v1406 = vrot.slane %v1405, 4
      %v1408 = vshll.u32 %v1201, 16
      %v1410 = vrot.slane %v1408, 5
      %v1411 = vsel %vm1229, %v1406, %v1410
      %v1412 = vshrl.u32 %v1201, 16
      %v1414 = vrot.slane %v1412, 4
      %v1415 = vor.u32 %v1414, %v1410
      %v1416 = vrot.slane %v1415, 4
      %v1418 = vshll.u32 %v1202, 16
      %v1420 = vrot.slane %v1418, 5
      %v1421 = vsel %vm1229, %v1416, %v1420
      %v1423 = vshrl.u32 %v1203, 16
      %v1425 = vrot.slane %v1423, 4
      %v1426 = vshll.u32 %v1203, 16
      %v1428 = vrot.slane %v1426, 5
      %v1429 = vor.u32 %v1425, %v1428
      %v1430 = vrot.slane %v1429, 4
      %v1432 = vshll.u32 %v1204, 16
      %v1434 = vrot.slane %v1432, 5
      %v1435 = vsel %vm1229, %v1430, %v1434
      %v1436 = vshrl.u32 %v1204, 16
      %v1438 = vrot.slane %v1436, 4
      %v1439 = vor.u32 %v1438, %v1434
      %v1440 = vrot.slane %v1439, 4
      %v1442 = vshll.u32 %v1205, 16
      %v1444 = vrot.slane %v1442, 5
      %v1445 = vsel %vm1229, %v1440, %v1444
      %v1447 = vshrl.u32 %v1206, 16
      %v1449 = vrot.slane %v1447, 4
      %v1450 = vshll.u32 %v1206, 16
      %v1452 = vrot.slane %v1450, 5
      %v1453 = vor.u32 %v1449, %v1452
      %v1454 = vrot.slane %v1453, 4
      %v1456 = vshll.u32 %v1207, 16
      %v1458 = vrot.slane %v1456, 5
      %v1459 = vsel %vm1229, %v1454, %v1458
      %v1460 = vshrl.u32 %v1207, 16
      %v1462 = vrot.slane %v1460, 4
      %v1463 = vor.u32 %v1462, %v1458
      %v1464 = vrot.slane %v1463, 4
      %v1466 = vshll.u32 %v1208, 16
      %v1468 = vrot.slane %v1466, 5
      %v1469 = vsel %vm1229, %v1464, %v1468
      %v1471 = vshrl.u32 %v1209, 16
      %v1473 = vrot.slane %v1471, 4
      %v1474 = vshll.u32 %v1209, 16
      %v1476 = vrot.slane %v1474, 5
      %v1477 = vor.u32 %v1473, %v1476
      %v1478 = vrot.slane %v1477, 4
      %v1480 = vshll.u32 %v1210, 16
      %v1482 = vrot.slane %v1480, 5
      %v1483 = vsel %vm1229, %v1478, %v1482
      %v1484 = vshrl.u32 %v1210, 16
      %v1486 = vrot.slane %v1484, 4
      %v1487 = vor.u32 %v1486, %v1482
      %v1488 = vrot.slane %v1487, 4
      %v1490 = vshll.u32 %v1211, 16
      %v1492 = vrot.slane %v1490, 5
      %v1493 = vsel %vm1229, %v1488, %v1492
      %v1495 = vshrl.u32 %v1212, 16
      %v1497 = vrot.slane %v1495, 4
      %v1498 = vshll.u32 %v1212, 16
      %v1500 = vrot.slane %v1498, 5
      %v1501 = vor.u32 %v1497, %v1500
      %v1502 = vrot.slane %v1501, 4
      %v1504 = vshll.u32 %v1213, 16
      %v1506 = vrot.slane %v1504, 5
      %v1507 = vsel %vm1229, %v1502, %v1506
      %v1508 = vshrl.u32 %v1213, 16
      %v1510 = vrot.slane %v1508, 4
      %v1511 = vor.u32 %v1510, %v1506
      %v1512 = vrot.slane %v1511, 4
      %v1514 = vshll.u32 %v1214, 16
      %v1516 = vrot.slane %v1514, 5
      %v1517 = vsel %vm1229, %v1512, %v1516
      %v1519 = vshrl.u32 %v1215, 16
      %v1521 = vrot.slane %v1519, 4
      %v1522 = vshll.u32 %v1215, 16
      %v1524 = vrot.slane %v1522, 5
      %v1525 = vor.u32 %v1521, %v1524
      %v1526 = vrot.slane %v1525, 4
      %v1528 = vshll.u32 %v1216, 16
      %v1530 = vrot.slane %v1528, 5
      %v1531 = vsel %vm1229, %v1526, %v1530
      %v1532 = vshrl.u32 %v1216, 16
      %v1534 = vrot.slane %v1532, 4
      %v1535 = vor.u32 %v1534, %v1530
      %v1536 = vrot.slane %v1535, 4
      %v1538 = vshll.u32 %v1217, 16
      %v1540 = vrot.slane %v1538, 5
      %v1541 = vsel %vm1229, %v1536, %v1540
      %v1543 = vshrl.u32 %v1218, 16
      %v1545 = vrot.slane %v1543, 4
      %v1546 = vshll.u32 %v1218, 16
      %v1548 = vrot.slane %v1546, 5
      %v1549 = vor.u32 %v1545, %v1548
      %v1550 = vrot.slane %v1549, 4
      %v1552 = vshll.u32 %v1219, 16
      %v1554 = vrot.slane %v1552, 5
      %v1555 = vsel %vm1229, %v1550, %v1554
      %v1556 = vshrl.u32 %v1219, 16
      %v1558 = vrot.slane %v1556, 4
      %v1559 = vor.u32 %v1558, %v1554
      %v1560 = vrot.slane %v1559, 4
      %v1562 = vshll.u32 %v1220, 16
      %v1564 = vrot.slane %v1562, 5
      %v1565 = vsel %vm1229, %v1560, %v1564
      %v1567 = vshrl.u32 %v1221, 16
      %v1569 = vrot.slane %v1567, 4
      %v1570 = vshll.u32 %v1221, 16
      %v1572 = vrot.slane %v1570, 5
      %v1573 = vor.u32 %v1569, %v1572
      %v1574 = vrot.slane %v1573, 4
      %v1576 = vshll.u32 %v1222, 16
      %v1578 = vrot.slane %v1576, 5
      %v1579 = vsel %vm1229, %v1574, %v1578
      %v1580 = vshrl.u32 %v1222, 16
      %v1582 = vrot.slane %v1580, 4
      %v1583 = vor.u32 %v1582, %v1578
      %v1584 = vrot.slane %v1583, 4
      %v1586 = vshll.u32 %v1223, 16
      %v1588 = vrot.slane %v1586, 5
      %v1589 = vsel %vm1229, %v1584, %v1588
      %v1591 = vshrl.u32 %v1224, 16
      %v1593 = vrot.slane %v1591, 4
      %v1594 = vshll.u32 %v1224, 16
      %v1596 = vrot.slane %v1594, 5
      %v1597 = vor.u32 %v1593, %v1596
      %v1598 = vrot.slane %v1597, 4
      %v1600 = vshll.u32 %v1225, 16
      %v1602 = vrot.slane %v1600, 5
      %v1603 = vsel %vm1229, %v1598, %v1602
      %v1604 = vshrl.u32 %v1225, 16
      %v1606 = vrot.slane %v1604, 4
      %v1607 = vor.u32 %v1606, %v1602
      %v1608 = vrot.slane %v1607, 4
      %v1610 = vshll.u32 %v1226, 16
      %v1612 = vrot.slane %v1610, 5
      %v1613 = vsel %vm1229, %v1608, %v1612
      %v1614 = vunpack.c.l.b16 %v1243
      %v1615 = vunpack.c.l.b16 %v1253
      %v1616 = vunpack.c.l.b16 %v1267
      %v1617 = vunpack.c.l.b16 %v1277
      %v1618 = vunpack.c.l.b16 %v1291
      %v1619 = vunpack.c.l.b16 %v1301
      %v1620 = vunpack.c.l.b16 %v1315
      %v1621 = vunpack.c.l.b16 %v1325
      %v1622 = vunpack.c.l.b16 %v1339
      %v1623 = vunpack.c.l.b16 %v1349
      %v1624 = vunpack.c.l.b16 %v1363
      %v1625 = vunpack.c.l.b16 %v1373
      %v1626 = vunpack.c.l.b16 %v1387
      %v1627 = vunpack.c.l.b16 %v1397
      %v1628 = vunpack.c.l.b16 %v1411
      %v1629 = vunpack.c.l.b16 %v1421
      %v1630 = vunpack.c.l.b16 %v1435
      %v1631 = vunpack.c.l.b16 %v1445
      %v1632 = vunpack.c.l.b16 %v1459
      %v1633 = vunpack.c.l.b16 %v1469
      %v1634 = vunpack.c.l.b16 %v1483
      %v1635 = vunpack.c.l.b16 %v1493
      %v1636 = vunpack.c.l.b16 %v1507
      %v1637 = vunpack.c.l.b16 %v1517
      %v1638 = vunpack.c.l.b16 %v1531
      %v1639 = vunpack.c.l.b16 %v1541
      %v1640 = vunpack.c.l.b16 %v1555
      %v1641 = vunpack.c.l.b16 %v1565
      %v1642 = vunpack.c.l.b16 %v1579
      %v1643 = vunpack.c.l.b16 %v1589
      %v1644 = vunpack.c.l.b16 %v1603
      %v1645 = vunpack.c.l.b16 %v1613
      %v1646 = vpack.c.b16 %v1615, %v1614
      %v1647 = vpack.c.b16 %v1617, %v1616
      %v1648 = vpack.c.b16 %v1619, %v1618
      %v1649 = vpack.c.b16 %v1621, %v1620
      %v1650 = vpack.c.b16 %v1623, %v1622
      %v1651 = vpack.c.b16 %v1625, %v1624
      %v1652 = vpack.c.b16 %v1627, %v1626
      %v1653 = vpack.c.b16 %v1629, %v1628
      %v1654 = vpack.c.b16 %v1631, %v1630
      %v1655 = vpack.c.b16 %v1633, %v1632
      %v1656 = vpack.c.b16 %v1635, %v1634
      %v1657 = vpack.c.b16 %v1637, %v1636
      %v1658 = vpack.c.b16 %v1639, %v1638
      %v1659 = vpack.c.b16 %v1641, %v1640
      %v1660 = vpack.c.b16 %v1643, %v1642
      %v1661 = vpack.c.b16 %v1645, %v1644
      %1678 = vst [vmem:[#allocation3 + $0x8] sm:$0xff] %v1646
      %1679 = vst [vmem:[#allocation3 + $0x50] sm:$0xff] %v1647
      %1680 = vst [vmem:[#allocation3 + $0x98] sm:$0xff] %v1648
      %1681 = vst [vmem:[#allocation3 + $0xe0] sm:$0xff] %v1649
      %1682 = vst [vmem:[#allocation3 + $0x128] sm:$0xff] %v1650
      %1683 = vst [vmem:[#allocation3 + $0x170] sm:$0xff] %v1651
      %1684 = vst [vmem:[#allocation3 + $0x1b8] sm:$0xff] %v1652
      %1685 = vst [vmem:[#allocation3 + $0x200] sm:$0xff] %v1653
      %1686 = vst [vmem:[#allocation3 + $0x248] sm:$0xff] %v1654
      %1687 = vst [vmem:[#allocation3 + $0x290] sm:$0xff] %v1655
      %1688 = vst [vmem:[#allocation3 + $0x2d8] sm:$0xff] %v1656
      %1689 = vst [vmem:[#allocation3 + $0x320] sm:$0xff] %v1657
      %1690 = vst [vmem:[#allocation3 + $0x368] sm:$0xff] %v1658
      %1691 = vst [vmem:[#allocation3 + $0x3b0] sm:$0xff] %v1659
      %1692 = vst [vmem:[#allocation3 + $0x3f8] sm:$0xff] %v1660
      %1693 = vst [vmem:[#allocation3 + $0x440] sm:$0xff] %v1661
      %v1694 = vld [vmem:[#allocation2] sm:$0xe]
      %v1695 = vld [vmem:[#allocation2 + $0x4] sm:$0xf]
      %v1696 = vld [vmem:[#allocation2 + $0x8] sm:$0x1]
      %v1697 = vld [vmem:[#allocation2 + $0xc] sm:$0xe]
      %v1698 = vld [vmem:[#allocation2 + $0x10] sm:$0xf]
      %v1699 = vld [vmem:[#allocation2 + $0x14] sm:$0x1]
      %v1700 = vld [vmem:[#allocation2 + $0x18] sm:$0xe]
      %v1701 = vld [vmem:[#allocation2 + $0x1c] sm:$0xf]
      %v1702 = vld [vmem:[#allocation2 + $0x20] sm:$0x1]
      %v1703 = vld [vmem:[#allocation2 + $0x24] sm:$0xe]
      %v1704 = vld [vmem:[#allocation2 + $0x28] sm:$0xf]
      %v1705 = vld [vmem:[#allocation2 + $0x2c] sm:$0x1]
      %v1706 = vld [vmem:[#allocation2 + $0x30] sm:$0xe]
      %v1707 = vld [vmem:[#allocation2 + $0x34] sm:$0xf]
      %v1708 = vld [vmem:[#allocation2 + $0x38] sm:$0x1]
      %v1709 = vld [vmem:[#allocation2 + $0x3c] sm:$0xe]
      %v1710 = vld [vmem:[#allocation2 + $0x40] sm:$0xf]
      %v1711 = vld [vmem:[#allocation2 + $0x44] sm:$0x1]
      %v1712 = vld [vmem:[#allocation2 + $0x48] sm:$0xe]
      %v1713 = vld [vmem:[#allocation2 + $0x4c] sm:$0xf]
      %v1714 = vld [vmem:[#allocation2 + $0x50] sm:$0x1]
      %v1715 = vld [vmem:[#allocation2 + $0x54] sm:$0xe]
      %v1716 = vld [vmem:[#allocation2 + $0x58] sm:$0xf]
      %v1717 = vld [vmem:[#allocation2 + $0x5c] sm:$0x1]
      %v1718 = vld [vmem:[#allocation2 + $0x60] sm:$0xe]
      %v1719 = vld [vmem:[#allocation2 + $0x64] sm:$0xf]
      %v1720 = vld [vmem:[#allocation2 + $0x68] sm:$0x1]
      %v1721 = vld [vmem:[#allocation2 + $0x6c] sm:$0xe]
      %v1722 = vld [vmem:[#allocation2 + $0x70] sm:$0xf]
      %v1723 = vld [vmem:[#allocation2 + $0x74] sm:$0x1]
      %v1724 = vld [vmem:[#allocation2 + $0x78] sm:$0xe]
      %v1725 = vld [vmem:[#allocation2 + $0x7c] sm:$0xf]
      %v1726 = vld [vmem:[#allocation2 + $0x80] sm:$0x1]
      %v1727 = vld [vmem:[#allocation2 + $0x84] sm:$0xe]
      %v1728 = vld [vmem:[#allocation2 + $0x88] sm:$0xf]
      %v1729 = vld [vmem:[#allocation2 + $0x8c] sm:$0x1]
      %v1730 = vld [vmem:[#allocation2 + $0x90] sm:$0xe]
      %v1731 = vld [vmem:[#allocation2 + $0x94] sm:$0xf]
      %v1732 = vld [vmem:[#allocation2 + $0x98] sm:$0x1]
      %v1733 = vld [vmem:[#allocation2 + $0x9c] sm:$0xe]
      %v1734 = vld [vmem:[#allocation2 + $0xa0] sm:$0xf]
      %v1735 = vld [vmem:[#allocation2 + $0xa4] sm:$0x1]
      %v1736 = vld [vmem:[#allocation2 + $0xa8] sm:$0xe]
      %v1737 = vld [vmem:[#allocation2 + $0xac] sm:$0xf]
      %v1738 = vld [vmem:[#allocation2 + $0xb0] sm:$0x1]
      %v1739 = vld [vmem:[#allocation2 + $0xb4] sm:$0xe]
      %v1740 = vld [vmem:[#allocation2 + $0xb8] sm:$0xf]
      %v1741 = vld [vmem:[#allocation2 + $0xbc] sm:$0x1]
      %vm1790 = vcmask 1042432
      %vm1791 = vcmask 1046532
      %vm1792 = vmor %vm1790, %vm1791
      %v1793 = vrot.slane %v1694, 5
      %v1794 = vrot.slane %v1793, 4
      %v1795 = vrot.slane %v1695, 5
      %v1796 = vsel %vm1792, %v1794, %v1795
      %v1797 = vrot.slane %v1795, 4
      %v1798 = vrot.slane %v1696, 5
      %v1799 = vsel %vm1792, %v1797, %v1798
      %v1800 = vrot.slane %v1697, 5
      %v1801 = vrot.slane %v1800, 4
      %v1802 = vrot.slane %v1698, 5
      %v1803 = vsel %vm1792, %v1801, %v1802
      %v1804 = vrot.slane %v1802, 4
      %v1805 = vrot.slane %v1699, 5
      %v1806 = vsel %vm1792, %v1804, %v1805
      %v1807 = vrot.slane %v1700, 5
      %v1808 = vrot.slane %v1807, 4
      %v1809 = vrot.slane %v1701, 5
      %v1810 = vsel %vm1792, %v1808, %v1809
      %v1811 = vrot.slane %v1809, 4
      %v1812 = vrot.slane %v1702, 5
      %v1813 = vsel %vm1792, %v1811, %v1812
      %v1814 = vrot.slane %v1703, 5
      %v1815 = vrot.slane %v1814, 4
      %v1816 = vrot.slane %v1704, 5
      %v1817 = vsel %vm1792, %v1815, %v1816
      %v1818 = vrot.slane %v1816, 4
      %v1819 = vrot.slane %v1705, 5
      %v1820 = vsel %vm1792, %v1818, %v1819
      %v1821 = vrot.slane %v1706, 5
      %v1822 = vrot.slane %v1821, 4
      %v1823 = vrot.slane %v1707, 5
      %v1824 = vsel %vm1792, %v1822, %v1823
      %v1825 = vrot.slane %v1823, 4
      %v1826 = vrot.slane %v1708, 5
      %v1827 = vsel %vm1792, %v1825, %v1826
      %v1828 = vrot.slane %v1709, 5
      %v1829 = vrot.slane %v1828, 4
      %v1830 = vrot.slane %v1710, 5
      %v1831 = vsel %vm1792, %v1829, %v1830
      %v1832 = vrot.slane %v1830, 4
      %v1833 = vrot.slane %v1711, 5
      %v1834 = vsel %vm1792, %v1832, %v1833
      %v1835 = vrot.slane %v1712, 5
      %v1836 = vrot.slane %v1835, 4
      %v1837 = vrot.slane %v1713, 5
      %v1838 = vsel %vm1792, %v1836, %v1837
      %v1839 = vrot.slane %v1837, 4
      %v1840 = vrot.slane %v1714, 5
      %v1841 = vsel %vm1792, %v1839, %v1840
      %v1842 = vrot.slane %v1715, 5
      %v1843 = vrot.slane %v1842, 4
      %v1844 = vrot.slane %v1716, 5
      %v1845 = vsel %vm1792, %v1843, %v1844
      %v1846 = vrot.slane %v1844, 4
      %v1847 = vrot.slane %v1717, 5
      %v1848 = vsel %vm1792, %v1846, %v1847
      %v1849 = vrot.slane %v1718, 5
      %v1850 = vrot.slane %v1849, 4
      %v1851 = vrot.slane %v1719, 5
      %v1852 = vsel %vm1792, %v1850, %v1851
      %v1853 = vrot.slane %v1851, 4
      %v1854 = vrot.slane %v1720, 5
      %v1855 = vsel %vm1792, %v1853, %v1854
      %v1856 = vrot.slane %v1721, 5
      %v1857 = vrot.slane %v1856, 4
      %v1858 = vrot.slane %v1722, 5
      %v1859 = vsel %vm1792, %v1857, %v1858
      %v1860 = vrot.slane %v1858, 4
      %v1861 = vrot.slane %v1723, 5
      %v1862 = vsel %vm1792, %v1860, %v1861
      %v1863 = vrot.slane %v1724, 5
      %v1864 = vrot.slane %v1863, 4
      %v1865 = vrot.slane %v1725, 5
      %v1866 = vsel %vm1792, %v1864, %v1865
      %v1867 = vrot.slane %v1865, 4
      %v1868 = vrot.slane %v1726, 5
      %v1869 = vsel %vm1792, %v1867, %v1868
      %v1870 = vrot.slane %v1727, 5
      %v1871 = vrot.slane %v1870, 4
      %v1872 = vrot.slane %v1728, 5
      %v1873 = vsel %vm1792, %v1871, %v1872
      %v1874 = vrot.slane %v1872, 4
      %v1875 = vrot.slane %v1729, 5
      %v1876 = vsel %vm1792, %v1874, %v1875
      %v1877 = vrot.slane %v1730, 5
      %v1878 = vrot.slane %v1877, 4
      %v1879 = vrot.slane %v1731, 5
      %v1880 = vsel %vm1792, %v1878, %v1879
      %v1881 = vrot.slane %v1879, 4
      %v1882 = vrot.slane %v1732, 5
      %v1883 = vsel %vm1792, %v1881, %v1882
      %v1884 = vrot.slane %v1733, 5
      %v1885 = vrot.slane %v1884, 4
      %v1886 = vrot.slane %v1734, 5
      %v1887 = vsel %vm1792, %v1885, %v1886
      %v1888 = vrot.slane %v1886, 4
      %v1889 = vrot.slane %v1735, 5
      %v1890 = vsel %vm1792, %v1888, %v1889
      %v1891 = vrot.slane %v1736, 5
      %v1892 = vrot.slane %v1891, 4
      %v1893 = vrot.slane %v1737, 5
      %v1894 = vsel %vm1792, %v1892, %v1893
      %v1895 = vrot.slane %v1893, 4
      %v1896 = vrot.slane %v1738, 5
      %v1897 = vsel %vm1792, %v1895, %v1896
      %v1898 = vrot.slane %v1739, 5
      %v1899 = vrot.slane %v1898, 4
      %v1900 = vrot.slane %v1740, 5
      %v1901 = vsel %vm1792, %v1899, %v1900
      %v1902 = vrot.slane %v1900, 4
      %v1903 = vrot.slane %v1741, 5
      %v1904 = vsel %vm1792, %v1902, %v1903
      %v1905 = vunpack.c.l.b16 %v1796
      %v1906 = vunpack.c.l.b16 %v1799
      %v1907 = vunpack.c.l.b16 %v1803
      %v1908 = vunpack.c.l.b16 %v1806
      %v1909 = vunpack.c.l.b16 %v1810
      %v1910 = vunpack.c.l.b16 %v1813
      %v1911 = vunpack.c.l.b16 %v1817
      %v1912 = vunpack.c.l.b16 %v1820
      %v1913 = vunpack.c.l.b16 %v1824
      %v1914 = vunpack.c.l.b16 %v1827
      %v1915 = vunpack.c.l.b16 %v1831
      %v1916 = vunpack.c.l.b16 %v1834
      %v1917 = vunpack.c.l.b16 %v1838
      %v1918 = vunpack.c.l.b16 %v1841
      %v1919 = vunpack.c.l.b16 %v1845
      %v1920 = vunpack.c.l.b16 %v1848
      %v1921 = vunpack.c.l.b16 %v1852
      %v1922 = vunpack.c.l.b16 %v1855
      %v1923 = vunpack.c.l.b16 %v1859
      %v1924 = vunpack.c.l.b16 %v1862
      %v1925 = vunpack.c.l.b16 %v1866
      %v1926 = vunpack.c.l.b16 %v1869
      %v1927 = vunpack.c.l.b16 %v1873
      %v1928 = vunpack.c.l.b16 %v1876
      %v1929 = vunpack.c.l.b16 %v1880
      %v1930 = vunpack.c.l.b16 %v1883
      %v1931 = vunpack.c.l.b16 %v1887
      %v1932 = vunpack.c.l.b16 %v1890
      %v1933 = vunpack.c.l.b16 %v1894
      %v1934 = vunpack.c.l.b16 %v1897
      %v1935 = vunpack.c.l.b16 %v1901
      %v1936 = vunpack.c.l.b16 %v1904
      %v1937 = vpack.c.b16 %v1906, %v1905
      %v1938 = vpack.c.b16 %v1908, %v1907
      %v1939 = vpack.c.b16 %v1910, %v1909
      %v1940 = vpack.c.b16 %v1912, %v1911
      %v1941 = vpack.c.b16 %v1914, %v1913
      %v1942 = vpack.c.b16 %v1916, %v1915
      %v1943 = vpack.c.b16 %v1918, %v1917
      %v1944 = vpack.c.b16 %v1920, %v1919
      %v1945 = vpack.c.b16 %v1922, %v1921
      %v1946 = vpack.c.b16 %v1924, %v1923
      %v1947 = vpack.c.b16 %v1926, %v1925
      %v1948 = vpack.c.b16 %v1928, %v1927
      %v1949 = vpack.c.b16 %v1930, %v1929
      %v1950 = vpack.c.b16 %v1932, %v1931
      %v1951 = vpack.c.b16 %v1934, %v1933
      %v1952 = vpack.c.b16 %v1936, %v1935
      %1969 = vst [vmem:[#allocation3 + $0x10] sm:$0xff] %v1937
      %1970 = vst [vmem:[#allocation3 + $0x58] sm:$0xff] %v1938
      %1971 = vst [vmem:[#allocation3 + $0xa0] sm:$0xff] %v1939
      %1972 = vst [vmem:[#allocation3 + $0xe8] sm:$0xff] %v1940
      %1973 = vst [vmem:[#allocation3 + $0x130] sm:$0xff] %v1941
      %1974 = vst [vmem:[#allocation3 + $0x178] sm:$0xff] %v1942
      %1975 = vst [vmem:[#allocation3 + $0x1c0] sm:$0xff] %v1943
      %1976 = vst [vmem:[#allocation3 + $0x208] sm:$0xff] %v1944
      %1977 = vst [vmem:[#allocation3 + $0x250] sm:$0xff] %v1945
      %1978 = vst [vmem:[#allocation3 + $0x298] sm:$0xff] %v1946
      %1979 = vst [vmem:[#allocation3 + $0x2e0] sm:$0xff] %v1947
      %1980 = vst [vmem:[#allocation3 + $0x328] sm:$0xff] %v1948
      %1981 = vst [vmem:[#allocation3 + $0x370] sm:$0xff] %v1949
      %1982 = vst [vmem:[#allocation3 + $0x3b8] sm:$0xff] %v1950
      %1983 = vst [vmem:[#allocation3 + $0x400] sm:$0xff] %v1951
      %1984 = vst [vmem:[#allocation3 + $0x448] sm:$0xff] %v1952
      %v1985 = vld [vmem:[%s917] sm:$0xf]
      %v1986 = vld [vmem:[%s917 + $0x4] sm:$0xf]
      %v1987 = vld [vmem:[%s917 + $0xc] sm:$0xf]
      %v1988 = vld [vmem:[%s917 + $0x10] sm:$0xf]
      %v1989 = vld [vmem:[%s917 + $0x18] sm:$0xf]
      %v1990 = vld [vmem:[%s917 + $0x1c] sm:$0xf]
      %v1991 = vld [vmem:[%s917 + $0x24] sm:$0xf]
      %v1992 = vld [vmem:[%s917 + $0x28] sm:$0xf]
      %v1993 = vld [vmem:[%s917 + $0x30] sm:$0xf]
      %v1994 = vld [vmem:[%s917 + $0x34] sm:$0xf]
      %v1995 = vld [vmem:[%s917 + $0x3c] sm:$0xf]
      %v1996 = vld [vmem:[%s917 + $0x40] sm:$0xf]
      %v1997 = vld [vmem:[%s917 + $0x48] sm:$0xf]
      %v1998 = vld [vmem:[%s917 + $0x4c] sm:$0xf]
      %v1999 = vld [vmem:[%s917 + $0x54] sm:$0xf]
      %v2000 = vld [vmem:[%s917 + $0x58] sm:$0xf]
      %v2001 = vld [vmem:[%s917 + $0x60] sm:$0xf]
      %v2002 = vld [vmem:[%s917 + $0x64] sm:$0xf]
      %v2003 = vld [vmem:[%s917 + $0x6c] sm:$0xf]
      %v2004 = vld [vmem:[%s917 + $0x70] sm:$0xf]
      %v2005 = vld [vmem:[%s917 + $0x78] sm:$0xf]
      %v2006 = vld [vmem:[%s917 + $0x7c] sm:$0xf]
      %v2007 = vld [vmem:[%s917 + $0x84] sm:$0xf]
      %v2008 = vld [vmem:[%s917 + $0x88] sm:$0xf]
      %v2009 = vld [vmem:[%s917 + $0x90] sm:$0xf]
      %v2010 = vld [vmem:[%s917 + $0x94] sm:$0xf]
      %v2011 = vld [vmem:[%s917 + $0x9c] sm:$0xf]
      %v2012 = vld [vmem:[%s917 + $0xa0] sm:$0xf]
      %v2013 = vld [vmem:[%s917 + $0xa8] sm:$0xf]
      %v2014 = vld [vmem:[%s917 + $0xac] sm:$0xf]
      %v2015 = vld [vmem:[%s917 + $0xb4] sm:$0xf]
      %v2016 = vld [vmem:[%s917 + $0xb8] sm:$0xf]
      %v2049 = vunpack.c.l.b16 %v1985
      %v2050 = vunpack.c.l.b16 %v1986
      %v2051 = vunpack.c.l.b16 %v1987
      %v2052 = vunpack.c.l.b16 %v1988
      %v2053 = vunpack.c.l.b16 %v1989
      %v2054 = vunpack.c.l.b16 %v1990
      %v2055 = vunpack.c.l.b16 %v1991
      %v2056 = vunpack.c.l.b16 %v1992
      %v2057 = vunpack.c.l.b16 %v1993
      %v2058 = vunpack.c.l.b16 %v1994
      %v2059 = vunpack.c.l.b16 %v1995
      %v2060 = vunpack.c.l.b16 %v1996
      %v2061 = vunpack.c.l.b16 %v1997
      %v2062 = vunpack.c.l.b16 %v1998
      %v2063 = vunpack.c.l.b16 %v1999
      %v2064 = vunpack.c.l.b16 %v2000
      %v2065 = vunpack.c.l.b16 %v2001
      %v2066 = vunpack.c.l.b16 %v2002
      %v2067 = vunpack.c.l.b16 %v2003
      %v2068 = vunpack.c.l.b16 %v2004
      %v2069 = vunpack.c.l.b16 %v2005
      %v2070 = vunpack.c.l.b16 %v2006
      %v2071 = vunpack.c.l.b16 %v2007
      %v2072 = vunpack.c.l.b16 %v2008
      %v2073 = vunpack.c.l.b16 %v2009
      %v2074 = vunpack.c.l.b16 %v2010
      %v2075 = vunpack.c.l.b16 %v2011
      %v2076 = vunpack.c.l.b16 %v2012
      %v2077 = vunpack.c.l.b16 %v2013
      %v2078 = vunpack.c.l.b16 %v2014
      %v2079 = vunpack.c.l.b16 %v2015
      %v2080 = vunpack.c.l.b16 %v2016
      %v2081 = vpack.c.b16 %v2050, %v2049
      %v2082 = vpack.c.b16 %v2052, %v2051
      %v2083 = vpack.c.b16 %v2054, %v2053
      %v2084 = vpack.c.b16 %v2056, %v2055
      %v2085 = vpack.c.b16 %v2058, %v2057
      %v2086 = vpack.c.b16 %v2060, %v2059
      %v2087 = vpack.c.b16 %v2062, %v2061
      %v2088 = vpack.c.b16 %v2064, %v2063
      %v2089 = vpack.c.b16 %v2066, %v2065
      %v2090 = vpack.c.b16 %v2068, %v2067
      %v2091 = vpack.c.b16 %v2070, %v2069
      %v2092 = vpack.c.b16 %v2072, %v2071
      %v2093 = vpack.c.b16 %v2074, %v2073
      %v2094 = vpack.c.b16 %v2076, %v2075
      %v2095 = vpack.c.b16 %v2078, %v2077
      %v2096 = vpack.c.b16 %v2080, %v2079
      %2113 = vst [vmem:[#allocation3 + $0x18] sm:$0xff] %v2081
      %2114 = vst [vmem:[#allocation3 + $0x60] sm:$0xff] %v2082
      %2115 = vst [vmem:[#allocation3 + $0xa8] sm:$0xff] %v2083
      %2116 = vst [vmem:[#allocation3 + $0xf0] sm:$0xff] %v2084
      %2117 = vst [vmem:[#allocation3 + $0x138] sm:$0xff] %v2085
      %2118 = vst [vmem:[#allocation3 + $0x180] sm:$0xff] %v2086
      %2119 = vst [vmem:[#allocation3 + $0x1c8] sm:$0xff] %v2087
      %2120 = vst [vmem:[#allocation3 + $0x210] sm:$0xff] %v2088
      %2121 = vst [vmem:[#allocation3 + $0x258] sm:$0xff] %v2089
      %2122 = vst [vmem:[#allocation3 + $0x2a0] sm:$0xff] %v2090
      %2123 = vst [vmem:[#allocation3 + $0x2e8] sm:$0xff] %v2091
      %2124 = vst [vmem:[#allocation3 + $0x330] sm:$0xff] %v2092
      %2125 = vst [vmem:[#allocation3 + $0x378] sm:$0xff] %v2093
      %2126 = vst [vmem:[#allocation3 + $0x3c0] sm:$0xff] %v2094
      %2127 = vst [vmem:[#allocation3 + $0x408] sm:$0xff] %v2095
      %2128 = vst [vmem:[#allocation3 + $0x450] sm:$0xff] %v2096
      %v2129 = vld [vmem:[%s917] sm:$0xf]
      %v2130 = vld [vmem:[%s917 + $0x4] sm:$0xf]
      %v2131 = vld [vmem:[%s917 + $0x8] sm:$0x1]
      %v2132 = vld [vmem:[%s917 + $0xc] sm:$0xf]
      %v2133 = vld [vmem:[%s917 + $0x10] sm:$0xf]
      %v2134 = vld [vmem:[%s917 + $0x14] sm:$0x1]
      %v2135 = vld [vmem:[%s917 + $0x18] sm:$0xf]
      %v2136 = vld [vmem:[%s917 + $0x1c] sm:$0xf]
      %v2137 = vld [vmem:[%s917 + $0x20] sm:$0x1]
      %v2138 = vld [vmem:[%s917 + $0x24] sm:$0xf]
      %v2139 = vld [vmem:[%s917 + $0x28] sm:$0xf]
      %v2140 = vld [vmem:[%s917 + $0x2c] sm:$0x1]
      %v2141 = vld [vmem:[%s917 + $0x30] sm:$0xf]
      %v2142 = vld [vmem:[%s917 + $0x34] sm:$0xf]
      %v2143 = vld [vmem:[%s917 + $0x38] sm:$0x1]
      %v2144 = vld [vmem:[%s917 + $0x3c] sm:$0xf]
      %v2145 = vld [vmem:[%s917 + $0x40] sm:$0xf]
      %v2146 = vld [vmem:[%s917 + $0x44] sm:$0x1]
      %v2147 = vld [vmem:[%s917 + $0x48] sm:$0xf]
      %v2148 = vld [vmem:[%s917 + $0x4c] sm:$0xf]
      %v2149 = vld [vmem:[%s917 + $0x50] sm:$0x1]
      %v2150 = vld [vmem:[%s917 + $0x54] sm:$0xf]
      %v2151 = vld [vmem:[%s917 + $0x58] sm:$0xf]
      %v2152 = vld [vmem:[%s917 + $0x5c] sm:$0x1]
      %v2153 = vld [vmem:[%s917 + $0x60] sm:$0xf]
      %v2154 = vld [vmem:[%s917 + $0x64] sm:$0xf]
      %v2155 = vld [vmem:[%s917 + $0x68] sm:$0x1]
      %v2156 = vld [vmem:[%s917 + $0x6c] sm:$0xf]
      %v2157 = vld [vmem:[%s917 + $0x70] sm:$0xf]
      %v2158 = vld [vmem:[%s917 + $0x74] sm:$0x1]
      %v2159 = vld [vmem:[%s917 + $0x78] sm:$0xf]
      %v2160 = vld [vmem:[%s917 + $0x7c] sm:$0xf]
      %v2161 = vld [vmem:[%s917 + $0x80] sm:$0x1]
      %v2162 = vld [vmem:[%s917 + $0x84] sm:$0xf]
      %v2163 = vld [vmem:[%s917 + $0x88] sm:$0xf]
      %v2164 = vld [vmem:[%s917 + $0x8c] sm:$0x1]
      %v2165 = vld [vmem:[%s917 + $0x90] sm:$0xf]
      %v2166 = vld [vmem:[%s917 + $0x94] sm:$0xf]
      %v2167 = vld [vmem:[%s917 + $0x98] sm:$0x1]
      %v2168 = vld [vmem:[%s917 + $0x9c] sm:$0xf]
      %v2169 = vld [vmem:[%s917 + $0xa0] sm:$0xf]
      %v2170 = vld [vmem:[%s917 + $0xa4] sm:$0x1]
      %v2171 = vld [vmem:[%s917 + $0xa8] sm:$0xf]
      %v2172 = vld [vmem:[%s917 + $0xac] sm:$0xf]
      %v2173 = vld [vmem:[%s917 + $0xb0] sm:$0x1]
      %v2174 = vld [vmem:[%s917 + $0xb4] sm:$0xf]
      %v2175 = vld [vmem:[%s917 + $0xb8] sm:$0xf]
      %v2176 = vld [vmem:[%s917 + $0xbc] sm:$0x1]
      %v2178 = vshrl.u32 %v2129, 16
      %v2180 = vrot.slane %v2178, 4
      %v2181 = vshll.u32 %v2129, 16
      %v2183 = vrot.slane %v2181, 5
      %v2184 = vor.u32 %v2180, %v2183
      %v2185 = vrot.slane %v2184, 4
      %v2187 = vshll.u32 %v2130, 16
      %v2189 = vrot.slane %v2187, 5
      %v2190 = vsel %vm1229, %v2185, %v2189
      %v2191 = vshrl.u32 %v2130, 16
      %v2193 = vrot.slane %v2191, 4
      %v2194 = vor.u32 %v2193, %v2189
      %v2195 = vrot.slane %v2194, 4
      %v2197 = vshll.u32 %v2131, 16
      %v2199 = vrot.slane %v2197, 5
      %v2200 = vsel %vm1229, %v2195, %v2199
      %v2202 = vshrl.u32 %v2132, 16
      %v2204 = vrot.slane %v2202, 4
      %v2205 = vshll.u32 %v2132, 16
      %v2207 = vrot.slane %v2205, 5
      %v2208 = vor.u32 %v2204, %v2207
      %v2209 = vrot.slane %v2208, 4
      %v2211 = vshll.u32 %v2133, 16
      %v2213 = vrot.slane %v2211, 5
      %v2214 = vsel %vm1229, %v2209, %v2213
      %v2215 = vshrl.u32 %v2133, 16
      %v2217 = vrot.slane %v2215, 4
      %v2218 = vor.u32 %v2217, %v2213
      %v2219 = vrot.slane %v2218, 4
      %v2221 = vshll.u32 %v2134, 16
      %v2223 = vrot.slane %v2221, 5
      %v2224 = vsel %vm1229, %v2219, %v2223
      %v2226 = vshrl.u32 %v2135, 16
      %v2228 = vrot.slane %v2226, 4
      %v2229 = vshll.u32 %v2135, 16
      %v2231 = vrot.slane %v2229, 5
      %v2232 = vor.u32 %v2228, %v2231
      %v2233 = vrot.slane %v2232, 4
      %v2235 = vshll.u32 %v2136, 16
      %v2237 = vrot.slane %v2235, 5
      %v2238 = vsel %vm1229, %v2233, %v2237
      %v2239 = vshrl.u32 %v2136, 16
      %v2241 = vrot.slane %v2239, 4
      %v2242 = vor.u32 %v2241, %v2237
      %v2243 = vrot.slane %v2242, 4
      %v2245 = vshll.u32 %v2137, 16
      %v2247 = vrot.slane %v2245, 5
      %v2248 = vsel %vm1229, %v2243, %v2247
      %v2250 = vshrl.u32 %v2138, 16
      %v2252 = vrot.slane %v2250, 4
      %v2253 = vshll.u32 %v2138, 16
      %v2255 = vrot.slane %v2253, 5
      %v2256 = vor.u32 %v2252, %v2255
      %v2257 = vrot.slane %v2256, 4
      %v2259 = vshll.u32 %v2139, 16
      %v2261 = vrot.slane %v2259, 5
      %v2262 = vsel %vm1229, %v2257, %v2261
      %v2263 = vshrl.u32 %v2139, 16
      %v2265 = vrot.slane %v2263, 4
      %v2266 = vor.u32 %v2265, %v2261
      %v2267 = vrot.slane %v2266, 4
      %v2269 = vshll.u32 %v2140, 16
      %v2271 = vrot.slane %v2269, 5
      %v2272 = vsel %vm1229, %v2267, %v2271
      %v2274 = vshrl.u32 %v2141, 16
      %v2276 = vrot.slane %v2274, 4
      %v2277 = vshll.u32 %v2141, 16
      %v2279 = vrot.slane %v2277, 5
      %v2280 = vor.u32 %v2276, %v2279
      %v2281 = vrot.slane %v2280, 4
      %v2283 = vshll.u32 %v2142, 16
      %v2285 = vrot.slane %v2283, 5
      %v2286 = vsel %vm1229, %v2281, %v2285
      %v2287 = vshrl.u32 %v2142, 16
      %v2289 = vrot.slane %v2287, 4
      %v2290 = vor.u32 %v2289, %v2285
      %v2291 = vrot.slane %v2290, 4
      %v2293 = vshll.u32 %v2143, 16
      %v2295 = vrot.slane %v2293, 5
      %v2296 = vsel %vm1229, %v2291, %v2295
      %v2298 = vshrl.u32 %v2144, 16
      %v2300 = vrot.slane %v2298, 4
      %v2301 = vshll.u32 %v2144, 16
      %v2303 = vrot.slane %v2301, 5
      %v2304 = vor.u32 %v2300, %v2303
      %v2305 = vrot.slane %v2304, 4
      %v2307 = vshll.u32 %v2145, 16
      %v2309 = vrot.slane %v2307, 5
      %v2310 = vsel %vm1229, %v2305, %v2309
      %v2311 = vshrl.u32 %v2145, 16
      %v2313 = vrot.slane %v2311, 4
      %v2314 = vor.u32 %v2313, %v2309
      %v2315 = vrot.slane %v2314, 4
      %v2317 = vshll.u32 %v2146, 16
      %v2319 = vrot.slane %v2317, 5
      %v2320 = vsel %vm1229, %v2315, %v2319
      %v2322 = vshrl.u32 %v2147, 16
      %v2324 = vrot.slane %v2322, 4
      %v2325 = vshll.u32 %v2147, 16
      %v2327 = vrot.slane %v2325, 5
      %v2328 = vor.u32 %v2324, %v2327
      %v2329 = vrot.slane %v2328, 4
      %v2331 = vshll.u32 %v2148, 16
      %v2333 = vrot.slane %v2331, 5
      %v2334 = vsel %vm1229, %v2329, %v2333
      %v2335 = vshrl.u32 %v2148, 16
      %v2337 = vrot.slane %v2335, 4
      %v2338 = vor.u32 %v2337, %v2333
      %v2339 = vrot.slane %v2338, 4
      %v2341 = vshll.u32 %v2149, 16
      %v2343 = vrot.slane %v2341, 5
      %v2344 = vsel %vm1229, %v2339, %v2343
      %v2346 = vshrl.u32 %v2150, 16
      %v2348 = vrot.slane %v2346, 4
      %v2349 = vshll.u32 %v2150, 16
      %v2351 = vrot.slane %v2349, 5
      %v2352 = vor.u32 %v2348, %v2351
      %v2353 = vrot.slane %v2352, 4
      %v2355 = vshll.u32 %v2151, 16
      %v2357 = vrot.slane %v2355, 5
      %v2358 = vsel %vm1229, %v2353, %v2357
      %v2359 = vshrl.u32 %v2151, 16
      %v2361 = vrot.slane %v2359, 4
      %v2362 = vor.u32 %v2361, %v2357
      %v2363 = vrot.slane %v2362, 4
      %v2365 = vshll.u32 %v2152, 16
      %v2367 = vrot.slane %v2365, 5
      %v2368 = vsel %vm1229, %v2363, %v2367
      %v2370 = vshrl.u32 %v2153, 16
      %v2372 = vrot.slane %v2370, 4
      %v2373 = vshll.u32 %v2153, 16
      %v2375 = vrot.slane %v2373, 5
      %v2376 = vor.u32 %v2372, %v2375
      %v2377 = vrot.slane %v2376, 4
      %v2379 = vshll.u32 %v2154, 16
      %v2381 = vrot.slane %v2379, 5
      %v2382 = vsel %vm1229, %v2377, %v2381
      %v2383 = vshrl.u32 %v2154, 16
      %v2385 = vrot.slane %v2383, 4
      %v2386 = vor.u32 %v2385, %v2381
      %v2387 = vrot.slane %v2386, 4
      %v2389 = vshll.u32 %v2155, 16
      %v2391 = vrot.slane %v2389, 5
      %v2392 = vsel %vm1229, %v2387, %v2391
      %v2394 = vshrl.u32 %v2156, 16
      %v2396 = vrot.slane %v2394, 4
      %v2397 = vshll.u32 %v2156, 16
      %v2399 = vrot.slane %v2397, 5
      %v2400 = vor.u32 %v2396, %v2399
      %v2401 = vrot.slane %v2400, 4
      %v2403 = vshll.u32 %v2157, 16
      %v2405 = vrot.slane %v2403, 5
      %v2406 = vsel %vm1229, %v2401, %v2405
      %v2407 = vshrl.u32 %v2157, 16
      %v2409 = vrot.slane %v2407, 4
      %v2410 = vor.u32 %v2409, %v2405
      %v2411 = vrot.slane %v2410, 4
      %v2413 = vshll.u32 %v2158, 16
      %v2415 = vrot.slane %v2413, 5
      %v2416 = vsel %vm1229, %v2411, %v2415
      %v2418 = vshrl.u32 %v2159, 16
      %v2420 = vrot.slane %v2418, 4
      %v2421 = vshll.u32 %v2159, 16
      %v2423 = vrot.slane %v2421, 5
      %v2424 = vor.u32 %v2420, %v2423
      %v2425 = vrot.slane %v2424, 4
      %v2427 = vshll.u32 %v2160, 16
      %v2429 = vrot.slane %v2427, 5
      %v2430 = vsel %vm1229, %v2425, %v2429
      %v2431 = vshrl.u32 %v2160, 16
      %v2433 = vrot.slane %v2431, 4
      %v2434 = vor.u32 %v2433, %v2429
      %v2435 = vrot.slane %v2434, 4
      %v2437 = vshll.u32 %v2161, 16
      %v2439 = vrot.slane %v2437, 5
      %v2440 = vsel %vm1229, %v2435, %v2439
      %v2442 = vshrl.u32 %v2162, 16
      %v2444 = vrot.slane %v2442, 4
      %v2445 = vshll.u32 %v2162, 16
      %v2447 = vrot.slane %v2445, 5
      %v2448 = vor.u32 %v2444, %v2447
      %v2449 = vrot.slane %v2448, 4
      %v2451 = vshll.u32 %v2163, 16
      %v2453 = vrot.slane %v2451, 5
      %v2454 = vsel %vm1229, %v2449, %v2453
      %v2455 = vshrl.u32 %v2163, 16
      %v2457 = vrot.slane %v2455, 4
      %v2458 = vor.u32 %v2457, %v2453
      %v2459 = vrot.slane %v2458, 4
      %v2461 = vshll.u32 %v2164, 16
      %v2463 = vrot.slane %v2461, 5
      %v2464 = vsel %vm1229, %v2459, %v2463
      %v2466 = vshrl.u32 %v2165, 16
      %v2468 = vrot.slane %v2466, 4
      %v2469 = vshll.u32 %v2165, 16
      %v2471 = vrot.slane %v2469, 5
      %v2472 = vor.u32 %v2468, %v2471
      %v2473 = vrot.slane %v2472, 4
      %v2475 = vshll.u32 %v2166, 16
      %v2477 = vrot.slane %v2475, 5
      %v2478 = vsel %vm1229, %v2473, %v2477
      %v2479 = vshrl.u32 %v2166, 16
      %v2481 = vrot.slane %v2479, 4
      %v2482 = vor.u32 %v2481, %v2477
      %v2483 = vrot.slane %v2482, 4
      %v2485 = vshll.u32 %v2167, 16
      %v2487 = vrot.slane %v2485, 5
      %v2488 = vsel %vm1229, %v2483, %v2487
      %v2490 = vshrl.u32 %v2168, 16
      %v2492 = vrot.slane %v2490, 4
      %v2493 = vshll.u32 %v2168, 16
      %v2495 = vrot.slane %v2493, 5
      %v2496 = vor.u32 %v2492, %v2495
      %v2497 = vrot.slane %v2496, 4
      %v2499 = vshll.u32 %v2169, 16
      %v2501 = vrot.slane %v2499, 5
      %v2502 = vsel %vm1229, %v2497, %v2501
      %v2503 = vshrl.u32 %v2169, 16
      %v2505 = vrot.slane %v2503, 4
      %v2506 = vor.u32 %v2505, %v2501
      %v2507 = vrot.slane %v2506, 4
      %v2509 = vshll.u32 %v2170, 16
      %v2511 = vrot.slane %v2509, 5
      %v2512 = vsel %vm1229, %v2507, %v2511
      %v2514 = vshrl.u32 %v2171, 16
      %v2516 = vrot.slane %v2514, 4
      %v2517 = vshll.u32 %v2171, 16
      %v2519 = vrot.slane %v2517, 5
      %v2520 = vor.u32 %v2516, %v2519
      %v2521 = vrot.slane %v2520, 4
      %v2523 = vshll.u32 %v2172, 16
      %v2525 = vrot.slane %v2523, 5
      %v2526 = vsel %vm1229, %v2521, %v2525
      %v2527 = vshrl.u32 %v2172, 16
      %v2529 = vrot.slane %v2527, 4
      %v2530 = vor.u32 %v2529, %v2525
      %v2531 = vrot.slane %v2530, 4
      %v2533 = vshll.u32 %v2173, 16
      %v2535 = vrot.slane %v2533, 5
      %v2536 = vsel %vm1229, %v2531, %v2535
      %v2538 = vshrl.u32 %v2174, 16
      %v2540 = vrot.slane %v2538, 4
      %v2541 = vshll.u32 %v2174, 16
      %v2543 = vrot.slane %v2541, 5
      %v2544 = vor.u32 %v2540, %v2543
      %v2545 = vrot.slane %v2544, 4
      %v2547 = vshll.u32 %v2175, 16
      %v2549 = vrot.slane %v2547, 5
      %v2550 = vsel %vm1229, %v2545, %v2549
      %v2551 = vshrl.u32 %v2175, 16
      %v2553 = vrot.slane %v2551, 4
      %v2554 = vor.u32 %v2553, %v2549
      %v2555 = vrot.slane %v2554, 4
      %v2557 = vshll.u32 %v2176, 16
      %v2559 = vrot.slane %v2557, 5
      %v2560 = vsel %vm1229, %v2555, %v2559
      %v2561 = vunpack.c.l.b16 %v2190
      %v2562 = vunpack.c.l.b16 %v2200
      %v2563 = vunpack.c.l.b16 %v2214
      %v2564 = vunpack.c.l.b16 %v2224
      %v2565 = vunpack.c.l.b16 %v2238
      %v2566 = vunpack.c.l.b16 %v2248
      %v2567 = vunpack.c.l.b16 %v2262
      %v2568 = vunpack.c.l.b16 %v2272
      %v2569 = vunpack.c.l.b16 %v2286
      %v2570 = vunpack.c.l.b16 %v2296
      %v2571 = vunpack.c.l.b16 %v2310
      %v2572 = vunpack.c.l.b16 %v2320
      %v2573 = vunpack.c.l.b16 %v2334
      %v2574 = vunpack.c.l.b16 %v2344
      %v2575 = vunpack.c.l.b16 %v2358
      %v2576 = vunpack.c.l.b16 %v2368
      %v2577 = vunpack.c.l.b16 %v2382
      %v2578 = vunpack.c.l.b16 %v2392
      %v2579 = vunpack.c.l.b16 %v2406
      %v2580 = vunpack.c.l.b16 %v2416
      %v2581 = vunpack.c.l.b16 %v2430
      %v2582 = vunpack.c.l.b16 %v2440
      %v2583 = vunpack.c.l.b16 %v2454
      %v2584 = vunpack.c.l.b16 %v2464
      %v2585 = vunpack.c.l.b16 %v2478
      %v2586 = vunpack.c.l.b16 %v2488
      %v2587 = vunpack.c.l.b16 %v2502
      %v2588 = vunpack.c.l.b16 %v2512
      %v2589 = vunpack.c.l.b16 %v2526
      %v2590 = vunpack.c.l.b16 %v2536
      %v2591 = vunpack.c.l.b16 %v2550
      %v2592 = vunpack.c.l.b16 %v2560
      %v2593 = vpack.c.b16 %v2562, %v2561
      %v2594 = vpack.c.b16 %v2564, %v2563
      %v2595 = vpack.c.b16 %v2566, %v2565
      %v2596 = vpack.c.b16 %v2568, %v2567
      %v2597 = vpack.c.b16 %v2570, %v2569
      %v2598 = vpack.c.b16 %v2572, %v2571
      %v2599 = vpack.c.b16 %v2574, %v2573
      %v2600 = vpack.c.b16 %v2576, %v2575
      %v2601 = vpack.c.b16 %v2578, %v2577
      %v2602 = vpack.c.b16 %v2580, %v2579
      %v2603 = vpack.c.b16 %v2582, %v2581
      %v2604 = vpack.c.b16 %v2584, %v2583
      %v2605 = vpack.c.b16 %v2586, %v2585
      %v2606 = vpack.c.b16 %v2588, %v2587
      %v2607 = vpack.c.b16 %v2590, %v2589
      %v2608 = vpack.c.b16 %v2592, %v2591
      %2625 = vst [vmem:[#allocation3 + $0x20] sm:$0xff] %v2593
      %2626 = vst [vmem:[#allocation3 + $0x68] sm:$0xff] %v2594
      %2627 = vst [vmem:[#allocation3 + $0xb0] sm:$0xff] %v2595
      %2628 = vst [vmem:[#allocation3 + $0xf8] sm:$0xff] %v2596
      %2629 = vst [vmem:[#allocation3 + $0x140] sm:$0xff] %v2597
      %2630 = vst [vmem:[#allocation3 + $0x188] sm:$0xff] %v2598
      %2631 = vst [vmem:[#allocation3 + $0x1d0] sm:$0xff] %v2599
      %2632 = vst [vmem:[#allocation3 + $0x218] sm:$0xff] %v2600
      %2633 = vst [vmem:[#allocation3 + $0x260] sm:$0xff] %v2601
      %2634 = vst [vmem:[#allocation3 + $0x2a8] sm:$0xff] %v2602
      %2635 = vst [vmem:[#allocation3 + $0x2f0] sm:$0xff] %v2603
      %2636 = vst [vmem:[#allocation3 + $0x338] sm:$0xff] %v2604
      %2637 = vst [vmem:[#allocation3 + $0x380] sm:$0xff] %v2605
      %2638 = vst [vmem:[#allocation3 + $0x3c8] sm:$0xff] %v2606
      %2639 = vst [vmem:[#allocation3 + $0x410] sm:$0xff] %v2607
      %2640 = vst [vmem:[#allocation3 + $0x458] sm:$0xff] %v2608
      %v2641 = vld [vmem:[%s917] sm:$0xe]
      %v2642 = vld [vmem:[%s917 + $0x4] sm:$0xf]
      %v2643 = vld [vmem:[%s917 + $0x8] sm:$0x1]
      %v2644 = vld [vmem:[%s917 + $0xc] sm:$0xe]
      %v2645 = vld [vmem:[%s917 + $0x10] sm:$0xf]
      %v2646 = vld [vmem:[%s917 + $0x14] sm:$0x1]
      %v2647 = vld [vmem:[%s917 + $0x18] sm:$0xe]
      %v2648 = vld [vmem:[%s917 + $0x1c] sm:$0xf]
      %v2649 = vld [vmem:[%s917 + $0x20] sm:$0x1]
      %v2650 = vld [vmem:[%s917 + $0x24] sm:$0xe]
      %v2651 = vld [vmem:[%s917 + $0x28] sm:$0xf]
      %v2652 = vld [vmem:[%s917 + $0x2c] sm:$0x1]
      %v2653 = vld [vmem:[%s917 + $0x30] sm:$0xe]
      %v2654 = vld [vmem:[%s917 + $0x34] sm:$0xf]
      %v2655 = vld [vmem:[%s917 + $0x38] sm:$0x1]
      %v2656 = vld [vmem:[%s917 + $0x3c] sm:$0xe]
      %v2657 = vld [vmem:[%s917 + $0x40] sm:$0xf]
      %v2658 = vld [vmem:[%s917 + $0x44] sm:$0x1]
      %v2659 = vld [vmem:[%s917 + $0x48] sm:$0xe]
      %v2660 = vld [vmem:[%s917 + $0x4c] sm:$0xf]
      %v2661 = vld [vmem:[%s917 + $0x50] sm:$0x1]
      %v2662 = vld [vmem:[%s917 + $0x54] sm:$0xe]
      %v2663 = vld [vmem:[%s917 + $0x58] sm:$0xf]
      %v2664 = vld [vmem:[%s917 + $0x5c] sm:$0x1]
      %v2665 = vld [vmem:[%s917 + $0x60] sm:$0xe]
      %v2666 = vld [vmem:[%s917 + $0x64] sm:$0xf]
      %v2667 = vld [vmem:[%s917 + $0x68] sm:$0x1]
      %v2668 = vld [vmem:[%s917 + $0x6c] sm:$0xe]
      %v2669 = vld [vmem:[%s917 + $0x70] sm:$0xf]
      %v2670 = vld [vmem:[%s917 + $0x74] sm:$0x1]
      %v2671 = vld [vmem:[%s917 + $0x78] sm:$0xe]
      %v2672 = vld [vmem:[%s917 + $0x7c] sm:$0xf]
      %v2673 = vld [vmem:[%s917 + $0x80] sm:$0x1]
      %v2674 = vld [vmem:[%s917 + $0x84] sm:$0xe]
      %v2675 = vld [vmem:[%s917 + $0x88] sm:$0xf]
      %v2676 = vld [vmem:[%s917 + $0x8c] sm:$0x1]
      %v2677 = vld [vmem:[%s917 + $0x90] sm:$0xe]
      %v2678 = vld [vmem:[%s917 + $0x94] sm:$0xf]
      %v2679 = vld [vmem:[%s917 + $0x98] sm:$0x1]
      %v2680 = vld [vmem:[%s917 + $0x9c] sm:$0xe]
      %v2681 = vld [vmem:[%s917 + $0xa0] sm:$0xf]
      %v2682 = vld [vmem:[%s917 + $0xa4] sm:$0x1]
      %v2683 = vld [vmem:[%s917 + $0xa8] sm:$0xe]
      %v2684 = vld [vmem:[%s917 + $0xac] sm:$0xf]
      %v2685 = vld [vmem:[%s917 + $0xb0] sm:$0x1]
      %v2686 = vld [vmem:[%s917 + $0xb4] sm:$0xe]
      %v2687 = vld [vmem:[%s917 + $0xb8] sm:$0xf]
      %v2688 = vld [vmem:[%s917 + $0xbc] sm:$0x1]
      %v2737 = vrot.slane %v2641, 5
      %v2738 = vrot.slane %v2737, 4
      %v2739 = vrot.slane %v2642, 5
      %v2740 = vsel %vm1792, %v2738, %v2739
      %v2741 = vrot.slane %v2739, 4
      %v2742 = vrot.slane %v2643, 5
      %v2743 = vsel %vm1792, %v2741, %v2742
      %v2744 = vrot.slane %v2644, 5
      %v2745 = vrot.slane %v2744, 4
      %v2746 = vrot.slane %v2645, 5
      %v2747 = vsel %vm1792, %v2745, %v2746
      %v2748 = vrot.slane %v2746, 4
      %v2749 = vrot.slane %v2646, 5
      %v2750 = vsel %vm1792, %v2748, %v2749
      %v2751 = vrot.slane %v2647, 5
      %v2752 = vrot.slane %v2751, 4
      %v2753 = vrot.slane %v2648, 5
      %v2754 = vsel %vm1792, %v2752, %v2753
      %v2755 = vrot.slane %v2753, 4
      %v2756 = vrot.slane %v2649, 5
      %v2757 = vsel %vm1792, %v2755, %v2756
      %v2758 = vrot.slane %v2650, 5
      %v2759 = vrot.slane %v2758, 4
      %v2760 = vrot.slane %v2651, 5
      %v2761 = vsel %vm1792, %v2759, %v2760
      %v2762 = vrot.slane %v2760, 4
      %v2763 = vrot.slane %v2652, 5
      %v2764 = vsel %vm1792, %v2762, %v2763
      %v2765 = vrot.slane %v2653, 5
      %v2766 = vrot.slane %v2765, 4
      %v2767 = vrot.slane %v2654, 5
      %v2768 = vsel %vm1792, %v2766, %v2767
      %v2769 = vrot.slane %v2767, 4
      %v2770 = vrot.slane %v2655, 5
      %v2771 = vsel %vm1792, %v2769, %v2770
      %v2772 = vrot.slane %v2656, 5
      %v2773 = vrot.slane %v2772, 4
      %v2774 = vrot.slane %v2657, 5
      %v2775 = vsel %vm1792, %v2773, %v2774
      %v2776 = vrot.slane %v2774, 4
      %v2777 = vrot.slane %v2658, 5
      %v2778 = vsel %vm1792, %v2776, %v2777
      %v2779 = vrot.slane %v2659, 5
      %v2780 = vrot.slane %v2779, 4
      %v2781 = vrot.slane %v2660, 5
      %v2782 = vsel %vm1792, %v2780, %v2781
      %v2783 = vrot.slane %v2781, 4
      %v2784 = vrot.slane %v2661, 5
      %v2785 = vsel %vm1792, %v2783, %v2784
      %v2786 = vrot.slane %v2662, 5
      %v2787 = vrot.slane %v2786, 4
      %v2788 = vrot.slane %v2663, 5
      %v2789 = vsel %vm1792, %v2787, %v2788
      %v2790 = vrot.slane %v2788, 4
      %v2791 = vrot.slane %v2664, 5
      %v2792 = vsel %vm1792, %v2790, %v2791
      %v2793 = vrot.slane %v2665, 5
      %v2794 = vrot.slane %v2793, 4
      %v2795 = vrot.slane %v2666, 5
      %v2796 = vsel %vm1792, %v2794, %v2795
      %v2797 = vrot.slane %v2795, 4
      %v2798 = vrot.slane %v2667, 5
      %v2799 = vsel %vm1792, %v2797, %v2798
      %v2800 = vrot.slane %v2668, 5
      %v2801 = vrot.slane %v2800, 4
      %v2802 = vrot.slane %v2669, 5
      %v2803 = vsel %vm1792, %v2801, %v2802
      %v2804 = vrot.slane %v2802, 4
      %v2805 = vrot.slane %v2670, 5
      %v2806 = vsel %vm1792, %v2804, %v2805
      %v2807 = vrot.slane %v2671, 5
      %v2808 = vrot.slane %v2807, 4
      %v2809 = vrot.slane %v2672, 5
      %v2810 = vsel %vm1792, %v2808, %v2809
      %v2811 = vrot.slane %v2809, 4
      %v2812 = vrot.slane %v2673, 5
      %v2813 = vsel %vm1792, %v2811, %v2812
      %v2814 = vrot.slane %v2674, 5
      %v2815 = vrot.slane %v2814, 4
      %v2816 = vrot.slane %v2675, 5
      %v2817 = vsel %vm1792, %v2815, %v2816
      %v2818 = vrot.slane %v2816, 4
      %v2819 = vrot.slane %v2676, 5
      %v2820 = vsel %vm1792, %v2818, %v2819
      %v2821 = vrot.slane %v2677, 5
      %v2822 = vrot.slane %v2821, 4
      %v2823 = vrot.slane %v2678, 5
      %v2824 = vsel %vm1792, %v2822, %v2823
      %v2825 = vrot.slane %v2823, 4
      %v2826 = vrot.slane %v2679, 5
      %v2827 = vsel %vm1792, %v2825, %v2826
      %v2828 = vrot.slane %v2680, 5
      %v2829 = vrot.slane %v2828, 4
      %v2830 = vrot.slane %v2681, 5
      %v2831 = vsel %vm1792, %v2829, %v2830
      %v2832 = vrot.slane %v2830, 4
      %v2833 = vrot.slane %v2682, 5
      %v2834 = vsel %vm1792, %v2832, %v2833
      %v2835 = vrot.slane %v2683, 5
      %v2836 = vrot.slane %v2835, 4
      %v2837 = vrot.slane %v2684, 5
      %v2838 = vsel %vm1792, %v2836, %v2837
      %v2839 = vrot.slane %v2837, 4
      %v2840 = vrot.slane %v2685, 5
      %v2841 = vsel %vm1792, %v2839, %v2840
      %v2842 = vrot.slane %v2686, 5
      %v2843 = vrot.slane %v2842, 4
      %v2844 = vrot.slane %v2687, 5
      %v2845 = vsel %vm1792, %v2843, %v2844
      %v2846 = vrot.slane %v2844, 4
      %v2847 = vrot.slane %v2688, 5
      %v2848 = vsel %vm1792, %v2846, %v2847
      %v2849 = vunpack.c.l.b16 %v2740
      %v2850 = vunpack.c.l.b16 %v2743
      %v2851 = vunpack.c.l.b16 %v2747
      %v2852 = vunpack.c.l.b16 %v2750
      %v2853 = vunpack.c.l.b16 %v2754
      %v2854 = vunpack.c.l.b16 %v2757
      %v2855 = vunpack.c.l.b16 %v2761
      %v2856 = vunpack.c.l.b16 %v2764
      %v2857 = vunpack.c.l.b16 %v2768
      %v2858 = vunpack.c.l.b16 %v2771
      %v2859 = vunpack.c.l.b16 %v2775
      %v2860 = vunpack.c.l.b16 %v2778
      %v2861 = vunpack.c.l.b16 %v2782
      %v2862 = vunpack.c.l.b16 %v2785
      %v2863 = vunpack.c.l.b16 %v2789
      %v2864 = vunpack.c.l.b16 %v2792
      %v2865 = vunpack.c.l.b16 %v2796
      %v2866 = vunpack.c.l.b16 %v2799
      %v2867 = vunpack.c.l.b16 %v2803
      %v2868 = vunpack.c.l.b16 %v2806
      %v2869 = vunpack.c.l.b16 %v2810
      %v2870 = vunpack.c.l.b16 %v2813
      %v2871 = vunpack.c.l.b16 %v2817
      %v2872 = vunpack.c.l.b16 %v2820
      %v2873 = vunpack.c.l.b16 %v2824
      %v2874 = vunpack.c.l.b16 %v2827
      %v2875 = vunpack.c.l.b16 %v2831
      %v2876 = vunpack.c.l.b16 %v2834
      %v2877 = vunpack.c.l.b16 %v2838
      %v2878 = vunpack.c.l.b16 %v2841
      %v2879 = vunpack.c.l.b16 %v2845
      %v2880 = vunpack.c.l.b16 %v2848
      %v2881 = vpack.c.b16 %v2850, %v2849
      %v2882 = vpack.c.b16 %v2852, %v2851
      %v2883 = vpack.c.b16 %v2854, %v2853
      %v2884 = vpack.c.b16 %v2856, %v2855
      %v2885 = vpack.c.b16 %v2858, %v2857
      %v2886 = vpack.c.b16 %v2860, %v2859
      %v2887 = vpack.c.b16 %v2862, %v2861
      %v2888 = vpack.c.b16 %v2864, %v2863
      %v2889 = vpack.c.b16 %v2866, %v2865
      %v2890 = vpack.c.b16 %v2868, %v2867
      %v2891 = vpack.c.b16 %v2870, %v2869
      %v2892 = vpack.c.b16 %v2872, %v2871
      %v2893 = vpack.c.b16 %v2874, %v2873
      %v2894 = vpack.c.b16 %v2876, %v2875
      %v2895 = vpack.c.b16 %v2878, %v2877
      %v2896 = vpack.c.b16 %v2880, %v2879
      %2913 = vst [vmem:[#allocation3 + $0x28] sm:$0xff] %v2881
      %2914 = vst [vmem:[#allocation3 + $0x70] sm:$0xff] %v2882
      %2915 = vst [vmem:[#allocation3 + $0xb8] sm:$0xff] %v2883
      %2916 = vst [vmem:[#allocation3 + $0x100] sm:$0xff] %v2884
      %2917 = vst [vmem:[#allocation3 + $0x148] sm:$0xff] %v2885
      %2918 = vst [vmem:[#allocation3 + $0x190] sm:$0xff] %v2886
      %2919 = vst [vmem:[#allocation3 + $0x1d8] sm:$0xff] %v2887
      %2920 = vst [vmem:[#allocation3 + $0x220] sm:$0xff] %v2888
      %2921 = vst [vmem:[#allocation3 + $0x268] sm:$0xff] %v2889
      %2922 = vst [vmem:[#allocation3 + $0x2b0] sm:$0xff] %v2890
      %2923 = vst [vmem:[#allocation3 + $0x2f8] sm:$0xff] %v2891
      %2924 = vst [vmem:[#allocation3 + $0x340] sm:$0xff] %v2892
      %2925 = vst [vmem:[#allocation3 + $0x388] sm:$0xff] %v2893
      %2926 = vst [vmem:[#allocation3 + $0x3d0] sm:$0xff] %v2894
      %2927 = vst [vmem:[#allocation3 + $0x418] sm:$0xff] %v2895
      %2928 = vst [vmem:[#allocation3 + $0x460] sm:$0xff] %v2896
      %s2929 = scalar_lea.vmem [#allocation2], 24
      %v2930 = vld [vmem:[%s2929] sm:$0xf]
      %v2931 = vld [vmem:[%s2929 + $0x4] sm:$0xf]
      %v2932 = vld [vmem:[%s2929 + $0xc] sm:$0xf]
      %v2933 = vld [vmem:[%s2929 + $0x10] sm:$0xf]
      %v2934 = vld [vmem:[%s2929 + $0x18] sm:$0xf]
      %v2935 = vld [vmem:[%s2929 + $0x1c] sm:$0xf]
      %v2936 = vld [vmem:[%s2929 + $0x24] sm:$0xf]
      %v2937 = vld [vmem:[%s2929 + $0x28] sm:$0xf]
      %v2938 = vld [vmem:[%s2929 + $0x30] sm:$0xf]
      %v2939 = vld [vmem:[%s2929 + $0x34] sm:$0xf]
      %v2940 = vld [vmem:[%s2929 + $0x3c] sm:$0xf]
      %v2941 = vld [vmem:[%s2929 + $0x40] sm:$0xf]
      %v2942 = vld [vmem:[%s2929 + $0x48] sm:$0xf]
      %v2943 = vld [vmem:[%s2929 + $0x4c] sm:$0xf]
      %v2944 = vld [vmem:[%s2929 + $0x54] sm:$0xf]
      %v2945 = vld [vmem:[%s2929 + $0x58] sm:$0xf]
      %v2946 = vld [vmem:[%s2929 + $0x60] sm:$0xf]
      %v2947 = vld [vmem:[%s2929 + $0x64] sm:$0xf]
      %v2948 = vld [vmem:[%s2929 + $0x6c] sm:$0xf]
      %v2949 = vld [vmem:[%s2929 + $0x70] sm:$0xf]
      %v2950 = vld [vmem:[%s2929 + $0x78] sm:$0xf]
      %v2951 = vld [vmem:[%s2929 + $0x7c] sm:$0xf]
      %v2952 = vld [vmem:[%s2929 + $0x84] sm:$0xf]
      %v2953 = vld [vmem:[%s2929 + $0x88] sm:$0xf]
      %v2954 = vld [vmem:[%s2929 + $0x90] sm:$0xf]
      %v2955 = vld [vmem:[%s2929 + $0x94] sm:$0xf]
      %v2956 = vld [vmem:[%s2929 + $0x9c] sm:$0xf]
      %v2957 = vld [vmem:[%s2929 + $0xa0] sm:$0xf]
      %v2958 = vld [vmem:[%s2929 + $0xa8] sm:$0xf]
      %v2959 = vld [vmem:[%s2929 + $0xac] sm:$0xf]
      %v2960 = vld [vmem:[%s2929 + $0xb4] sm:$0xf]
      %v2961 = vld [vmem:[%s2929 + $0xb8] sm:$0xf]
      %v2994 = vunpack.c.l.b16 %v2930
      %v2995 = vunpack.c.l.b16 %v2931
      %v2996 = vunpack.c.l.b16 %v2932
      %v2997 = vunpack.c.l.b16 %v2933
      %v2998 = vunpack.c.l.b16 %v2934
      %v2999 = vunpack.c.l.b16 %v2935
      %v3000 = vunpack.c.l.b16 %v2936
      %v3001 = vunpack.c.l.b16 %v2937
      %v3002 = vunpack.c.l.b16 %v2938
      %v3003 = vunpack.c.l.b16 %v2939
      %v3004 = vunpack.c.l.b16 %v2940
      %v3005 = vunpack.c.l.b16 %v2941
      %v3006 = vunpack.c.l.b16 %v2942
      %v3007 = vunpack.c.l.b16 %v2943
      %v3008 = vunpack.c.l.b16 %v2944
      %v3009 = vunpack.c.l.b16 %v2945
      %v3010 = vunpack.c.l.b16 %v2946
      %v3011 = vunpack.c.l.b16 %v2947
      %v3012 = vunpack.c.l.b16 %v2948
      %v3013 = vunpack.c.l.b16 %v2949
      %v3014 = vunpack.c.l.b16 %v2950
      %v3015 = vunpack.c.l.b16 %v2951
      %v3016 = vunpack.c.l.b16 %v2952
      %v3017 = vunpack.c.l.b16 %v2953
      %v3018 = vunpack.c.l.b16 %v2954
      %v3019 = vunpack.c.l.b16 %v2955
      %v3020 = vunpack.c.l.b16 %v2956
      %v3021 = vunpack.c.l.b16 %v2957
      %v3022 = vunpack.c.l.b16 %v2958
      %v3023 = vunpack.c.l.b16 %v2959
      %v3024 = vunpack.c.l.b16 %v2960
      %v3025 = vunpack.c.l.b16 %v2961
      %v3026 = vpack.c.b16 %v2995, %v2994
      %v3027 = vpack.c.b16 %v2997, %v2996
      %v3028 = vpack.c.b16 %v2999, %v2998
      %v3029 = vpack.c.b16 %v3001, %v3000
      %v3030 = vpack.c.b16 %v3003, %v3002
      %v3031 = vpack.c.b16 %v3005, %v3004
      %v3032 = vpack.c.b16 %v3007, %v3006
      %v3033 = vpack.c.b16 %v3009, %v3008
      %v3034 = vpack.c.b16 %v3011, %v3010
      %v3035 = vpack.c.b16 %v3013, %v3012
      %v3036 = vpack.c.b16 %v3015, %v3014
      %v3037 = vpack.c.b16 %v3017, %v3016
      %v3038 = vpack.c.b16 %v3019, %v3018
      %v3039 = vpack.c.b16 %v3021, %v3020
      %v3040 = vpack.c.b16 %v3023, %v3022
      %v3041 = vpack.c.b16 %v3025, %v3024
      %3058 = vst [vmem:[#allocation3 + $0x30] sm:$0xff] %v3026
      %3059 = vst [vmem:[#allocation3 + $0x78] sm:$0xff] %v3027
      %3060 = vst [vmem:[#allocation3 + $0xc0] sm:$0xff] %v3028
      %3061 = vst [vmem:[#allocation3 + $0x108] sm:$0xff] %v3029
      %3062 = vst [vmem:[#allocation3 + $0x150] sm:$0xff] %v3030
      %3063 = vst [vmem:[#allocation3 + $0x198] sm:$0xff] %v3031
      %3064 = vst [vmem:[#allocation3 + $0x1e0] sm:$0xff] %v3032
      %3065 = vst [vmem:[#allocation3 + $0x228] sm:$0xff] %v3033
      %3066 = vst [vmem:[#allocation3 + $0x270] sm:$0xff] %v3034
      %3067 = vst [vmem:[#allocation3 + $0x2b8] sm:$0xff] %v3035
      %3068 = vst [vmem:[#allocation3 + $0x300] sm:$0xff] %v3036
      %3069 = vst [vmem:[#allocation3 + $0x348] sm:$0xff] %v3037
      %3070 = vst [vmem:[#allocation3 + $0x390] sm:$0xff] %v3038
      %3071 = vst [vmem:[#allocation3 + $0x3d8] sm:$0xff] %v3039
      %3072 = vst [vmem:[#allocation3 + $0x420] sm:$0xff] %v3040
      %3073 = vst [vmem:[#allocation3 + $0x468] sm:$0xff] %v3041
      %v3074 = vld [vmem:[%s2929] sm:$0xf]
      %v3075 = vld [vmem:[%s2929 + $0x4] sm:$0xf]
      %v3076 = vld [vmem:[%s2929 + $0x8] sm:$0x1]
      %v3077 = vld [vmem:[%s2929 + $0xc] sm:$0xf]
      %v3078 = vld [vmem:[%s2929 + $0x10] sm:$0xf]
      %v3079 = vld [vmem:[%s2929 + $0x14] sm:$0x1]
      %v3080 = vld [vmem:[%s2929 + $0x18] sm:$0xf]
      %v3081 = vld [vmem:[%s2929 + $0x1c] sm:$0xf]
      %v3082 = vld [vmem:[%s2929 + $0x20] sm:$0x1]
      %v3083 = vld [vmem:[%s2929 + $0x24] sm:$0xf]
      %v3084 = vld [vmem:[%s2929 + $0x28] sm:$0xf]
      %v3085 = vld [vmem:[%s2929 + $0x2c] sm:$0x1]
      %v3086 = vld [vmem:[%s2929 + $0x30] sm:$0xf]
      %v3087 = vld [vmem:[%s2929 + $0x34] sm:$0xf]
      %v3088 = vld [vmem:[%s2929 + $0x38] sm:$0x1]
      %v3089 = vld [vmem:[%s2929 + $0x3c] sm:$0xf]
      %v3090 = vld [vmem:[%s2929 + $0x40] sm:$0xf]
      %v3091 = vld [vmem:[%s2929 + $0x44] sm:$0x1]
      %v3092 = vld [vmem:[%s2929 + $0x48] sm:$0xf]
      %v3093 = vld [vmem:[%s2929 + $0x4c] sm:$0xf]
      %v3094 = vld [vmem:[%s2929 + $0x50] sm:$0x1]
      %v3095 = vld [vmem:[%s2929 + $0x54] sm:$0xf]
      %v3096 = vld [vmem:[%s2929 + $0x58] sm:$0xf]
      %v3097 = vld [vmem:[%s2929 + $0x5c] sm:$0x1]
      %v3098 = vld [vmem:[%s2929 + $0x60] sm:$0xf]
      %v3099 = vld [vmem:[%s2929 + $0x64] sm:$0xf]
      %v3100 = vld [vmem:[%s2929 + $0x68] sm:$0x1]
      %v3101 = vld [vmem:[%s2929 + $0x6c] sm:$0xf]
      %v3102 = vld [vmem:[%s2929 + $0x70] sm:$0xf]
      %v3103 = vld [vmem:[%s2929 + $0x74] sm:$0x1]
      %v3104 = vld [vmem:[%s2929 + $0x78] sm:$0xf]
      %v3105 = vld [vmem:[%s2929 + $0x7c] sm:$0xf]
      %v3106 = vld [vmem:[%s2929 + $0x80] sm:$0x1]
      %v3107 = vld [vmem:[%s2929 + $0x84] sm:$0xf]
      %v3108 = vld [vmem:[%s2929 + $0x88] sm:$0xf]
      %v3109 = vld [vmem:[%s2929 + $0x8c] sm:$0x1]
      %v3110 = vld [vmem:[%s2929 + $0x90] sm:$0xf]
      %v3111 = vld [vmem:[%s2929 + $0x94] sm:$0xf]
      %v3112 = vld [vmem:[%s2929 + $0x98] sm:$0x1]
      %v3113 = vld [vmem:[%s2929 + $0x9c] sm:$0xf]
      %v3114 = vld [vmem:[%s2929 + $0xa0] sm:$0xf]
      %v3115 = vld [vmem:[%s2929 + $0xa4] sm:$0x1]
      %v3116 = vld [vmem:[%s2929 + $0xa8] sm:$0xf]
      %v3117 = vld [vmem:[%s2929 + $0xac] sm:$0xf]
      %v3118 = vld [vmem:[%s2929 + $0xb0] sm:$0x1]
      %v3119 = vld [vmem:[%s2929 + $0xb4] sm:$0xf]
      %v3120 = vld [vmem:[%s2929 + $0xb8] sm:$0xf]
      %v3121 = vld [vmem:[%s2929 + $0xbc] sm:$0x1]
      %v3123 = vshrl.u32 %v3074, 16
      %v3125 = vrot.slane %v3123, 4
      %v3126 = vshll.u32 %v3074, 16
      %v3128 = vrot.slane %v3126, 5
      %v3129 = vor.u32 %v3125, %v3128
      %v3130 = vrot.slane %v3129, 4
      %v3132 = vshll.u32 %v3075, 16
      %v3134 = vrot.slane %v3132, 5
      %v3135 = vsel %vm1229, %v3130, %v3134
      %v3136 = vshrl.u32 %v3075, 16
      %v3138 = vrot.slane %v3136, 4
      %v3139 = vor.u32 %v3138, %v3134
      %v3140 = vrot.slane %v3139, 4
      %v3142 = vshll.u32 %v3076, 16
      %v3144 = vrot.slane %v3142, 5
      %v3145 = vsel %vm1229, %v3140, %v3144
      %v3147 = vshrl.u32 %v3077, 16
      %v3149 = vrot.slane %v3147, 4
      %v3150 = vshll.u32 %v3077, 16
      %v3152 = vrot.slane %v3150, 5
      %v3153 = vor.u32 %v3149, %v3152
      %v3154 = vrot.slane %v3153, 4
      %v3156 = vshll.u32 %v3078, 16
      %v3158 = vrot.slane %v3156, 5
      %v3159 = vsel %vm1229, %v3154, %v3158
      %v3160 = vshrl.u32 %v3078, 16
      %v3162 = vrot.slane %v3160, 4
      %v3163 = vor.u32 %v3162, %v3158
      %v3164 = vrot.slane %v3163, 4
      %v3166 = vshll.u32 %v3079, 16
      %v3168 = vrot.slane %v3166, 5
      %v3169 = vsel %vm1229, %v3164, %v3168
      %v3171 = vshrl.u32 %v3080, 16
      %v3173 = vrot.slane %v3171, 4
      %v3174 = vshll.u32 %v3080, 16
      %v3176 = vrot.slane %v3174, 5
      %v3177 = vor.u32 %v3173, %v3176
      %v3178 = vrot.slane %v3177, 4
      %v3180 = vshll.u32 %v3081, 16
      %v3182 = vrot.slane %v3180, 5
      %v3183 = vsel %vm1229, %v3178, %v3182
      %v3184 = vshrl.u32 %v3081, 16
      %v3186 = vrot.slane %v3184, 4
      %v3187 = vor.u32 %v3186, %v3182
      %v3188 = vrot.slane %v3187, 4
      %v3190 = vshll.u32 %v3082, 16
      %v3192 = vrot.slane %v3190, 5
      %v3193 = vsel %vm1229, %v3188, %v3192
      %v3195 = vshrl.u32 %v3083, 16
      %v3197 = vrot.slane %v3195, 4
      %v3198 = vshll.u32 %v3083, 16
      %v3200 = vrot.slane %v3198, 5
      %v3201 = vor.u32 %v3197, %v3200
      %v3202 = vrot.slane %v3201, 4
      %v3204 = vshll.u32 %v3084, 16
      %v3206 = vrot.slane %v3204, 5
      %v3207 = vsel %vm1229, %v3202, %v3206
      %v3208 = vshrl.u32 %v3084, 16
      %v3210 = vrot.slane %v3208, 4
      %v3211 = vor.u32 %v3210, %v3206
      %v3212 = vrot.slane %v3211, 4
      %v3214 = vshll.u32 %v3085, 16
      %v3216 = vrot.slane %v3214, 5
      %v3217 = vsel %vm1229, %v3212, %v3216
      %v3219 = vshrl.u32 %v3086, 16
      %v3221 = vrot.slane %v3219, 4
      %v3222 = vshll.u32 %v3086, 16
      %v3224 = vrot.slane %v3222, 5
      %v3225 = vor.u32 %v3221, %v3224
      %v3226 = vrot.slane %v3225, 4
      %v3228 = vshll.u32 %v3087, 16
      %v3230 = vrot.slane %v3228, 5
      %v3231 = vsel %vm1229, %v3226, %v3230
      %v3232 = vshrl.u32 %v3087, 16
      %v3234 = vrot.slane %v3232, 4
      %v3235 = vor.u32 %v3234, %v3230
      %v3236 = vrot.slane %v3235, 4
      %v3238 = vshll.u32 %v3088, 16
      %v3240 = vrot.slane %v3238, 5
      %v3241 = vsel %vm1229, %v3236, %v3240
      %v3243 = vshrl.u32 %v3089, 16
      %v3245 = vrot.slane %v3243, 4
      %v3246 = vshll.u32 %v3089, 16
      %v3248 = vrot.slane %v3246, 5
      %v3249 = vor.u32 %v3245, %v3248
      %v3250 = vrot.slane %v3249, 4
      %v3252 = vshll.u32 %v3090, 16
      %v3254 = vrot.slane %v3252, 5
      %v3255 = vsel %vm1229, %v3250, %v3254
      %v3256 = vshrl.u32 %v3090, 16
      %v3258 = vrot.slane %v3256, 4
      %v3259 = vor.u32 %v3258, %v3254
      %v3260 = vrot.slane %v3259, 4
      %v3262 = vshll.u32 %v3091, 16
      %v3264 = vrot.slane %v3262, 5
      %v3265 = vsel %vm1229, %v3260, %v3264
      %v3267 = vshrl.u32 %v3092, 16
      %v3269 = vrot.slane %v3267, 4
      %v3270 = vshll.u32 %v3092, 16
      %v3272 = vrot.slane %v3270, 5
      %v3273 = vor.u32 %v3269, %v3272
      %v3274 = vrot.slane %v3273, 4
      %v3276 = vshll.u32 %v3093, 16
      %v3278 = vrot.slane %v3276, 5
      %v3279 = vsel %vm1229, %v3274, %v3278
      %v3280 = vshrl.u32 %v3093, 16
      %v3282 = vrot.slane %v3280, 4
      %v3283 = vor.u32 %v3282, %v3278
      %v3284 = vrot.slane %v3283, 4
      %v3286 = vshll.u32 %v3094, 16
      %v3288 = vrot.slane %v3286, 5
      %v3289 = vsel %vm1229, %v3284, %v3288
      %v3291 = vshrl.u32 %v3095, 16
      %v3293 = vrot.slane %v3291, 4
      %v3294 = vshll.u32 %v3095, 16
      %v3296 = vrot.slane %v3294, 5
      %v3297 = vor.u32 %v3293, %v3296
      %v3298 = vrot.slane %v3297, 4
      %v3300 = vshll.u32 %v3096, 16
      %v3302 = vrot.slane %v3300, 5
      %v3303 = vsel %vm1229, %v3298, %v3302
      %v3304 = vshrl.u32 %v3096, 16
      %v3306 = vrot.slane %v3304, 4
      %v3307 = vor.u32 %v3306, %v3302
      %v3308 = vrot.slane %v3307, 4
      %v3310 = vshll.u32 %v3097, 16
      %v3312 = vrot.slane %v3310, 5
      %v3313 = vsel %vm1229, %v3308, %v3312
      %v3315 = vshrl.u32 %v3098, 16
      %v3317 = vrot.slane %v3315, 4
      %v3318 = vshll.u32 %v3098, 16
      %v3320 = vrot.slane %v3318, 5
      %v3321 = vor.u32 %v3317, %v3320
      %v3322 = vrot.slane %v3321, 4
      %v3324 = vshll.u32 %v3099, 16
      %v3326 = vrot.slane %v3324, 5
      %v3327 = vsel %vm1229, %v3322, %v3326
      %v3328 = vshrl.u32 %v3099, 16
      %v3330 = vrot.slane %v3328, 4
      %v3331 = vor.u32 %v3330, %v3326
      %v3332 = vrot.slane %v3331, 4
      %v3334 = vshll.u32 %v3100, 16
      %v3336 = vrot.slane %v3334, 5
      %v3337 = vsel %vm1229, %v3332, %v3336
      %v3339 = vshrl.u32 %v3101, 16
      %v3341 = vrot.slane %v3339, 4
      %v3342 = vshll.u32 %v3101, 16
      %v3344 = vrot.slane %v3342, 5
      %v3345 = vor.u32 %v3341, %v3344
      %v3346 = vrot.slane %v3345, 4
      %v3348 = vshll.u32 %v3102, 16
      %v3350 = vrot.slane %v3348, 5
      %v3351 = vsel %vm1229, %v3346, %v3350
      %v3352 = vshrl.u32 %v3102, 16
      %v3354 = vrot.slane %v3352, 4
      %v3355 = vor.u32 %v3354, %v3350
      %v3356 = vrot.slane %v3355, 4
      %v3358 = vshll.u32 %v3103, 16
      %v3360 = vrot.slane %v3358, 5
      %v3361 = vsel %vm1229, %v3356, %v3360
      %v3363 = vshrl.u32 %v3104, 16
      %v3365 = vrot.slane %v3363, 4
      %v3366 = vshll.u32 %v3104, 16
      %v3368 = vrot.slane %v3366, 5
      %v3369 = vor.u32 %v3365, %v3368
      %v3370 = vrot.slane %v3369, 4
      %v3372 = vshll.u32 %v3105, 16
      %v3374 = vrot.slane %v3372, 5
      %v3375 = vsel %vm1229, %v3370, %v3374
      %v3376 = vshrl.u32 %v3105, 16
      %v3378 = vrot.slane %v3376, 4
      %v3379 = vor.u32 %v3378, %v3374
      %v3380 = vrot.slane %v3379, 4
      %v3382 = vshll.u32 %v3106, 16
      %v3384 = vrot.slane %v3382, 5
      %v3385 = vsel %vm1229, %v3380, %v3384
      %v3387 = vshrl.u32 %v3107, 16
      %v3389 = vrot.slane %v3387, 4
      %v3390 = vshll.u32 %v3107, 16
      %v3392 = vrot.slane %v3390, 5
      %v3393 = vor.u32 %v3389, %v3392
      %v3394 = vrot.slane %v3393, 4
      %v3396 = vshll.u32 %v3108, 16
      %v3398 = vrot.slane %v3396, 5
      %v3399 = vsel %vm1229, %v3394, %v3398
      %v3400 = vshrl.u32 %v3108, 16
      %v3402 = vrot.slane %v3400, 4
      %v3403 = vor.u32 %v3402, %v3398
      %v3404 = vrot.slane %v3403, 4
      %v3406 = vshll.u32 %v3109, 16
      %v3408 = vrot.slane %v3406, 5
      %v3409 = vsel %vm1229, %v3404, %v3408
      %v3411 = vshrl.u32 %v3110, 16
      %v3413 = vrot.slane %v3411, 4
      %v3414 = vshll.u32 %v3110, 16
      %v3416 = vrot.slane %v3414, 5
      %v3417 = vor.u32 %v3413, %v3416
      %v3418 = vrot.slane %v3417, 4
      %v3420 = vshll.u32 %v3111, 16
      %v3422 = vrot.slane %v3420, 5
      %v3423 = vsel %vm1229, %v3418, %v3422
      %v3424 = vshrl.u32 %v3111, 16
      %v3426 = vrot.slane %v3424, 4
      %v3427 = vor.u32 %v3426, %v3422
      %v3428 = vrot.slane %v3427, 4
      %v3430 = vshll.u32 %v3112, 16
      %v3432 = vrot.slane %v3430, 5
      %v3433 = vsel %vm1229, %v3428, %v3432
      %v3435 = vshrl.u32 %v3113, 16
      %v3437 = vrot.slane %v3435, 4
      %v3438 = vshll.u32 %v3113, 16
      %v3440 = vrot.slane %v3438, 5
      %v3441 = vor.u32 %v3437, %v3440
      %v3442 = vrot.slane %v3441, 4
      %v3444 = vshll.u32 %v3114, 16
      %v3446 = vrot.slane %v3444, 5
      %v3447 = vsel %vm1229, %v3442, %v3446
      %v3448 = vshrl.u32 %v3114, 16
      %v3450 = vrot.slane %v3448, 4
      %v3451 = vor.u32 %v3450, %v3446
      %v3452 = vrot.slane %v3451, 4
      %v3454 = vshll.u32 %v3115, 16
      %v3456 = vrot.slane %v3454, 5
      %v3457 = vsel %vm1229, %v3452, %v3456
      %v3459 = vshrl.u32 %v3116, 16
      %v3461 = vrot.slane %v3459, 4
      %v3462 = vshll.u32 %v3116, 16
      %v3464 = vrot.slane %v3462, 5
      %v3465 = vor.u32 %v3461, %v3464
      %v3466 = vrot.slane %v3465, 4
      %v3468 = vshll.u32 %v3117, 16
      %v3470 = vrot.slane %v3468, 5
      %v3471 = vsel %vm1229, %v3466, %v3470
      %v3472 = vshrl.u32 %v3117, 16
      %v3474 = vrot.slane %v3472, 4
      %v3475 = vor.u32 %v3474, %v3470
      %v3476 = vrot.slane %v3475, 4
      %v3478 = vshll.u32 %v3118, 16
      %v3480 = vrot.slane %v3478, 5
      %v3481 = vsel %vm1229, %v3476, %v3480
      %v3483 = vshrl.u32 %v3119, 16
      %v3485 = vrot.slane %v3483, 4
      %v3486 = vshll.u32 %v3119, 16
      %v3488 = vrot.slane %v3486, 5
      %v3489 = vor.u32 %v3485, %v3488
      %v3490 = vrot.slane %v3489, 4
      %v3492 = vshll.u32 %v3120, 16
      %v3494 = vrot.slane %v3492, 5
      %v3495 = vsel %vm1229, %v3490, %v3494
      %v3496 = vshrl.u32 %v3120, 16
      %v3498 = vrot.slane %v3496, 4
      %v3499 = vor.u32 %v3498, %v3494
      %v3500 = vrot.slane %v3499, 4
      %v3502 = vshll.u32 %v3121, 16
      %v3504 = vrot.slane %v3502, 5
      %v3505 = vsel %vm1229, %v3500, %v3504
      %v3506 = vunpack.c.l.b16 %v3135
      %v3507 = vunpack.c.l.b16 %v3145
      %v3508 = vunpack.c.l.b16 %v3159
      %v3509 = vunpack.c.l.b16 %v3169
      %v3510 = vunpack.c.l.b16 %v3183
      %v3511 = vunpack.c.l.b16 %v3193
      %v3512 = vunpack.c.l.b16 %v3207
      %v3513 = vunpack.c.l.b16 %v3217
      %v3514 = vunpack.c.l.b16 %v3231
      %v3515 = vunpack.c.l.b16 %v3241
      %v3516 = vunpack.c.l.b16 %v3255
      %v3517 = vunpack.c.l.b16 %v3265
      %v3518 = vunpack.c.l.b16 %v3279
      %v3519 = vunpack.c.l.b16 %v3289
      %v3520 = vunpack.c.l.b16 %v3303
      %v3521 = vunpack.c.l.b16 %v3313
      %v3522 = vunpack.c.l.b16 %v3327
      %v3523 = vunpack.c.l.b16 %v3337
      %v3524 = vunpack.c.l.b16 %v3351
      %v3525 = vunpack.c.l.b16 %v3361
      %v3526 = vunpack.c.l.b16 %v3375
      %v3527 = vunpack.c.l.b16 %v3385
      %v3528 = vunpack.c.l.b16 %v3399
      %v3529 = vunpack.c.l.b16 %v3409
      %v3530 = vunpack.c.l.b16 %v3423
      %v3531 = vunpack.c.l.b16 %v3433
      %v3532 = vunpack.c.l.b16 %v3447
      %v3533 = vunpack.c.l.b16 %v3457
      %v3534 = vunpack.c.l.b16 %v3471
      %v3535 = vunpack.c.l.b16 %v3481
      %v3536 = vunpack.c.l.b16 %v3495
      %v3537 = vunpack.c.l.b16 %v3505
      %v3538 = vpack.c.b16 %v3507, %v3506
      %v3539 = vpack.c.b16 %v3509, %v3508
      %v3540 = vpack.c.b16 %v3511, %v3510
      %v3541 = vpack.c.b16 %v3513, %v3512
      %v3542 = vpack.c.b16 %v3515, %v3514
      %v3543 = vpack.c.b16 %v3517, %v3516
      %v3544 = vpack.c.b16 %v3519, %v3518
      %v3545 = vpack.c.b16 %v3521, %v3520
      %v3546 = vpack.c.b16 %v3523, %v3522
      %v3547 = vpack.c.b16 %v3525, %v3524
      %v3548 = vpack.c.b16 %v3527, %v3526
      %v3549 = vpack.c.b16 %v3529, %v3528
      %v3550 = vpack.c.b16 %v3531, %v3530
      %v3551 = vpack.c.b16 %v3533, %v3532
      %v3552 = vpack.c.b16 %v3535, %v3534
      %v3553 = vpack.c.b16 %v3537, %v3536
      %3570 = vst [vmem:[#allocation3 + $0x38] sm:$0xff] %v3538
      %3571 = vst [vmem:[#allocation3 + $0x80] sm:$0xff] %v3539
      %3572 = vst [vmem:[#allocation3 + $0xc8] sm:$0xff] %v3540
      %3573 = vst [vmem:[#allocation3 + $0x110] sm:$0xff] %v3541
      %3574 = vst [vmem:[#allocation3 + $0x158] sm:$0xff] %v3542
      %3575 = vst [vmem:[#allocation3 + $0x1a0] sm:$0xff] %v3543
      %3576 = vst [vmem:[#allocation3 + $0x1e8] sm:$0xff] %v3544
      %3577 = vst [vmem:[#allocation3 + $0x230] sm:$0xff] %v3545
      %3578 = vst [vmem:[#allocation3 + $0x278] sm:$0xff] %v3546
      %3579 = vst [vmem:[#allocation3 + $0x2c0] sm:$0xff] %v3547
      %3580 = vst [vmem:[#allocation3 + $0x308] sm:$0xff] %v3548
      %3581 = vst [vmem:[#allocation3 + $0x350] sm:$0xff] %v3549
      %3582 = vst [vmem:[#allocation3 + $0x398] sm:$0xff] %v3550
      %3583 = vst [vmem:[#allocation3 + $0x3e0] sm:$0xff] %v3551
      %3584 = vst [vmem:[#allocation3 + $0x428] sm:$0xff] %v3552
      %3585 = vst [vmem:[#allocation3 + $0x470] sm:$0xff] %v3553
      %v3586 = vld [vmem:[%s2929] sm:$0xe]
      %v3587 = vld [vmem:[%s2929 + $0x4] sm:$0xf]
      %v3588 = vld [vmem:[%s2929 + $0x8] sm:$0x1]
      %v3589 = vld [vmem:[%s2929 + $0xc] sm:$0xe]
      %v3590 = vld [vmem:[%s2929 + $0x10] sm:$0xf]
      %v3591 = vld [vmem:[%s2929 + $0x14] sm:$0x1]
      %v3592 = vld [vmem:[%s2929 + $0x18] sm:$0xe]
      %v3593 = vld [vmem:[%s2929 + $0x1c] sm:$0xf]
      %v3594 = vld [vmem:[%s2929 + $0x20] sm:$0x1]
      %v3595 = vld [vmem:[%s2929 + $0x24] sm:$0xe]
      %v3596 = vld [vmem:[%s2929 + $0x28] sm:$0xf]
      %v3597 = vld [vmem:[%s2929 + $0x2c] sm:$0x1]
      %v3598 = vld [vmem:[%s2929 + $0x30] sm:$0xe]
      %v3599 = vld [vmem:[%s2929 + $0x34] sm:$0xf]
      %v3600 = vld [vmem:[%s2929 + $0x38] sm:$0x1]
      %v3601 = vld [vmem:[%s2929 + $0x3c] sm:$0xe]
      %v3602 = vld [vmem:[%s2929 + $0x40] sm:$0xf]
      %v3603 = vld [vmem:[%s2929 + $0x44] sm:$0x1]
      %v3604 = vld [vmem:[%s2929 + $0x48] sm:$0xe]
      %v3605 = vld [vmem:[%s2929 + $0x4c] sm:$0xf]
      %v3606 = vld [vmem:[%s2929 + $0x50] sm:$0x1]
      %v3607 = vld [vmem:[%s2929 + $0x54] sm:$0xe]
      %v3608 = vld [vmem:[%s2929 + $0x58] sm:$0xf]
      %v3609 = vld [vmem:[%s2929 + $0x5c] sm:$0x1]
      %v3610 = vld [vmem:[%s2929 + $0x60] sm:$0xe]
      %v3611 = vld [vmem:[%s2929 + $0x64] sm:$0xf]
      %v3612 = vld [vmem:[%s2929 + $0x68] sm:$0x1]
      %v3613 = vld [vmem:[%s2929 + $0x6c] sm:$0xe]
      %v3614 = vld [vmem:[%s2929 + $0x70] sm:$0xf]
      %v3615 = vld [vmem:[%s2929 + $0x74] sm:$0x1]
      %v3616 = vld [vmem:[%s2929 + $0x78] sm:$0xe]
      %v3617 = vld [vmem:[%s2929 + $0x7c] sm:$0xf]
      %v3618 = vld [vmem:[%s2929 + $0x80] sm:$0x1]
      %v3619 = vld [vmem:[%s2929 + $0x84] sm:$0xe]
      %v3620 = vld [vmem:[%s2929 + $0x88] sm:$0xf]
      %v3621 = vld [vmem:[%s2929 + $0x8c] sm:$0x1]
      %v3622 = vld [vmem:[%s2929 + $0x90] sm:$0xe]
      %v3623 = vld [vmem:[%s2929 + $0x94] sm:$0xf]
      %v3624 = vld [vmem:[%s2929 + $0x98] sm:$0x1]
      %v3625 = vld [vmem:[%s2929 + $0x9c] sm:$0xe]
      %v3626 = vld [vmem:[%s2929 + $0xa0] sm:$0xf]
      %v3627 = vld [vmem:[%s2929 + $0xa4] sm:$0x1]
      %v3628 = vld [vmem:[%s2929 + $0xa8] sm:$0xe]
      %v3629 = vld [vmem:[%s2929 + $0xac] sm:$0xf]
      %v3630 = vld [vmem:[%s2929 + $0xb0] sm:$0x1]
      %v3631 = vld [vmem:[%s2929 + $0xb4] sm:$0xe]
      %v3632 = vld [vmem:[%s2929 + $0xb8] sm:$0xf]
      %v3633 = vld [vmem:[%s2929 + $0xbc] sm:$0x1]
      %v3682 = vrot.slane %v3586, 5
      %v3683 = vrot.slane %v3682, 4
      %v3684 = vrot.slane %v3587, 5
      %v3685 = vsel %vm1792, %v3683, %v3684
      %v3686 = vrot.slane %v3684, 4
      %v3687 = vrot.slane %v3588, 5
      %v3688 = vsel %vm1792, %v3686, %v3687
      %v3689 = vrot.slane %v3589, 5
      %v3690 = vrot.slane %v3689, 4
      %v3691 = vrot.slane %v3590, 5
      %v3692 = vsel %vm1792, %v3690, %v3691
      %v3693 = vrot.slane %v3691, 4
      %v3694 = vrot.slane %v3591, 5
      %v3695 = vsel %vm1792, %v3693, %v3694
      %v3696 = vrot.slane %v3592, 5
      %v3697 = vrot.slane %v3696, 4
      %v3698 = vrot.slane %v3593, 5
      %v3699 = vsel %vm1792, %v3697, %v3698
      %v3700 = vrot.slane %v3698, 4
      %v3701 = vrot.slane %v3594, 5
      %v3702 = vsel %vm1792, %v3700, %v3701
      %v3703 = vrot.slane %v3595, 5
      %v3704 = vrot.slane %v3703, 4
      %v3705 = vrot.slane %v3596, 5
      %v3706 = vsel %vm1792, %v3704, %v3705
      %v3707 = vrot.slane %v3705, 4
      %v3708 = vrot.slane %v3597, 5
      %v3709 = vsel %vm1792, %v3707, %v3708
      %v3710 = vrot.slane %v3598, 5
      %v3711 = vrot.slane %v3710, 4
      %v3712 = vrot.slane %v3599, 5
      %v3713 = vsel %vm1792, %v3711, %v3712
      %v3714 = vrot.slane %v3712, 4
      %v3715 = vrot.slane %v3600, 5
      %v3716 = vsel %vm1792, %v3714, %v3715
      %v3717 = vrot.slane %v3601, 5
      %v3718 = vrot.slane %v3717, 4
      %v3719 = vrot.slane %v3602, 5
      %v3720 = vsel %vm1792, %v3718, %v3719
      %v3721 = vrot.slane %v3719, 4
      %v3722 = vrot.slane %v3603, 5
      %v3723 = vsel %vm1792, %v3721, %v3722
      %v3724 = vrot.slane %v3604, 5
      %v3725 = vrot.slane %v3724, 4
      %v3726 = vrot.slane %v3605, 5
      %v3727 = vsel %vm1792, %v3725, %v3726
      %v3728 = vrot.slane %v3726, 4
      %v3729 = vrot.slane %v3606, 5
      %v3730 = vsel %vm1792, %v3728, %v3729
      %v3731 = vrot.slane %v3607, 5
      %v3732 = vrot.slane %v3731, 4
      %v3733 = vrot.slane %v3608, 5
      %v3734 = vsel %vm1792, %v3732, %v3733
      %v3735 = vrot.slane %v3733, 4
      %v3736 = vrot.slane %v3609, 5
      %v3737 = vsel %vm1792, %v3735, %v3736
      %v3738 = vrot.slane %v3610, 5
      %v3739 = vrot.slane %v3738, 4
      %v3740 = vrot.slane %v3611, 5
      %v3741 = vsel %vm1792, %v3739, %v3740
      %v3742 = vrot.slane %v3740, 4
      %v3743 = vrot.slane %v3612, 5
      %v3744 = vsel %vm1792, %v3742, %v3743
      %v3745 = vrot.slane %v3613, 5
      %v3746 = vrot.slane %v3745, 4
      %v3747 = vrot.slane %v3614, 5
      %v3748 = vsel %vm1792, %v3746, %v3747
      %v3749 = vrot.slane %v3747, 4
      %v3750 = vrot.slane %v3615, 5
      %v3751 = vsel %vm1792, %v3749, %v3750
      %v3752 = vrot.slane %v3616, 5
      %v3753 = vrot.slane %v3752, 4
      %v3754 = vrot.slane %v3617, 5
      %v3755 = vsel %vm1792, %v3753, %v3754
      %v3756 = vrot.slane %v3754, 4
      %v3757 = vrot.slane %v3618, 5
      %v3758 = vsel %vm1792, %v3756, %v3757
      %v3759 = vrot.slane %v3619, 5
      %v3760 = vrot.slane %v3759, 4
      %v3761 = vrot.slane %v3620, 5
      %v3762 = vsel %vm1792, %v3760, %v3761
      %v3763 = vrot.slane %v3761, 4
      %v3764 = vrot.slane %v3621, 5
      %v3765 = vsel %vm1792, %v3763, %v3764
      %v3766 = vrot.slane %v3622, 5
      %v3767 = vrot.slane %v3766, 4
      %v3768 = vrot.slane %v3623, 5
      %v3769 = vsel %vm1792, %v3767, %v3768
      %v3770 = vrot.slane %v3768, 4
      %v3771 = vrot.slane %v3624, 5
      %v3772 = vsel %vm1792, %v3770, %v3771
      %v3773 = vrot.slane %v3625, 5
      %v3774 = vrot.slane %v3773, 4
      %v3775 = vrot.slane %v3626, 5
      %v3776 = vsel %vm1792, %v3774, %v3775
      %v3777 = vrot.slane %v3775, 4
      %v3778 = vrot.slane %v3627, 5
      %v3779 = vsel %vm1792, %v3777, %v3778
      %v3780 = vrot.slane %v3628, 5
      %v3781 = vrot.slane %v3780, 4
      %v3782 = vrot.slane %v3629, 5
      %v3783 = vsel %vm1792, %v3781, %v3782
      %v3784 = vrot.slane %v3782, 4
      %v3785 = vrot.slane %v3630, 5
      %v3786 = vsel %vm1792, %v3784, %v3785
      %v3787 = vrot.slane %v3631, 5
      %v3788 = vrot.slane %v3787, 4
      %v3789 = vrot.slane %v3632, 5
      %v3790 = vsel %vm1792, %v3788, %v3789
      %v3791 = vrot.slane %v3789, 4
      %v3792 = vrot.slane %v3633, 5
      %v3793 = vsel %vm1792, %v3791, %v3792
      %v3794 = vunpack.c.l.b16 %v3685
      %v3795 = vunpack.c.l.b16 %v3688
      %v3796 = vunpack.c.l.b16 %v3692
      %v3797 = vunpack.c.l.b16 %v3695
      %v3798 = vunpack.c.l.b16 %v3699
      %v3799 = vunpack.c.l.b16 %v3702
      %v3800 = vunpack.c.l.b16 %v3706
      %v3801 = vunpack.c.l.b16 %v3709
      %v3802 = vunpack.c.l.b16 %v3713
      %v3803 = vunpack.c.l.b16 %v3716
      %v3804 = vunpack.c.l.b16 %v3720
      %v3805 = vunpack.c.l.b16 %v3723
      %v3806 = vunpack.c.l.b16 %v3727
      %v3807 = vunpack.c.l.b16 %v3730
      %v3808 = vunpack.c.l.b16 %v3734
      %v3809 = vunpack.c.l.b16 %v3737
      %v3810 = vunpack.c.l.b16 %v3741
      %v3811 = vunpack.c.l.b16 %v3744
      %v3812 = vunpack.c.l.b16 %v3748
      %v3813 = vunpack.c.l.b16 %v3751
      %v3814 = vunpack.c.l.b16 %v3755
      %v3815 = vunpack.c.l.b16 %v3758
      %v3816 = vunpack.c.l.b16 %v3762
      %v3817 = vunpack.c.l.b16 %v3765
      %v3818 = vunpack.c.l.b16 %v3769
      %v3819 = vunpack.c.l.b16 %v3772
      %v3820 = vunpack.c.l.b16 %v3776
      %v3821 = vunpack.c.l.b16 %v3779
      %v3822 = vunpack.c.l.b16 %v3783
      %v3823 = vunpack.c.l.b16 %v3786
      %v3824 = vunpack.c.l.b16 %v3790
      %v3825 = vunpack.c.l.b16 %v3793
      %v3826 = vpack.c.b16 %v3795, %v3794
      %v3827 = vpack.c.b16 %v3797, %v3796
      %v3828 = vpack.c.b16 %v3799, %v3798
      %v3829 = vpack.c.b16 %v3801, %v3800
      %v3830 = vpack.c.b16 %v3803, %v3802
      %v3831 = vpack.c.b16 %v3805, %v3804
      %v3832 = vpack.c.b16 %v3807, %v3806
      %v3833 = vpack.c.b16 %v3809, %v3808
      %v3834 = vpack.c.b16 %v3811, %v3810
      %v3835 = vpack.c.b16 %v3813, %v3812
      %v3836 = vpack.c.b16 %v3815, %v3814
      %v3837 = vpack.c.b16 %v3817, %v3816
      %v3838 = vpack.c.b16 %v3819, %v3818
      %v3839 = vpack.c.b16 %v3821, %v3820
      %v3840 = vpack.c.b16 %v3823, %v3822
      %v3841 = vpack.c.b16 %v3825, %v3824
      %3858 = vst [vmem:[#allocation3 + $0x40] sm:$0xff] %v3826
      %3859 = vst [vmem:[#allocation3 + $0x88] sm:$0xff] %v3827
      %3860 = vst [vmem:[#allocation3 + $0xd0] sm:$0xff] %v3828
      %3861 = vst [vmem:[#allocation3 + $0x118] sm:$0xff] %v3829
      %3862 = vst [vmem:[#allocation3 + $0x160] sm:$0xff] %v3830
      %3863 = vst [vmem:[#allocation3 + $0x1a8] sm:$0xff] %v3831
      %3864 = vst [vmem:[#allocation3 + $0x1f0] sm:$0xff] %v3832
      %3865 = vst [vmem:[#allocation3 + $0x238] sm:$0xff] %v3833
      %3866 = vst [vmem:[#allocation3 + $0x280] sm:$0xff] %v3834
      %3867 = vst [vmem:[#allocation3 + $0x2c8] sm:$0xff] %v3835
      %3868 = vst [vmem:[#allocation3 + $0x310] sm:$0xff] %v3836
      %3869 = vst [vmem:[#allocation3 + $0x358] sm:$0xff] %v3837
      %3870 = vst [vmem:[#allocation3 + $0x3a0] sm:$0xff] %v3838
      %3871 = vst [vmem:[#allocation3 + $0x3e8] sm:$0xff] %v3839
      %3872 = vst [vmem:[#allocation3 + $0x430] sm:$0xff] %v3840
      %3873 = vst [vmem:[#allocation3 + $0x478] sm:$0xff] %v3841
      %v3874 = vld [vmem:[#allocation3] sm:$0xff]
      %v3875 = vld [vmem:[#allocation3 + $0x8] sm:$0xff]
      %v3876 = vld [vmem:[#allocation3 + $0x10] sm:$0xff]
      %v3877 = vld [vmem:[#allocation3 + $0x18] sm:$0xff]
      %v3878 = vld [vmem:[#allocation3 + $0x20] sm:$0xff]
      %v3879 = vld [vmem:[#allocation3 + $0x28] sm:$0xff]
      %v3880 = vld [vmem:[#allocation3 + $0x30] sm:$0xff]
      %v3881 = vld [vmem:[#allocation3 + $0x38] sm:$0xff]
      %v3882 = vld [vmem:[#allocation3 + $0x40] sm:$0xff]
      %v3883 = vld [vmem:[#allocation3 + $0x48] sm:$0xff]
      %v3884 = vld [vmem:[#allocation3 + $0x50] sm:$0xff]
      %v3885 = vld [vmem:[#allocation3 + $0x58] sm:$0xff]
      %v3886 = vld [vmem:[#allocation3 + $0x60] sm:$0xff]
      %v3887 = vld [vmem:[#allocation3 + $0x68] sm:$0xff]
      %v3888 = vld [vmem:[#allocation3 + $0x70] sm:$0xff]
      %v3889 = vld [vmem:[#allocation3 + $0x78] sm:$0xff]
      %v3890 = vld [vmem:[#allocation3 + $0x80] sm:$0xff]
      %v3891 = vld [vmem:[#allocation3 + $0x88] sm:$0xff]
      %v3892 = vld [vmem:[#allocation3 + $0x90] sm:$0xff]
      %v3893 = vld [vmem:[#allocation3 + $0x98] sm:$0xff]
      %v3894 = vld [vmem:[#allocation3 + $0xa0] sm:$0xff]
      %v3895 = vld [vmem:[#allocation3 + $0xa8] sm:$0xff]
      %v3896 = vld [vmem:[#allocation3 + $0xb0] sm:$0xff]
      %v3897 = vld [vmem:[#allocation3 + $0xb8] sm:$0xff]
      %v3898 = vld [vmem:[#allocation3 + $0xc0] sm:$0xff]
      %v3899 = vld [vmem:[#allocation3 + $0xc8] sm:$0xff]
      %v3900 = vld [vmem:[#allocation3 + $0xd0] sm:$0xff]
      %v3901 = vld [vmem:[#allocation3 + $0xd8] sm:$0xff]
      %v3902 = vld [vmem:[#allocation3 + $0xe0] sm:$0xff]
      %v3903 = vld [vmem:[#allocation3 + $0xe8] sm:$0xff]
      %v3904 = vld [vmem:[#allocation3 + $0xf0] sm:$0xff]
      %v3905 = vld [vmem:[#allocation3 + $0xf8] sm:$0xff]
      %v3906 = vld [vmem:[#allocation3 + $0x100] sm:$0xff]
      %v3907 = vld [vmem:[#allocation3 + $0x108] sm:$0xff]
      %v3908 = vld [vmem:[#allocation3 + $0x110] sm:$0xff]
      %v3909 = vld [vmem:[#allocation3 + $0x118] sm:$0xff]
      %v3910 = vld [vmem:[#allocation3 + $0x120] sm:$0xff]
      %v3911 = vld [vmem:[#allocation3 + $0x128] sm:$0xff]
      %v3912 = vld [vmem:[#allocation3 + $0x130] sm:$0xff]
      %v3913 = vld [vmem:[#allocation3 + $0x138] sm:$0xff]
      %v3914 = vld [vmem:[#allocation3 + $0x140] sm:$0xff]
      %v3915 = vld [vmem:[#allocation3 + $0x148] sm:$0xff]
      %v3916 = vld [vmem:[#allocation3 + $0x150] sm:$0xff]
      %v3917 = vld [vmem:[#allocation3 + $0x158] sm:$0xff]
      %v3918 = vld [vmem:[#allocation3 + $0x160] sm:$0xff]
      %v3919 = vld [vmem:[#allocation3 + $0x168] sm:$0xff]
      %v3920 = vld [vmem:[#allocation3 + $0x170] sm:$0xff]
      %v3921 = vld [vmem:[#allocation3 + $0x178] sm:$0xff]
      %v3922 = vld [vmem:[#allocation3 + $0x180] sm:$0xff]
      %v3923 = vld [vmem:[#allocation3 + $0x188] sm:$0xff]
      %v3924 = vld [vmem:[#allocation3 + $0x190] sm:$0xff]
      %v3925 = vld [vmem:[#allocation3 + $0x198] sm:$0xff]
      %v3926 = vld [vmem:[#allocation3 + $0x1a0] sm:$0xff]
      %v3927 = vld [vmem:[#allocation3 + $0x1a8] sm:$0xff]
      %v3928 = vld [vmem:[#allocation3 + $0x1b0] sm:$0xff]
      %v3929 = vld [vmem:[#allocation3 + $0x1b8] sm:$0xff]
      %v3930 = vld [vmem:[#allocation3 + $0x1c0] sm:$0xff]
      %v3931 = vld [vmem:[#allocation3 + $0x1c8] sm:$0xff]
      %v3932 = vld [vmem:[#allocation3 + $0x1d0] sm:$0xff]
      %v3933 = vld [vmem:[#allocation3 + $0x1d8] sm:$0xff]
      %v3934 = vld [vmem:[#allocation3 + $0x1e0] sm:$0xff]
      %v3935 = vld [vmem:[#allocation3 + $0x1e8] sm:$0xff]
      %v3936 = vld [vmem:[#allocation3 + $0x1f0] sm:$0xff]
      %v3937 = vld [vmem:[#allocation3 + $0x1f8] sm:$0xff]
      %v3938 = vld [vmem:[#allocation3 + $0x200] sm:$0xff]
      %v3939 = vld [vmem:[#allocation3 + $0x208] sm:$0xff]
      %v3940 = vld [vmem:[#allocation3 + $0x210] sm:$0xff]
      %v3941 = vld [vmem:[#allocation3 + $0x218] sm:$0xff]
      %v3942 = vld [vmem:[#allocation3 + $0x220] sm:$0xff]
      %v3943 = vld [vmem:[#allocation3 + $0x228] sm:$0xff]
      %v3944 = vld [vmem:[#allocation3 + $0x230] sm:$0xff]
      %v3945 = vld [vmem:[#allocation3 + $0x238] sm:$0xff]
      %v3946 = vld [vmem:[#allocation3 + $0x240] sm:$0xff]
      %v3947 = vld [vmem:[#allocation3 + $0x248] sm:$0xff]
      %v3948 = vld [vmem:[#allocation3 + $0x250] sm:$0xff]
      %v3949 = vld [vmem:[#allocation3 + $0x258] sm:$0xff]
      %v3950 = vld [vmem:[#allocation3 + $0x260] sm:$0xff]
      %v3951 = vld [vmem:[#allocation3 + $0x268] sm:$0xff]
      %v3952 = vld [vmem:[#allocation3 + $0x270] sm:$0xff]
      %v3953 = vld [vmem:[#allocation3 + $0x278] sm:$0xff]
      %v3954 = vld [vmem:[#allocation3 + $0x280] sm:$0xff]
      %v3955 = vld [vmem:[#allocation3 + $0x288] sm:$0xff]
      %v3956 = vld [vmem:[#allocation3 + $0x290] sm:$0xff]
      %v3957 = vld [vmem:[#allocation3 + $0x298] sm:$0xff]
      %v3958 = vld [vmem:[#allocation3 + $0x2a0] sm:$0xff]
      %v3959 = vld [vmem:[#allocation3 + $0x2a8] sm:$0xff]
      %v3960 = vld [vmem:[#allocation3 + $0x2b0] sm:$0xff]
      %v3961 = vld [vmem:[#allocation3 + $0x2b8] sm:$0xff]
      %v3962 = vld [vmem:[#allocation3 + $0x2c0] sm:$0xff]
      %v3963 = vld [vmem:[#allocation3 + $0x2c8] sm:$0xff]
      %v3964 = vld [vmem:[#allocation3 + $0x2d0] sm:$0xff]
      %v3965 = vld [vmem:[#allocation3 + $0x2d8] sm:$0xff]
      %v3966 = vld [vmem:[#allocation3 + $0x2e0] sm:$0xff]
      %v3967 = vld [vmem:[#allocation3 + $0x2e8] sm:$0xff]
      %v3968 = vld [vmem:[#allocation3 + $0x2f0] sm:$0xff]
      %v3969 = vld [vmem:[#allocation3 + $0x2f8] sm:$0xff]
      %v3970 = vld [vmem:[#allocation3 + $0x300] sm:$0xff]
      %v3971 = vld [vmem:[#allocation3 + $0x308] sm:$0xff]
      %v3972 = vld [vmem:[#allocation3 + $0x310] sm:$0xff]
      %v3973 = vld [vmem:[#allocation3 + $0x318] sm:$0xff]
      %v3974 = vld [vmem:[#allocation3 + $0x320] sm:$0xff]
      %v3975 = vld [vmem:[#allocation3 + $0x328] sm:$0xff]
      %v3976 = vld [vmem:[#allocation3 + $0x330] sm:$0xff]
      %v3977 = vld [vmem:[#allocation3 + $0x338] sm:$0xff]
      %v3978 = vld [vmem:[#allocation3 + $0x340] sm:$0xff]
      %v3979 = vld [vmem:[#allocation3 + $0x348] sm:$0xff]
      %v3980 = vld [vmem:[#allocation3 + $0x350] sm:$0xff]
      %v3981 = vld [vmem:[#allocation3 + $0x358] sm:$0xff]
      %v3982 = vld [vmem:[#allocation3 + $0x360] sm:$0xff]
      %v3983 = vld [vmem:[#allocation3 + $0x368] sm:$0xff]
      %v3984 = vld [vmem:[#allocation3 + $0x370] sm:$0xff]
      %v3985 = vld [vmem:[#allocation3 + $0x378] sm:$0xff]
      %v3986 = vld [vmem:[#allocation3 + $0x380] sm:$0xff]
      %v3987 = vld [vmem:[#allocation3 + $0x388] sm:$0xff]
      %v3988 = vld [vmem:[#allocation3 + $0x390] sm:$0xff]
      %v3989 = vld [vmem:[#allocation3 + $0x398] sm:$0xff]
      %v3990 = vld [vmem:[#allocation3 + $0x3a0] sm:$0xff]
      %v3991 = vld [vmem:[#allocation3 + $0x3a8] sm:$0xff]
      %v3992 = vld [vmem:[#allocation3 + $0x3b0] sm:$0xff]
      %v3993 = vld [vmem:[#allocation3 + $0x3b8] sm:$0xff]
      %v3994 = vld [vmem:[#allocation3 + $0x3c0] sm:$0xff]
      %v3995 = vld [vmem:[#allocation3 + $0x3c8] sm:$0xff]
      %v3996 = vld [vmem:[#allocation3 + $0x3d0] sm:$0xff]
      %v3997 = vld [vmem:[#allocation3 + $0x3d8] sm:$0xff]
      %v3998 = vld [vmem:[#allocation3 + $0x3e0] sm:$0xff]
      %v3999 = vld [vmem:[#allocation3 + $0x3e8] sm:$0xff]
      %v4000 = vld [vmem:[#allocation3 + $0x3f0] sm:$0xff]
      %v4001 = vld [vmem:[#allocation3 + $0x3f8] sm:$0xff]
      %v4002 = vld [vmem:[#allocation3 + $0x400] sm:$0xff]
      %v4003 = vld [vmem:[#allocation3 + $0x408] sm:$0xff]
      %v4004 = vld [vmem:[#allocation3 + $0x410] sm:$0xff]
      %v4005 = vld [vmem:[#allocation3 + $0x418] sm:$0xff]
      %v4006 = vld [vmem:[#allocation3 + $0x420] sm:$0xff]
      %v4007 = vld [vmem:[#allocation3 + $0x428] sm:$0xff]
      %v4008 = vld [vmem:[#allocation3 + $0x430] sm:$0xff]
      %v4009 = vld [vmem:[#allocation3 + $0x438] sm:$0xff]
      %v4010 = vld [vmem:[#allocation3 + $0x440] sm:$0xff]
      %v4011 = vld [vmem:[#allocation3 + $0x448] sm:$0xff]
      %v4012 = vld [vmem:[#allocation3 + $0x450] sm:$0xff]
      %v4013 = vld [vmem:[#allocation3 + $0x458] sm:$0xff]
      %v4014 = vld [vmem:[#allocation3 + $0x460] sm:$0xff]
      %v4015 = vld [vmem:[#allocation3 + $0x468] sm:$0xff]
      %v4016 = vld [vmem:[#allocation3 + $0x470] sm:$0xff]
      %v4017 = vld [vmem:[#allocation3 + $0x478] sm:$0xff]
      %v4018 = vld [vmem:[%s3] sm:$0xf]
      %v4019 = vld [vmem:[%s3 + $0x4] sm:$0xf]
      %v4020 = vld [vmem:[%s3 + $0x8] sm:$0xf]
      %v4021 = vld [vmem:[%s3 + $0xc] sm:$0xf]
      %v4022 = vld [vmem:[%s3 + $0x10] sm:$0xf]
      %v4023 = vld [vmem:[%s3 + $0x14] sm:$0xf]
      %v4024 = vld [vmem:[%s3 + $0x18] sm:$0xf]
      %v4025 = vld [vmem:[%s3 + $0x1c] sm:$0xf]
      %v4026 = vld [vmem:[%s3 + $0x20] sm:$0xf]
      %v4027 = vld [vmem:[%s3 + $0x24] sm:$0xf]
      %v4028 = vld [vmem:[%s3 + $0x28] sm:$0xf]
      %v4029 = vld [vmem:[%s3 + $0x2c] sm:$0xf]
      %v4030 = vld [vmem:[%s3 + $0x30] sm:$0xf]
      %v4031 = vld [vmem:[%s3 + $0x34] sm:$0xf]
      %v4032 = vld [vmem:[%s3 + $0x38] sm:$0xf]
      %v4033 = vld [vmem:[%s3 + $0x3c] sm:$0xf]
      %v4034 = vld [vmem:[%s3 + $0x40] sm:$0xf]
      %v4035 = vld [vmem:[%s3 + $0x44] sm:$0xf]
      %v4036 = vld [vmem:[%s3 + $0x48] sm:$0xf]
      %v4037 = vld [vmem:[%s3 + $0x4c] sm:$0xf]
      %v4038 = vld [vmem:[%s3 + $0x50] sm:$0xf]
      %v4039 = vld [vmem:[%s3 + $0x54] sm:$0xf]
      %v4040 = vld [vmem:[%s3 + $0x58] sm:$0xf]
      %v4041 = vld [vmem:[%s3 + $0x5c] sm:$0xf]
      %v4042 = vld [vmem:[%s3 + $0x60] sm:$0xf]
      %v4043 = vld [vmem:[%s3 + $0x64] sm:$0xf]
      %v4044 = vld [vmem:[%s3 + $0x68] sm:$0xf]
      %v4045 = vld [vmem:[%s3 + $0x6c] sm:$0xf]
      %v4046 = vld [vmem:[%s3 + $0x70] sm:$0xf]
      %v4047 = vld [vmem:[%s3 + $0x74] sm:$0xf]
      %v4048 = vld [vmem:[%s3 + $0x78] sm:$0xf]
      %v4049 = vld [vmem:[%s3 + $0x7c] sm:$0xf]
      %v4050 = vld [vmem:[%s3 + $0x80] sm:$0xf]
      %v4051 = vld [vmem:[%s3 + $0x84] sm:$0xf]
      %v4052 = vld [vmem:[%s3 + $0x88] sm:$0xf]
      %v4053 = vld [vmem:[%s3 + $0x8c] sm:$0xf]
      %v4054 = vld [vmem:[%s3 + $0x90] sm:$0xf]
      %v4055 = vld [vmem:[%s3 + $0x94] sm:$0xf]
      %v4056 = vld [vmem:[%s3 + $0x98] sm:$0xf]
      %v4057 = vld [vmem:[%s3 + $0x9c] sm:$0xf]
      %v4058 = vld [vmem:[%s3 + $0xa0] sm:$0xf]
      %v4059 = vld [vmem:[%s3 + $0xa4] sm:$0xf]
      %v4060 = vld [vmem:[%s3 + $0xa8] sm:$0xf]
      %v4061 = vld [vmem:[%s3 + $0xac] sm:$0xf]
      %v4062 = vld [vmem:[%s3 + $0xb0] sm:$0xf]
      %v4063 = vld [vmem:[%s3 + $0xb4] sm:$0xf]
      %v4064 = vld [vmem:[%s3 + $0xb8] sm:$0xf]
      %v4065 = vld [vmem:[%s3 + $0xbc] sm:$0xf]
      %v4066 = vld [vmem:[%s3 + $0xc0] sm:$0xf]
      %v4067 = vld [vmem:[%s3 + $0xc4] sm:$0xf]
      %v4068 = vld [vmem:[%s3 + $0xc8] sm:$0xf]
      %v4069 = vld [vmem:[%s3 + $0xcc] sm:$0xf]
      %v4070 = vld [vmem:[%s3 + $0xd0] sm:$0xf]
      %v4071 = vld [vmem:[%s3 + $0xd4] sm:$0xf]
      %v4072 = vld [vmem:[%s3 + $0xd8] sm:$0xf]
      %v4073 = vld [vmem:[%s3 + $0xdc] sm:$0xf]
      %v4074 = vld [vmem:[%s3 + $0xe0] sm:$0xf]
      %v4075 = vld [vmem:[%s3 + $0xe4] sm:$0xf]
      %v4076 = vld [vmem:[%s3 + $0xe8] sm:$0xf]
      %v4077 = vld [vmem:[%s3 + $0xec] sm:$0xf]
      %v4078 = vld [vmem:[%s3 + $0xf0] sm:$0xf]
      %v4079 = vld [vmem:[%s3 + $0xf4] sm:$0xf]
      %v4080 = vld [vmem:[%s3 + $0xf8] sm:$0xf]
      %v4081 = vld [vmem:[%s3 + $0xfc] sm:$0xf]
      %v4082 = vld [vmem:[%s3 + $0x100] sm:$0xf]
      %v4083 = vld [vmem:[%s3 + $0x104] sm:$0xf]
      %v4084 = vld [vmem:[%s3 + $0x108] sm:$0xf]
      %v4085 = vld [vmem:[%s3 + $0x10c] sm:$0xf]
      %v4086 = vld [vmem:[%s3 + $0x110] sm:$0xf]
      %v4087 = vld [vmem:[%s3 + $0x114] sm:$0xf]
      %v4088 = vld [vmem:[%s3 + $0x118] sm:$0xf]
      %v4089 = vld [vmem:[%s3 + $0x11c] sm:$0xf]
      %v4090 = vld [vmem:[%s3 + $0x120] sm:$0xf]
      %v4091 = vld [vmem:[%s3 + $0x124] sm:$0xf]
      %v4092 = vld [vmem:[%s3 + $0x128] sm:$0xf]
      %v4093 = vld [vmem:[%s3 + $0x12c] sm:$0xf]
      %v4094 = vld [vmem:[%s3 + $0x130] sm:$0xf]
      %v4095 = vld [vmem:[%s3 + $0x134] sm:$0xf]
      %v4096 = vld [vmem:[%s3 + $0x138] sm:$0xf]
      %v4097 = vld [vmem:[%s3 + $0x13c] sm:$0xf]
      %v4098 = vld [vmem:[%s3 + $0x140] sm:$0xf]
      %v4099 = vld [vmem:[%s3 + $0x144] sm:$0xf]
      %v4100 = vld [vmem:[%s3 + $0x148] sm:$0xf]
      %v4101 = vld [vmem:[%s3 + $0x14c] sm:$0xf]
      %v4102 = vld [vmem:[%s3 + $0x150] sm:$0xf]
      %v4103 = vld [vmem:[%s3 + $0x154] sm:$0xf]
      %v4104 = vld [vmem:[%s3 + $0x158] sm:$0xf]
      %v4105 = vld [vmem:[%s3 + $0x15c] sm:$0xf]
      %v4106 = vld [vmem:[%s3 + $0x160] sm:$0xf]
      %v4107 = vld [vmem:[%s3 + $0x164] sm:$0xf]
      %v4108 = vld [vmem:[%s3 + $0x168] sm:$0xf]
      %v4109 = vld [vmem:[%s3 + $0x16c] sm:$0xf]
      %v4110 = vld [vmem:[%s3 + $0x170] sm:$0xf]
      %v4111 = vld [vmem:[%s3 + $0x174] sm:$0xf]
      %v4112 = vld [vmem:[%s3 + $0x178] sm:$0xf]
      %v4113 = vld [vmem:[%s3 + $0x17c] sm:$0xf]
      %v4114 = vld [vmem:[%s3 + $0x180] sm:$0xf]
      %v4115 = vld [vmem:[%s3 + $0x184] sm:$0xf]
      %v4116 = vld [vmem:[%s3 + $0x188] sm:$0xf]
      %v4117 = vld [vmem:[%s3 + $0x18c] sm:$0xf]
      %v4118 = vld [vmem:[%s3 + $0x190] sm:$0xf]
      %v4119 = vld [vmem:[%s3 + $0x194] sm:$0xf]
      %v4120 = vld [vmem:[%s3 + $0x198] sm:$0xf]
      %v4121 = vld [vmem:[%s3 + $0x19c] sm:$0xf]
      %v4122 = vld [vmem:[%s3 + $0x1a0] sm:$0xf]
      %v4123 = vld [vmem:[%s3 + $0x1a4] sm:$0xf]
      %v4124 = vld [vmem:[%s3 + $0x1a8] sm:$0xf]
      %v4125 = vld [vmem:[%s3 + $0x1ac] sm:$0xf]
      %v4126 = vld [vmem:[%s3 + $0x1b0] sm:$0xf]
      %v4127 = vld [vmem:[%s3 + $0x1b4] sm:$0xf]
      %v4128 = vld [vmem:[%s3 + $0x1b8] sm:$0xf]
      %v4129 = vld [vmem:[%s3 + $0x1bc] sm:$0xf]
      %v4130 = vld [vmem:[%s3 + $0x1c0] sm:$0xf]
      %v4131 = vld [vmem:[%s3 + $0x1c4] sm:$0xf]
      %v4132 = vld [vmem:[%s3 + $0x1c8] sm:$0xf]
      %v4133 = vld [vmem:[%s3 + $0x1cc] sm:$0xf]
      %v4134 = vld [vmem:[%s3 + $0x1d0] sm:$0xf]
      %v4135 = vld [vmem:[%s3 + $0x1d4] sm:$0xf]
      %v4136 = vld [vmem:[%s3 + $0x1d8] sm:$0xf]
      %v4137 = vld [vmem:[%s3 + $0x1dc] sm:$0xf]
      %v4138 = vld [vmem:[%s3 + $0x1e0] sm:$0xf]
      %v4139 = vld [vmem:[%s3 + $0x1e4] sm:$0xf]
      %v4140 = vld [vmem:[%s3 + $0x1e8] sm:$0xf]
      %v4141 = vld [vmem:[%s3 + $0x1ec] sm:$0xf]
      %v4142 = vld [vmem:[%s3 + $0x1f0] sm:$0xf]
      %v4143 = vld [vmem:[%s3 + $0x1f4] sm:$0xf]
      %v4144 = vld [vmem:[%s3 + $0x1f8] sm:$0xf]
      %v4145 = vld [vmem:[%s3 + $0x1fc] sm:$0xf]
      %v4146 = vld [vmem:[%s3 + $0x200] sm:$0xf]
      %v4147 = vld [vmem:[%s3 + $0x204] sm:$0xf]
      %v4148 = vld [vmem:[%s3 + $0x208] sm:$0xf]
      %v4149 = vld [vmem:[%s3 + $0x20c] sm:$0xf]
      %v4150 = vld [vmem:[%s3 + $0x210] sm:$0xf]
      %v4151 = vld [vmem:[%s3 + $0x214] sm:$0xf]
      %v4152 = vld [vmem:[%s3 + $0x218] sm:$0xf]
      %v4153 = vld [vmem:[%s3 + $0x21c] sm:$0xf]
      %v4154 = vld [vmem:[%s3 + $0x220] sm:$0xf]
      %v4155 = vld [vmem:[%s3 + $0x224] sm:$0xf]
      %v4156 = vld [vmem:[%s3 + $0x228] sm:$0xf]
      %v4157 = vld [vmem:[%s3 + $0x22c] sm:$0xf]
      %v4158 = vld [vmem:[%s3 + $0x230] sm:$0xf]
      %v4159 = vld [vmem:[%s3 + $0x234] sm:$0xf]
      %v4160 = vld [vmem:[%s3 + $0x238] sm:$0xf]
      %v4161 = vld [vmem:[%s3 + $0x23c] sm:$0xf]
      %v4306 = vunpack.c.l.b16 %v4018
      %v4307 = vunpack.c.l.b16 %v4019
      %v4308 = vunpack.c.l.b16 %v4020
      %v4309 = vunpack.c.l.b16 %v4021
      %v4310 = vunpack.c.l.b16 %v4022
      %v4311 = vunpack.c.l.b16 %v4023
      %v4312 = vunpack.c.l.b16 %v4024
      %v4313 = vunpack.c.l.b16 %v4025
      %v4314 = vunpack.c.l.b16 %v4026
      %v4315 = vunpack.c.l.b16 %v4027
      %v4316 = vunpack.c.l.b16 %v4028
      %v4317 = vunpack.c.l.b16 %v4029
      %v4318 = vunpack.c.l.b16 %v4030
      %v4319 = vunpack.c.l.b16 %v4031
      %v4320 = vunpack.c.l.b16 %v4032
      %v4321 = vunpack.c.l.b16 %v4033
      %v4322 = vunpack.c.l.b16 %v4034
      %v4323 = vunpack.c.l.b16 %v4035
      %v4324 = vunpack.c.l.b16 %v4036
      %v4325 = vunpack.c.l.b16 %v4037
      %v4326 = vunpack.c.l.b16 %v4038
      %v4327 = vunpack.c.l.b16 %v4039
      %v4328 = vunpack.c.l.b16 %v4040
      %v4329 = vunpack.c.l.b16 %v4041
      %v4330 = vunpack.c.l.b16 %v4042
      %v4331 = vunpack.c.l.b16 %v4043
      %v4332 = vunpack.c.l.b16 %v4044
      %v4333 = vunpack.c.l.b16 %v4045
      %v4334 = vunpack.c.l.b16 %v4046
      %v4335 = vunpack.c.l.b16 %v4047
      %v4336 = vunpack.c.l.b16 %v4048
      %v4337 = vunpack.c.l.b16 %v4049
      %v4338 = vunpack.c.l.b16 %v4050
      %v4339 = vunpack.c.l.b16 %v4051
      %v4340 = vunpack.c.l.b16 %v4052
      %v4341 = vunpack.c.l.b16 %v4053
      %v4342 = vunpack.c.l.b16 %v4054
      %v4343 = vunpack.c.l.b16 %v4055
      %v4344 = vunpack.c.l.b16 %v4056
      %v4345 = vunpack.c.l.b16 %v4057
      %v4346 = vunpack.c.l.b16 %v4058
      %v4347 = vunpack.c.l.b16 %v4059
      %v4348 = vunpack.c.l.b16 %v4060
      %v4349 = vunpack.c.l.b16 %v4061
      %v4350 = vunpack.c.l.b16 %v4062
      %v4351 = vunpack.c.l.b16 %v4063
      %v4352 = vunpack.c.l.b16 %v4064
      %v4353 = vunpack.c.l.b16 %v4065
      %v4354 = vunpack.c.l.b16 %v4066
      %v4355 = vunpack.c.l.b16 %v4067
      %v4356 = vunpack.c.l.b16 %v4068
      %v4357 = vunpack.c.l.b16 %v4069
      %v4358 = vunpack.c.l.b16 %v4070
      %v4359 = vunpack.c.l.b16 %v4071
      %v4360 = vunpack.c.l.b16 %v4072
      %v4361 = vunpack.c.l.b16 %v4073
      %v4362 = vunpack.c.l.b16 %v4074
      %v4363 = vunpack.c.l.b16 %v4075
      %v4364 = vunpack.c.l.b16 %v4076
      %v4365 = vunpack.c.l.b16 %v4077
      %v4366 = vunpack.c.l.b16 %v4078
      %v4367 = vunpack.c.l.b16 %v4079
      %v4368 = vunpack.c.l.b16 %v4080
      %v4369 = vunpack.c.l.b16 %v4081
      %v4370 = vunpack.c.l.b16 %v4082
      %v4371 = vunpack.c.l.b16 %v4083
      %v4372 = vunpack.c.l.b16 %v4084
      %v4373 = vunpack.c.l.b16 %v4085
      %v4374 = vunpack.c.l.b16 %v4086
      %v4375 = vunpack.c.l.b16 %v4087
      %v4376 = vunpack.c.l.b16 %v4088
      %v4377 = vunpack.c.l.b16 %v4089
      %v4378 = vunpack.c.l.b16 %v4090
      %v4379 = vunpack.c.l.b16 %v4091
      %v4380 = vunpack.c.l.b16 %v4092
      %v4381 = vunpack.c.l.b16 %v4093
      %v4382 = vunpack.c.l.b16 %v4094
      %v4383 = vunpack.c.l.b16 %v4095
      %v4384 = vunpack.c.l.b16 %v4096
      %v4385 = vunpack.c.l.b16 %v4097
      %v4386 = vunpack.c.l.b16 %v4098
      %v4387 = vunpack.c.l.b16 %v4099
      %v4388 = vunpack.c.l.b16 %v4100
      %v4389 = vunpack.c.l.b16 %v4101
      %v4390 = vunpack.c.l.b16 %v4102
      %v4391 = vunpack.c.l.b16 %v4103
      %v4392 = vunpack.c.l.b16 %v4104
      %v4393 = vunpack.c.l.b16 %v4105
      %v4394 = vunpack.c.l.b16 %v4106
      %v4395 = vunpack.c.l.b16 %v4107
      %v4396 = vunpack.c.l.b16 %v4108
      %v4397 = vunpack.c.l.b16 %v4109
      %v4398 = vunpack.c.l.b16 %v4110
      %v4399 = vunpack.c.l.b16 %v4111
      %v4400 = vunpack.c.l.b16 %v4112
      %v4401 = vunpack.c.l.b16 %v4113
      %v4402 = vunpack.c.l.b16 %v4114
      %v4403 = vunpack.c.l.b16 %v4115
      %v4404 = vunpack.c.l.b16 %v4116
      %v4405 = vunpack.c.l.b16 %v4117
      %v4406 = vunpack.c.l.b16 %v4118
      %v4407 = vunpack.c.l.b16 %v4119
      %v4408 = vunpack.c.l.b16 %v4120
      %v4409 = vunpack.c.l.b16 %v4121
      %v4410 = vunpack.c.l.b16 %v4122
      %v4411 = vunpack.c.l.b16 %v4123
      %v4412 = vunpack.c.l.b16 %v4124
      %v4413 = vunpack.c.l.b16 %v4125
      %v4414 = vunpack.c.l.b16 %v4126
      %v4415 = vunpack.c.l.b16 %v4127
      %v4416 = vunpack.c.l.b16 %v4128
      %v4417 = vunpack.c.l.b16 %v4129
      %v4418 = vunpack.c.l.b16 %v4130
      %v4419 = vunpack.c.l.b16 %v4131
      %v4420 = vunpack.c.l.b16 %v4132
      %v4421 = vunpack.c.l.b16 %v4133
      %v4422 = vunpack.c.l.b16 %v4134
      %v4423 = vunpack.c.l.b16 %v4135
      %v4424 = vunpack.c.l.b16 %v4136
      %v4425 = vunpack.c.l.b16 %v4137
      %v4426 = vunpack.c.l.b16 %v4138
      %v4427 = vunpack.c.l.b16 %v4139
      %v4428 = vunpack.c.l.b16 %v4140
      %v4429 = vunpack.c.l.b16 %v4141
      %v4430 = vunpack.c.l.b16 %v4142
      %v4431 = vunpack.c.l.b16 %v4143
      %v4432 = vunpack.c.l.b16 %v4144
      %v4433 = vunpack.c.l.b16 %v4145
      %v4434 = vunpack.c.l.b16 %v4146
      %v4435 = vunpack.c.l.b16 %v4147
      %v4436 = vunpack.c.l.b16 %v4148
      %v4437 = vunpack.c.l.b16 %v4149
      %v4438 = vunpack.c.l.b16 %v4150
      %v4439 = vunpack.c.l.b16 %v4151
      %v4440 = vunpack.c.l.b16 %v4152
      %v4441 = vunpack.c.l.b16 %v4153
      %v4442 = vunpack.c.l.b16 %v4154
      %v4443 = vunpack.c.l.b16 %v4155
      %v4444 = vunpack.c.l.b16 %v4156
      %v4445 = vunpack.c.l.b16 %v4157
      %v4446 = vunpack.c.l.b16 %v4158
      %v4447 = vunpack.c.l.b16 %v4159
      %v4448 = vunpack.c.l.b16 %v4160
      %v4449 = vunpack.c.l.b16 %v4161
      %v4450 = vpack.c.b16 %v4307, %v4306
      %v4451 = vpack.c.b16 %v4309, %v4308
      %v4452 = vpack.c.b16 %v4311, %v4310
      %v4453 = vpack.c.b16 %v4313, %v4312
      %v4454 = vpack.c.b16 %v4315, %v4314
      %v4455 = vpack.c.b16 %v4317, %v4316
      %v4456 = vpack.c.b16 %v4319, %v4318
      %v4457 = vpack.c.b16 %v4321, %v4320
      %v4458 = vpack.c.b16 %v4323, %v4322
      %v4459 = vpack.c.b16 %v4325, %v4324
      %v4460 = vpack.c.b16 %v4327, %v4326
      %v4461 = vpack.c.b16 %v4329, %v4328
      %v4462 = vpack.c.b16 %v4331, %v4330
      %v4463 = vpack.c.b16 %v4333, %v4332
      %v4464 = vpack.c.b16 %v4335, %v4334
      %v4465 = vpack.c.b16 %v4337, %v4336
      %v4466 = vpack.c.b16 %v4339, %v4338
      %v4467 = vpack.c.b16 %v4341, %v4340
      %v4468 = vpack.c.b16 %v4343, %v4342
      %v4469 = vpack.c.b16 %v4345, %v4344
      %v4470 = vpack.c.b16 %v4347, %v4346
      %v4471 = vpack.c.b16 %v4349, %v4348
      %v4472 = vpack.c.b16 %v4351, %v4350
      %v4473 = vpack.c.b16 %v4353, %v4352
      %v4474 = vpack.c.b16 %v4355, %v4354
      %v4475 = vpack.c.b16 %v4357, %v4356
      %v4476 = vpack.c.b16 %v4359, %v4358
      %v4477 = vpack.c.b16 %v4361, %v4360
      %v4478 = vpack.c.b16 %v4363, %v4362
      %v4479 = vpack.c.b16 %v4365, %v4364
      %v4480 = vpack.c.b16 %v4367, %v4366
      %v4481 = vpack.c.b16 %v4369, %v4368
      %v4482 = vpack.c.b16 %v4371, %v4370
      %v4483 = vpack.c.b16 %v4373, %v4372
      %v4484 = vpack.c.b16 %v4375, %v4374
      %v4485 = vpack.c.b16 %v4377, %v4376
      %v4486 = vpack.c.b16 %v4379, %v4378
      %v4487 = vpack.c.b16 %v4381, %v4380
      %v4488 = vpack.c.b16 %v4383, %v4382
      %v4489 = vpack.c.b16 %v4385, %v4384
      %v4490 = vpack.c.b16 %v4387, %v4386
      %v4491 = vpack.c.b16 %v4389, %v4388
      %v4492 = vpack.c.b16 %v4391, %v4390
      %v4493 = vpack.c.b16 %v4393, %v4392
      %v4494 = vpack.c.b16 %v4395, %v4394
      %v4495 = vpack.c.b16 %v4397, %v4396
      %v4496 = vpack.c.b16 %v4399, %v4398
      %v4497 = vpack.c.b16 %v4401, %v4400
      %v4498 = vpack.c.b16 %v4403, %v4402
      %v4499 = vpack.c.b16 %v4405, %v4404
      %v4500 = vpack.c.b16 %v4407, %v4406
      %v4501 = vpack.c.b16 %v4409, %v4408
      %v4502 = vpack.c.b16 %v4411, %v4410
      %v4503 = vpack.c.b16 %v4413, %v4412
      %v4504 = vpack.c.b16 %v4415, %v4414
      %v4505 = vpack.c.b16 %v4417, %v4416
      %v4506 = vpack.c.b16 %v4419, %v4418
      %v4507 = vpack.c.b16 %v4421, %v4420
      %v4508 = vpack.c.b16 %v4423, %v4422
      %v4509 = vpack.c.b16 %v4425, %v4424
      %v4510 = vpack.c.b16 %v4427, %v4426
      %v4511 = vpack.c.b16 %v4429, %v4428
      %v4512 = vpack.c.b16 %v4431, %v4430
      %v4513 = vpack.c.b16 %v4433, %v4432
      %v4514 = vpack.c.b16 %v4435, %v4434
      %v4515 = vpack.c.b16 %v4437, %v4436
      %v4516 = vpack.c.b16 %v4439, %v4438
      %v4517 = vpack.c.b16 %v4441, %v4440
      %v4518 = vpack.c.b16 %v4443, %v4442
      %v4519 = vpack.c.b16 %v4445, %v4444
      %v4520 = vpack.c.b16 %v4447, %v4446
      %v4521 = vpack.c.b16 %v4449, %v4448
      %4594 = vmatprep.subr.bf16.mxu0 0
      %4595 = vmatpush1.bf16.msra.mxu0 %v4450
      %4596 = vmatprep.subr.bf16.mxu0 0
      %4597 = vmatpush1.bf16.msra.mxu0 %v4451
      %4598 = vmatprep.subr.bf16.mxu0 0
      %4599 = vmatpush1.bf16.msra.mxu0 %v4452
      %4600 = vmatprep.subr.bf16.mxu0 0
      %4601 = vmatpush1.bf16.msra.mxu0 %v4453
      %4602 = vmatprep.subr.bf16.mxu0 0
      %4603 = vmatpush1.bf16.msra.mxu0 %v4454
      %4604 = vmatprep.subr.bf16.mxu0 0
      %4605 = vmatpush1.bf16.msra.mxu0 %v4455
      %4606 = vmatprep.subr.bf16.mxu0 0
      %4607 = vmatpush1.bf16.msra.mxu0 %v4456
      %4608 = vmatprep.subr.bf16.mxu0 0
      %4609 = vmatpush1.bf16.msra.mxu0 %v4457
      %4610 = vmatprep.subr.bf16.mxu0 0
      %4611 = vmatpush1.bf16.msra.mxu0 %v4458
      %4612 = vmatprep.subr.bf16.mxu0 0
      %4613 = vmatpush1.bf16.msra.mxu0 %v4459
      %4614 = vmatprep.subr.bf16.mxu0 0
      %4615 = vmatpush1.bf16.msra.mxu0 %v4460
      %4616 = vmatprep.subr.bf16.mxu0 0
      %4617 = vmatpush1.bf16.msra.mxu0 %v4461
      %4618 = vmatprep.subr.bf16.mxu0 0
      %4619 = vmatpush1.bf16.msra.mxu0 %v4462
      %4620 = vmatprep.subr.bf16.mxu0 0
      %4621 = vmatpush1.bf16.msra.mxu0 %v4463
      %4622 = vmatprep.subr.bf16.mxu0 0
      %4623 = vmatpush1.bf16.msra.mxu0 %v4464
      %4624 = vmatprep.subr.bf16.mxu0 0
      %4625 = vmatpush1.bf16.msra.mxu0 %v4465
      %4626 = vmatprep.mubr.bf16.mxu0 %v3875
      %4627 = vmatmul.mubr.bf16.gmra.mrb[0].mxu0 %v3874
      %v4628 = vpop.f32.mrb[0].mxu0
      %v4629 = vadd.f32 0.0, %v4628
      %v4630 = vpop.f32.mrb[0].mxu0
      %v4631 = vpop.f32.mrb[0].mxu0
      %v4632 = vadd.f32 0.0, %v4631
      %v4633 = vpop.f32.mrb[0].mxu0
      %4634 = vmatprep.mubr.bf16.mxu0 %v3884
      %4635 = vmatmul.mubr.bf16.gmra.mrb[0].mxu0 %v3883
      %v4636 = vpop.f32.mrb[0].mxu0
      %v4637 = vadd.f32 0.0, %v4636
      %v4638 = vpop.f32.mrb[0].mxu0
      %v4639 = vpop.f32.mrb[0].mxu0
      %v4640 = vadd.f32 0.0, %v4639
      %v4641 = vpop.f32.mrb[0].mxu0
      %4642 = vmatprep.mubr.bf16.mxu0 %v3893
      %4643 = vmatmul.mubr.bf16.gmra.mrb[0].mxu0 %v3892
      %v4644 = vpop.f32.mrb[0].mxu0
      %v4645 = vadd.f32 0.0, %v4644
      %v4646 = vpop.f32.mrb[0].mxu0
      %v4647 = vpop.f32.mrb[0].mxu0
      %v4648 = vadd.f32 0.0, %v4647
      %v4649 = vpop.f32.mrb[0].mxu0
      %4650 = vmatprep.mubr.bf16.mxu0 %v3902
      %4651 = vmatmul.mubr.bf16.gmra.mrb[0].mxu0 %v3901
      %v4652 = vpop.f32.mrb[0].mxu0
      %v4653 = vadd.f32 0.0, %v4652
      %v4654 = vpop.f32.mrb[0].mxu0
      %v4655 = vpop.f32.mrb[0].mxu0
      %v4656 = vadd.f32 0.0, %v4655
      %v4657 = vpop.f32.mrb[0].mxu0
      %4658 = vmatprep.mubr.bf16.mxu0 %v3911
      %4659 = vmatmul.mubr.bf16.gmra.mrb[0].mxu0 %v3910
      %v4660 = vpop.f32.mrb[0].mxu0
      %v4661 = vadd.f32 0.0, %v4660
      %v4662 = vpop.f32.mrb[0].mxu0
      %v4663 = vpop.f32.mrb[0].mxu0
      %v4664 = vadd.f32 0.0, %v4663
      %v4665 = vpop.f32.mrb[0].mxu0
      %4666 = vmatprep.mubr.bf16.mxu0 %v3920
      %4667 = vmatmul.mubr.bf16.gmra.mrb[0].mxu0 %v3919
      %v4668 = vpop.f32.mrb[0].mxu0
      %v4669 = vadd.f32 0.0, %v4668
      %v4670 = vpop.f32.mrb[0].mxu0
      %v4671 = vpop.f32.mrb[0].mxu0
      %v4672 = vadd.f32 0.0, %v4671
      %v4673 = vpop.f32.mrb[0].mxu0
      %4674 = vmatprep.mubr.bf16.mxu0 %v3929
      %4675 = vmatmul.mubr.bf16.gmra.mrb[0].mxu0 %v3928
      %v4676 = vpop.f32.mrb[0].mxu0
      %v4677 = vadd.f32 0.0, %v4676
      %v4678 = vpop.f32.mrb[0].mxu0
      %v4679 = vpop.f32.mrb[0].mxu0
      %v4680 = vadd.f32 0.0, %v4679
      %v4681 = vpop.f32.mrb[0].mxu0
      %4682 = vmatprep.mubr.bf16.mxu0 %v3938
      %4683 = vmatmul.mubr.bf16.gmra.mrb[0].mxu0 %v3937
      %v4684 = vpop.f32.mrb[0].mxu0
      %v4685 = vadd.f32 0.0, %v4684
      %v4686 = vpop.f32.mrb[0].mxu0
      %v4687 = vpop.f32.mrb[0].mxu0
      %v4688 = vadd.f32 0.0, %v4687
      %v4689 = vpop.f32.mrb[0].mxu0
      %4690 = vmatprep.mubr.bf16.mxu0 %v3947
      %4691 = vmatmul.mubr.bf16.gmra.mrb[0].mxu0 %v3946
      %v4692 = vpop.f32.mrb[0].mxu0
      %v4693 = vadd.f32 0.0, %v4692
      %v4694 = vpop.f32.mrb[0].mxu0
      %v4695 = vpop.f32.mrb[0].mxu0
      %v4696 = vadd.f32 0.0, %v4695
      %v4697 = vpop.f32.mrb[0].mxu0
      %4698 = vmatprep.mubr.bf16.mxu0 %v3956
      %4699 = vmatmul.mubr.bf16.gmra.mrb[0].mxu0 %v3955
      %v4700 = vpop.f32.mrb[0].mxu0
      %v4701 = vadd.f32 0.0, %v4700
      %v4702 = vpop.f32.mrb[0].mxu0
      %v4703 = vpop.f32.mrb[0].mxu0
      %v4704 = vadd.f32 0.0, %v4703
      %v4705 = vpop.f32.mrb[0].mxu0
      %4706 = vmatprep.mubr.bf16.mxu0 %v3965
      %4707 = vmatmul.mubr.bf16.gmra.mrb[0].mxu0 %v3964
      %v4708 = vpop.f32.mrb[0].mxu0
      %v4709 = vadd.f32 0.0, %v4708
      %v4710 = vpop.f32.mrb[0].mxu0
      %v4711 = vpop.f32.mrb[0].mxu0
      %v4712 = vadd.f32 0.0, %v4711
      %v4713 = vpop.f32.mrb[0].mxu0
      %4714 = vmatprep.mubr.bf16.mxu0 %v3974
      %4715 = vmatmul.mubr.bf16.gmra.mrb[0].mxu0 %v3973
      %v4716 = vpop.f32.mrb[0].mxu0
      %v4717 = vadd.f32 0.0, %v4716
      %v4718 = vpop.f32.mrb[0].mxu0
      %v4719 = vpop.f32.mrb[0].mxu0
      %v4720 = vadd.f32 0.0, %v4719
      %v4721 = vpop.f32.mrb[0].mxu0
      %4722 = vmatprep.mubr.bf16.mxu0 %v3983
      %4723 = vmatmul.mubr.bf16.gmra.mrb[0].mxu0 %v3982
      %v4724 = vpop.f32.mrb[0].mxu0
      %v4725 = vadd.f32 0.0, %v4724
      %v4726 = vpop.f32.mrb[0].mxu0
      %v4727 = vpop.f32.mrb[0].mxu0
      %v4728 = vadd.f32 0.0, %v4727
      %v4729 = vpop.f32.mrb[0].mxu0
      %4730 = vmatprep.mubr.bf16.mxu0 %v3992
      %4731 = vmatmul.mubr.bf16.gmra.mrb[0].mxu0 %v3991
      %v4732 = vpop.f32.mrb[0].mxu0
      %v4733 = vadd.f32 0.0, %v4732
      %v4734 = vpop.f32.mrb[0].mxu0
      %v4735 = vpop.f32.mrb[0].mxu0
      %v4736 = vadd.f32 0.0, %v4735
      %v4737 = vpop.f32.mrb[0].mxu0
      %4738 = vmatprep.mubr.bf16.mxu0 %v4001
      %4739 = vmatmul.mubr.bf16.gmra.mrb[0].mxu0 %v4000
      %v4740 = vpop.f32.mrb[0].mxu0
      %v4741 = vadd.f32 0.0, %v4740
      %v4742 = vpop.f32.mrb[0].mxu0
      %v4743 = vpop.f32.mrb[0].mxu0
      %v4744 = vadd.f32 0.0, %v4743
      %v4745 = vpop.f32.mrb[0].mxu0
      %4746 = vmatprep.mubr.bf16.mxu0 %v4010
      %4747 = vmatmul.mubr.bf16.gmra.mrb[0].mxu0 %v4009
      %v4748 = vpop.f32.mrb[0].mxu0
      %v4749 = vadd.f32 0.0, %v4748
      %v4750 = vpop.f32.mrb[0].mxu0
      %v4751 = vpop.f32.mrb[0].mxu0
      %v4752 = vadd.f32 0.0, %v4751
      %v4753 = vpop.f32.mrb[0].mxu0
      %4754 = vdwg.mxu0
      %4755 = vmatprep.subr.bf16.mxu0 0
      %4756 = vmatpush1.bf16.msra.mxu0 %v4466
      %4757 = vmatprep.subr.bf16.mxu0 0
      %4758 = vmatpush1.bf16.msra.mxu0 %v4467
      %4759 = vmatprep.subr.bf16.mxu0 0
      %4760 = vmatpush1.bf16.msra.mxu0 %v4468
      %4761 = vmatprep.subr.bf16.mxu0 0
      %4762 = vmatpush1.bf16.msra.mxu0 %v4469
      %4763 = vmatprep.subr.bf16.mxu0 0
      %4764 = vmatpush1.bf16.msra.mxu0 %v4470
      %4765 = vmatprep.subr.bf16.mxu0 0
      %4766 = vmatpush1.bf16.msra.mxu0 %v4471
      %4767 = vmatprep.subr.bf16.mxu0 0
      %4768 = vmatpush1.bf16.msra.mxu0 %v4472
      %4769 = vmatprep.subr.bf16.mxu0 0
      %4770 = vmatpush1.bf16.msra.mxu0 %v4473
      %4771 = vmatprep.subr.bf16.mxu0 0
      %4772 = vmatpush1.bf16.msra.mxu0 %v4474
      %4773 = vmatprep.subr.bf16.mxu0 0
      %4774 = vmatpush1.bf16.msra.mxu0 %v4475
      %4775 = vmatprep.subr.bf16.mxu0 0
      %4776 = vmatpush1.bf16.msra.mxu0 %v4476
      %4777 = vmatprep.subr.bf16.mxu0 0
      %4778 = vmatpush1.bf16.msra.mxu0 %v4477
      %4779 = vmatprep.subr.bf16.mxu0 0
      %4780 = vmatpush1.bf16.msra.mxu0 %v4478
      %4781 = vmatprep.subr.bf16.mxu0 0
      %4782 = vmatpush1.bf16.msra.mxu0 %v4479
      %4783 = vmatprep.subr.bf16.mxu0 0
      %4784 = vmatpush1.bf16.msra.mxu0 %v4480
      %4785 = vmatprep.subr.bf16.mxu0 0
      %4786 = vmatpush1.bf16.msra.mxu0 %v4481
      %4787 = vmatprep.mubr.bf16.mxu0 %v3877
      %4788 = vmatmul.mubr.bf16.gmra.mrb[0].mxu0 %v3876
      %v4789 = vpop.f32.mrb[0].mxu0
      %v4790 = vadd.f32 %v4629, %v4789
      %v4791 = vpop.f32.mrb[0].mxu0
      %v4792 = vpop.f32.mrb[0].mxu0
      %v4793 = vadd.f32 %v4632, %v4792
      %v4794 = vpop.f32.mrb[0].mxu0
      %4795 = vmatprep.mubr.bf16.mxu0 %v3886
      %4796 = vmatmul.mubr.bf16.gmra.mrb[0].mxu0 %v3885
      %v4797 = vpop.f32.mrb[0].mxu0
      %v4798 = vadd.f32 %v4637, %v4797
      %v4799 = vpop.f32.mrb[0].mxu0
      %v4800 = vpop.f32.mrb[0].mxu0
      %v4801 = vadd.f32 %v4640, %v4800
      %v4802 = vpop.f32.mrb[0].mxu0
      %4803 = vmatprep.mubr.bf16.mxu0 %v3895
      %4804 = vmatmul.mubr.bf16.gmra.mrb[0].mxu0 %v3894
      %v4805 = vpop.f32.mrb[0].mxu0
      %v4806 = vadd.f32 %v4645, %v4805
      %v4807 = vpop.f32.mrb[0].mxu0
      %v4808 = vpop.f32.mrb[0].mxu0
      %v4809 = vadd.f32 %v4648, %v4808
      %v4810 = vpop.f32.mrb[0].mxu0
      %4811 = vmatprep.mubr.bf16.mxu0 %v3904
      %4812 = vmatmul.mubr.bf16.gmra.mrb[0].mxu0 %v3903
      %v4813 = vpop.f32.mrb[0].mxu0
      %v4814 = vadd.f32 %v4653, %v4813
      %v4815 = vpop.f32.mrb[0].mxu0
      %v4816 = vpop.f32.mrb[0].mxu0
      %v4817 = vadd.f32 %v4656, %v4816
      %v4818 = vpop.f32.mrb[0].mxu0
      %4819 = vmatprep.mubr.bf16.mxu0 %v3913
      %4820 = vmatmul.mubr.bf16.gmra.mrb[0].mxu0 %v3912
      %v4821 = vpop.f32.mrb[0].mxu0
      %v4822 = vadd.f32 %v4661, %v4821
      %v4823 = vpop.f32.mrb[0].mxu0
      %v4824 = vpop.f32.mrb[0].mxu0
      %v4825 = vadd.f32 %v4664, %v4824
      %v4826 = vpop.f32.mrb[0].mxu0
      %4827 = vmatprep.mubr.bf16.mxu0 %v3922
      %4828 = vmatmul.mubr.bf16.gmra.mrb[0].mxu0 %v3921
      %v4829 = vpop.f32.mrb[0].mxu0
      %v4830 = vadd.f32 %v4669, %v4829
      %v4831 = vpop.f32.mrb[0].mxu0
      %v4832 = vpop.f32.mrb[0].mxu0
      %v4833 = vadd.f32 %v4672, %v4832
      %v4834 = vpop.f32.mrb[0].mxu0
      %4835 = vmatprep.mubr.bf16.mxu0 %v3931
      %4836 = vmatmul.mubr.bf16.gmra.mrb[0].mxu0 %v3930
      %v4837 = vpop.f32.mrb[0].mxu0
      %v4838 = vadd.f32 %v4677, %v4837
      %v4839 = vpop.f32.mrb[0].mxu0
      %v4840 = vpop.f32.mrb[0].mxu0
      %v4841 = vadd.f32 %v4680, %v4840
      %v4842 = vpop.f32.mrb[0].mxu0
      %4843 = vmatprep.mubr.bf16.mxu0 %v3940
      %4844 = vmatmul.mubr.bf16.gmra.mrb[0].mxu0 %v3939
      %v4845 = vpop.f32.mrb[0].mxu0
      %v4846 = vadd.f32 %v4685, %v4845
      %v4847 = vpop.f32.mrb[0].mxu0
      %v4848 = vpop.f32.mrb[0].mxu0
      %v4849 = vadd.f32 %v4688, %v4848
      %v4850 = vpop.f32.mrb[0].mxu0
      %4851 = vmatprep.mubr.bf16.mxu0 %v3949
      %4852 = vmatmul.mubr.bf16.gmra.mrb[0].mxu0 %v3948
      %v4853 = vpop.f32.mrb[0].mxu0
      %v4854 = vadd.f32 %v4693, %v4853
      %v4855 = vpop.f32.mrb[0].mxu0
      %v4856 = vpop.f32.mrb[0].mxu0
      %v4857 = vadd.f32 %v4696, %v4856
      %v4858 = vpop.f32.mrb[0].mxu0
      %4859 = vmatprep.mubr.bf16.mxu0 %v3958
      %4860 = vmatmul.mubr.bf16.gmra.mrb[0].mxu0 %v3957
      %v4861 = vpop.f32.mrb[0].mxu0
      %v4862 = vadd.f32 %v4701, %v4861
      %v4863 = vpop.f32.mrb[0].mxu0
      %v4864 = vpop.f32.mrb[0].mxu0
      %v4865 = vadd.f32 %v4704, %v4864
      %v4866 = vpop.f32.mrb[0].mxu0
      %4867 = vmatprep.mubr.bf16.mxu0 %v3967
      %4868 = vmatmul.mubr.bf16.gmra.mrb[0].mxu0 %v3966
      %v4869 = vpop.f32.mrb[0].mxu0
      %v4870 = vadd.f32 %v4709, %v4869
      %v4871 = vpop.f32.mrb[0].mxu0
      %v4872 = vpop.f32.mrb[0].mxu0
      %v4873 = vadd.f32 %v4712, %v4872
      %v4874 = vpop.f32.mrb[0].mxu0
      %4875 = vmatprep.mubr.bf16.mxu0 %v3976
      %4876 = vmatmul.mubr.bf16.gmra.mrb[0].mxu0 %v3975
      %v4877 = vpop.f32.mrb[0].mxu0
      %v4878 = vadd.f32 %v4717, %v4877
      %v4879 = vpop.f32.mrb[0].mxu0
      %v4880 = vpop.f32.mrb[0].mxu0
      %v4881 = vadd.f32 %v4720, %v4880
      %v4882 = vpop.f32.mrb[0].mxu0
      %4883 = vmatprep.mubr.bf16.mxu0 %v3985
      %4884 = vmatmul.mubr.bf16.gmra.mrb[0].mxu0 %v3984
      %v4885 = vpop.f32.mrb[0].mxu0
      %v4886 = vadd.f32 %v4725, %v4885
      %v4887 = vpop.f32.mrb[0].mxu0
      %v4888 = vpop.f32.mrb[0].mxu0
      %v4889 = vadd.f32 %v4728, %v4888
      %v4890 = vpop.f32.mrb[0].mxu0
      %4891 = vmatprep.mubr.bf16.mxu0 %v3994
      %4892 = vmatmul.mubr.bf16.gmra.mrb[0].mxu0 %v3993
      %v4893 = vpop.f32.mrb[0].mxu0
      %v4894 = vadd.f32 %v4733, %v4893
      %v4895 = vpop.f32.mrb[0].mxu0
      %v4896 = vpop.f32.mrb[0].mxu0
      %v4897 = vadd.f32 %v4736, %v4896
      %v4898 = vpop.f32.mrb[0].mxu0
      %4899 = vmatprep.mubr.bf16.mxu0 %v4003
      %4900 = vmatmul.mubr.bf16.gmra.mrb[0].mxu0 %v4002
      %v4901 = vpop.f32.mrb[0].mxu0
      %v4902 = vadd.f32 %v4741, %v4901
      %v4903 = vpop.f32.mrb[0].mxu0
      %v4904 = vpop.f32.mrb[0].mxu0
      %v4905 = vadd.f32 %v4744, %v4904
      %v4906 = vpop.f32.mrb[0].mxu0
      %4907 = vmatprep.mubr.bf16.mxu0 %v4012
      %4908 = vmatmul.mubr.bf16.gmra.mrb[0].mxu0 %v4011
      %v4909 = vpop.f32.mrb[0].mxu0
      %v4910 = vadd.f32 %v4749, %v4909
      %v4911 = vpop.f32.mrb[0].mxu0
      %v4912 = vpop.f32.mrb[0].mxu0
      %v4913 = vadd.f32 %v4752, %v4912
      %v4914 = vpop.f32.mrb[0].mxu0
      %4915 = vdwg.mxu0
      %4916 = vmatprep.subr.bf16.mxu0 0
      %4917 = vmatpush1.bf16.msra.mxu0 %v4482
      %4918 = vmatprep.subr.bf16.mxu0 0
      %4919 = vmatpush1.bf16.msra.mxu0 %v4483
      %4920 = vmatprep.subr.bf16.mxu0 0
      %4921 = vmatpush1.bf16.msra.mxu0 %v4484
      %4922 = vmatprep.subr.bf16.mxu0 0
      %4923 = vmatpush1.bf16.msra.mxu0 %v4485
      %4924 = vmatprep.subr.bf16.mxu0 0
      %4925 = vmatpush1.bf16.msra.mxu0 %v4486
      %4926 = vmatprep.subr.bf16.mxu0 0
      %4927 = vmatpush1.bf16.msra.mxu0 %v4487
      %4928 = vmatprep.subr.bf16.mxu0 0
      %4929 = vmatpush1.bf16.msra.mxu0 %v4488
      %4930 = vmatprep.subr.bf16.mxu0 0
      %4931 = vmatpush1.bf16.msra.mxu0 %v4489
      %4932 = vmatprep.subr.bf16.mxu0 0
      %4933 = vmatpush1.bf16.msra.mxu0 %v4490
      %4934 = vmatprep.subr.bf16.mxu0 0
      %4935 = vmatpush1.bf16.msra.mxu0 %v4491
      %4936 = vmatprep.subr.bf16.mxu0 0
      %4937 = vmatpush1.bf16.msra.mxu0 %v4492
      %4938 = vmatprep.subr.bf16.mxu0 0
      %4939 = vmatpush1.bf16.msra.mxu0 %v4493
      %4940 = vmatprep.subr.bf16.mxu0 0
      %4941 = vmatpush1.bf16.msra.mxu0 %v4494
      %4942 = vmatprep.subr.bf16.mxu0 0
      %4943 = vmatpush1.bf16.msra.mxu0 %v4495
      %4944 = vmatprep.subr.bf16.mxu0 0
      %4945 = vmatpush1.bf16.msra.mxu0 %v4496
      %4946 = vmatprep.subr.bf16.mxu0 0
      %4947 = vmatpush1.bf16.msra.mxu0 %v4497
      %4948 = vmatprep.mubr.bf16.mxu0 %v3879
      %4949 = vmatmul.mubr.bf16.gmra.mrb[0].mxu0 %v3878
      %v4950 = vpop.f32.mrb[0].mxu0
      %v4951 = vadd.f32 %v4790, %v4950
      %v4952 = vpop.f32.mrb[0].mxu0
      %v4953 = vpop.f32.mrb[0].mxu0
      %v4954 = vadd.f32 %v4793, %v4953
      %v4955 = vpop.f32.mrb[0].mxu0
      %4956 = vmatprep.mubr.bf16.mxu0 %v3888
      %4957 = vmatmul.mubr.bf16.gmra.mrb[0].mxu0 %v3887
      %v4958 = vpop.f32.mrb[0].mxu0
      %v4959 = vadd.f32 %v4798, %v4958
      %v4960 = vpop.f32.mrb[0].mxu0
      %v4961 = vpop.f32.mrb[0].mxu0
      %v4962 = vadd.f32 %v4801, %v4961
      %v4963 = vpop.f32.mrb[0].mxu0
      %4964 = vmatprep.mubr.bf16.mxu0 %v3897
      %4965 = vmatmul.mubr.bf16.gmra.mrb[0].mxu0 %v3896
      %v4966 = vpop.f32.mrb[0].mxu0
      %v4967 = vadd.f32 %v4806, %v4966
      %v4968 = vpop.f32.mrb[0].mxu0
      %v4969 = vpop.f32.mrb[0].mxu0
      %v4970 = vadd.f32 %v4809, %v4969
      %v4971 = vpop.f32.mrb[0].mxu0
      %4972 = vmatprep.mubr.bf16.mxu0 %v3906
      %4973 = vmatmul.mubr.bf16.gmra.mrb[0].mxu0 %v3905
      %v4974 = vpop.f32.mrb[0].mxu0
      %v4975 = vadd.f32 %v4814, %v4974
      %v4976 = vpop.f32.mrb[0].mxu0
      %v4977 = vpop.f32.mrb[0].mxu0
      %v4978 = vadd.f32 %v4817, %v4977
      %v4979 = vpop.f32.mrb[0].mxu0
      %4980 = vmatprep.mubr.bf16.mxu0 %v3915
      %4981 = vmatmul.mubr.bf16.gmra.mrb[0].mxu0 %v3914
      %v4982 = vpop.f32.mrb[0].mxu0
      %v4983 = vadd.f32 %v4822, %v4982
      %v4984 = vpop.f32.mrb[0].mxu0
      %v4985 = vpop.f32.mrb[0].mxu0
      %v4986 = vadd.f32 %v4825, %v4985
      %v4987 = vpop.f32.mrb[0].mxu0
      %4988 = vmatprep.mubr.bf16.mxu0 %v3924
      %4989 = vmatmul.mubr.bf16.gmra.mrb[0].mxu0 %v3923
      %v4990 = vpop.f32.mrb[0].mxu0
      %v4991 = vadd.f32 %v4830, %v4990
      %v4992 = vpop.f32.mrb[0].mxu0
      %v4993 = vpop.f32.mrb[0].mxu0
      %v4994 = vadd.f32 %v4833, %v4993
      %v4995 = vpop.f32.mrb[0].mxu0
      %4996 = vmatprep.mubr.bf16.mxu0 %v3933
      %4997 = vmatmul.mubr.bf16.gmra.mrb[0].mxu0 %v3932
      %v4998 = vpop.f32.mrb[0].mxu0
      %v4999 = vadd.f32 %v4838, %v4998
      %v5000 = vpop.f32.mrb[0].mxu0
      %v5001 = vpop.f32.mrb[0].mxu0
      %v5002 = vadd.f32 %v4841, %v5001
      %v5003 = vpop.f32.mrb[0].mxu0
      %5004 = vmatprep.mubr.bf16.mxu0 %v3942
      %5005 = vmatmul.mubr.bf16.gmra.mrb[0].mxu0 %v3941
      %v5006 = vpop.f32.mrb[0].mxu0
      %v5007 = vadd.f32 %v4846, %v5006
      %v5008 = vpop.f32.mrb[0].mxu0
      %v5009 = vpop.f32.mrb[0].mxu0
      %v5010 = vadd.f32 %v4849, %v5009
      %v5011 = vpop.f32.mrb[0].mxu0
      %5012 = vmatprep.mubr.bf16.mxu0 %v3951
      %5013 = vmatmul.mubr.bf16.gmra.mrb[0].mxu0 %v3950
      %v5014 = vpop.f32.mrb[0].mxu0
      %v5015 = vadd.f32 %v4854, %v5014
      %v5016 = vpop.f32.mrb[0].mxu0
      %v5017 = vpop.f32.mrb[0].mxu0
      %v5018 = vadd.f32 %v4857, %v5017
      %v5019 = vpop.f32.mrb[0].mxu0
      %5020 = vmatprep.mubr.bf16.mxu0 %v3960
      %5021 = vmatmul.mubr.bf16.gmra.mrb[0].mxu0 %v3959
      %v5022 = vpop.f32.mrb[0].mxu0
      %v5023 = vadd.f32 %v4862, %v5022
      %v5024 = vpop.f32.mrb[0].mxu0
      %v5025 = vpop.f32.mrb[0].mxu0
      %v5026 = vadd.f32 %v4865, %v5025
      %v5027 = vpop.f32.mrb[0].mxu0
      %5028 = vmatprep.mubr.bf16.mxu0 %v3969
      %5029 = vmatmul.mubr.bf16.gmra.mrb[0].mxu0 %v3968
      %v5030 = vpop.f32.mrb[0].mxu0
      %v5031 = vadd.f32 %v4870, %v5030
      %v5032 = vpop.f32.mrb[0].mxu0
      %v5033 = vpop.f32.mrb[0].mxu0
      %v5034 = vadd.f32 %v4873, %v5033
      %v5035 = vpop.f32.mrb[0].mxu0
      %5036 = vmatprep.mubr.bf16.mxu0 %v3978
      %5037 = vmatmul.mubr.bf16.gmra.mrb[0].mxu0 %v3977
      %v5038 = vpop.f32.mrb[0].mxu0
      %v5039 = vadd.f32 %v4878, %v5038
      %v5040 = vpop.f32.mrb[0].mxu0
      %v5041 = vpop.f32.mrb[0].mxu0
      %v5042 = vadd.f32 %v4881, %v5041
      %v5043 = vpop.f32.mrb[0].mxu0
      %5044 = vmatprep.mubr.bf16.mxu0 %v3987
      %5045 = vmatmul.mubr.bf16.gmra.mrb[0].mxu0 %v3986
      %v5046 = vpop.f32.mrb[0].mxu0
      %v5047 = vadd.f32 %v4886, %v5046
      %v5048 = vpop.f32.mrb[0].mxu0
      %v5049 = vpop.f32.mrb[0].mxu0
      %v5050 = vadd.f32 %v4889, %v5049
      %v5051 = vpop.f32.mrb[0].mxu0
      %5052 = vmatprep.mubr.bf16.mxu0 %v3996
      %5053 = vmatmul.mubr.bf16.gmra.mrb[0].mxu0 %v3995
      %v5054 = vpop.f32.mrb[0].mxu0
      %v5055 = vadd.f32 %v4894, %v5054
      %v5056 = vpop.f32.mrb[0].mxu0
      %v5057 = vpop.f32.mrb[0].mxu0
      %v5058 = vadd.f32 %v4897, %v5057
      %v5059 = vpop.f32.mrb[0].mxu0
      %5060 = vmatprep.mubr.bf16.mxu0 %v4005
      %5061 = vmatmul.mubr.bf16.gmra.mrb[0].mxu0 %v4004
      %v5062 = vpop.f32.mrb[0].mxu0
      %v5063 = vadd.f32 %v4902, %v5062
      %v5064 = vpop.f32.mrb[0].mxu0
      %v5065 = vpop.f32.mrb[0].mxu0
      %v5066 = vadd.f32 %v4905, %v5065
      %v5067 = vpop.f32.mrb[0].mxu0
      %5068 = vmatprep.mubr.bf16.mxu0 %v4014
      %5069 = vmatmul.mubr.bf16.gmra.mrb[0].mxu0 %v4013
      %v5070 = vpop.f32.mrb[0].mxu0
      %v5071 = vadd.f32 %v4910, %v5070
      %v5072 = vpop.f32.mrb[0].mxu0
      %v5073 = vpop.f32.mrb[0].mxu0
      %v5074 = vadd.f32 %v4913, %v5073
      %v5075 = vpop.f32.mrb[0].mxu0
      %5076 = vdwg.mxu0
      %5077 = vmatprep.subr.bf16.mxu0 0
      %5078 = vmatpush1.bf16.msra.mxu0 %v4498
      %5079 = vmatprep.subr.bf16.mxu0 0
      %5080 = vmatpush1.bf16.msra.mxu0 %v4499
      %5081 = vmatprep.subr.bf16.mxu0 0
      %5082 = vmatpush1.bf16.msra.mxu0 %v4500
      %5083 = vmatprep.subr.bf16.mxu0 0
      %5084 = vmatpush1.bf16.msra.mxu0 %v4501
      %5085 = vmatprep.subr.bf16.mxu0 0
      %5086 = vmatpush1.bf16.msra.mxu0 %v4502
      %5087 = vmatprep.subr.bf16.mxu0 0
      %5088 = vmatpush1.bf16.msra.mxu0 %v4503
      %5089 = vmatprep.subr.bf16.mxu0 0
      %5090 = vmatpush1.bf16.msra.mxu0 %v4504
      %5091 = vmatprep.subr.bf16.mxu0 0
      %5092 = vmatpush1.bf16.msra.mxu0 %v4505
      %5093 = vmatprep.subr.bf16.mxu0 0
      %5094 = vmatpush1.bf16.msra.mxu0 %v4506
      %5095 = vmatprep.subr.bf16.mxu0 0
      %5096 = vmatpush1.bf16.msra.mxu0 %v4507
      %5097 = vmatprep.subr.bf16.mxu0 0
      %5098 = vmatpush1.bf16.msra.mxu0 %v4508
      %5099 = vmatprep.subr.bf16.mxu0 0
      %5100 = vmatpush1.bf16.msra.mxu0 %v4509
      %5101 = vmatprep.subr.bf16.mxu0 0
      %5102 = vmatpush1.bf16.msra.mxu0 %v4510
      %5103 = vmatprep.subr.bf16.mxu0 0
      %5104 = vmatpush1.bf16.msra.mxu0 %v4511
      %5105 = vmatprep.subr.bf16.mxu0 0
      %5106 = vmatpush1.bf16.msra.mxu0 %v4512
      %5107 = vmatprep.subr.bf16.mxu0 0
      %5108 = vmatpush1.bf16.msra.mxu0 %v4513
      %5109 = vmatprep.mubr.bf16.mxu0 %v3881
      %5110 = vmatmul.mubr.bf16.gmra.mrb[0].mxu0 %v3880
      %v5111 = vpop.f32.mrb[0].mxu0
      %v5112 = vadd.f32 %v4951, %v5111
      %v5113 = vpop.f32.mrb[0].mxu0
      %v5114 = vpop.f32.mrb[0].mxu0
      %v5115 = vadd.f32 %v4954, %v5114
      %v5116 = vpop.f32.mrb[0].mxu0
      %5117 = vmatprep.mubr.bf16.mxu0 %v3890
      %5118 = vmatmul.mubr.bf16.gmra.mrb[0].mxu0 %v3889
      %v5119 = vpop.f32.mrb[0].mxu0
      %v5120 = vadd.f32 %v4959, %v5119
      %v5121 = vpop.f32.mrb[0].mxu0
      %v5122 = vpop.f32.mrb[0].mxu0
      %v5123 = vadd.f32 %v4962, %v5122
      %v5124 = vpop.f32.mrb[0].mxu0
      %5125 = vmatprep.mubr.bf16.mxu0 %v3899
      %5126 = vmatmul.mubr.bf16.gmra.mrb[0].mxu0 %v3898
      %v5127 = vpop.f32.mrb[0].mxu0
      %v5128 = vadd.f32 %v4967, %v5127
      %v5129 = vpop.f32.mrb[0].mxu0
      %v5130 = vpop.f32.mrb[0].mxu0
      %v5131 = vadd.f32 %v4970, %v5130
      %v5132 = vpop.f32.mrb[0].mxu0
      %5133 = vmatprep.mubr.bf16.mxu0 %v3908
      %5134 = vmatmul.mubr.bf16.gmra.mrb[0].mxu0 %v3907
      %v5135 = vpop.f32.mrb[0].mxu0
      %v5136 = vadd.f32 %v4975, %v5135
      %v5137 = vpop.f32.mrb[0].mxu0
      %v5138 = vpop.f32.mrb[0].mxu0
      %v5139 = vadd.f32 %v4978, %v5138
      %v5140 = vpop.f32.mrb[0].mxu0
      %5141 = vmatprep.mubr.bf16.mxu0 %v3917
      %5142 = vmatmul.mubr.bf16.gmra.mrb[0].mxu0 %v3916
      %v5143 = vpop.f32.mrb[0].mxu0
      %v5144 = vadd.f32 %v4983, %v5143
      %v5145 = vpop.f32.mrb[0].mxu0
      %v5146 = vpop.f32.mrb[0].mxu0
      %v5147 = vadd.f32 %v4986, %v5146
      %v5148 = vpop.f32.mrb[0].mxu0
      %5149 = vmatprep.mubr.bf16.mxu0 %v3926
      %5150 = vmatmul.mubr.bf16.gmra.mrb[0].mxu0 %v3925
      %v5151 = vpop.f32.mrb[0].mxu0
      %v5152 = vadd.f32 %v4991, %v5151
      %v5153 = vpop.f32.mrb[0].mxu0
      %v5154 = vpop.f32.mrb[0].mxu0
      %v5155 = vadd.f32 %v4994, %v5154
      %v5156 = vpop.f32.mrb[0].mxu0
      %5157 = vmatprep.mubr.bf16.mxu0 %v3935
      %5158 = vmatmul.mubr.bf16.gmra.mrb[0].mxu0 %v3934
      %v5159 = vpop.f32.mrb[0].mxu0
      %v5160 = vadd.f32 %v4999, %v5159
      %v5161 = vpop.f32.mrb[0].mxu0
      %v5162 = vpop.f32.mrb[0].mxu0
      %v5163 = vadd.f32 %v5002, %v5162
      %v5164 = vpop.f32.mrb[0].mxu0
      %5165 = vmatprep.mubr.bf16.mxu0 %v3944
      %5166 = vmatmul.mubr.bf16.gmra.mrb[0].mxu0 %v3943
      %v5167 = vpop.f32.mrb[0].mxu0
      %v5168 = vadd.f32 %v5007, %v5167
      %v5169 = vpop.f32.mrb[0].mxu0
      %v5170 = vpop.f32.mrb[0].mxu0
      %v5171 = vadd.f32 %v5010, %v5170
      %v5172 = vpop.f32.mrb[0].mxu0
      %5173 = vmatprep.mubr.bf16.mxu0 %v3953
      %5174 = vmatmul.mubr.bf16.gmra.mrb[0].mxu0 %v3952
      %v5175 = vpop.f32.mrb[0].mxu0
      %v5176 = vadd.f32 %v5015, %v5175
      %v5177 = vpop.f32.mrb[0].mxu0
      %v5178 = vpop.f32.mrb[0].mxu0
      %v5179 = vadd.f32 %v5018, %v5178
      %v5180 = vpop.f32.mrb[0].mxu0
      %5181 = vmatprep.mubr.bf16.mxu0 %v3962
      %5182 = vmatmul.mubr.bf16.gmra.mrb[0].mxu0 %v3961
      %v5183 = vpop.f32.mrb[0].mxu0
      %v5184 = vadd.f32 %v5023, %v5183
      %v5185 = vpop.f32.mrb[0].mxu0
      %v5186 = vpop.f32.mrb[0].mxu0
      %v5187 = vadd.f32 %v5026, %v5186
      %v5188 = vpop.f32.mrb[0].mxu0
      %5189 = vmatprep.mubr.bf16.mxu0 %v3971
      %5190 = vmatmul.mubr.bf16.gmra.mrb[0].mxu0 %v3970
      %v5191 = vpop.f32.mrb[0].mxu0
      %v5192 = vadd.f32 %v5031, %v5191
      %v5193 = vpop.f32.mrb[0].mxu0
      %v5194 = vpop.f32.mrb[0].mxu0
      %v5195 = vadd.f32 %v5034, %v5194
      %v5196 = vpop.f32.mrb[0].mxu0
      %5197 = vmatprep.mubr.bf16.mxu0 %v3980
      %5198 = vmatmul.mubr.bf16.gmra.mrb[0].mxu0 %v3979
      %v5199 = vpop.f32.mrb[0].mxu0
      %v5200 = vadd.f32 %v5039, %v5199
      %v5201 = vpop.f32.mrb[0].mxu0
      %v5202 = vpop.f32.mrb[0].mxu0
      %v5203 = vadd.f32 %v5042, %v5202
      %v5204 = vpop.f32.mrb[0].mxu0
      %5205 = vmatprep.mubr.bf16.mxu0 %v3989
      %5206 = vmatmul.mubr.bf16.gmra.mrb[0].mxu0 %v3988
      %v5207 = vpop.f32.mrb[0].mxu0
      %v5208 = vadd.f32 %v5047, %v5207
      %v5209 = vpop.f32.mrb[0].mxu0
      %v5210 = vpop.f32.mrb[0].mxu0
      %v5211 = vadd.f32 %v5050, %v5210
      %v5212 = vpop.f32.mrb[0].mxu0
      %5213 = vmatprep.mubr.bf16.mxu0 %v3998
      %5214 = vmatmul.mubr.bf16.gmra.mrb[0].mxu0 %v3997
      %v5215 = vpop.f32.mrb[0].mxu0
      %v5216 = vadd.f32 %v5055, %v5215
      %v5217 = vpop.f32.mrb[0].mxu0
      %v5218 = vpop.f32.mrb[0].mxu0
      %v5219 = vadd.f32 %v5058, %v5218
      %v5220 = vpop.f32.mrb[0].mxu0
      %5221 = vmatprep.mubr.bf16.mxu0 %v4007
      %5222 = vmatmul.mubr.bf16.gmra.mrb[0].mxu0 %v4006
      %v5223 = vpop.f32.mrb[0].mxu0
      %v5224 = vadd.f32 %v5063, %v5223
      %v5225 = vpop.f32.mrb[0].mxu0
      %v5226 = vpop.f32.mrb[0].mxu0
      %v5227 = vadd.f32 %v5066, %v5226
      %v5228 = vpop.f32.mrb[0].mxu0
      %5229 = vmatprep.mubr.bf16.mxu0 %v4016
      %5230 = vmatmul.mubr.bf16.gmra.mrb[0].mxu0 %v4015
      %v5231 = vpop.f32.mrb[0].mxu0
      %v5232 = vadd.f32 %v5071, %v5231
      %v5233 = vpop.f32.mrb[0].mxu0
      %v5234 = vpop.f32.mrb[0].mxu0
      %v5235 = vadd.f32 %v5074, %v5234
      %v5236 = vpop.f32.mrb[0].mxu0
      %5237 = vdwg.mxu0
      %5238 = vmatprep.subr.bf16.mxu0 0
      %5239 = vmatpush1.bf16.msra.mxu0 %v4514
      %5240 = vmatprep.subr.bf16.mxu0 0
      %5241 = vmatpush1.bf16.msra.mxu0 %v4515
      %5242 = vmatprep.subr.bf16.mxu0 0
      %5243 = vmatpush1.bf16.msra.mxu0 %v4516
      %5244 = vmatprep.subr.bf16.mxu0 0
      %5245 = vmatpush1.bf16.msra.mxu0 %v4517
      %5246 = vmatprep.subr.bf16.mxu0 0
      %5247 = vmatpush1.bf16.msra.mxu0 %v4518
      %5248 = vmatprep.subr.bf16.mxu0 0
      %5249 = vmatpush1.bf16.msra.mxu0 %v4519
      %5250 = vmatprep.subr.bf16.mxu0 0
      %5251 = vmatpush1.bf16.msra.mxu0 %v4520
      %5252 = vmatprep.subr.bf16.mxu0 0
      %5253 = vmatpush1.bf16.msra.mxu0 %v4521
      %5254 = vmatprep.subr.bf16.mxu0 0
      %5255 = vmatpush1.bf16.msra.mxu0 0
      %5256 = vmatprep.subr.bf16.mxu0 0
      %5257 = vmatpush1.bf16.msra.mxu0 0
      %5258 = vmatprep.subr.bf16.mxu0 0
      %5259 = vmatpush1.bf16.msra.mxu0 0
      %5260 = vmatprep.subr.bf16.mxu0 0
      %5261 = vmatpush1.bf16.msra.mxu0 0
      %5262 = vmatprep.subr.bf16.mxu0 0
      %5263 = vmatpush1.bf16.msra.mxu0 0
      %5264 = vmatprep.subr.bf16.mxu0 0
      %5265 = vmatpush1.bf16.msra.mxu0 0
      %5266 = vmatprep.subr.bf16.mxu0 0
      %5267 = vmatpush1.bf16.msra.mxu0 0
      %5268 = vmatprep.subr.bf16.mxu0 0
      %5269 = vmatpush1.bf16.msra.mxu0 0
      %5270 = vmatprep.mubr.bf16.mxu0 0
      %5271 = vmatmul.mubr.bf16.gmra.mrb[0].mxu0 %v3882
      %v5272 = vpop.f32.mrb[0].mxu0
      %v5273 = vadd.f32 %v5112, %v5272
      %v5274 = vpop.f32.mrb[0].mxu0
      %v5275 = vpop.f32.mrb[0].mxu0
      %v5276 = vadd.f32 %v5115, %v5275
      %v5277 = vpop.f32.mrb[0].mxu0
      %5278 = vmatprep.mubr.bf16.mxu0 0
      %5279 = vmatmul.mubr.bf16.gmra.mrb[0].mxu0 %v3891
      %v5280 = vpop.f32.mrb[0].mxu0
      %v5281 = vadd.f32 %v5120, %v5280
      %v5282 = vpop.f32.mrb[0].mxu0
      %v5283 = vpop.f32.mrb[0].mxu0
      %v5284 = vadd.f32 %v5123, %v5283
      %v5285 = vpop.f32.mrb[0].mxu0
      %5286 = vmatprep.mubr.bf16.mxu0 0
      %5287 = vmatmul.mubr.bf16.gmra.mrb[0].mxu0 %v3900
      %v5288 = vpop.f32.mrb[0].mxu0
      %v5289 = vadd.f32 %v5128, %v5288
      %v5290 = vpop.f32.mrb[0].mxu0
      %v5291 = vpop.f32.mrb[0].mxu0
      %v5292 = vadd.f32 %v5131, %v5291
      %v5293 = vpop.f32.mrb[0].mxu0
      %5294 = vmatprep.mubr.bf16.mxu0 0
      %5295 = vmatmul.mubr.bf16.gmra.mrb[0].mxu0 %v3909
      %v5296 = vpop.f32.mrb[0].mxu0
      %v5297 = vadd.f32 %v5136, %v5296
      %v5298 = vpop.f32.mrb[0].mxu0
      %v5299 = vpop.f32.mrb[0].mxu0
      %v5300 = vadd.f32 %v5139, %v5299
      %v5301 = vpop.f32.mrb[0].mxu0
      %5302 = vmatprep.mubr.bf16.mxu0 0
      %5303 = vmatmul.mubr.bf16.gmra.mrb[0].mxu0 %v3918
      %v5304 = vpop.f32.mrb[0].mxu0
      %v5305 = vadd.f32 %v5144, %v5304
      %v5306 = vpop.f32.mrb[0].mxu0
      %v5307 = vpop.f32.mrb[0].mxu0
      %v5308 = vadd.f32 %v5147, %v5307
      %v5309 = vpop.f32.mrb[0].mxu0
      %5310 = vmatprep.mubr.bf16.mxu0 0
      %5311 = vmatmul.mubr.bf16.gmra.mrb[0].mxu0 %v3927
      %v5312 = vpop.f32.mrb[0].mxu0
      %v5313 = vadd.f32 %v5152, %v5312
      %v5314 = vpop.f32.mrb[0].mxu0
      %v5315 = vpop.f32.mrb[0].mxu0
      %v5316 = vadd.f32 %v5155, %v5315
      %v5317 = vpop.f32.mrb[0].mxu0
      %5318 = vmatprep.mubr.bf16.mxu0 0
      %5319 = vmatmul.mubr.bf16.gmra.mrb[0].mxu0 %v3936
      %v5320 = vpop.f32.mrb[0].mxu0
      %v5321 = vadd.f32 %v5160, %v5320
      %v5322 = vpop.f32.mrb[0].mxu0
      %v5323 = vpop.f32.mrb[0].mxu0
      %v5324 = vadd.f32 %v5163, %v5323
      %v5325 = vpop.f32.mrb[0].mxu0
      %5326 = vmatprep.mubr.bf16.mxu0 0
      %5327 = vmatmul.mubr.bf16.gmra.mrb[0].mxu0 %v3945
      %v5328 = vpop.f32.mrb[0].mxu0
      %v5329 = vadd.f32 %v5168, %v5328
      %v5330 = vpop.f32.mrb[0].mxu0
      %v5331 = vpop.f32.mrb[0].mxu0
      %v5332 = vadd.f32 %v5171, %v5331
      %v5333 = vpop.f32.mrb[0].mxu0
      %5334 = vmatprep.mubr.bf16.mxu0 0
      %5335 = vmatmul.mubr.bf16.gmra.mrb[0].mxu0 %v3954
      %v5336 = vpop.f32.mrb[0].mxu0
      %v5337 = vadd.f32 %v5176, %v5336
      %v5338 = vpop.f32.mrb[0].mxu0
      %v5339 = vpop.f32.mrb[0].mxu0
      %v5340 = vadd.f32 %v5179, %v5339
      %v5341 = vpop.f32.mrb[0].mxu0
      %5342 = vmatprep.mubr.bf16.mxu0 0
      %5343 = vmatmul.mubr.bf16.gmra.mrb[0].mxu0 %v3963
      %v5344 = vpop.f32.mrb[0].mxu0
      %v5345 = vadd.f32 %v5184, %v5344
      %v5346 = vpop.f32.mrb[0].mxu0
      %v5347 = vpop.f32.mrb[0].mxu0
      %v5348 = vadd.f32 %v5187, %v5347
      %v5349 = vpop.f32.mrb[0].mxu0
      %5350 = vmatprep.mubr.bf16.mxu0 0
      %5351 = vmatmul.mubr.bf16.gmra.mrb[0].mxu0 %v3972
      %v5352 = vpop.f32.mrb[0].mxu0
      %v5353 = vadd.f32 %v5192, %v5352
      %v5354 = vpop.f32.mrb[0].mxu0
      %v5355 = vpop.f32.mrb[0].mxu0
      %v5356 = vadd.f32 %v5195, %v5355
      %v5357 = vpop.f32.mrb[0].mxu0
      %5358 = vmatprep.mubr.bf16.mxu0 0
      %5359 = vmatmul.mubr.bf16.gmra.mrb[0].mxu0 %v3981
      %v5360 = vpop.f32.mrb[0].mxu0
      %v5361 = vadd.f32 %v5200, %v5360
      %v5362 = vpop.f32.mrb[0].mxu0
      %v5363 = vpop.f32.mrb[0].mxu0
      %v5364 = vadd.f32 %v5203, %v5363
      %v5365 = vpop.f32.mrb[0].mxu0
      %5366 = vmatprep.mubr.bf16.mxu0 0
      %5367 = vmatmul.mubr.bf16.gmra.mrb[0].mxu0 %v3990
      %v5368 = vpop.f32.mrb[0].mxu0
      %v5369 = vadd.f32 %v5208, %v5368
      %v5370 = vpop.f32.mrb[0].mxu0
      %v5371 = vpop.f32.mrb[0].mxu0
      %v5372 = vadd.f32 %v5211, %v5371
      %v5373 = vpop.f32.mrb[0].mxu0
      %5374 = vmatprep.mubr.bf16.mxu0 0
      %5375 = vmatmul.mubr.bf16.gmra.mrb[0].mxu0 %v3999
      %v5376 = vpop.f32.mrb[0].mxu0
      %v5377 = vadd.f32 %v5216, %v5376
      %v5378 = vpop.f32.mrb[0].mxu0
      %v5379 = vpop.f32.mrb[0].mxu0
      %v5380 = vadd.f32 %v5219, %v5379
      %v5381 = vpop.f32.mrb[0].mxu0
      %5382 = vmatprep.mubr.bf16.mxu0 0
      %5383 = vmatmul.mubr.bf16.gmra.mrb[0].mxu0 %v4008
      %v5384 = vpop.f32.mrb[0].mxu0
      %v5385 = vadd.f32 %v5224, %v5384
      %v5386 = vpop.f32.mrb[0].mxu0
      %v5387 = vpop.f32.mrb[0].mxu0
      %v5388 = vadd.f32 %v5227, %v5387
      %v5389 = vpop.f32.mrb[0].mxu0
      %5390 = vmatprep.mubr.bf16.mxu0 0
      %5391 = vmatmul.mubr.bf16.gmra.mrb[0].mxu0 %v4017
      %v5392 = vpop.f32.mrb[0].mxu0
      %v5393 = vadd.f32 %v5232, %v5392
      %v5394 = vpop.f32.mrb[0].mxu0
      %v5395 = vpop.f32.mrb[0].mxu0
      %v5396 = vadd.f32 %v5235, %v5395
      %v5397 = vpop.f32.mrb[0].mxu0
      %5398 = vdwg.mxu0
      %v5399 = vpack.c.bf16 %v5276, %v5273
      %v5400 = vpack.c.bf16 %v5284, %v5281
      %v5401 = vpack.c.bf16 %v5292, %v5289
      %v5402 = vpack.c.bf16 %v5300, %v5297
      %v5403 = vpack.c.bf16 %v5308, %v5305
      %v5404 = vpack.c.bf16 %v5316, %v5313
      %v5405 = vpack.c.bf16 %v5324, %v5321
      %v5406 = vpack.c.bf16 %v5332, %v5329
      %v5407 = vpack.c.bf16 %v5340, %v5337
      %v5408 = vpack.c.bf16 %v5348, %v5345
      %v5409 = vpack.c.bf16 %v5356, %v5353
      %v5410 = vpack.c.bf16 %v5364, %v5361
      %v5411 = vpack.c.bf16 %v5372, %v5369
      %v5412 = vpack.c.bf16 %v5380, %v5377
      %v5413 = vpack.c.bf16 %v5388, %v5385
      %v5414 = vpack.c.bf16 %v5396, %v5393
      %v5431 = vunpack.c.l.b16 %v5399
      %v5432 = vunpack.c.h.b16 %v5399
      %v5433 = vunpack.c.l.b16 %v5400
      %v5434 = vunpack.c.h.b16 %v5400
      %v5435 = vunpack.c.l.b16 %v5401
      %v5436 = vunpack.c.h.b16 %v5401
      %v5437 = vunpack.c.l.b16 %v5402
      %v5438 = vunpack.c.h.b16 %v5402
      %v5439 = vunpack.c.l.b16 %v5403
      %v5440 = vunpack.c.h.b16 %v5403
      %v5441 = vunpack.c.l.b16 %v5404
      %v5442 = vunpack.c.h.b16 %v5404
      %v5443 = vunpack.c.l.b16 %v5405
      %v5444 = vunpack.c.h.b16 %v5405
      %v5445 = vunpack.c.l.b16 %v5406
      %v5446 = vunpack.c.h.b16 %v5406
      %v5447 = vunpack.c.l.b16 %v5407
      %v5448 = vunpack.c.h.b16 %v5407
      %v5449 = vunpack.c.l.b16 %v5408
      %v5450 = vunpack.c.h.b16 %v5408
      %v5451 = vunpack.c.l.b16 %v5409
      %v5452 = vunpack.c.h.b16 %v5409
      %v5453 = vunpack.c.l.b16 %v5410
      %v5454 = vunpack.c.h.b16 %v5410
      %v5455 = vunpack.c.l.b16 %v5411
      %v5456 = vunpack.c.h.b16 %v5411
      %v5457 = vunpack.c.l.b16 %v5412
      %v5458 = vunpack.c.h.b16 %v5412
      %v5459 = vunpack.c.l.b16 %v5413
      %v5460 = vunpack.c.h.b16 %v5413
      %v5461 = vunpack.c.l.b16 %v5414
      %v5462 = vunpack.c.h.b16 %v5414
      %v5463 = vpack.c.b16 %v5431, %v5431
      %v5464 = vpack.c.b16 %v5432, %v5432
      %v5465 = vpack.c.b16 %v5433, %v5433
      %v5466 = vpack.c.b16 %v5434, %v5434
      %v5467 = vpack.c.b16 %v5435, %v5435
      %v5468 = vpack.c.b16 %v5436, %v5436
      %v5469 = vpack.c.b16 %v5437, %v5437
      %v5470 = vpack.c.b16 %v5438, %v5438
      %v5471 = vpack.c.b16 %v5439, %v5439
      %v5472 = vpack.c.b16 %v5440, %v5440
      %v5473 = vpack.c.b16 %v5441, %v5441
      %v5474 = vpack.c.b16 %v5442, %v5442
      %v5475 = vpack.c.b16 %v5443, %v5443
      %v5476 = vpack.c.b16 %v5444, %v5444
      %v5477 = vpack.c.b16 %v5445, %v5445
      %v5478 = vpack.c.b16 %v5446, %v5446
      %v5479 = vpack.c.b16 %v5447, %v5447
      %v5480 = vpack.c.b16 %v5448, %v5448
      %v5481 = vpack.c.b16 %v5449, %v5449
      %v5482 = vpack.c.b16 %v5450, %v5450
      %v5483 = vpack.c.b16 %v5451, %v5451
      %v5484 = vpack.c.b16 %v5452, %v5452
      %v5485 = vpack.c.b16 %v5453, %v5453
      %v5486 = vpack.c.b16 %v5454, %v5454
      %v5487 = vpack.c.b16 %v5455, %v5455
      %v5488 = vpack.c.b16 %v5456, %v5456
      %v5489 = vpack.c.b16 %v5457, %v5457
      %v5490 = vpack.c.b16 %v5458, %v5458
      %v5491 = vpack.c.b16 %v5459, %v5459
      %v5492 = vpack.c.b16 %v5460, %v5460
      %v5493 = vpack.c.b16 %v5461, %v5461
      %v5494 = vpack.c.b16 %v5462, %v5462
      %5527 = vst [vmem:[%s262] sm:$0xf] %v5463
      %5528 = vst [vmem:[%s262 + $0x4] sm:$0xf] %v5464
      %5529 = vst [vmem:[%s262 + $0x8] sm:$0xf] %v5465
      %5530 = vst [vmem:[%s262 + $0xc] sm:$0xf] %v5466
      %5531 = vst [vmem:[%s262 + $0x10] sm:$0xf] %v5467
      %5532 = vst [vmem:[%s262 + $0x14] sm:$0xf] %v5468
      %5533 = vst [vmem:[%s262 + $0x18] sm:$0xf] %v5469
      %5534 = vst [vmem:[%s262 + $0x1c] sm:$0xf] %v5470
      %5535 = vst [vmem:[%s262 + $0x20] sm:$0xf] %v5471
      %5536 = vst [vmem:[%s262 + $0x24] sm:$0xf] %v5472
      %5537 = vst [vmem:[%s262 + $0x28] sm:$0xf] %v5473
      %5538 = vst [vmem:[%s262 + $0x2c] sm:$0xf] %v5474
      %5539 = vst [vmem:[%s262 + $0x30] sm:$0xf] %v5475
      %5540 = vst [vmem:[%s262 + $0x34] sm:$0xf] %v5476
      %5541 = vst [vmem:[%s262 + $0x38] sm:$0xf] %v5477
      %5542 = vst [vmem:[%s262 + $0x3c] sm:$0xf] %v5478
      %5543 = vst [vmem:[%s262 + $0x40] sm:$0xf] %v5479
      %5544 = vst [vmem:[%s262 + $0x44] sm:$0xf] %v5480
      %5545 = vst [vmem:[%s262 + $0x48] sm:$0xf] %v5481
      %5546 = vst [vmem:[%s262 + $0x4c] sm:$0xf] %v5482
      %5547 = vst [vmem:[%s262 + $0x50] sm:$0xf] %v5483
      %5548 = vst [vmem:[%s262 + $0x54] sm:$0xf] %v5484
      %5549 = vst [vmem:[%s262 + $0x58] sm:$0xf] %v5485
      %5550 = vst [vmem:[%s262 + $0x5c] sm:$0xf] %v5486
      %5551 = vst [vmem:[%s262 + $0x60] sm:$0xf] %v5487
      %5552 = vst [vmem:[%s262 + $0x64] sm:$0xf] %v5488
      %5553 = vst [vmem:[%s262 + $0x68] sm:$0xf] %v5489
      %5554 = vst [vmem:[%s262 + $0x6c] sm:$0xf] %v5490
      %5555 = vst [vmem:[%s262 + $0x70] sm:$0xf] %v5491
      %5556 = vst [vmem:[%s262 + $0x74] sm:$0xf] %v5492
      %5557 = vst [vmem:[%s262 + $0x78] sm:$0xf] %v5493
      %5558 = vst [vmem:[%s262 + $0x7c] sm:$0xf] %v5494
      %v5559 = vadd.f32 %v5273, %v5276
      %v5560 = vadd.f32 %v5559, %v5281
      %v5561 = vadd.f32 %v5560, %v5284
      %v5562 = vadd.f32 %v5561, %v5289
      %v5563 = vadd.f32 %v5562, %v5292
      %v5564 = vadd.f32 %v5563, %v5297
      %v5565 = vadd.f32 %v5564, %v5300
      %v5566 = vadd.f32 %v5565, %v5305
      %v5567 = vadd.f32 %v5566, %v5308
      %v5568 = vadd.f32 %v5567, %v5313
      %v5569 = vadd.f32 %v5568, %v5316
      %v5570 = vadd.f32 %v5569, %v5321
      %v5571 = vadd.f32 %v5570, %v5324
      %v5572 = vadd.f32 %v5571, %v5329
      %v5573 = vadd.f32 %v5572, %v5332
      %v5574 = vadd.f32 %v5573, %v5337
      %v5575 = vadd.f32 %v5574, %v5340
      %v5576 = vadd.f32 %v5575, %v5345
      %v5577 = vadd.f32 %v5576, %v5348
      %v5578 = vadd.f32 %v5577, %v5353
      %v5579 = vadd.f32 %v5578, %v5356
      %v5580 = vadd.f32 %v5579, %v5361
      %v5581 = vadd.f32 %v5580, %v5364
      %v5582 = vadd.f32 %v5581, %v5369
      %v5583 = vadd.f32 %v5582, %v5372
      %v5584 = vadd.f32 %v5583, %v5377
      %v5585 = vadd.f32 %v5584, %v5380
      %v5586 = vadd.f32 %v5585, %v5385
      %v5587 = vadd.f32 %v5586, %v5388
      %v5588 = vadd.f32 %v5587, %v5393
      %v5589 = vadd.f32 %v5588, %v5396
      %v5590 = vrot.slane %v5589, 4
      %v5591 = vadd.f32 %v5589, %v5590
      %v5592 = vrot.slane %v5591, 2
      %v5593 = vadd.f32 %v5591, %v5592
      %v5594 = vrot.slane %v5593, 1
      %v5595 = vadd.f32 %v5593, %v5594
      %5596 = vst [vmem:[%s265] sm:$0x1] %v5595
      %v5597 = vmul.f32 %v5273, %v5273
      %v5598 = vmul.f32 %v5276, %v5276
      %v5599 = vmul.f32 %v5281, %v5281
      %v5600 = vmul.f32 %v5284, %v5284
      %v5601 = vmul.f32 %v5289, %v5289
      %v5602 = vmul.f32 %v5292, %v5292
      %v5603 = vmul.f32 %v5297, %v5297
      %v5604 = vmul.f32 %v5300, %v5300
      %v5605 = vmul.f32 %v5305, %v5305
      %v5606 = vmul.f32 %v5308, %v5308
      %v5607 = vmul.f32 %v5313, %v5313
      %v5608 = vmul.f32 %v5316, %v5316
      %v5609 = vmul.f32 %v5321, %v5321
      %v5610 = vmul.f32 %v5324, %v5324
      %v5611 = vmul.f32 %v5329, %v5329
      %v5612 = vmul.f32 %v5332, %v5332
      %v5613 = vmul.f32 %v5337, %v5337
      %v5614 = vmul.f32 %v5340, %v5340
      %v5615 = vmul.f32 %v5345, %v5345
      %v5616 = vmul.f32 %v5348, %v5348
      %v5617 = vmul.f32 %v5353, %v5353
      %v5618 = vmul.f32 %v5356, %v5356
      %v5619 = vmul.f32 %v5361, %v5361
      %v5620 = vmul.f32 %v5364, %v5364
      %v5621 = vmul.f32 %v5369, %v5369
      %v5622 = vmul.f32 %v5372, %v5372
      %v5623 = vmul.f32 %v5377, %v5377
      %v5624 = vmul.f32 %v5380, %v5380
      %v5625 = vmul.f32 %v5385, %v5385
      %v5626 = vmul.f32 %v5388, %v5388
      %v5627 = vmul.f32 %v5393, %v5393
      %v5628 = vmul.f32 %v5396, %v5396
      %v5629 = vadd.f32 %v5597, %v5598
      %v5630 = vadd.f32 %v5629, %v5599
      %v5631 = vadd.f32 %v5630, %v5600
      %v5632 = vadd.f32 %v5631, %v5601
      %v5633 = vadd.f32 %v5632, %v5602
      %v5634 = vadd.f32 %v5633, %v5603
      %v5635 = vadd.f32 %v5634, %v5604
      %v5636 = vadd.f32 %v5635, %v5605
      %v5637 = vadd.f32 %v5636, %v5606
      %v5638 = vadd.f32 %v5637, %v5607
      %v5639 = vadd.f32 %v5638, %v5608
      %v5640 = vadd.f32 %v5639, %v5609
      %v5641 = vadd.f32 %v5640, %v5610
      %v5642 = vadd.f32 %v5641, %v5611
      %v5643 = vadd.f32 %v5642, %v5612
      %v5644 = vadd.f32 %v5643, %v5613
      %v5645 = vadd.f32 %v5644, %v5614
      %v5646 = vadd.f32 %v5645, %v5615
      %v5647 = vadd.f32 %v5646, %v5616
      %v5648 = vadd.f32 %v5647, %v5617
      %v5649 = vadd.f32 %v5648, %v5618
      %v5650 = vadd.f32 %v5649, %v5619
      %v5651 = vadd.f32 %v5650, %v5620
      %v5652 = vadd.f32 %v5651, %v5621
      %v5653 = vadd.f32 %v5652, %v5622
      %v5654 = vadd.f32 %v5653, %v5623
      %v5655 = vadd.f32 %v5654, %v5624
      %v5656 = vadd.f32 %v5655, %v5625
      %v5657 = vadd.f32 %v5656, %v5626
      %v5658 = vadd.f32 %v5657, %v5627
      %v5659 = vadd.f32 %v5658, %v5628
      %v5660 = vrot.slane %v5659, 4
      %v5661 = vadd.f32 %v5659, %v5660
      %v5662 = vrot.slane %v5661, 2
      %v5663 = vadd.f32 %v5661, %v5662
      %v5664 = vrot.slane %v5663, 1
      %v5665 = vadd.f32 %v5663, %v5664
      %5666 = vst [vmem:[%s268] sm:$0x1] %v5665
      %p5667 = scmp.lt.s32.totalorder %s18, 1
      %s5668 = scalar_select %p5667, %s18, 1
      %s5669 = smul.addr %s5668, 32
      %s5670 = smul.addr %s5669, 4
      %s5671 = scalar_lea.vmem %s4, %s5670
      %p5672 = scmp.lt.s32.totalorder %s18, 1
      %s5673 = scalar_select %p5672, %s18, 1
      %s5674 = scalar_lea.vmem %s5, %s5673
      %p5675 = scmp.lt.s32.totalorder %s18, 1
      %s5676 = scalar_select %p5675, %s18, 1
      %s5677 = scalar_lea.vmem %s6, %s5676
      // Predicated region
      $region37: #{double_conv_forward.4} parent=35 // pred_check
        %p5678 = pneg %p125
      $region38: #{double_conv_forward.4} parent=35 // pred_check_branch
        %5680 = sbr.rel (%p5678) target = $region40
      $region39: #{double_conv_forward.4} parent=35 // pred_region
        _
      $region40: #{double_conv_forward.4} parent=35 // pred_fallthru
        _
      // Predicated region
      $region41: #{double_conv_forward.4} parent=35 // pred_check
        %p5681 = pneg %p151
      $region42: #{double_conv_forward.4} parent=35 // pred_check_branch
        %5683 = sbr.rel (%p5681) target = $region44
      $region43: #{double_conv_forward.4} parent=35 // pred_region
        _
      $region44: #{double_conv_forward.4} parent=35 // pred_fallthru
        _
      // Predicated region
      $region45: #{double_conv_forward.4} parent=35 // pred_check
        %p5684 = pneg %p177
      $region46: #{double_conv_forward.4} parent=35 // pred_check_branch
        %5686 = sbr.rel (%p5684) target = $region48
      $region47: #{double_conv_forward.4} parent=35 // pred_region
        _
      $region48: #{double_conv_forward.4} parent=35 // pred_fallthru
        _
    $region36: #{double_conv_forward.4} parent=5 // pred_fallthru
      _
    %p5687 = scmp.le.s32.totalorder 2, %s13
    // Predicated region
    $region49: #{double_conv_forward.4} parent=5 // pred_check
      %p5688 = pneg %p5687
    $region50: #{double_conv_forward.4} parent=5 // pred_check_branch
      %5690 = sbr.rel (%p5688) target = $region52
    $region51: #{double_conv_forward.4} parent=5 // pred_region
      %s5691 = ssub.s32 %s13, 2
      // Predicated region
      $region53: #{double_conv_forward.4} parent=51 // pred_check
        %p5692 = pneg %p131
      $region54: #{double_conv_forward.4} parent=51 // pred_check_branch
        %5694 = sbr.rel (%p5692) target = $region56
      $region55: #{double_conv_forward.4} parent=51 // pred_region
        %p5695 = scmp.lt.s32.totalorder %s19, 1
        %s5696 = scalar_select %p5695, %s19, 1
        %s5697 = smul.addr %s5696, 32
        %s5698 = smul.addr %s5697, 4
        %s5699 = scalar_lea.vmem %s4, %s5698
      $region56: #{double_conv_forward.4} parent=51 // pred_fallthru
        _
      // Predicated region
      $region57: #{double_conv_forward.4} parent=51 // pred_check
        %p5700 = pneg %p157
      $region58: #{double_conv_forward.4} parent=51 // pred_check_branch
        %5702 = sbr.rel (%p5700) target = $region60
      $region59: #{double_conv_forward.4} parent=51 // pred_region
        %p5703 = scmp.lt.s32.totalorder %s19, 1
        %s5704 = scalar_select %p5703, %s19, 1
        %s5705 = scalar_lea.vmem %s5, %s5704
      $region60: #{double_conv_forward.4} parent=51 // pred_fallthru
        _
      // Predicated region
      $region61: #{double_conv_forward.4} parent=51 // pred_check
        %p5706 = pneg %p183
      $region62: #{double_conv_forward.4} parent=51 // pred_check_branch
        %5708 = sbr.rel (%p5706) target = $region64
      $region63: #{double_conv_forward.4} parent=51 // pred_region
        %p5709 = scmp.lt.s32.totalorder %s19, 1
        %s5710 = scalar_select %p5709, %s19, 1
        %s5711 = scalar_lea.vmem %s6, %s5710
      $region64: #{double_conv_forward.4} parent=51 // pred_fallthru
        _
    $region52: #{double_conv_forward.4} parent=5 // pred_fallthru
      _
  $region6: #{double_conv_forward.4} parent=0 // loop_footer
    %s17 = sadd.s32 1, %s13
  $region7: #{double_conv_forward.4} parent=0 // loop_footer_branch
    %12 = sbr.rel target = $region3
  $region8: #{double_conv_forward.4} parent=0 // loop_exit
    _

</llo_original>
